<compile_context>
chip_gen: v7x
topology: tpu7x:2x2x1
jax: 0.10.0
libtpu: 0.0.40
codegen_flags: <defaults>
</compile_context>

<pallas_src>
import functools

import jax
import jax.numpy as jnp
from jax.experimental import pallas as pl
from jax.experimental.pallas import tpu as pltpu

HIDDEN = 128                           # hidden_size hard-coded in the torch module
_ATTN_TEMP_BYTES = 2 * 1024 * 1024     # bound for ONE (Lo, lc_tile, D) tanh temp (v5e-safe)
_GRU_TT_MAX = 32                       # max timesteps unrolled per recurrence grid step
_GRU_GX_BLOCK_BYTES = 2 * 1024 * 1024  # bound for one (TT, Bp, 3H) gate block
_PAD_Z = 1e4                           # added to the z-gate at padded steps -> sigmoid==1
                                       #   -> h_new == h exactly (no-op timestep)


def _round_up(x, m):
    return ((x + m - 1) // m) * m


def _vmem_capacity_bytes():
    try:
        return int(pltpu.get_tpu_info().vmem_capacity_bytes)
    except Exception:
        return 64 * 1024 * 1024


# Bigger linear tiles on v5e/v6e (128 MiB VMEM); conservative on v7x (64 MiB).
_TM_TARGET = 512 if _vmem_capacity_bytes() >= 128 * 1024 * 1024 else 256


def _pick_tile(size, target, align):
    """Largest tile <= target (multiple of `align`) dividing round_up(size, align)."""
    padded = _round_up(size, align)
    t = min(_round_up(min(target, padded), align), padded)
    while padded % t:
        t -= align
    return t, padded


# ----------------------------------------------------------------------------
# Tiled dense projection:  y = a @ w + bias   (bf16 operands, f32 accumulate)
# ----------------------------------------------------------------------------
def _linear_kernel(a_ref, b_ref, bias_ref, o_ref):
    o_ref[...] = (jnp.dot(a_ref[...], b_ref[...],
                          preferred_element_type=jnp.float32)
                  + bias_ref[...])


def pallas_linear(a, w, bias=None):
    """(M, K) @ (K, N) + bias -> (M, N) f32, tiled over M and N (lane-dense N)."""
    M, K = a.shape
    K2, N = w.shape
    assert K == K2
    if bias is None:
        bias = jnp.zeros((1, N), jnp.float32)
    else:
        bias = jnp.asarray(bias, jnp.float32).reshape(1, N)

    tm, Mp = _pick_tile(M, _TM_TARGET, 8)   # full sublanes
    tn, Np = _pick_tile(N, 512, 128)        # lane-dense output stores

    a = a.astype(jnp.bfloat16)
    w = w.astype(jnp.bfloat16)
    if Mp != M:
        a = jnp.pad(a, ((0, Mp - M), (0, 0)))
    if Np != N:
        w = jnp.pad(w, ((0, 0), (0, Np - N)))
        bias = jnp.pad(bias, ((0, 0), (0, Np - N)))

    out = pl.pallas_call(
        _linear_kernel,
        out_shape=jax.ShapeDtypeStruct((Mp, Np), jnp.float32),
        grid=(Mp // tm, Np // tn),
        in_specs=[pl.BlockSpec((tm, K), lambda i, j: (i, 0)),
                  pl.BlockSpec((K, tn), lambda i, j: (0, j)),
                  pl.BlockSpec((1, tn), lambda i, j: (0, j))],
        out_specs=pl.BlockSpec((tm, tn), lambda i, j: (i, j)),
        compiler_params=pltpu.CompilerParams(
            dimension_semantics=("parallel", "parallel")),
    )(a, w, bias)
    if Mp != M or Np != N:
        out = out[:M, :N]
    return out


# ----------------------------------------------------------------------------
# Fused bidirectional GRU recurrence: grid = (direction, time_block)
# TT timesteps are processed (fully unrolled) per grid step.
# ----------------------------------------------------------------------------
def _gru_chunk_kernel(gx_ref, whhT_ref, bhh_ref, out_ref, h_ref):
    d = pl.program_id(0)       # 0 = forward, 1 = backward
    tb = pl.program_id(1)      # time-block index (backward visits blocks reversed via index_map)

    @pl.when(tb == 0)
    def _():
        h_ref[...] = jnp.zeros_like(h_ref)

    TT = gx_ref.shape[0]
    H = h_ref.shape[-1]
    whhT = whhT_ref[...]                       # (H, 3H) bf16, loaded once per block
    bhh = bhh_ref[...]                         # (1, 3H) f32

    for s in range(TT):                        # fully unrolled, TT <= _GRU_TT_MAX
        # forward processes local index s; backward processes local index TT-1-s
        idx = s + d * (TT - 1 - 2 * s)
        gx = gx_ref[idx]                       # (Bp, 3H) = W_ih x + b_ih (+ pad no-op bias)
        h = h_ref[...]                         # (Bp, H)
        hg = jnp.dot(h.astype(jnp.bfloat16), whhT,
                     preferred_element_type=jnp.float32) + bhh
        r = jax.nn.sigmoid(gx[:, :H] + hg[:, :H])
        z = jax.nn.sigmoid(gx[:, H:2 * H] + hg[:, H:2 * H])
        n = jnp.tanh(gx[:, 2 * H:] + r * hg[:, 2 * H:])
        h_new = (1.0 - z) * n + z * h          # z==1 at padded steps -> h_new == h
        h_ref[...] = h_new
        out_ref[idx] = h_new


def _hidden_weights(p):
    H = HIDDEN
    whh = jnp.stack([p['w_hh_f'].T, p['w_hh_b'].T]).astype(jnp.bfloat16)    # (2, H, 3H)
    bhh = jnp.stack([p['b_hh_f'].reshape(1, 3 * H),
                     p['b_hh_b'].reshape(1, 3 * H)]).astype(jnp.float32)    # (2, 1, 3H)
    return whh, bhh


def bigru_multi(x_list, w_ih_cat, b_ih_cat, whh_stack, bhh_stack):
    """Run ONE bidirectional GRU over several batches of sequences (shared
    weights, possibly different lengths) in a single fused recurrence call.

    x_list:     list of (rows_i, T_i, In) f32
    w_ih_cat:   (In, 6H)  [fwd r,z,n | bwd r,z,n] input-gate weights (transposed)
    b_ih_cat:   (6H,)
    whh_stack:  (2, H, 3H) bf16 hidden-gate weights (transposed), per direction
    bhh_stack:  (2, 1, 3H) f32
    Returns list of (rows_i, T_i, 2H) f32 outputs (forward | backward concat).
    """
    H = HIDDEN
    In = int(x_list[0].shape[-1])
    rows_list = [int(x.shape[0]) for x in x_list]
    T_list = [int(x.shape[1]) for x in x_list]
    T_max = max(T_list)
    rows_tot = sum(rows_list)
    Bp = _round_up(rows_tot, 8)

    # Timesteps per grid step: as large as the VMEM budget / cap allow, then
    # balanced so time padding is minimal.
    tt0 = max(1, min(T_max, _GRU_TT_MAX,
                     _GRU_GX_BLOCK_BYTES // max(1, Bp * 3 * H * 4)))
    nb = -(-T_max // tt0)
    TT = -(-T_max // nb)
    T_pad = TT * nb

    # Merged time-major input (transpose the NARROW input, not the wide gates).
    xs = []
    for x in x_list:
        T = x.shape[1]
        if T != T_pad:
            x = jnp.pad(x, ((0, 0), (0, T_pad - T), (0, 0)))
        xs.append(x)
    xm = jnp.concatenate(xs, axis=0)                            # (rows_tot, T_pad, In)
    if Bp != rows_tot:
        xm = jnp.pad(xm, ((0, Bp - rows_tot), (0, 0), (0, 0)))
    xm = xm.transpose(1, 0, 2)                                  # (T_pad, Bp, In)

    # Input-gate activations for BOTH directions in one projection.
    gx = pallas_linear(xm.reshape(T_pad * Bp, In), w_ih_cat, b_ih_cat)
    gx = gx.reshape(T_pad, Bp, 6 * H)

    # Per-(row, t) no-op padding: push update gate z -> 1 wherever t >= the
    # row's real length, so padded timesteps leave the hidden state untouched
    # (this also makes the backward direction start at each row's real end).
    if min(T_list) < T_pad:
        lens_parts = [jnp.full((r,), t, jnp.int32)
                      for r, t in zip(rows_list, T_list)]
        if Bp != rows_tot:
            lens_parts.append(jnp.zeros((Bp - rows_tot,), jnp.int32))
        lens = jnp.concatenate(lens_parts)                      # (Bp,)
        pad_mask = (jnp.arange(T_pad, dtype=jnp.int32)[:, None]
                    >= lens[None, :])                           # (T_pad, Bp)
        zpat = jnp.zeros((6 * H,), jnp.float32)
        zpat = zpat.at[H:2 * H].set(_PAD_Z).at[4 * H:5 * H].set(_PAD_Z)
        gx = gx + pad_mask[:, :, None].astype(jnp.float32) * zpat

    def blk_map(d, tb):
        # forward reads/writes time-block tb; backward reads/writes nb-1-tb.
        return (tb + d * (nb - 1 - 2 * tb), 0, d)

    out = pl.pallas_call(
        _gru_chunk_kernel,
        out_shape=jax.ShapeDtypeStruct((T_pad, Bp, 2 * H), jnp.float32),
        grid=(2, nb),
        in_specs=[pl.BlockSpec((TT, Bp, 3 * H), blk_map),
                  pl.BlockSpec((None, H, 3 * H), lambda d, tb: (d, 0, 0)),
                  pl.BlockSpec((None, 1, 3 * H), lambda d, tb: (d, 0, 0))],
        out_specs=pl.BlockSpec((TT, Bp, H), blk_map),
        scratch_shapes=[pltpu.VMEM((Bp, H), jnp.float32)],
        compiler_params=pltpu.CompilerParams(
            dimension_semantics=("parallel", "arbitrary")),
    )(gx, whh_stack, bhh_stack)

    out = out.transpose(1, 0, 2)                                # (Bp, T_pad, 2H)
    res, off = [], 0
    for rows, T in zip(rows_list, T_list):
        res.append(out[off:off + rows, :T])
        off += rows
    return res


def _encoder_gate_weights(p):
    w = jnp.concatenate([p['w_ih_f'].T, p['w_ih_b'].T], axis=1)    # (In, 6H)
    b = jnp.concatenate([p['b_ih_f'], p['b_ih_b']])                # (6H,)
    whh, bhh = _hidden_weights(p)
    return w, b, whh, bhh


def _folded_attention_gate_weights(p):
    """Fold cat(u, a, u*a, u-a) @ W_ih^T into cat(u, a, u*a) @ W_fold."""
    H = HIDDEN
    D = 2 * H

    def fold(w):                                                  # w: (3H, 4D)
        w1, w2, w3, w4 = w[:, :D], w[:, D:2 * D], w[:, 2 * D:3 * D], w[:, 3 * D:]
        return jnp.concatenate([w1 + w4, w2 - w4, w3], axis=1).T  # (3D, 3H)

    w = jnp.concatenate([fold(p['w_ih_f']), fold(p['w_ih_b'])], axis=1)  # (3D, 6H)
    b = jnp.concatenate([p['b_ih_f'], p['b_ih_b']])
    whh, bhh = _hidden_weights(p)
    return w, b, whh, bhh


# ----------------------------------------------------------------------------
# Batched bi-directional additive attention (one call for all batch x options)
# ----------------------------------------------------------------------------
def _attention_kernel(q_ref, k_ref, w_ref, oo_ref, co_ref, ac_ref, ao_ref,
                      e_ref, *, lc_tile, n_tiles, lc_real):
    q = q_ref[...]             # (Lo, D)  f32  option query
    w = w_ref[...]             # (1, D)   f32  = v^T @ energy_W  (fold is exact:
                               #   v . (W @ tanh(x)) == (v^T W) . tanh(x))

    # energies e[i, j] = sum_d w_d * tanh(q[i,d] + k[j,d]); filled into a VMEM
    # scratch in lane-aligned Lc tiles so only ONE rank-3 tanh temp is live.
    def fill(j0):
        k = k_ref[pl.ds(j0, lc_tile), :]                    # (lc_tile, D)
        t = jnp.tanh(q[:, None, :] + k[None, :, :])         # (Lo, lc_tile, D)
        e_ref[:, pl.ds(j0, lc_tile)] = jnp.sum(t * w, axis=-1)

    if n_tiles == 1:
        fill(0)
    else:
        def body(jt, carry):
            fill(pl.multiple_of(jt * lc_tile, 128))
            return carry
        jax.lax.fori_loop(0, n_tiles, body, 0)

    e = e_ref[...]                                          # (Lo, Lc_p)

    # softmax over the OPTION axis (rows) -> attention for the context side;
    # contract over the option axis directly (no explicit transpose of s0).
    p0 = jnp.exp(e - jnp.max(e, axis=0, keepdims=True))
    s0 = p0 * pl.reciprocal(jnp.sum(p0, axis=0, keepdims=True), approx=True)
    ac_ref[...] = jax.lax.dot_general(
        s0.astype(jnp.bfloat16), oo_ref[...],
        dimension_numbers=(((0,), (0,)), ((), ())),
        preferred_element_type=jnp.float32)                 # (Lc_p, D)

    # softmax over the CONTEXT axis (cols) -> attention for the option side;
    # mask padded context columns (only present when Lc was padded for tiling).
    if e.shape[1] != lc_real:
        col = jax.lax.broadcasted_iota(jnp.int32, e.shape, 1)
        e = jnp.where(col < lc_real, e, -1e30)
    p1 = jnp.exp(e - jnp.max(e, axis=1, keepdims=True))
    s1 = p1 * pl.reciprocal(jnp.sum(p1, axis=1, keepdims=True), approx=True)
    ao_ref[...] = jnp.dot(s1.astype(jnp.bfloat16), co_ref[...],
                          preferred_element_type=jnp.float32)   # (Lo, D)


def pallas_biattention(option_query, context_key, w_eff, option_outs,
                       context_outs):
    """option_*: (B, n_opts, Lo, D); context_*: (B, Lc, D); w_eff: (D,)."""
    B, n_opts, Lo, D = option_query.shape
    Lc = context_key.shape[1]

    one_shot_cap = max(1, _ATTN_TEMP_BYTES // max(1, Lo * D * 4))
    if Lc <= one_shot_cap:
        lc_tile, Lc_p, n_tiles = Lc, Lc, 1
    else:
        lc_tile = max(128, (one_shot_cap // 128) * 128)
        Lc_p = _round_up(Lc, lc_tile)
        n_tiles = Lc_p // lc_tile

    ck = context_key.astype(jnp.float32)
    co = context_outs.astype(jnp.bfloat16)
    if Lc_p != Lc:
        ck = jnp.pad(ck, ((0, 0), (0, Lc_p - Lc), (0, 0)))
        co = jnp.pad(co, ((0, 0), (0, Lc_p - Lc), (0, 0)))

    kernel = functools.partial(_attention_kernel, lc_tile=lc_tile,
                               n_tiles=n_tiles, lc_real=Lc)
    ac, ao = pl.pallas_call(
        kernel,
        out_shape=(jax.ShapeDtypeStruct((B, n_opts, Lc_p, D), jnp.float32),
                   jax.ShapeDtypeStruct((B, n_opts, Lo, D), jnp.float32)),
        grid=(B, n_opts),
        in_specs=[pl.BlockSpec((None, None, Lo, D), lambda b, o: (b, o, 0, 0)),
                  pl.BlockSpec((None, Lc_p, D), lambda b, o: (b, 0, 0)),
                  pl.BlockSpec((1, D), lambda b, o: (0, 0)),
                  pl.BlockSpec((None, None, Lo, D), lambda b, o: (b, o, 0, 0)),
                  pl.BlockSpec((None, Lc_p, D), lambda b, o: (b, 0, 0))],
        out_specs=(pl.BlockSpec((None, None, Lc_p, D), lambda b, o: (b, o, 0, 0)),
                   pl.BlockSpec((None, None, Lo, D), lambda b, o: (b, o, 0, 0))),
        scratch_shapes=[pltpu.VMEM((Lo, Lc_p), jnp.float32)],
        compiler_params=pltpu.CompilerParams(
            dimension_semantics=("parallel", "parallel")),
    )(option_query.astype(jnp.float32), ck,
      w_eff.reshape(1, D).astype(jnp.float32),
      option_outs.astype(jnp.bfloat16), co)
    if Lc_p != Lc:
        ac = ac[:, :, :Lc]
    return ac, ao


# ----------------------------------------------------------------------------
# Parameters + model glue
# ----------------------------------------------------------------------------
def init_params(key, dim_embeddings):
    H = HIDDEN

    def nrm(k, shape, scale=0.1):
        return scale * jax.random.normal(k, shape, dtype=jnp.float32)

    keys = iter(jax.random.split(key, 32))
    p = {}
    p['rnn'] = {
        'w_ih_f': nrm(next(keys), (3 * H, dim_embeddings)),
        'w_hh_f': nrm(next(keys), (3 * H, H)),
        'b_ih_f': nrm(next(keys), (3 * H,)),
        'b_hh_f': nrm(next(keys), (3 * H,)),
        'w_ih_b': nrm(next(keys), (3 * H, dim_embeddings)),
        'w_hh_b': nrm(next(keys), (3 * H, H)),
        'b_ih_b': nrm(next(keys), (3 * H,)),
        'b_hh_b': nrm(next(keys), (3 * H,)),
    }
    p['key_W'] = nrm(next(keys), (2 * H, 2 * H))
    p['query_W'] = nrm(next(keys), (2 * H, 2 * H))
    p['energy_W'] = nrm(next(keys), (2 * H, 2 * H))
    p['v'] = nrm(next(keys), (2 * H,), scale=1.0 / jnp.sqrt(2.0 * H))
    p['attention_rnn'] = {
        'w_ih_f': nrm(next(keys), (3 * H, 8 * H)),
        'w_hh_f': nrm(next(keys), (3 * H, H)),
        'b_ih_f': nrm(next(keys), (3 * H,)),
        'b_hh_f': nrm(next(keys), (3 * H,)),
        'w_ih_b': nrm(next(keys), (3 * H, 8 * H)),
        'w_hh_b': nrm(next(keys), (3 * H, H)),
        'b_ih_b': nrm(next(keys), (3 * H,)),
        'b_hh_b': nrm(next(keys), (3 * H,)),
    }
    p['sim_W'] = nrm(next(keys), (1, 4 * H))
    return p


def forward(params, context, context_lens, options, option_lens):
    # context_lens / option_lens are accepted but unused, exactly as in the
    # reference torch forward (no masking / packing is done there).
    del context_lens, option_lens
    B, Tc, E = context.shape
    n_opts, To = options.shape[1], options.shape[2]
    H = HIDDEN
    D = 2 * H

    # --- encoder: context + all options in ONE fused recurrence call --------
    opts = options.reshape(B * n_opts, To, E)
    w_ih, b_ih, whh, bhh = _encoder_gate_weights(params['rnn'])
    context_outs, option_outs = bigru_multi([context, opts], w_ih, b_ih, whh, bhh)
    option_outs4 = option_outs.reshape(B, n_opts, To, D)

    context_key = pallas_linear(context_outs.reshape(B * Tc, D),
                                params['key_W'].T).reshape(B, Tc, D)
    option_query = pallas_linear(option_outs.reshape(B * n_opts * To, D),
                                 params['query_W'].T).reshape(B, n_opts, To, D)

    # v . (energy_W @ tanh(x)) == (v^T energy_W) . tanh(x)  (parameter-only fold)
    w_eff = jnp.dot(params['v'], params['energy_W'])                    # (D,)

    attention_context, attention_option = pallas_biattention(
        option_query, context_key, w_eff, option_outs4, context_outs)
    # attention_context: (B, n, Tc, D); attention_option: (B, n, To, D)

    # --- attention RNN: folded 4-way concat, both passes in ONE call --------
    wf, bf, whh_a, bhh_a = _folded_attention_gate_weights(params['attention_rnn'])
    ctx_b = jnp.broadcast_to(context_outs[:, None], (B, n_opts, Tc, D))
    ctx_feat = jnp.concatenate(
        [ctx_b, attention_context, ctx_b * attention_context],
        axis=-1).reshape(B * n_opts, Tc, 3 * D)
    opt_feat = jnp.concatenate(
        [option_outs4, attention_option, option_outs4 * attention_option],
        axis=-1).reshape(B * n_opts, To, 3 * D)

    ctx_enc, opt_enc = bigru_multi([ctx_feat, opt_feat], wf, bf, whh_a, bhh_a)

    ctx_max = jnp.max(ctx_enc, axis=1)                                  # (B*n, 2H)
    opt_max = jnp.max(opt_enc, axis=1)                                  # (B*n, 2H)

    feats = jnp.concatenate([ctx_max, opt_max], axis=-1)                # (B*n, 4H)
    # N=1 similarity head in plain JAX (launch-overhead-bound as a pallas call).
    logits = jnp.dot(feats, params['sim_W'].T)[:, 0].reshape(B, n_opts)
    return jax.nn.softmax(logits, axis=1)


if __name__ == "__main__":
    key = jax.random.PRNGKey(0)
    B, Tc, To, E, n_opts = 2, 8, 6, 32, 3
    kp, kc, ko = jax.random.split(key, 3)

    params = init_params(kp, E)
    context = jax.random.normal(kc, (B, Tc, E), dtype=jnp.float32)
    options = jax.random.normal(ko, (B, n_opts, To, E), dtype=jnp.float32)
    context_lens = jnp.full((B,), Tc, dtype=jnp.int32)
    option_lens = jnp.full((B, n_opts), To, dtype=jnp.int32)

    fwd = jax.jit(forward)
    out = jax.block_until_ready(
        fwd(params, context, context_lens, options, option_lens))

    assert out.shape == (B, n_opts)
    assert bool(jnp.all(jnp.isfinite(out)))
    assert bool(jnp.allclose(jnp.sum(out, axis=1), 1.0, atol=1e-5))
    print("KERNEL_OK")
</pallas_src>

<mosaic_0001>
module attributes {stable_mosaic.version = 11 : i64} {
  func.func @_linear_kernel(%arg0: i32, %arg1: i32, %arg2: memref<64x32xbf16, #tpu.memory_space<vmem>>, %arg3: memref<32x384xbf16, #tpu.memory_space<vmem>>, %arg4: memref<1x384xf32, #tpu.memory_space<vmem>>, %arg5: memref<64x384xf32, #tpu.memory_space<vmem>>) attributes {dimension_semantics = [#tpu.dimension_semantics<parallel>, #tpu.dimension_semantics<parallel>], iteration_bounds = array<i64: 1, 2>, scalar_prefetch = 0 : i64, scratch_operands = 0 : i64, tpu.core_type = #tpu.core_type<tc>, window_params = [{transform_indices = @transform_0, window_bounds = array<i64: 64, 32>}, {transform_indices = @transform_1, window_bounds = array<i64: 32, 384>}, {transform_indices = @transform_2, window_bounds = array<i64: 1, 384>}, {transform_indices = @transform_3, window_bounds = array<i64: 64, 384>}]} {
    %c0 = arith.constant 0 : index
    %c0_0 = arith.constant 0 : index
    %0 = vector.load %arg2[%c0, %c0_0] : memref<64x32xbf16, #tpu.memory_space<vmem>>, vector<64x32xbf16>
    %c0_1 = arith.constant 0 : index
    %c0_2 = arith.constant 0 : index
    %1 = vector.load %arg3[%c0_1, %c0_2] : memref<32x384xbf16, #tpu.memory_space<vmem>>, vector<32x384xbf16>
    %cst = arith.constant dense<0.000000e+00> : vector<64x384xf32>
    %2 = tpu.matmul %0, %1, %cst {dimension_numbers = #tpu.dot_dimension_numbers<[1], [0], [0], [1], [0, 0, 1, 1], [], []>} : vector<64x32xbf16>, vector<32x384xbf16>, vector<64x384xf32> -> vector<64x384xf32>
    %c0_3 = arith.constant 0 : index
    %c0_4 = arith.constant 0 : index
    %3 = vector.load %arg4[%c0_3, %c0_4] : memref<1x384xf32, #tpu.memory_space<vmem>>, vector<1x384xf32>
    %4 = vector.broadcast %3 : vector<1x384xf32> to vector<64x384xf32>
    %5 = arith.addf %2, %4 : vector<64x384xf32>
    %c0_5 = arith.constant 0 : index
    %c0_6 = arith.constant 0 : index
    %6 = vector.load %arg5[%c0_5, %c0_6] : memref<64x384xf32, #tpu.memory_space<vmem>>, vector<64x384xf32>
    tpu.vector_store %arg5[%c0_5, %c0_6], %5 {strides = array<i32>} : memref<64x384xf32, #tpu.memory_space<vmem>>, vector<64x384xf32>,
    return
  }
  func.func @transform_0(%arg0: i32, %arg1: i32) -> (i32, i32) {
    %c0_i32 = arith.constant 0 : i32
    %c0_i32_0 = arith.constant 0 : i32
    return %arg0, %c0_i32 : i32, i32
  }
  func.func @transform_1(%arg0: i32, %arg1: i32) -> (i32, i32) {
    %c0_i32 = arith.constant 0 : i32
    %c0_i32_0 = arith.constant 0 : i32
    return %c0_i32, %arg1 : i32, i32
  }
  func.func @transform_2(%arg0: i32, %arg1: i32) -> (i32, i32) {
    %c0_i32 = arith.constant 0 : i32
    %c0_i32_0 = arith.constant 0 : i32
    return %c0_i32, %arg1 : i32, i32
  }
  func.func @transform_3(%arg0: i32, %arg1: i32) -> (i32, i32) {
    %c0_i32 = arith.constant 0 : i32
    return %arg0, %arg1 : i32, i32
  }
}

module attributes {stable_mosaic.version = 11 : i64} {
  func.func @_linear_kernel(%arg0: i32, %arg1: i32, %arg2: memref<40x256xbf16, #tpu.memory_space<vmem>>, %arg3: memref<256x256xbf16, #tpu.memory_space<vmem>>, %arg4: memref<1x256xf32, #tpu.memory_space<vmem>>, %arg5: memref<40x256xf32, #tpu.memory_space<vmem>>) attributes {dimension_semantics = [#tpu.dimension_semantics<parallel>, #tpu.dimension_semantics<parallel>], iteration_bounds = array<i64: 1, 1>, scalar_prefetch = 0 : i64, scratch_operands = 0 : i64, tpu.core_type = #tpu.core_type<tc>, window_params = [{transform_indices = @transform_0, window_bounds = array<i64: 40, 256>}, {transform_indices = @transform_1, window_bounds = array<i64: 256, 256>}, {transform_indices = @transform_2, window_bounds = array<i64: 1, 256>}, {transform_indices = @transform_3, window_bounds = array<i64: 40, 256>}]} {
    %c0 = arith.constant 0 : index
    %c0_0 = arith.constant 0 : index
    %0 = vector.load %arg2[%c0, %c0_0] : memref<40x256xbf16, #tpu.memory_space<vmem>>, vector<40x256xbf16>
    %c0_1 = arith.constant 0 : index
    %c0_2 = arith.constant 0 : index
    %1 = vector.load %arg3[%c0_1, %c0_2] : memref<256x256xbf16, #tpu.memory_space<vmem>>, vector<256x256xbf16>
    %cst = arith.constant dense<0.000000e+00> : vector<40x256xf32>
    %2 = tpu.matmul %0, %1, %cst {dimension_numbers = #tpu.dot_dimension_numbers<[1], [0], [0], [1], [0, 0, 1, 1], [], []>} : vector<40x256xbf16>, vector<256x256xbf16>, vector<40x256xf32> -> vector<40x256xf32>
    %c0_3 = arith.constant 0 : index
    %c0_4 = arith.constant 0 : index
    %3 = vector.load %arg4[%c0_3, %c0_4] : memref<1x256xf32, #tpu.memory_space<vmem>>, vector<1x256xf32>
    %4 = vector.broadcast %3 : vector<1x256xf32> to vector<40x256xf32>
    %5 = arith.addf %2, %4 : vector<40x256xf32>
    %c0_5 = arith.constant 0 : index
    %c0_6 = arith.constant 0 : index
    %6 = vector.load %arg5[%c0_5, %c0_6] : memref<40x256xf32, #tpu.memory_space<vmem>>, vector<40x256xf32>
    tpu.vector_store %arg5[%c0_5, %c0_6], %5 {strides = array<i32>} : memref<40x256xf32, #tpu.memory_space<vmem>>, vector<40x256xf32>,
    return
  }
  func.func @transform_0(%arg0: i32, %arg1: i32) -> (i32, i32) {
    %c0_i32 = arith.constant 0 : i32
    %c0_i32_0 = arith.constant 0 : i32
    return %arg0, %c0_i32 : i32, i32
  }
  func.func @transform_1(%arg0: i32, %arg1: i32) -> (i32, i32) {
    %c0_i32 = arith.constant 0 : i32
    %c0_i32_0 = arith.constant 0 : i32
    return %c0_i32, %arg1 : i32, i32
  }
  func.func @transform_2(%arg0: i32, %arg1: i32) -> (i32, i32) {
    %c0_i32 = arith.constant 0 : i32
    %c0_i32_0 = arith.constant 0 : i32
    return %c0_i32, %arg1 : i32, i32
  }
  func.func @transform_3(%arg0: i32, %arg1: i32) -> (i32, i32) {
    %c0_i32 = arith.constant 0 : i32
    return %arg0, %arg1 : i32, i32
  }
}

module attributes {stable_mosaic.version = 11 : i64} {
  func.func @_gru_chunk_kernel(%arg0: i32, %arg1: i32, %arg2: memref<8x8x384xf32, #tpu.memory_space<vmem>>, %arg3: memref<1x128x384xbf16, #tpu.memory_space<vmem>>, %arg4: memref<1x1x384xf32, #tpu.memory_space<vmem>>, %arg5: memref<8x8x128xf32, #tpu.memory_space<vmem>>, %arg6: memref<8x128xf32, #tpu.memory_space<vmem>>) attributes {dimension_semantics = [#tpu.dimension_semantics<parallel>, #tpu.dimension_semantics<arbitrary>], iteration_bounds = array<i64: 2, 1>, scalar_prefetch = 0 : i64, scratch_operands = 1 : i64, tpu.core_type = #tpu.core_type<tc>, window_params = [{transform_indices = @transform_0, window_bounds = array<i64: 8, 8, 384>}, {transform_indices = @transform_1, window_bounds = array<i64: 1, 128, 384>}, {transform_indices = @transform_2, window_bounds = array<i64: 1, 1, 384>}, {transform_indices = @transform_3, window_bounds = array<i64: 8, 8, 128>}]} {
    %c0_i32 = arith.constant 0 : i32
    %0 = arith.cmpi eq, %arg1, %c0_i32 : i32
    %1 = arith.extui %0 : i1 to i32
    %c0_i32_0 = arith.constant 0 : i32
    %2 = arith.cmpi ne, %1, %c0_i32_0 : i32
    scf.if %2 {
      %cst_106 = arith.constant 0.000000e+00 : f32
      %335 = vector.broadcast %cst_106 : f32 to vector<8x128xf32>
      %c0_107 = arith.constant 0 : index
      %c0_108 = arith.constant 0 : index
      %336 = vector.load %arg6[%c0_107, %c0_108] : memref<8x128xf32, #tpu.memory_space<vmem>>, vector<8x128xf32>
      tpu.vector_store %arg6[%c0_107, %c0_108], %335 {strides = array<i32>} : memref<8x128xf32, #tpu.memory_space<vmem>>, vector<8x128xf32>,
    } else {
    }
    %c0 = arith.constant 0 : index
    %c0_1 = arith.constant 0 : index
    %c0_2 = arith.constant 0 : index
    %3 = vector.load %arg3[%c0, %c0_1, %c0_2] : memref<1x128x384xbf16, #tpu.memory_space<vmem>>, vector<1x128x384xbf16>
    %4 = vector.shape_cast %3 : vector<1x128x384xbf16> to vector<128x384xbf16>
    %c0_3 = arith.constant 0 : index
    %c0_4 = arith.constant 0 : index
    %c0_5 = arith.constant 0 : index
    %5 = vector.load %arg4[%c0_3, %c0_4, %c0_5] : memref<1x1x384xf32, #tpu.memory_space<vmem>>, vector<1x1x384xf32>
    %6 = vector.shape_cast %5 : vector<1x1x384xf32> to vector<1x384xf32>
    %c7_i32 = arith.constant 7 : i32
    %7 = arith.muli %arg0, %c7_i32 : i32
    %c0_i32_6 = arith.constant 0 : i32
    %8 = arith.addi %c0_i32_6, %7 : i32
    %9 = arith.index_cast %8 : i32 to index
    %c0_7 = arith.constant 0 : index
    %c0_8 = arith.constant 0 : index
    %10 = vector.load %arg2[%9, %c0_7, %c0_8] : memref<8x8x384xf32, #tpu.memory_space<vmem>>, vector<1x8x384xf32>
    %11 = vector.shape_cast %10 : vector<1x8x384xf32> to vector<8x384xf32>
    %c0_9 = arith.constant 0 : index
    %c0_10 = arith.constant 0 : index
    %12 = vector.load %arg6[%c0_9, %c0_10] : memref<8x128xf32, #tpu.memory_space<vmem>>, vector<8x128xf32>
    %13 = arith.truncf %12 : vector<8x128xf32> to vector<8x128xbf16>
    %cst = arith.constant dense<0.000000e+00> : vector<8x384xf32>
    %14 = tpu.matmul %13, %4, %cst {dimension_numbers = #tpu.dot_dimension_numbers<[1], [0], [0], [1], [0, 0, 1, 1], [], []>} : vector<8x128xbf16>, vector<128x384xbf16>, vector<8x384xf32> -> vector<8x384xf32>
    %15 = vector.broadcast %6 : vector<1x384xf32> to vector<8x384xf32>
    %16 = arith.addf %14, %15 : vector<8x384xf32>
    %17 = vector.extract_strided_slice %11 {offsets = [0, 0], sizes = [8, 128], strides = [1, 1]} : vector<8x384xf32> to vector<8x128xf32>
    %18 = vector.extract_strided_slice %16 {offsets = [0, 0], sizes = [8, 128], strides = [1, 1]} : vector<8x384xf32> to vector<8x128xf32>
    %19 = arith.addf %17, %18 : vector<8x128xf32>
    %20 = arith.negf %19 : vector<8x128xf32>
    %21 = math.exp %20 : vector<8x128xf32>
    %cst_11 = arith.constant 1.000000e+00 : f32
    %22 = vector.broadcast %cst_11 : f32 to vector<8x128xf32>
    %23 = arith.addf %22, %21 : vector<8x128xf32>
    %24 = arith.divf %22, %23 : vector<8x128xf32>
    %25 = vector.extract_strided_slice %11 {offsets = [0, 128], sizes = [8, 128], strides = [1, 1]} : vector<8x384xf32> to vector<8x128xf32>
    %26 = vector.extract_strided_slice %16 {offsets = [0, 128], sizes = [8, 128], strides = [1, 1]} : vector<8x384xf32> to vector<8x128xf32>
    %27 = arith.addf %25, %26 : vector<8x128xf32>
    %28 = arith.negf %27 : vector<8x128xf32>
    %29 = math.exp %28 : vector<8x128xf32>
    %cst_12 = arith.constant 1.000000e+00 : f32
    %30 = vector.broadcast %cst_12 : f32 to vector<8x128xf32>
    %31 = arith.addf %30, %29 : vector<8x128xf32>
    %32 = arith.divf %30, %31 : vector<8x128xf32>
    %33 = vector.extract_strided_slice %11 {offsets = [0, 256], sizes = [8, 128], strides = [1, 1]} : vector<8x384xf32> to vector<8x128xf32>
    %34 = vector.extract_strided_slice %16 {offsets = [0, 256], sizes = [8, 128], strides = [1, 1]} : vector<8x384xf32> to vector<8x128xf32>
    %35 = arith.mulf %24, %34 : vector<8x128xf32>
    %36 = arith.addf %33, %35 : vector<8x128xf32>
    %37 = math.tanh %36 : vector<8x128xf32>
    %cst_13 = arith.constant 1.000000e+00 : f32
    %38 = vector.broadcast %cst_13 : f32 to vector<8x128xf32>
    %39 = arith.subf %38, %32 : vector<8x128xf32>
    %40 = arith.mulf %39, %37 : vector<8x128xf32>
    %41 = arith.mulf %32, %12 : vector<8x128xf32>
    %42 = arith.addf %40, %41 : vector<8x128xf32>
    %c0_14 = arith.constant 0 : index
    %c0_15 = arith.constant 0 : index
    %43 = vector.load %arg6[%c0_14, %c0_15] : memref<8x128xf32, #tpu.memory_space<vmem>>, vector<8x128xf32>
    tpu.vector_store %arg6[%c0_14, %c0_15], %42 {strides = array<i32>} : memref<8x128xf32, #tpu.memory_space<vmem>>, vector<8x128xf32>,
    %44 = arith.index_cast %8 : i32 to index
    %c0_16 = arith.constant 0 : index
    %c0_17 = arith.constant 0 : index
    %45 = vector.load %arg5[%44, %c0_16, %c0_17] : memref<8x8x128xf32, #tpu.memory_space<vmem>>, vector<1x8x128xf32>
    %46 = vector.shape_cast %45 : vector<1x8x128xf32> to vector<8x128xf32>
    %47 = vector.shape_cast %42 : vector<8x128xf32> to vector<1x8x128xf32>
    tpu.vector_store %arg5[%44, %c0_16, %c0_17], %47 {strides = array<i32>} : memref<8x8x128xf32, #tpu.memory_space<vmem>>, vector<1x8x128xf32>,
    %c5_i32 = arith.constant 5 : i32
    %48 = arith.muli %arg0, %c5_i32 : i32
    %c1_i32 = arith.constant 1 : i32
    %49 = arith.addi %c1_i32, %48 : i32
    %50 = arith.index_cast %49 : i32 to index
    %c0_18 = arith.constant 0 : index
    %c0_19 = arith.constant 0 : index
    %51 = vector.load %arg2[%50, %c0_18, %c0_19] : memref<8x8x384xf32, #tpu.memory_space<vmem>>, vector<1x8x384xf32>
    %52 = vector.shape_cast %51 : vector<1x8x384xf32> to vector<8x384xf32>
    %c0_20 = arith.constant 0 : index
    %c0_21 = arith.constant 0 : index
    %53 = vector.load %arg6[%c0_20, %c0_21] : memref<8x128xf32, #tpu.memory_space<vmem>>, vector<8x128xf32>
    %54 = arith.truncf %53 : vector<8x128xf32> to vector<8x128xbf16>
    %cst_22 = arith.constant dense<0.000000e+00> : vector<8x384xf32>
    %55 = tpu.matmul %54, %4, %cst_22 {dimension_numbers = #tpu.dot_dimension_numbers<[1], [0], [0], [1], [0, 0, 1, 1], [], []>} : vector<8x128xbf16>, vector<128x384xbf16>, vector<8x384xf32> -> vector<8x384xf32>
    %56 = vector.broadcast %6 : vector<1x384xf32> to vector<8x384xf32>
    %57 = arith.addf %55, %56 : vector<8x384xf32>
    %58 = vector.extract_strided_slice %52 {offsets = [0, 0], sizes = [8, 128], strides = [1, 1]} : vector<8x384xf32> to vector<8x128xf32>
    %59 = vector.extract_strided_slice %57 {offsets = [0, 0], sizes = [8, 128], strides = [1, 1]} : vector<8x384xf32> to vector<8x128xf32>
    %60 = arith.addf %58, %59 : vector<8x128xf32>
    %61 = arith.negf %60 : vector<8x128xf32>
    %62 = math.exp %61 : vector<8x128xf32>
    %cst_23 = arith.constant 1.000000e+00 : f32
    %63 = vector.broadcast %cst_23 : f32 to vector<8x128xf32>
    %64 = arith.addf %63, %62 : vector<8x128xf32>
    %65 = arith.divf %63, %64 : vector<8x128xf32>
    %66 = vector.extract_strided_slice %52 {offsets = [0, 128], sizes = [8, 128], strides = [1, 1]} : vector<8x384xf32> to vector<8x128xf32>
    %67 = vector.extract_strided_slice %57 {offsets = [0, 128], sizes = [8, 128], strides = [1, 1]} : vector<8x384xf32> to vector<8x128xf32>
    %68 = arith.addf %66, %67 : vector<8x128xf32>
    %69 = arith.negf %68 : vector<8x128xf32>
    %70 = math.exp %69 : vector<8x128xf32>
    %cst_24 = arith.constant 1.000000e+00 : f32
    %71 = vector.broadcast %cst_24 : f32 to vector<8x128xf32>
    %72 = arith.addf %71, %70 : vector<8x128xf32>
    %73 = arith.divf %71, %72 : vector<8x128xf32>
    %74 = vector.extract_strided_slice %52 {offsets = [0, 256], sizes = [8, 128], strides = [1, 1]} : vector<8x384xf32> to vector<8x128xf32>
    %75 = vector.extract_strided_slice %57 {offsets = [0, 256], sizes = [8, 128], strides = [1, 1]} : vector<8x384xf32> to vector<8x128xf32>
    %76 = arith.mulf %65, %75 : vector<8x128xf32>
    %77 = arith.addf %74, %76 : vector<8x128xf32>
    %78 = math.tanh %77 : vector<8x128xf32>
    %cst_25 = arith.constant 1.000000e+00 : f32
    %79 = vector.broadcast %cst_25 : f32 to vector<8x128xf32>
    %80 = arith.subf %79, %73 : vector<8x128xf32>
    %81 = arith.mulf %80, %78 : vector<8x128xf32>
    %82 = arith.mulf %73, %53 : vector<8x128xf32>
    %83 = arith.addf %81, %82 : vector<8x128xf32>
    %c0_26 = arith.constant 0 : index
    %c0_27 = arith.constant 0 : index
    %84 = vector.load %arg6[%c0_26, %c0_27] : memref<8x128xf32, #tpu.memory_space<vmem>>, vector<8x128xf32>
    tpu.vector_store %arg6[%c0_26, %c0_27], %83 {strides = array<i32>} : memref<8x128xf32, #tpu.memory_space<vmem>>, vector<8x128xf32>,
    %85 = arith.index_cast %49 : i32 to index
    %c0_28 = arith.constant 0 : index
    %c0_29 = arith.constant 0 : index
    %86 = vector.load %arg5[%85, %c0_28, %c0_29] : memref<8x8x128xf32, #tpu.memory_space<vmem>>, vector<1x8x128xf32>
    %87 = vector.shape_cast %86 : vector<1x8x128xf32> to vector<8x128xf32>
    %88 = vector.shape_cast %83 : vector<8x128xf32> to vector<1x8x128xf32>
    tpu.vector_store %arg5[%85, %c0_28, %c0_29], %88 {strides = array<i32>} : memref<8x8x128xf32, #tpu.memory_space<vmem>>, vector<1x8x128xf32>,
    %c3_i32 = arith.constant 3 : i32
    %89 = arith.muli %arg0, %c3_i32 : i32
    %c2_i32 = arith.constant 2 : i32
    %90 = arith.addi %c2_i32, %89 : i32
    %91 = arith.index_cast %90 : i32 to index
    %c0_30 = arith.constant 0 : index
    %c0_31 = arith.constant 0 : index
    %92 = vector.load %arg2[%91, %c0_30, %c0_31] : memref<8x8x384xf32, #tpu.memory_space<vmem>>, vector<1x8x384xf32>
    %93 = vector.shape_cast %92 : vector<1x8x384xf32> to vector<8x384xf32>
    %c0_32 = arith.constant 0 : index
    %c0_33 = arith.constant 0 : index
    %94 = vector.load %arg6[%c0_32, %c0_33] : memref<8x128xf32, #tpu.memory_space<vmem>>, vector<8x128xf32>
    %95 = arith.truncf %94 : vector<8x128xf32> to vector<8x128xbf16>
    %cst_34 = arith.constant dense<0.000000e+00> : vector<8x384xf32>
    %96 = tpu.matmul %95, %4, %cst_34 {dimension_numbers = #tpu.dot_dimension_numbers<[1], [0], [0], [1], [0, 0, 1, 1], [], []>} : vector<8x128xbf16>, vector<128x384xbf16>, vector<8x384xf32> -> vector<8x384xf32>
    %97 = vector.broadcast %6 : vector<1x384xf32> to vector<8x384xf32>
    %98 = arith.addf %96, %97 : vector<8x384xf32>
    %99 = vector.extract_strided_slice %93 {offsets = [0, 0], sizes = [8, 128], strides = [1, 1]} : vector<8x384xf32> to vector<8x128xf32>
    %100 = vector.extract_strided_slice %98 {offsets = [0, 0], sizes = [8, 128], strides = [1, 1]} : vector<8x384xf32> to vector<8x128xf32>
    %101 = arith.addf %99, %100 : vector<8x128xf32>
    %102 = arith.negf %101 : vector<8x128xf32>
    %103 = math.exp %102 : vector<8x128xf32>
    %cst_35 = arith.constant 1.000000e+00 : f32
    %104 = vector.broadcast %cst_35 : f32 to vector<8x128xf32>
    %105 = arith.addf %104, %103 : vector<8x128xf32>
    %106 = arith.divf %104, %105 : vector<8x128xf32>
    %107 = vector.extract_strided_slice %93 {offsets = [0, 128], sizes = [8, 128], strides = [1, 1]} : vector<8x384xf32> to vector<8x128xf32>
    %108 = vector.extract_strided_slice %98 {offsets = [0, 128], sizes = [8, 128], strides = [1, 1]} : vector<8x384xf32> to vector<8x128xf32>
    %109 = arith.addf %107, %108 : vector<8x128xf32>
    %110 = arith.negf %109 : vector<8x128xf32>
    %111 = math.exp %110 : vector<8x128xf32>
    %cst_36 = arith.constant 1.000000e+00 : f32
    %112 = vector.broadcast %cst_36 : f32 to vector<8x128xf32>
    %113 = arith.addf %112, %111 : vector<8x128xf32>
    %114 = arith.divf %112, %113 : vector<8x128xf32>
    %115 = vector.extract_strided_slice %93 {offsets = [0, 256], sizes = [8, 128], strides = [1, 1]} : vector<8x384xf32> to vector<8x128xf32>
    %116 = vector.extract_strided_slice %98 {offsets = [0, 256], sizes = [8, 128], strides = [1, 1]} : vector<8x384xf32> to vector<8x128xf32>
    %117 = arith.mulf %106, %116 : vector<8x128xf32>
    %118 = arith.addf %115, %117 : vector<8x128xf32>
    %119 = math.tanh %118 : vector<8x128xf32>
    %cst_37 = arith.constant 1.000000e+00 : f32
    %120 = vector.broadcast %cst_37 : f32 to vector<8x128xf32>
    %121 = arith.subf %120, %114 : vector<8x128xf32>
    %122 = arith.mulf %121, %119 : vector<8x128xf32>
    %123 = arith.mulf %114, %94 : vector<8x128xf32>
    %124 = arith.addf %122, %123 : vector<8x128xf32>
    %c0_38 = arith.constant 0 : index
    %c0_39 = arith.constant 0 : index
    %125 = vector.load %arg6[%c0_38, %c0_39] : memref<8x128xf32, #tpu.memory_space<vmem>>, vector<8x128xf32>
    tpu.vector_store %arg6[%c0_38, %c0_39], %124 {strides = array<i32>} : memref<8x128xf32, #tpu.memory_space<vmem>>, vector<8x128xf32>,
    %126 = arith.index_cast %90 : i32 to index
    %c0_40 = arith.constant 0 : index
    %c0_41 = arith.constant 0 : index
    %127 = vector.load %arg5[%126, %c0_40, %c0_41] : memref<8x8x128xf32, #tpu.memory_space<vmem>>, vector<1x8x128xf32>
    %128 = vector.shape_cast %127 : vector<1x8x128xf32> to vector<8x128xf32>
    %129 = vector.shape_cast %124 : vector<8x128xf32> to vector<1x8x128xf32>
    tpu.vector_store %arg5[%126, %c0_40, %c0_41], %129 {strides = array<i32>} : memref<8x8x128xf32, #tpu.memory_space<vmem>>, vector<1x8x128xf32>,
    %c1_i32_42 = arith.constant 1 : i32
    %130 = arith.muli %arg0, %c1_i32_42 : i32
    %c3_i32_43 = arith.constant 3 : i32
    %131 = arith.addi %c3_i32_43, %130 : i32
    %132 = arith.index_cast %131 : i32 to index
    %c0_44 = arith.constant 0 : index
    %c0_45 = arith.constant 0 : index
    %133 = vector.load %arg2[%132, %c0_44, %c0_45] : memref<8x8x384xf32, #tpu.memory_space<vmem>>, vector<1x8x384xf32>
    %134 = vector.shape_cast %133 : vector<1x8x384xf32> to vector<8x384xf32>
    %c0_46 = arith.constant 0 : index
    %c0_47 = arith.constant 0 : index
    %135 = vector.load %arg6[%c0_46, %c0_47] : memref<8x128xf32, #tpu.memory_space<vmem>>, vector<8x128xf32>
    %136 = arith.truncf %135 : vector<8x128xf32> to vector<8x128xbf16>
    %cst_48 = arith.constant dense<0.000000e+00> : vector<8x384xf32>
    %137 = tpu.matmul %136, %4, %cst_48 {dimension_numbers = #tpu.dot_dimension_numbers<[1], [0], [0], [1], [0, 0, 1, 1], [], []>} : vector<8x128xbf16>, vector<128x384xbf16>, vector<8x384xf32> -> vector<8x384xf32>
    %138 = vector.broadcast %6 : vector<1x384xf32> to vector<8x384xf32>
    %139 = arith.addf %137, %138 : vector<8x384xf32>
    %140 = vector.extract_strided_slice %134 {offsets = [0, 0], sizes = [8, 128], strides = [1, 1]} : vector<8x384xf32> to vector<8x128xf32>
    %141 = vector.extract_strided_slice %139 {offsets = [0, 0], sizes = [8, 128], strides = [1, 1]} : vector<8x384xf32> to vector<8x128xf32>
    %142 = arith.addf %140, %141 : vector<8x128xf32>
    %143 = arith.negf %142 : vector<8x128xf32>
    %144 = math.exp %143 : vector<8x128xf32>
    %cst_49 = arith.constant 1.000000e+00 : f32
    %145 = vector.broadcast %cst_49 : f32 to vector<8x128xf32>
    %146 = arith.addf %145, %144 : vector<8x128xf32>
    %147 = arith.divf %145, %146 : vector<8x128xf32>
    %148 = vector.extract_strided_slice %134 {offsets = [0, 128], sizes = [8, 128], strides = [1, 1]} : vector<8x384xf32> to vector<8x128xf32>
    %149 = vector.extract_strided_slice %139 {offsets = [0, 128], sizes = [8, 128], strides = [1, 1]} : vector<8x384xf32> to vector<8x128xf32>
    %150 = arith.addf %148, %149 : vector<8x128xf32>
    %151 = arith.negf %150 : vector<8x128xf32>
    %152 = math.exp %151 : vector<8x128xf32>
    %cst_50 = arith.constant 1.000000e+00 : f32
    %153 = vector.broadcast %cst_50 : f32 to vector<8x128xf32>
    %154 = arith.addf %153, %152 : vector<8x128xf32>
    %155 = arith.divf %153, %154 : vector<8x128xf32>
    %156 = vector.extract_strided_slice %134 {offsets = [0, 256], sizes = [8, 128], strides = [1, 1]} : vector<8x384xf32> to vector<8x128xf32>
    %157 = vector.extract_strided_slice %139 {offsets = [0, 256], sizes = [8, 128], strides = [1, 1]} : vector<8x384xf32> to vector<8x128xf32>
    %158 = arith.mulf %147, %157 : vector<8x128xf32>
    %159 = arith.addf %156, %158 : vector<8x128xf32>
    %160 = math.tanh %159 : vector<8x128xf32>
    %cst_51 = arith.constant 1.000000e+00 : f32
    %161 = vector.broadcast %cst_51 : f32 to vector<8x128xf32>
    %162 = arith.subf %161, %155 : vector<8x128xf32>
    %163 = arith.mulf %162, %160 : vector<8x128xf32>
    %164 = arith.mulf %155, %135 : vector<8x128xf32>
    %165 = arith.addf %163, %164 : vector<8x128xf32>
    %c0_52 = arith.constant 0 : index
    %c0_53 = arith.constant 0 : index
    %166 = vector.load %arg6[%c0_52, %c0_53] : memref<8x128xf32, #tpu.memory_space<vmem>>, vector<8x128xf32>
    tpu.vector_store %arg6[%c0_52, %c0_53], %165 {strides = array<i32>} : memref<8x128xf32, #tpu.memory_space<vmem>>, vector<8x128xf32>,
    %167 = arith.index_cast %131 : i32 to index
    %c0_54 = arith.constant 0 : index
    %c0_55 = arith.constant 0 : index
    %168 = vector.load %arg5[%167, %c0_54, %c0_55] : memref<8x8x128xf32, #tpu.memory_space<vmem>>, vector<1x8x128xf32>
    %169 = vector.shape_cast %168 : vector<1x8x128xf32> to vector<8x128xf32>
    %170 = vector.shape_cast %165 : vector<8x128xf32> to vector<1x8x128xf32>
    tpu.vector_store %arg5[%167, %c0_54, %c0_55], %170 {strides = array<i32>} : memref<8x8x128xf32, #tpu.memory_space<vmem>>, vector<1x8x128xf32>,
    %c-1_i32 = arith.constant -1 : i32
    %171 = arith.muli %arg0, %c-1_i32 : i32
    %c4_i32 = arith.constant 4 : i32
    %172 = arith.addi %c4_i32, %171 : i32
    %173 = arith.index_cast %172 : i32 to index
    %c0_56 = arith.constant 0 : index
    %c0_57 = arith.constant 0 : index
    %174 = vector.load %arg2[%173, %c0_56, %c0_57] : memref<8x8x384xf32, #tpu.memory_space<vmem>>, vector<1x8x384xf32>
    %175 = vector.shape_cast %174 : vector<1x8x384xf32> to vector<8x384xf32>
    %c0_58 = arith.constant 0 : index
    %c0_59 = arith.constant 0 : index
    %176 = vector.load %arg6[%c0_58, %c0_59] : memref<8x128xf32, #tpu.memory_space<vmem>>, vector<8x128xf32>
    %177 = arith.truncf %176 : vector<8x128xf32> to vector<8x128xbf16>
    %cst_60 = arith.constant dense<0.000000e+00> : vector<8x384xf32>
    %178 = tpu.matmul %177, %4, %cst_60 {dimension_numbers = #tpu.dot_dimension_numbers<[1], [0], [0], [1], [0, 0, 1, 1], [], []>} : vector<8x128xbf16>, vector<128x384xbf16>, vector<8x384xf32> -> vector<8x384xf32>
    %179 = vector.broadcast %6 : vector<1x384xf32> to vector<8x384xf32>
    %180 = arith.addf %178, %179 : vector<8x384xf32>
    %181 = vector.extract_strided_slice %175 {offsets = [0, 0], sizes = [8, 128], strides = [1, 1]} : vector<8x384xf32> to vector<8x128xf32>
    %182 = vector.extract_strided_slice %180 {offsets = [0, 0], sizes = [8, 128], strides = [1, 1]} : vector<8x384xf32> to vector<8x128xf32>
    %183 = arith.addf %181, %182 : vector<8x128xf32>
    %184 = arith.negf %183 : vector<8x128xf32>
    %185 = math.exp %184 : vector<8x128xf32>
    %cst_61 = arith.constant 1.000000e+00 : f32
    %186 = vector.broadcast %cst_61 : f32 to vector<8x128xf32>
    %187 = arith.addf %186, %185 : vector<8x128xf32>
    %188 = arith.divf %186, %187 : vector<8x128xf32>
    %189 = vector.extract_strided_slice %175 {offsets = [0, 128], sizes = [8, 128], strides = [1, 1]} : vector<8x384xf32> to vector<8x128xf32>
    %190 = vector.extract_strided_slice %180 {offsets = [0, 128], sizes = [8, 128], strides = [1, 1]} : vector<8x384xf32> to vector<8x128xf32>
    %191 = arith.addf %189, %190 : vector<8x128xf32>
    %192 = arith.negf %191 : vector<8x128xf32>
    %193 = math.exp %192 : vector<8x128xf32>
    %cst_62 = arith.constant 1.000000e+00 : f32
    %194 = vector.broadcast %cst_62 : f32 to vector<8x128xf32>
    %195 = arith.addf %194, %193 : vector<8x128xf32>
    %196 = arith.divf %194, %195 : vector<8x128xf32>
    %197 = vector.extract_strided_slice %175 {offsets = [0, 256], sizes = [8, 128], strides = [1, 1]} : vector<8x384xf32> to vector<8x128xf32>
    %198 = vector.extract_strided_slice %180 {offsets = [0, 256], sizes = [8, 128], strides = [1, 1]} : vector<8x384xf32> to vector<8x128xf32>
    %199 = arith.mulf %188, %198 : vector<8x128xf32>
    %200 = arith.addf %197, %199 : vector<8x128xf32>
    %201 = math.tanh %200 : vector<8x128xf32>
    %cst_63 = arith.constant 1.000000e+00 : f32
    %202 = vector.broadcast %cst_63 : f32 to vector<8x128xf32>
    %203 = arith.subf %202, %196 : vector<8x128xf32>
    %204 = arith.mulf %203, %201 : vector<8x128xf32>
    %205 = arith.mulf %196, %176 : vector<8x128xf32>
    %206 = arith.addf %204, %205 : vector<8x128xf32>
    %c0_64 = arith.constant 0 : index
    %c0_65 = arith.constant 0 : index
    %207 = vector.load %arg6[%c0_64, %c0_65] : memref<8x128xf32, #tpu.memory_space<vmem>>, vector<8x128xf32>
    tpu.vector_store %arg6[%c0_64, %c0_65], %206 {strides = array<i32>} : memref<8x128xf32, #tpu.memory_space<vmem>>, vector<8x128xf32>,
    %208 = arith.index_cast %172 : i32 to index
    %c0_66 = arith.constant 0 : index
    %c0_67 = arith.constant 0 : index
    %209 = vector.load %arg5[%208, %c0_66, %c0_67] : memref<8x8x128xf32, #tpu.memory_space<vmem>>, vector<1x8x128xf32>
    %210 = vector.shape_cast %209 : vector<1x8x128xf32> to vector<8x128xf32>
    %211 = vector.shape_cast %206 : vector<8x128xf32> to vector<1x8x128xf32>
    tpu.vector_store %arg5[%208, %c0_66, %c0_67], %211 {strides = array<i32>} : memref<8x8x128xf32, #tpu.memory_space<vmem>>, vector<1x8x128xf32>,
    %c-3_i32 = arith.constant -3 : i32
    %212 = arith.muli %arg0, %c-3_i32 : i32
    %c5_i32_68 = arith.constant 5 : i32
    %213 = arith.addi %c5_i32_68, %212 : i32
    %214 = arith.index_cast %213 : i32 to index
    %c0_69 = arith.constant 0 : index
    %c0_70 = arith.constant 0 : index
    %215 = vector.load %arg2[%214, %c0_69, %c0_70] : memref<8x8x384xf32, #tpu.memory_space<vmem>>, vector<1x8x384xf32>
    %216 = vector.shape_cast %215 : vector<1x8x384xf32> to vector<8x384xf32>
    %c0_71 = arith.constant 0 : index
    %c0_72 = arith.constant 0 : index
    %217 = vector.load %arg6[%c0_71, %c0_72] : memref<8x128xf32, #tpu.memory_space<vmem>>, vector<8x128xf32>
    %218 = arith.truncf %217 : vector<8x128xf32> to vector<8x128xbf16>
    %cst_73 = arith.constant dense<0.000000e+00> : vector<8x384xf32>
    %219 = tpu.matmul %218, %4, %cst_73 {dimension_numbers = #tpu.dot_dimension_numbers<[1], [0], [0], [1], [0, 0, 1, 1], [], []>} : vector<8x128xbf16>, vector<128x384xbf16>, vector<8x384xf32> -> vector<8x384xf32>
    %220 = vector.broadcast %6 : vector<1x384xf32> to vector<8x384xf32>
    %221 = arith.addf %219, %220 : vector<8x384xf32>
    %222 = vector.extract_strided_slice %216 {offsets = [0, 0], sizes = [8, 128], strides = [1, 1]} : vector<8x384xf32> to vector<8x128xf32>
    %223 = vector.extract_strided_slice %221 {offsets = [0, 0], sizes = [8, 128], strides = [1, 1]} : vector<8x384xf32> to vector<8x128xf32>
    %224 = arith.addf %222, %223 : vector<8x128xf32>
    %225 = arith.negf %224 : vector<8x128xf32>
    %226 = math.exp %225 : vector<8x128xf32>
    %cst_74 = arith.constant 1.000000e+00 : f32
    %227 = vector.broadcast %cst_74 : f32 to vector<8x128xf32>
    %228 = arith.addf %227, %226 : vector<8x128xf32>
    %229 = arith.divf %227, %228 : vector<8x128xf32>
    %230 = vector.extract_strided_slice %216 {offsets = [0, 128], sizes = [8, 128], strides = [1, 1]} : vector<8x384xf32> to vector<8x128xf32>
    %231 = vector.extract_strided_slice %221 {offsets = [0, 128], sizes = [8, 128], strides = [1, 1]} : vector<8x384xf32> to vector<8x128xf32>
    %232 = arith.addf %230, %231 : vector<8x128xf32>
    %233 = arith.negf %232 : vector<8x128xf32>
    %234 = math.exp %233 : vector<8x128xf32>
    %cst_75 = arith.constant 1.000000e+00 : f32
    %235 = vector.broadcast %cst_75 : f32 to vector<8x128xf32>
    %236 = arith.addf %235, %234 : vector<8x128xf32>
    %237 = arith.divf %235, %236 : vector<8x128xf32>
    %238 = vector.extract_strided_slice %216 {offsets = [0, 256], sizes = [8, 128], strides = [1, 1]} : vector<8x384xf32> to vector<8x128xf32>
    %239 = vector.extract_strided_slice %221 {offsets = [0, 256], sizes = [8, 128], strides = [1, 1]} : vector<8x384xf32> to vector<8x128xf32>
    %240 = arith.mulf %229, %239 : vector<8x128xf32>
    %241 = arith.addf %238, %240 : vector<8x128xf32>
    %242 = math.tanh %241 : vector<8x128xf32>
    %cst_76 = arith.constant 1.000000e+00 : f32
    %243 = vector.broadcast %cst_76 : f32 to vector<8x128xf32>
    %244 = arith.subf %243, %237 : vector<8x128xf32>
    %245 = arith.mulf %244, %242 : vector<8x128xf32>
    %246 = arith.mulf %237, %217 : vector<8x128xf32>
    %247 = arith.addf %245, %246 : vector<8x128xf32>
    %c0_77 = arith.constant 0 : index
    %c0_78 = arith.constant 0 : index
    %248 = vector.load %arg6[%c0_77, %c0_78] : memref<8x128xf32, #tpu.memory_space<vmem>>, vector<8x128xf32>
    tpu.vector_store %arg6[%c0_77, %c0_78], %247 {strides = array<i32>} : memref<8x128xf32, #tpu.memory_space<vmem>>, vector<8x128xf32>,
    %249 = arith.index_cast %213 : i32 to index
    %c0_79 = arith.constant 0 : index
    %c0_80 = arith.constant 0 : index
    %250 = vector.load %arg5[%249, %c0_79, %c0_80] : memref<8x8x128xf32, #tpu.memory_space<vmem>>, vector<1x8x128xf32>
    %251 = vector.shape_cast %250 : vector<1x8x128xf32> to vector<8x128xf32>
    %252 = vector.shape_cast %247 : vector<8x128xf32> to vector<1x8x128xf32>
    tpu.vector_store %arg5[%249, %c0_79, %c0_80], %252 {strides = array<i32>} : memref<8x8x128xf32, #tpu.memory_space<vmem>>, vector<1x8x128xf32>,
    %c-5_i32 = arith.constant -5 : i32
    %253 = arith.muli %arg0, %c-5_i32 : i32
    %c6_i32 = arith.constant 6 : i32
    %254 = arith.addi %c6_i32, %253 : i32
    %255 = arith.index_cast %254 : i32 to index
    %c0_81 = arith.constant 0 : index
    %c0_82 = arith.constant 0 : index
    %256 = vector.load %arg2[%255, %c0_81, %c0_82] : memref<8x8x384xf32, #tpu.memory_space<vmem>>, vector<1x8x384xf32>
    %257 = vector.shape_cast %256 : vector<1x8x384xf32> to vector<8x384xf32>
    %c0_83 = arith.constant 0 : index
    %c0_84 = arith.constant 0 : index
    %258 = vector.load %arg6[%c0_83, %c0_84] : memref<8x128xf32, #tpu.memory_space<vmem>>, vector<8x128xf32>
    %259 = arith.truncf %258 : vector<8x128xf32> to vector<8x128xbf16>
    %cst_85 = arith.constant dense<0.000000e+00> : vector<8x384xf32>
    %260 = tpu.matmul %259, %4, %cst_85 {dimension_numbers = #tpu.dot_dimension_numbers<[1], [0], [0], [1], [0, 0, 1, 1], [], []>} : vector<8x128xbf16>, vector<128x384xbf16>, vector<8x384xf32> -> vector<8x384xf32>
    %261 = vector.broadcast %6 : vector<1x384xf32> to vector<8x384xf32>
    %262 = arith.addf %260, %261 : vector<8x384xf32>
    %263 = vector.extract_strided_slice %257 {offsets = [0, 0], sizes = [8, 128], strides = [1, 1]} : vector<8x384xf32> to vector<8x128xf32>
    %264 = vector.extract_strided_slice %262 {offsets = [0, 0], sizes = [8, 128], strides = [1, 1]} : vector<8x384xf32> to vector<8x128xf32>
    %265 = arith.addf %263, %264 : vector<8x128xf32>
    %266 = arith.negf %265 : vector<8x128xf32>
    %267 = math.exp %266 : vector<8x128xf32>
    %cst_86 = arith.constant 1.000000e+00 : f32
    %268 = vector.broadcast %cst_86 : f32 to vector<8x128xf32>
    %269 = arith.addf %268, %267 : vector<8x128xf32>
    %270 = arith.divf %268, %269 : vector<8x128xf32>
    %271 = vector.extract_strided_slice %257 {offsets = [0, 128], sizes = [8, 128], strides = [1, 1]} : vector<8x384xf32> to vector<8x128xf32>
    %272 = vector.extract_strided_slice %262 {offsets = [0, 128], sizes = [8, 128], strides = [1, 1]} : vector<8x384xf32> to vector<8x128xf32>
    %273 = arith.addf %271, %272 : vector<8x128xf32>
    %274 = arith.negf %273 : vector<8x128xf32>
    %275 = math.exp %274 : vector<8x128xf32>
    %cst_87 = arith.constant 1.000000e+00 : f32
    %276 = vector.broadcast %cst_87 : f32 to vector<8x128xf32>
    %277 = arith.addf %276, %275 : vector<8x128xf32>
    %278 = arith.divf %276, %277 : vector<8x128xf32>
    %279 = vector.extract_strided_slice %257 {offsets = [0, 256], sizes = [8, 128], strides = [1, 1]} : vector<8x384xf32> to vector<8x128xf32>
    %280 = vector.extract_strided_slice %262 {offsets = [0, 256], sizes = [8, 128], strides = [1, 1]} : vector<8x384xf32> to vector<8x128xf32>
    %281 = arith.mulf %270, %280 : vector<8x128xf32>
    %282 = arith.addf %279, %281 : vector<8x128xf32>
    %283 = math.tanh %282 : vector<8x128xf32>
    %cst_88 = arith.constant 1.000000e+00 : f32
    %284 = vector.broadcast %cst_88 : f32 to vector<8x128xf32>
    %285 = arith.subf %284, %278 : vector<8x128xf32>
    %286 = arith.mulf %285, %283 : vector<8x128xf32>
    %287 = arith.mulf %278, %258 : vector<8x128xf32>
    %288 = arith.addf %286, %287 : vector<8x128xf32>
    %c0_89 = arith.constant 0 : index
    %c0_90 = arith.constant 0 : index
    %289 = vector.load %arg6[%c0_89, %c0_90] : memref<8x128xf32, #tpu.memory_space<vmem>>, vector<8x128xf32>
    tpu.vector_store %arg6[%c0_89, %c0_90], %288 {strides = array<i32>} : memref<8x128xf32, #tpu.memory_space<vmem>>, vector<8x128xf32>,
    %290 = arith.index_cast %254 : i32 to index
    %c0_91 = arith.constant 0 : index
    %c0_92 = arith.constant 0 : index
    %291 = vector.load %arg5[%290, %c0_91, %c0_92] : memref<8x8x128xf32, #tpu.memory_space<vmem>>, vector<1x8x128xf32>
    %292 = vector.shape_cast %291 : vector<1x8x128xf32> to vector<8x128xf32>
    %293 = vector.shape_cast %288 : vector<8x128xf32> to vector<1x8x128xf32>
    tpu.vector_store %arg5[%290, %c0_91, %c0_92], %293 {strides = array<i32>} : memref<8x8x128xf32, #tpu.memory_space<vmem>>, vector<1x8x128xf32>,
    %c-7_i32 = arith.constant -7 : i32
    %294 = arith.muli %arg0, %c-7_i32 : i32
    %c7_i32_93 = arith.constant 7 : i32
    %295 = arith.addi %c7_i32_93, %294 : i32
    %296 = arith.index_cast %295 : i32 to index
    %c0_94 = arith.constant 0 : index
    %c0_95 = arith.constant 0 : index
    %297 = vector.load %arg2[%296, %c0_94, %c0_95] : memref<8x8x384xf32, #tpu.memory_space<vmem>>, vector<1x8x384xf32>
    %298 = vector.shape_cast %297 : vector<1x8x384xf32> to vector<8x384xf32>
    %c0_96 = arith.constant 0 : index
    %c0_97 = arith.constant 0 : index
    %299 = vector.load %arg6[%c0_96, %c0_97] : memref<8x128xf32, #tpu.memory_space<vmem>>, vector<8x128xf32>
    %300 = arith.truncf %299 : vector<8x128xf32> to vector<8x128xbf16>
    %cst_98 = arith.constant dense<0.000000e+00> : vector<8x384xf32>
    %301 = tpu.matmul %300, %4, %cst_98 {dimension_numbers = #tpu.dot_dimension_numbers<[1], [0], [0], [1], [0, 0, 1, 1], [], []>} : vector<8x128xbf16>, vector<128x384xbf16>, vector<8x384xf32> -> vector<8x384xf32>
    %302 = vector.broadcast %6 : vector<1x384xf32> to vector<8x384xf32>
    %303 = arith.addf %301, %302 : vector<8x384xf32>
    %304 = vector.extract_strided_slice %298 {offsets = [0, 0], sizes = [8, 128], strides = [1, 1]} : vector<8x384xf32> to vector<8x128xf32>
    %305 = vector.extract_strided_slice %303 {offsets = [0, 0], sizes = [8, 128], strides = [1, 1]} : vector<8x384xf32> to vector<8x128xf32>
    %306 = arith.addf %304, %305 : vector<8x128xf32>
    %307 = arith.negf %306 : vector<8x128xf32>
    %308 = math.exp %307 : vector<8x128xf32>
    %cst_99 = arith.constant 1.000000e+00 : f32
    %309 = vector.broadcast %cst_99 : f32 to vector<8x128xf32>
    %310 = arith.addf %309, %308 : vector<8x128xf32>
    %311 = arith.divf %309, %310 : vector<8x128xf32>
    %312 = vector.extract_strided_slice %298 {offsets = [0, 128], sizes = [8, 128], strides = [1, 1]} : vector<8x384xf32> to vector<8x128xf32>
    %313 = vector.extract_strided_slice %303 {offsets = [0, 128], sizes = [8, 128], strides = [1, 1]} : vector<8x384xf32> to vector<8x128xf32>
    %314 = arith.addf %312, %313 : vector<8x128xf32>
    %315 = arith.negf %314 : vector<8x128xf32>
    %316 = math.exp %315 : vector<8x128xf32>
    %cst_100 = arith.constant 1.000000e+00 : f32
    %317 = vector.broadcast %cst_100 : f32 to vector<8x128xf32>
    %318 = arith.addf %317, %316 : vector<8x128xf32>
    %319 = arith.divf %317, %318 : vector<8x128xf32>
    %320 = vector.extract_strided_slice %298 {offsets = [0, 256], sizes = [8, 128], strides = [1, 1]} : vector<8x384xf32> to vector<8x128xf32>
    %321 = vector.extract_strided_slice %303 {offsets = [0, 256], sizes = [8, 128], strides = [1, 1]} : vector<8x384xf32> to vector<8x128xf32>
    %322 = arith.mulf %311, %321 : vector<8x128xf32>
    %323 = arith.addf %320, %322 : vector<8x128xf32>
    %324 = math.tanh %323 : vector<8x128xf32>
    %cst_101 = arith.constant 1.000000e+00 : f32
    %325 = vector.broadcast %cst_101 : f32 to vector<8x128xf32>
    %326 = arith.subf %325, %319 : vector<8x128xf32>
    %327 = arith.mulf %326, %324 : vector<8x128xf32>
    %328 = arith.mulf %319, %299 : vector<8x128xf32>
    %329 = arith.addf %327, %328 : vector<8x128xf32>
    %c0_102 = arith.constant 0 : index
    %c0_103 = arith.constant 0 : index
    %330 = vector.load %arg6[%c0_102, %c0_103] : memref<8x128xf32, #tpu.memory_space<vmem>>, vector<8x128xf32>
    tpu.vector_store %arg6[%c0_102, %c0_103], %329 {strides = array<i32>} : memref<8x128xf32, #tpu.memory_space<vmem>>, vector<8x128xf32>,
    %331 = arith.index_cast %295 : i32 to index
    %c0_104 = arith.constant 0 : index
    %c0_105 = arith.constant 0 : index
    %332 = vector.load %arg5[%331, %c0_104, %c0_105] : memref<8x8x128xf32, #tpu.memory_space<vmem>>, vector<1x8x128xf32>
    %333 = vector.shape_cast %332 : vector<1x8x128xf32> to vector<8x128xf32>
    %334 = vector.shape_cast %329 : vector<8x128xf32> to vector<1x8x128xf32>
    tpu.vector_store %arg5[%331, %c0_104, %c0_105], %334 {strides = array<i32>} : memref<8x8x128xf32, #tpu.memory_space<vmem>>, vector<1x8x128xf32>,
    return
  }
  func.func @transform_0(%arg0: i32, %arg1: i32) -> (i32, i32, i32) {
    %c2_i32 = arith.constant 2 : i32
    %0 = arith.muli %c2_i32, %arg1 : i32
    %c0_i32 = arith.constant 0 : i32
    %1 = arith.subi %c0_i32, %0 : i32
    %2 = arith.muli %arg0, %1 : i32
    %3 = arith.addi %arg1, %2 : i32
    %c0_i32_0 = arith.constant 0 : i32
    %c0_i32_1 = arith.constant 0 : i32
    return %3, %c0_i32_0, %arg0 : i32, i32, i32
  }
  func.func @transform_1(%arg0: i32, %arg1: i32) -> (i32, i32, i32) {
    %c0_i32 = arith.constant 0 : i32
    %c0_i32_0 = arith.constant 0 : i32
    %c0_i32_1 = arith.constant 0 : i32
    return %arg0, %c0_i32, %c0_i32_0 : i32, i32, i32
  }
  func.func @transform_2(%arg0: i32, %arg1: i32) -> (i32, i32, i32) {
    %c0_i32 = arith.constant 0 : i32
    %c0_i32_0 = arith.constant 0 : i32
    %c0_i32_1 = arith.constant 0 : i32
    return %arg0, %c0_i32, %c0_i32_0 : i32, i32, i32
  }
  func.func @transform_3(%arg0: i32, %arg1: i32) -> (i32, i32, i32) {
    %c2_i32 = arith.constant 2 : i32
    %0 = arith.muli %c2_i32, %arg1 : i32
    %c0_i32 = arith.constant 0 : i32
    %1 = arith.subi %c0_i32, %0 : i32
    %2 = arith.muli %arg0, %1 : i32
    %3 = arith.addi %arg1, %2 : i32
    %c0_i32_0 = arith.constant 0 : i32
    %c0_i32_1 = arith.constant 0 : i32
    return %3, %c0_i32_0, %arg0 : i32, i32, i32
  }
}

module attributes {stable_mosaic.version = 11 : i64} {
  func.func @_linear_kernel(%arg0: i32, %arg1: i32, %arg2: memref<16x256xbf16, #tpu.memory_space<vmem>>, %arg3: memref<256x256xbf16, #tpu.memory_space<vmem>>, %arg4: memref<1x256xf32, #tpu.memory_space<vmem>>, %arg5: memref<16x256xf32, #tpu.memory_space<vmem>>) attributes {dimension_semantics = [#tpu.dimension_semantics<parallel>, #tpu.dimension_semantics<parallel>], iteration_bounds = array<i64: 1, 1>, scalar_prefetch = 0 : i64, scratch_operands = 0 : i64, tpu.core_type = #tpu.core_type<tc>, window_params = [{transform_indices = @transform_0, window_bounds = array<i64: 16, 256>}, {transform_indices = @transform_1, window_bounds = array<i64: 256, 256>}, {transform_indices = @transform_2, window_bounds = array<i64: 1, 256>}, {transform_indices = @transform_3, window_bounds = array<i64: 16, 256>}]} {
    %c0 = arith.constant 0 : index
    %c0_0 = arith.constant 0 : index
    %0 = vector.load %arg2[%c0, %c0_0] : memref<16x256xbf16, #tpu.memory_space<vmem>>, vector<16x256xbf16>
    %c0_1 = arith.constant 0 : index
    %c0_2 = arith.constant 0 : index
    %1 = vector.load %arg3[%c0_1, %c0_2] : memref<256x256xbf16, #tpu.memory_space<vmem>>, vector<256x256xbf16>
    %cst = arith.constant dense<0.000000e+00> : vector<16x256xf32>
    %2 = tpu.matmul %0, %1, %cst {dimension_numbers = #tpu.dot_dimension_numbers<[1], [0], [0], [1], [0, 0, 1, 1], [], []>} : vector<16x256xbf16>, vector<256x256xbf16>, vector<16x256xf32> -> vector<16x256xf32>
    %c0_3 = arith.constant 0 : index
    %c0_4 = arith.constant 0 : index
    %3 = vector.load %arg4[%c0_3, %c0_4] : memref<1x256xf32, #tpu.memory_space<vmem>>, vector<1x256xf32>
    %4 = vector.broadcast %3 : vector<1x256xf32> to vector<16x256xf32>
    %5 = arith.addf %2, %4 : vector<16x256xf32>
    %c0_5 = arith.constant 0 : index
    %c0_6 = arith.constant 0 : index
    %6 = vector.load %arg5[%c0_5, %c0_6] : memref<16x256xf32, #tpu.memory_space<vmem>>, vector<16x256xf32>
    tpu.vector_store %arg5[%c0_5, %c0_6], %5 {strides = array<i32>} : memref<16x256xf32, #tpu.memory_space<vmem>>, vector<16x256xf32>,
    return
  }
  func.func @transform_0(%arg0: i32, %arg1: i32) -> (i32, i32) {
    %c0_i32 = arith.constant 0 : i32
    %c0_i32_0 = arith.constant 0 : i32
    return %arg0, %c0_i32 : i32, i32
  }
  func.func @transform_1(%arg0: i32, %arg1: i32) -> (i32, i32) {
    %c0_i32 = arith.constant 0 : i32
    %c0_i32_0 = arith.constant 0 : i32
    return %c0_i32, %arg1 : i32, i32
  }
  func.func @transform_2(%arg0: i32, %arg1: i32) -> (i32, i32) {
    %c0_i32 = arith.constant 0 : i32
    %c0_i32_0 = arith.constant 0 : i32
    return %c0_i32, %arg1 : i32, i32
  }
  func.func @transform_3(%arg0: i32, %arg1: i32) -> (i32, i32) {
    %c0_i32 = arith.constant 0 : i32
    return %arg0, %arg1 : i32, i32
  }
}

module attributes {stable_mosaic.version = 11 : i64} {
  func.func @_attention_kernel(%arg0: i32, %arg1: i32, %arg2: memref<1x1x6x256xf32, #tpu.memory_space<vmem>>, %arg3: memref<1x8x256xf32, #tpu.memory_space<vmem>>, %arg4: memref<1x256xf32, #tpu.memory_space<vmem>>, %arg5: memref<1x1x6x256xbf16, #tpu.memory_space<vmem>>, %arg6: memref<1x8x256xbf16, #tpu.memory_space<vmem>>, %arg7: memref<1x1x8x256xf32, #tpu.memory_space<vmem>>, %arg8: memref<1x1x6x256xf32, #tpu.memory_space<vmem>>, %arg9: memref<6x8xf32, #tpu.memory_space<vmem>>) attributes {dimension_semantics = [#tpu.dimension_semantics<parallel>, #tpu.dimension_semantics<parallel>], iteration_bounds = array<i64: 2, 3>, scalar_prefetch = 0 : i64, scratch_operands = 1 : i64, tpu.core_type = #tpu.core_type<tc>, window_params = [{transform_indices = @transform_0, window_bounds = array<i64: 1, 1, 6, 256>}, {transform_indices = @transform_1, window_bounds = array<i64: 1, 8, 256>}, {pipeline_mode = #tpu.pipeline_mode<synchronous>, transform_indices = @transform_2, window_bounds = array<i64: 1, 256>}, {transform_indices = @transform_3, window_bounds = array<i64: 1, 1, 6, 256>}, {transform_indices = @transform_4, window_bounds = array<i64: 1, 8, 256>}, {transform_indices = @transform_5, window_bounds = array<i64: 1, 1, 8, 256>}, {transform_indices = @transform_6, window_bounds = array<i64: 1, 1, 6, 256>}]} {
    %c0 = arith.constant 0 : index
    %c0_0 = arith.constant 0 : index
    %c0_1 = arith.constant 0 : index
    %c0_2 = arith.constant 0 : index
    %0 = vector.load %arg2[%c0, %c0_0, %c0_1, %c0_2] : memref<1x1x6x256xf32, #tpu.memory_space<vmem>>, vector<1x1x6x256xf32>
    %1 = vector.shape_cast %0 : vector<1x1x6x256xf32> to vector<6x256xf32>
    %c0_3 = arith.constant 0 : index
    %c0_4 = arith.constant 0 : index
    %2 = vector.load %arg4[%c0_3, %c0_4] : memref<1x256xf32, #tpu.memory_space<vmem>>, vector<1x256xf32>
    %c0_5 = arith.constant 0 : index
    %c0_6 = arith.constant 0 : index
    %c0_7 = arith.constant 0 : index
    %3 = vector.load %arg3[%c0_5, %c0_6, %c0_7] : memref<1x8x256xf32, #tpu.memory_space<vmem>>, vector<1x8x256xf32>
    %4 = vector.shape_cast %3 : vector<1x8x256xf32> to vector<8x256xf32>
    %5 = vector.shape_cast %1 : vector<6x256xf32> to vector<6x1x256xf32>
    %6 = vector.shape_cast %4 : vector<8x256xf32> to vector<1x8x256xf32>
    %7 = vector.broadcast %5 : vector<6x1x256xf32> to vector<6x8x256xf32>
    %8 = vector.broadcast %6 : vector<1x8x256xf32> to vector<6x8x256xf32>
    %9 = arith.addf %7, %8 : vector<6x8x256xf32>
    %10 = math.tanh %9 : vector<6x8x256xf32>
    %11 = vector.shape_cast %2 : vector<1x256xf32> to vector<1x1x256xf32>
    %12 = vector.broadcast %11 : vector<1x1x256xf32> to vector<6x8x256xf32>
    %13 = arith.mulf %10, %12 : vector<6x8x256xf32>
    %cst = arith.constant dense<0.000000e+00> : vector<6x8xf32>
    %14 = vector.multi_reduction <add>, %13, %cst [2] : vector<6x8x256xf32> to vector<6x8xf32>
    %c0_8 = arith.constant 0 : index
    %c0_9 = arith.constant 0 : index
    %15 = vector.load %arg9[%c0_8, %c0_9] : memref<6x8xf32, #tpu.memory_space<vmem>>, vector<6x8xf32>
    tpu.vector_store %arg9[%c0_8, %c0_9], %14 {strides = array<i32>} : memref<6x8xf32, #tpu.memory_space<vmem>>, vector<6x8xf32>,
    %c0_10 = arith.constant 0 : index
    %c0_11 = arith.constant 0 : index
    %16 = vector.load %arg9[%c0_10, %c0_11] : memref<6x8xf32, #tpu.memory_space<vmem>>, vector<6x8xf32>
    %cst_12 = arith.constant dense<0xFF800000> : vector<8xf32>
    %17 = vector.multi_reduction <maximumf>, %16, %cst_12 [0] : vector<6x8xf32> to vector<8xf32>
    %18 = vector.shape_cast %17 : vector<8xf32> to vector<1x8xf32>
    %19 = vector.broadcast %18 : vector<1x8xf32> to vector<6x8xf32>
    %20 = arith.subf %16, %19 : vector<6x8xf32>
    %21 = math.exp %20 : vector<6x8xf32>
    %cst_13 = arith.constant dense<0.000000e+00> : vector<8xf32>
    %22 = vector.multi_reduction <add>, %21, %cst_13 [0] : vector<6x8xf32> to vector<8xf32>
    %23 = vector.shape_cast %22 : vector<8xf32> to vector<1x8xf32>
    %24 = tpu.reciprocal %23 {approx = true} : vector<1x8xf32> -> vector<1x8xf32>
    %25 = vector.broadcast %24 : vector<1x8xf32> to vector<6x8xf32>
    %26 = arith.mulf %21, %25 : vector<6x8xf32>
    %27 = arith.truncf %26 : vector<6x8xf32> to vector<6x8xbf16>
    %c0_14 = arith.constant 0 : index
    %c0_15 = arith.constant 0 : index
    %c0_16 = arith.constant 0 : index
    %c0_17 = arith.constant 0 : index
    %28 = vector.load %arg5[%c0_14, %c0_15, %c0_16, %c0_17] : memref<1x1x6x256xbf16, #tpu.memory_space<vmem>>, vector<1x1x6x256xbf16>
    %29 = vector.shape_cast %28 : vector<1x1x6x256xbf16> to vector<6x256xbf16>
    %cst_18 = arith.constant dense<0.000000e+00> : vector<8x256xf32>
    %30 = tpu.matmul %27, %29, %cst_18 {dimension_numbers = #tpu.dot_dimension_numbers<[0], [0], [1], [1], [0, 1, 1, 1], [], []>} : vector<6x8xbf16>, vector<6x256xbf16>, vector<8x256xf32> -> vector<8x256xf32>
    %c0_19 = arith.constant 0 : index
    %c0_20 = arith.constant 0 : index
    %c0_21 = arith.constant 0 : index
    %c0_22 = arith.constant 0 : index
    %31 = vector.load %arg7[%c0_19, %c0_20, %c0_21, %c0_22] : memref<1x1x8x256xf32, #tpu.memory_space<vmem>>, vector<1x1x8x256xf32>
    %32 = vector.shape_cast %31 : vector<1x1x8x256xf32> to vector<8x256xf32>
    %33 = vector.shape_cast %30 : vector<8x256xf32> to vector<1x1x8x256xf32>
    tpu.vector_store %arg7[%c0_19, %c0_20, %c0_21, %c0_22], %33 {strides = array<i32>} : memref<1x1x8x256xf32, #tpu.memory_space<vmem>>, vector<1x1x8x256xf32>,
    %cst_23 = arith.constant dense<0xFF800000> : vector<6xf32>
    %34 = vector.multi_reduction <maximumf>, %16, %cst_23 [1] : vector<6x8xf32> to vector<6xf32>
    %35 = vector.shape_cast %34 : vector<6xf32> to vector<6x1xf32>
    %36 = vector.broadcast %35 : vector<6x1xf32> to vector<6x8xf32>
    %37 = arith.subf %16, %36 : vector<6x8xf32>
    %38 = math.exp %37 : vector<6x8xf32>
    %cst_24 = arith.constant dense<0.000000e+00> : vector<6xf32>
    %39 = vector.multi_reduction <add>, %38, %cst_24 [1] : vector<6x8xf32> to vector<6xf32>
    %40 = vector.shape_cast %39 : vector<6xf32> to vector<6x1xf32>
    %41 = tpu.reciprocal %40 {approx = true} : vector<6x1xf32> -> vector<6x1xf32>
    %42 = vector.broadcast %41 : vector<6x1xf32> to vector<6x8xf32>
    %43 = arith.mulf %38, %42 : vector<6x8xf32>
    %44 = arith.truncf %43 : vector<6x8xf32> to vector<6x8xbf16>
    %c0_25 = arith.constant 0 : index
    %c0_26 = arith.constant 0 : index
    %c0_27 = arith.constant 0 : index
    %45 = vector.load %arg6[%c0_25, %c0_26, %c0_27] : memref<1x8x256xbf16, #tpu.memory_space<vmem>>, vector<1x8x256xbf16>
    %46 = vector.shape_cast %45 : vector<1x8x256xbf16> to vector<8x256xbf16>
    %cst_28 = arith.constant dense<0.000000e+00> : vector<6x256xf32>
    %47 = tpu.matmul %44, %46, %cst_28 {dimension_numbers = #tpu.dot_dimension_numbers<[1], [0], [0], [1], [0, 0, 1, 1], [], []>} : vector<6x8xbf16>, vector<8x256xbf16>, vector<6x256xf32> -> vector<6x256xf32>
    %c0_29 = arith.constant 0 : index
    %c0_30 = arith.constant 0 : index
    %c0_31 = arith.constant 0 : index
    %c0_32 = arith.constant 0 : index
    %48 = vector.load %arg8[%c0_29, %c0_30, %c0_31, %c0_32] : memref<1x1x6x256xf32, #tpu.memory_space<vmem>>, vector<1x1x6x256xf32>
    %49 = vector.shape_cast %48 : vector<1x1x6x256xf32> to vector<6x256xf32>
    %50 = vector.shape_cast %47 : vector<6x256xf32> to vector<1x1x6x256xf32>
    tpu.vector_store %arg8[%c0_29, %c0_30, %c0_31, %c0_32], %50 {strides = array<i32>} : memref<1x1x6x256xf32, #tpu.memory_space<vmem>>, vector<1x1x6x256xf32>,
    return
  }
  func.func @transform_0(%arg0: i32, %arg1: i32) -> (i32, i32, i32, i32) {
    %c0_i32 = arith.constant 0 : i32
    %c0_i32_0 = arith.constant 0 : i32
    %c0_i32_1 = arith.constant 0 : i32
    return %arg0, %arg1, %c0_i32, %c0_i32_0 : i32, i32, i32, i32
  }
  func.func @transform_1(%arg0: i32, %arg1: i32) -> (i32, i32, i32) {
    %c0_i32 = arith.constant 0 : i32
    %c0_i32_0 = arith.constant 0 : i32
    %c0_i32_1 = arith.constant 0 : i32
    return %arg0, %c0_i32, %c0_i32_0 : i32, i32, i32
  }
  func.func @transform_2(%arg0: i32, %arg1: i32) -> (i32, i32) {
    %c0_i32 = arith.constant 0 : i32
    %c0_i32_0 = arith.constant 0 : i32
    %c0_i32_1 = arith.constant 0 : i32
    return %c0_i32, %c0_i32_0 : i32, i32
  }
  func.func @transform_3(%arg0: i32, %arg1: i32) -> (i32, i32, i32, i32) {
    %c0_i32 = arith.constant 0 : i32
    %c0_i32_0 = arith.constant 0 : i32
    %c0_i32_1 = arith.constant 0 : i32
    return %arg0, %arg1, %c0_i32, %c0_i32_0 : i32, i32, i32, i32
  }
  func.func @transform_4(%arg0: i32, %arg1: i32) -> (i32, i32, i32) {
    %c0_i32 = arith.constant 0 : i32
    %c0_i32_0 = arith.constant 0 : i32
    %c0_i32_1 = arith.constant 0 : i32
    return %arg0, %c0_i32, %c0_i32_0 : i32, i32, i32
  }
  func.func @transform_5(%arg0: i32, %arg1: i32) -> (i32, i32, i32, i32) {
    %c0_i32 = arith.constant 0 : i32
    %c0_i32_0 = arith.constant 0 : i32
    %c0_i32_1 = arith.constant 0 : i32
    return %arg0, %arg1, %c0_i32, %c0_i32_0 : i32, i32, i32, i32
  }
  func.func @transform_6(%arg0: i32, %arg1: i32) -> (i32, i32, i32, i32) {
    %c0_i32 = arith.constant 0 : i32
    %c0_i32_0 = arith.constant 0 : i32
    %c0_i32_1 = arith.constant 0 : i32
    return %arg0, %arg1, %c0_i32, %c0_i32_0 : i32, i32, i32, i32
  }
}

module attributes {stable_mosaic.version = 11 : i64} {
  func.func @_linear_kernel(%arg0: i32, %arg1: i32, %arg2: memref<128x768xbf16, #tpu.memory_space<vmem>>, %arg3: memref<768x384xbf16, #tpu.memory_space<vmem>>, %arg4: memref<1x384xf32, #tpu.memory_space<vmem>>, %arg5: memref<128x384xf32, #tpu.memory_space<vmem>>) attributes {dimension_semantics = [#tpu.dimension_semantics<parallel>, #tpu.dimension_semantics<parallel>], iteration_bounds = array<i64: 1, 2>, scalar_prefetch = 0 : i64, scratch_operands = 0 : i64, tpu.core_type = #tpu.core_type<tc>, window_params = [{transform_indices = @transform_0, window_bounds = array<i64: 128, 768>}, {transform_indices = @transform_1, window_bounds = array<i64: 768, 384>}, {transform_indices = @transform_2, window_bounds = array<i64: 1, 384>}, {transform_indices = @transform_3, window_bounds = array<i64: 128, 384>}]} {
    %c0 = arith.constant 0 : index
    %c0_0 = arith.constant 0 : index
    %0 = vector.load %arg2[%c0, %c0_0] : memref<128x768xbf16, #tpu.memory_space<vmem>>, vector<128x768xbf16>
    %c0_1 = arith.constant 0 : index
    %c0_2 = arith.constant 0 : index
    %1 = vector.load %arg3[%c0_1, %c0_2] : memref<768x384xbf16, #tpu.memory_space<vmem>>, vector<768x384xbf16>
    %cst = arith.constant dense<0.000000e+00> : vector<128x384xf32>
    %2 = tpu.matmul %0, %1, %cst {dimension_numbers = #tpu.dot_dimension_numbers<[1], [0], [0], [1], [0, 0, 1, 1], [], []>} : vector<128x768xbf16>, vector<768x384xbf16>, vector<128x384xf32> -> vector<128x384xf32>
    %c0_3 = arith.constant 0 : index
    %c0_4 = arith.constant 0 : index
    %3 = vector.load %arg4[%c0_3, %c0_4] : memref<1x384xf32, #tpu.memory_space<vmem>>, vector<1x384xf32>
    %4 = vector.broadcast %3 : vector<1x384xf32> to vector<128x384xf32>
    %5 = arith.addf %2, %4 : vector<128x384xf32>
    %c0_5 = arith.constant 0 : index
    %c0_6 = arith.constant 0 : index
    %6 = vector.load %arg5[%c0_5, %c0_6] : memref<128x384xf32, #tpu.memory_space<vmem>>, vector<128x384xf32>
    tpu.vector_store %arg5[%c0_5, %c0_6], %5 {strides = array<i32>} : memref<128x384xf32, #tpu.memory_space<vmem>>, vector<128x384xf32>,
    return
  }
  func.func @transform_0(%arg0: i32, %arg1: i32) -> (i32, i32) {
    %c0_i32 = arith.constant 0 : i32
    %c0_i32_0 = arith.constant 0 : i32
    return %arg0, %c0_i32 : i32, i32
  }
  func.func @transform_1(%arg0: i32, %arg1: i32) -> (i32, i32) {
    %c0_i32 = arith.constant 0 : i32
    %c0_i32_0 = arith.constant 0 : i32
    return %c0_i32, %arg1 : i32, i32
  }
  func.func @transform_2(%arg0: i32, %arg1: i32) -> (i32, i32) {
    %c0_i32 = arith.constant 0 : i32
    %c0_i32_0 = arith.constant 0 : i32
    return %c0_i32, %arg1 : i32, i32
  }
  func.func @transform_3(%arg0: i32, %arg1: i32) -> (i32, i32) {
    %c0_i32 = arith.constant 0 : i32
    return %arg0, %arg1 : i32, i32
  }
}

module attributes {stable_mosaic.version = 11 : i64} {
  func.func @_gru_chunk_kernel(%arg0: i32, %arg1: i32, %arg2: memref<8x16x384xf32, #tpu.memory_space<vmem>>, %arg3: memref<1x128x384xbf16, #tpu.memory_space<vmem>>, %arg4: memref<1x1x384xf32, #tpu.memory_space<vmem>>, %arg5: memref<8x16x128xf32, #tpu.memory_space<vmem>>, %arg6: memref<16x128xf32, #tpu.memory_space<vmem>>) attributes {dimension_semantics = [#tpu.dimension_semantics<parallel>, #tpu.dimension_semantics<arbitrary>], iteration_bounds = array<i64: 2, 1>, scalar_prefetch = 0 : i64, scratch_operands = 1 : i64, tpu.core_type = #tpu.core_type<tc>, window_params = [{transform_indices = @transform_0, window_bounds = array<i64: 8, 16, 384>}, {transform_indices = @transform_1, window_bounds = array<i64: 1, 128, 384>}, {transform_indices = @transform_2, window_bounds = array<i64: 1, 1, 384>}, {transform_indices = @transform_3, window_bounds = array<i64: 8, 16, 128>}]} {
    %c0_i32 = arith.constant 0 : i32
    %0 = arith.cmpi eq, %arg1, %c0_i32 : i32
    %1 = arith.extui %0 : i1 to i32
    %c0_i32_0 = arith.constant 0 : i32
    %2 = arith.cmpi ne, %1, %c0_i32_0 : i32
    scf.if %2 {
      %cst_106 = arith.constant 0.000000e+00 : f32
      %335 = vector.broadcast %cst_106 : f32 to vector<16x128xf32>
      %c0_107 = arith.constant 0 : index
      %c0_108 = arith.constant 0 : index
      %336 = vector.load %arg6[%c0_107, %c0_108] : memref<16x128xf32, #tpu.memory_space<vmem>>, vector<16x128xf32>
      tpu.vector_store %arg6[%c0_107, %c0_108], %335 {strides = array<i32>} : memref<16x128xf32, #tpu.memory_space<vmem>>, vector<16x128xf32>,
    } else {
    }
    %c0 = arith.constant 0 : index
    %c0_1 = arith.constant 0 : index
    %c0_2 = arith.constant 0 : index
    %3 = vector.load %arg3[%c0, %c0_1, %c0_2] : memref<1x128x384xbf16, #tpu.memory_space<vmem>>, vector<1x128x384xbf16>
    %4 = vector.shape_cast %3 : vector<1x128x384xbf16> to vector<128x384xbf16>
    %c0_3 = arith.constant 0 : index
    %c0_4 = arith.constant 0 : index
    %c0_5 = arith.constant 0 : index
    %5 = vector.load %arg4[%c0_3, %c0_4, %c0_5] : memref<1x1x384xf32, #tpu.memory_space<vmem>>, vector<1x1x384xf32>
    %6 = vector.shape_cast %5 : vector<1x1x384xf32> to vector<1x384xf32>
    %c7_i32 = arith.constant 7 : i32
    %7 = arith.muli %arg0, %c7_i32 : i32
    %c0_i32_6 = arith.constant 0 : i32
    %8 = arith.addi %c0_i32_6, %7 : i32
    %9 = arith.index_cast %8 : i32 to index
    %c0_7 = arith.constant 0 : index
    %c0_8 = arith.constant 0 : index
    %10 = vector.load %arg2[%9, %c0_7, %c0_8] : memref<8x16x384xf32, #tpu.memory_space<vmem>>, vector<1x16x384xf32>
    %11 = vector.shape_cast %10 : vector<1x16x384xf32> to vector<16x384xf32>
    %c0_9 = arith.constant 0 : index
    %c0_10 = arith.constant 0 : index
    %12 = vector.load %arg6[%c0_9, %c0_10] : memref<16x128xf32, #tpu.memory_space<vmem>>, vector<16x128xf32>
    %13 = arith.truncf %12 : vector<16x128xf32> to vector<16x128xbf16>
    %cst = arith.constant dense<0.000000e+00> : vector<16x384xf32>
    %14 = tpu.matmul %13, %4, %cst {dimension_numbers = #tpu.dot_dimension_numbers<[1], [0], [0], [1], [0, 0, 1, 1], [], []>} : vector<16x128xbf16>, vector<128x384xbf16>, vector<16x384xf32> -> vector<16x384xf32>
    %15 = vector.broadcast %6 : vector<1x384xf32> to vector<16x384xf32>
    %16 = arith.addf %14, %15 : vector<16x384xf32>
    %17 = vector.extract_strided_slice %11 {offsets = [0, 0], sizes = [16, 128], strides = [1, 1]} : vector<16x384xf32> to vector<16x128xf32>
    %18 = vector.extract_strided_slice %16 {offsets = [0, 0], sizes = [16, 128], strides = [1, 1]} : vector<16x384xf32> to vector<16x128xf32>
    %19 = arith.addf %17, %18 : vector<16x128xf32>
    %20 = arith.negf %19 : vector<16x128xf32>
    %21 = math.exp %20 : vector<16x128xf32>
    %cst_11 = arith.constant 1.000000e+00 : f32
    %22 = vector.broadcast %cst_11 : f32 to vector<16x128xf32>
    %23 = arith.addf %22, %21 : vector<16x128xf32>
    %24 = arith.divf %22, %23 : vector<16x128xf32>
    %25 = vector.extract_strided_slice %11 {offsets = [0, 128], sizes = [16, 128], strides = [1, 1]} : vector<16x384xf32> to vector<16x128xf32>
    %26 = vector.extract_strided_slice %16 {offsets = [0, 128], sizes = [16, 128], strides = [1, 1]} : vector<16x384xf32> to vector<16x128xf32>
    %27 = arith.addf %25, %26 : vector<16x128xf32>
    %28 = arith.negf %27 : vector<16x128xf32>
    %29 = math.exp %28 : vector<16x128xf32>
    %cst_12 = arith.constant 1.000000e+00 : f32
    %30 = vector.broadcast %cst_12 : f32 to vector<16x128xf32>
    %31 = arith.addf %30, %29 : vector<16x128xf32>
    %32 = arith.divf %30, %31 : vector<16x128xf32>
    %33 = vector.extract_strided_slice %11 {offsets = [0, 256], sizes = [16, 128], strides = [1, 1]} : vector<16x384xf32> to vector<16x128xf32>
    %34 = vector.extract_strided_slice %16 {offsets = [0, 256], sizes = [16, 128], strides = [1, 1]} : vector<16x384xf32> to vector<16x128xf32>
    %35 = arith.mulf %24, %34 : vector<16x128xf32>
    %36 = arith.addf %33, %35 : vector<16x128xf32>
    %37 = math.tanh %36 : vector<16x128xf32>
    %cst_13 = arith.constant 1.000000e+00 : f32
    %38 = vector.broadcast %cst_13 : f32 to vector<16x128xf32>
    %39 = arith.subf %38, %32 : vector<16x128xf32>
    %40 = arith.mulf %39, %37 : vector<16x128xf32>
    %41 = arith.mulf %32, %12 : vector<16x128xf32>
    %42 = arith.addf %40, %41 : vector<16x128xf32>
    %c0_14 = arith.constant 0 : index
    %c0_15 = arith.constant 0 : index
    %43 = vector.load %arg6[%c0_14, %c0_15] : memref<16x128xf32, #tpu.memory_space<vmem>>, vector<16x128xf32>
    tpu.vector_store %arg6[%c0_14, %c0_15], %42 {strides = array<i32>} : memref<16x128xf32, #tpu.memory_space<vmem>>, vector<16x128xf32>,
    %44 = arith.index_cast %8 : i32 to index
    %c0_16 = arith.constant 0 : index
    %c0_17 = arith.constant 0 : index
    %45 = vector.load %arg5[%44, %c0_16, %c0_17] : memref<8x16x128xf32, #tpu.memory_space<vmem>>, vector<1x16x128xf32>
    %46 = vector.shape_cast %45 : vector<1x16x128xf32> to vector<16x128xf32>
    %47 = vector.shape_cast %42 : vector<16x128xf32> to vector<1x16x128xf32>
    tpu.vector_store %arg5[%44, %c0_16, %c0_17], %47 {strides = array<i32>} : memref<8x16x128xf32, #tpu.memory_space<vmem>>, vector<1x16x128xf32>,
    %c5_i32 = arith.constant 5 : i32
    %48 = arith.muli %arg0, %c5_i32 : i32
    %c1_i32 = arith.constant 1 : i32
    %49 = arith.addi %c1_i32, %48 : i32
    %50 = arith.index_cast %49 : i32 to index
    %c0_18 = arith.constant 0 : index
    %c0_19 = arith.constant 0 : index
    %51 = vector.load %arg2[%50, %c0_18, %c0_19] : memref<8x16x384xf32, #tpu.memory_space<vmem>>, vector<1x16x384xf32>
    %52 = vector.shape_cast %51 : vector<1x16x384xf32> to vector<16x384xf32>
    %c0_20 = arith.constant 0 : index
    %c0_21 = arith.constant 0 : index
    %53 = vector.load %arg6[%c0_20, %c0_21] : memref<16x128xf32, #tpu.memory_space<vmem>>, vector<16x128xf32>
    %54 = arith.truncf %53 : vector<16x128xf32> to vector<16x128xbf16>
    %cst_22 = arith.constant dense<0.000000e+00> : vector<16x384xf32>
    %55 = tpu.matmul %54, %4, %cst_22 {dimension_numbers = #tpu.dot_dimension_numbers<[1], [0], [0], [1], [0, 0, 1, 1], [], []>} : vector<16x128xbf16>, vector<128x384xbf16>, vector<16x384xf32> -> vector<16x384xf32>
    %56 = vector.broadcast %6 : vector<1x384xf32> to vector<16x384xf32>
    %57 = arith.addf %55, %56 : vector<16x384xf32>
    %58 = vector.extract_strided_slice %52 {offsets = [0, 0], sizes = [16, 128], strides = [1, 1]} : vector<16x384xf32> to vector<16x128xf32>
    %59 = vector.extract_strided_slice %57 {offsets = [0, 0], sizes = [16, 128], strides = [1, 1]} : vector<16x384xf32> to vector<16x128xf32>
    %60 = arith.addf %58, %59 : vector<16x128xf32>
    %61 = arith.negf %60 : vector<16x128xf32>
    %62 = math.exp %61 : vector<16x128xf32>
    %cst_23 = arith.constant 1.000000e+00 : f32
    %63 = vector.broadcast %cst_23 : f32 to vector<16x128xf32>
    %64 = arith.addf %63, %62 : vector<16x128xf32>
    %65 = arith.divf %63, %64 : vector<16x128xf32>
    %66 = vector.extract_strided_slice %52 {offsets = [0, 128], sizes = [16, 128], strides = [1, 1]} : vector<16x384xf32> to vector<16x128xf32>
    %67 = vector.extract_strided_slice %57 {offsets = [0, 128], sizes = [16, 128], strides = [1, 1]} : vector<16x384xf32> to vector<16x128xf32>
    %68 = arith.addf %66, %67 : vector<16x128xf32>
    %69 = arith.negf %68 : vector<16x128xf32>
    %70 = math.exp %69 : vector<16x128xf32>
    %cst_24 = arith.constant 1.000000e+00 : f32
    %71 = vector.broadcast %cst_24 : f32 to vector<16x128xf32>
    %72 = arith.addf %71, %70 : vector<16x128xf32>
    %73 = arith.divf %71, %72 : vector<16x128xf32>
    %74 = vector.extract_strided_slice %52 {offsets = [0, 256], sizes = [16, 128], strides = [1, 1]} : vector<16x384xf32> to vector<16x128xf32>
    %75 = vector.extract_strided_slice %57 {offsets = [0, 256], sizes = [16, 128], strides = [1, 1]} : vector<16x384xf32> to vector<16x128xf32>
    %76 = arith.mulf %65, %75 : vector<16x128xf32>
    %77 = arith.addf %74, %76 : vector<16x128xf32>
    %78 = math.tanh %77 : vector<16x128xf32>
    %cst_25 = arith.constant 1.000000e+00 : f32
    %79 = vector.broadcast %cst_25 : f32 to vector<16x128xf32>
    %80 = arith.subf %79, %73 : vector<16x128xf32>
    %81 = arith.mulf %80, %78 : vector<16x128xf32>
    %82 = arith.mulf %73, %53 : vector<16x128xf32>
    %83 = arith.addf %81, %82 : vector<16x128xf32>
    %c0_26 = arith.constant 0 : index
    %c0_27 = arith.constant 0 : index
    %84 = vector.load %arg6[%c0_26, %c0_27] : memref<16x128xf32, #tpu.memory_space<vmem>>, vector<16x128xf32>
    tpu.vector_store %arg6[%c0_26, %c0_27], %83 {strides = array<i32>} : memref<16x128xf32, #tpu.memory_space<vmem>>, vector<16x128xf32>,
    %85 = arith.index_cast %49 : i32 to index
    %c0_28 = arith.constant 0 : index
    %c0_29 = arith.constant 0 : index
    %86 = vector.load %arg5[%85, %c0_28, %c0_29] : memref<8x16x128xf32, #tpu.memory_space<vmem>>, vector<1x16x128xf32>
    %87 = vector.shape_cast %86 : vector<1x16x128xf32> to vector<16x128xf32>
    %88 = vector.shape_cast %83 : vector<16x128xf32> to vector<1x16x128xf32>
    tpu.vector_store %arg5[%85, %c0_28, %c0_29], %88 {strides = array<i32>} : memref<8x16x128xf32, #tpu.memory_space<vmem>>, vector<1x16x128xf32>,
    %c3_i32 = arith.constant 3 : i32
    %89 = arith.muli %arg0, %c3_i32 : i32
    %c2_i32 = arith.constant 2 : i32
    %90 = arith.addi %c2_i32, %89 : i32
    %91 = arith.index_cast %90 : i32 to index
    %c0_30 = arith.constant 0 : index
    %c0_31 = arith.constant 0 : index
    %92 = vector.load %arg2[%91, %c0_30, %c0_31] : memref<8x16x384xf32, #tpu.memory_space<vmem>>, vector<1x16x384xf32>
    %93 = vector.shape_cast %92 : vector<1x16x384xf32> to vector<16x384xf32>
    %c0_32 = arith.constant 0 : index
    %c0_33 = arith.constant 0 : index
    %94 = vector.load %arg6[%c0_32, %c0_33] : memref<16x128xf32, #tpu.memory_space<vmem>>, vector<16x128xf32>
    %95 = arith.truncf %94 : vector<16x128xf32> to vector<16x128xbf16>
    %cst_34 = arith.constant dense<0.000000e+00> : vector<16x384xf32>
    %96 = tpu.matmul %95, %4, %cst_34 {dimension_numbers = #tpu.dot_dimension_numbers<[1], [0], [0], [1], [0, 0, 1, 1], [], []>} : vector<16x128xbf16>, vector<128x384xbf16>, vector<16x384xf32> -> vector<16x384xf32>
    %97 = vector.broadcast %6 : vector<1x384xf32> to vector<16x384xf32>
    %98 = arith.addf %96, %97 : vector<16x384xf32>
    %99 = vector.extract_strided_slice %93 {offsets = [0, 0], sizes = [16, 128], strides = [1, 1]} : vector<16x384xf32> to vector<16x128xf32>
    %100 = vector.extract_strided_slice %98 {offsets = [0, 0], sizes = [16, 128], strides = [1, 1]} : vector<16x384xf32> to vector<16x128xf32>
    %101 = arith.addf %99, %100 : vector<16x128xf32>
    %102 = arith.negf %101 : vector<16x128xf32>
    %103 = math.exp %102 : vector<16x128xf32>
    %cst_35 = arith.constant 1.000000e+00 : f32
    %104 = vector.broadcast %cst_35 : f32 to vector<16x128xf32>
    %105 = arith.addf %104, %103 : vector<16x128xf32>
    %106 = arith.divf %104, %105 : vector<16x128xf32>
    %107 = vector.extract_strided_slice %93 {offsets = [0, 128], sizes = [16, 128], strides = [1, 1]} : vector<16x384xf32> to vector<16x128xf32>
    %108 = vector.extract_strided_slice %98 {offsets = [0, 128], sizes = [16, 128], strides = [1, 1]} : vector<16x384xf32> to vector<16x128xf32>
    %109 = arith.addf %107, %108 : vector<16x128xf32>
    %110 = arith.negf %109 : vector<16x128xf32>
    %111 = math.exp %110 : vector<16x128xf32>
    %cst_36 = arith.constant 1.000000e+00 : f32
    %112 = vector.broadcast %cst_36 : f32 to vector<16x128xf32>
    %113 = arith.addf %112, %111 : vector<16x128xf32>
    %114 = arith.divf %112, %113 : vector<16x128xf32>
    %115 = vector.extract_strided_slice %93 {offsets = [0, 256], sizes = [16, 128], strides = [1, 1]} : vector<16x384xf32> to vector<16x128xf32>
    %116 = vector.extract_strided_slice %98 {offsets = [0, 256], sizes = [16, 128], strides = [1, 1]} : vector<16x384xf32> to vector<16x128xf32>
    %117 = arith.mulf %106, %116 : vector<16x128xf32>
    %118 = arith.addf %115, %117 : vector<16x128xf32>
    %119 = math.tanh %118 : vector<16x128xf32>
    %cst_37 = arith.constant 1.000000e+00 : f32
    %120 = vector.broadcast %cst_37 : f32 to vector<16x128xf32>
    %121 = arith.subf %120, %114 : vector<16x128xf32>
    %122 = arith.mulf %121, %119 : vector<16x128xf32>
    %123 = arith.mulf %114, %94 : vector<16x128xf32>
    %124 = arith.addf %122, %123 : vector<16x128xf32>
    %c0_38 = arith.constant 0 : index
    %c0_39 = arith.constant 0 : index
    %125 = vector.load %arg6[%c0_38, %c0_39] : memref<16x128xf32, #tpu.memory_space<vmem>>, vector<16x128xf32>
    tpu.vector_store %arg6[%c0_38, %c0_39], %124 {strides = array<i32>} : memref<16x128xf32, #tpu.memory_space<vmem>>, vector<16x128xf32>,
    %126 = arith.index_cast %90 : i32 to index
    %c0_40 = arith.constant 0 : index
    %c0_41 = arith.constant 0 : index
    %127 = vector.load %arg5[%126, %c0_40, %c0_41] : memref<8x16x128xf32, #tpu.memory_space<vmem>>, vector<1x16x128xf32>
    %128 = vector.shape_cast %127 : vector<1x16x128xf32> to vector<16x128xf32>
    %129 = vector.shape_cast %124 : vector<16x128xf32> to vector<1x16x128xf32>
    tpu.vector_store %arg5[%126, %c0_40, %c0_41], %129 {strides = array<i32>} : memref<8x16x128xf32, #tpu.memory_space<vmem>>, vector<1x16x128xf32>,
    %c1_i32_42 = arith.constant 1 : i32
    %130 = arith.muli %arg0, %c1_i32_42 : i32
    %c3_i32_43 = arith.constant 3 : i32
    %131 = arith.addi %c3_i32_43, %130 : i32
    %132 = arith.index_cast %131 : i32 to index
    %c0_44 = arith.constant 0 : index
    %c0_45 = arith.constant 0 : index
    %133 = vector.load %arg2[%132, %c0_44, %c0_45] : memref<8x16x384xf32, #tpu.memory_space<vmem>>, vector<1x16x384xf32>
    %134 = vector.shape_cast %133 : vector<1x16x384xf32> to vector<16x384xf32>
    %c0_46 = arith.constant 0 : index
    %c0_47 = arith.constant 0 : index
    %135 = vector.load %arg6[%c0_46, %c0_47] : memref<16x128xf32, #tpu.memory_space<vmem>>, vector<16x128xf32>
    %136 = arith.truncf %135 : vector<16x128xf32> to vector<16x128xbf16>
    %cst_48 = arith.constant dense<0.000000e+00> : vector<16x384xf32>
    %137 = tpu.matmul %136, %4, %cst_48 {dimension_numbers = #tpu.dot_dimension_numbers<[1], [0], [0], [1], [0, 0, 1, 1], [], []>} : vector<16x128xbf16>, vector<128x384xbf16>, vector<16x384xf32> -> vector<16x384xf32>
    %138 = vector.broadcast %6 : vector<1x384xf32> to vector<16x384xf32>
    %139 = arith.addf %137, %138 : vector<16x384xf32>
    %140 = vector.extract_strided_slice %134 {offsets = [0, 0], sizes = [16, 128], strides = [1, 1]} : vector<16x384xf32> to vector<16x128xf32>
    %141 = vector.extract_strided_slice %139 {offsets = [0, 0], sizes = [16, 128], strides = [1, 1]} : vector<16x384xf32> to vector<16x128xf32>
    %142 = arith.addf %140, %141 : vector<16x128xf32>
    %143 = arith.negf %142 : vector<16x128xf32>
    %144 = math.exp %143 : vector<16x128xf32>
    %cst_49 = arith.constant 1.000000e+00 : f32
    %145 = vector.broadcast %cst_49 : f32 to vector<16x128xf32>
    %146 = arith.addf %145, %144 : vector<16x128xf32>
    %147 = arith.divf %145, %146 : vector<16x128xf32>
    %148 = vector.extract_strided_slice %134 {offsets = [0, 128], sizes = [16, 128], strides = [1, 1]} : vector<16x384xf32> to vector<16x128xf32>
    %149 = vector.extract_strided_slice %139 {offsets = [0, 128], sizes = [16, 128], strides = [1, 1]} : vector<16x384xf32> to vector<16x128xf32>
    %150 = arith.addf %148, %149 : vector<16x128xf32>
    %151 = arith.negf %150 : vector<16x128xf32>
    %152 = math.exp %151 : vector<16x128xf32>
    %cst_50 = arith.constant 1.000000e+00 : f32
    %153 = vector.broadcast %cst_50 : f32 to vector<16x128xf32>
    %154 = arith.addf %153, %152 : vector<16x128xf32>
    %155 = arith.divf %153, %154 : vector<16x128xf32>
    %156 = vector.extract_strided_slice %134 {offsets = [0, 256], sizes = [16, 128], strides = [1, 1]} : vector<16x384xf32> to vector<16x128xf32>
    %157 = vector.extract_strided_slice %139 {offsets = [0, 256], sizes = [16, 128], strides = [1, 1]} : vector<16x384xf32> to vector<16x128xf32>
    %158 = arith.mulf %147, %157 : vector<16x128xf32>
    %159 = arith.addf %156, %158 : vector<16x128xf32>
    %160 = math.tanh %159 : vector<16x128xf32>
    %cst_51 = arith.constant 1.000000e+00 : f32
    %161 = vector.broadcast %cst_51 : f32 to vector<16x128xf32>
    %162 = arith.subf %161, %155 : vector<16x128xf32>
    %163 = arith.mulf %162, %160 : vector<16x128xf32>
    %164 = arith.mulf %155, %135 : vector<16x128xf32>
    %165 = arith.addf %163, %164 : vector<16x128xf32>
    %c0_52 = arith.constant 0 : index
    %c0_53 = arith.constant 0 : index
    %166 = vector.load %arg6[%c0_52, %c0_53] : memref<16x128xf32, #tpu.memory_space<vmem>>, vector<16x128xf32>
    tpu.vector_store %arg6[%c0_52, %c0_53], %165 {strides = array<i32>} : memref<16x128xf32, #tpu.memory_space<vmem>>, vector<16x128xf32>,
    %167 = arith.index_cast %131 : i32 to index
    %c0_54 = arith.constant 0 : index
    %c0_55 = arith.constant 0 : index
    %168 = vector.load %arg5[%167, %c0_54, %c0_55] : memref<8x16x128xf32, #tpu.memory_space<vmem>>, vector<1x16x128xf32>
    %169 = vector.shape_cast %168 : vector<1x16x128xf32> to vector<16x128xf32>
    %170 = vector.shape_cast %165 : vector<16x128xf32> to vector<1x16x128xf32>
    tpu.vector_store %arg5[%167, %c0_54, %c0_55], %170 {strides = array<i32>} : memref<8x16x128xf32, #tpu.memory_space<vmem>>, vector<1x16x128xf32>,
    %c-1_i32 = arith.constant -1 : i32
    %171 = arith.muli %arg0, %c-1_i32 : i32
    %c4_i32 = arith.constant 4 : i32
    %172 = arith.addi %c4_i32, %171 : i32
    %173 = arith.index_cast %172 : i32 to index
    %c0_56 = arith.constant 0 : index
    %c0_57 = arith.constant 0 : index
    %174 = vector.load %arg2[%173, %c0_56, %c0_57] : memref<8x16x384xf32, #tpu.memory_space<vmem>>, vector<1x16x384xf32>
    %175 = vector.shape_cast %174 : vector<1x16x384xf32> to vector<16x384xf32>
    %c0_58 = arith.constant 0 : index
    %c0_59 = arith.constant 0 : index
    %176 = vector.load %arg6[%c0_58, %c0_59] : memref<16x128xf32, #tpu.memory_space<vmem>>, vector<16x128xf32>
    %177 = arith.truncf %176 : vector<16x128xf32> to vector<16x128xbf16>
    %cst_60 = arith.constant dense<0.000000e+00> : vector<16x384xf32>
    %178 = tpu.matmul %177, %4, %cst_60 {dimension_numbers = #tpu.dot_dimension_numbers<[1], [0], [0], [1], [0, 0, 1, 1], [], []>} : vector<16x128xbf16>, vector<128x384xbf16>, vector<16x384xf32> -> vector<16x384xf32>
    %179 = vector.broadcast %6 : vector<1x384xf32> to vector<16x384xf32>
    %180 = arith.addf %178, %179 : vector<16x384xf32>
    %181 = vector.extract_strided_slice %175 {offsets = [0, 0], sizes = [16, 128], strides = [1, 1]} : vector<16x384xf32> to vector<16x128xf32>
    %182 = vector.extract_strided_slice %180 {offsets = [0, 0], sizes = [16, 128], strides = [1, 1]} : vector<16x384xf32> to vector<16x128xf32>
    %183 = arith.addf %181, %182 : vector<16x128xf32>
    %184 = arith.negf %183 : vector<16x128xf32>
    %185 = math.exp %184 : vector<16x128xf32>
    %cst_61 = arith.constant 1.000000e+00 : f32
    %186 = vector.broadcast %cst_61 : f32 to vector<16x128xf32>
    %187 = arith.addf %186, %185 : vector<16x128xf32>
    %188 = arith.divf %186, %187 : vector<16x128xf32>
    %189 = vector.extract_strided_slice %175 {offsets = [0, 128], sizes = [16, 128], strides = [1, 1]} : vector<16x384xf32> to vector<16x128xf32>
    %190 = vector.extract_strided_slice %180 {offsets = [0, 128], sizes = [16, 128], strides = [1, 1]} : vector<16x384xf32> to vector<16x128xf32>
    %191 = arith.addf %189, %190 : vector<16x128xf32>
    %192 = arith.negf %191 : vector<16x128xf32>
    %193 = math.exp %192 : vector<16x128xf32>
    %cst_62 = arith.constant 1.000000e+00 : f32
    %194 = vector.broadcast %cst_62 : f32 to vector<16x128xf32>
    %195 = arith.addf %194, %193 : vector<16x128xf32>
    %196 = arith.divf %194, %195 : vector<16x128xf32>
    %197 = vector.extract_strided_slice %175 {offsets = [0, 256], sizes = [16, 128], strides = [1, 1]} : vector<16x384xf32> to vector<16x128xf32>
    %198 = vector.extract_strided_slice %180 {offsets = [0, 256], sizes = [16, 128], strides = [1, 1]} : vector<16x384xf32> to vector<16x128xf32>
    %199 = arith.mulf %188, %198 : vector<16x128xf32>
    %200 = arith.addf %197, %199 : vector<16x128xf32>
    %201 = math.tanh %200 : vector<16x128xf32>
    %cst_63 = arith.constant 1.000000e+00 : f32
    %202 = vector.broadcast %cst_63 : f32 to vector<16x128xf32>
    %203 = arith.subf %202, %196 : vector<16x128xf32>
    %204 = arith.mulf %203, %201 : vector<16x128xf32>
    %205 = arith.mulf %196, %176 : vector<16x128xf32>
    %206 = arith.addf %204, %205 : vector<16x128xf32>
    %c0_64 = arith.constant 0 : index
    %c0_65 = arith.constant 0 : index
    %207 = vector.load %arg6[%c0_64, %c0_65] : memref<16x128xf32, #tpu.memory_space<vmem>>, vector<16x128xf32>
    tpu.vector_store %arg6[%c0_64, %c0_65], %206 {strides = array<i32>} : memref<16x128xf32, #tpu.memory_space<vmem>>, vector<16x128xf32>,
    %208 = arith.index_cast %172 : i32 to index
    %c0_66 = arith.constant 0 : index
    %c0_67 = arith.constant 0 : index
    %209 = vector.load %arg5[%208, %c0_66, %c0_67] : memref<8x16x128xf32, #tpu.memory_space<vmem>>, vector<1x16x128xf32>
    %210 = vector.shape_cast %209 : vector<1x16x128xf32> to vector<16x128xf32>
    %211 = vector.shape_cast %206 : vector<16x128xf32> to vector<1x16x128xf32>
    tpu.vector_store %arg5[%208, %c0_66, %c0_67], %211 {strides = array<i32>} : memref<8x16x128xf32, #tpu.memory_space<vmem>>, vector<1x16x128xf32>,
    %c-3_i32 = arith.constant -3 : i32
    %212 = arith.muli %arg0, %c-3_i32 : i32
    %c5_i32_68 = arith.constant 5 : i32
    %213 = arith.addi %c5_i32_68, %212 : i32
    %214 = arith.index_cast %213 : i32 to index
    %c0_69 = arith.constant 0 : index
    %c0_70 = arith.constant 0 : index
    %215 = vector.load %arg2[%214, %c0_69, %c0_70] : memref<8x16x384xf32, #tpu.memory_space<vmem>>, vector<1x16x384xf32>
    %216 = vector.shape_cast %215 : vector<1x16x384xf32> to vector<16x384xf32>
    %c0_71 = arith.constant 0 : index
    %c0_72 = arith.constant 0 : index
    %217 = vector.load %arg6[%c0_71, %c0_72] : memref<16x128xf32, #tpu.memory_space<vmem>>, vector<16x128xf32>
    %218 = arith.truncf %217 : vector<16x128xf32> to vector<16x128xbf16>
    %cst_73 = arith.constant dense<0.000000e+00> : vector<16x384xf32>
    %219 = tpu.matmul %218, %4, %cst_73 {dimension_numbers = #tpu.dot_dimension_numbers<[1], [0], [0], [1], [0, 0, 1, 1], [], []>} : vector<16x128xbf16>, vector<128x384xbf16>, vector<16x384xf32> -> vector<16x384xf32>
    %220 = vector.broadcast %6 : vector<1x384xf32> to vector<16x384xf32>
    %221 = arith.addf %219, %220 : vector<16x384xf32>
    %222 = vector.extract_strided_slice %216 {offsets = [0, 0], sizes = [16, 128], strides = [1, 1]} : vector<16x384xf32> to vector<16x128xf32>
    %223 = vector.extract_strided_slice %221 {offsets = [0, 0], sizes = [16, 128], strides = [1, 1]} : vector<16x384xf32> to vector<16x128xf32>
    %224 = arith.addf %222, %223 : vector<16x128xf32>
    %225 = arith.negf %224 : vector<16x128xf32>
    %226 = math.exp %225 : vector<16x128xf32>
    %cst_74 = arith.constant 1.000000e+00 : f32
    %227 = vector.broadcast %cst_74 : f32 to vector<16x128xf32>
    %228 = arith.addf %227, %226 : vector<16x128xf32>
    %229 = arith.divf %227, %228 : vector<16x128xf32>
    %230 = vector.extract_strided_slice %216 {offsets = [0, 128], sizes = [16, 128], strides = [1, 1]} : vector<16x384xf32> to vector<16x128xf32>
    %231 = vector.extract_strided_slice %221 {offsets = [0, 128], sizes = [16, 128], strides = [1, 1]} : vector<16x384xf32> to vector<16x128xf32>
    %232 = arith.addf %230, %231 : vector<16x128xf32>
    %233 = arith.negf %232 : vector<16x128xf32>
    %234 = math.exp %233 : vector<16x128xf32>
    %cst_75 = arith.constant 1.000000e+00 : f32
    %235 = vector.broadcast %cst_75 : f32 to vector<16x128xf32>
    %236 = arith.addf %235, %234 : vector<16x128xf32>
    %237 = arith.divf %235, %236 : vector<16x128xf32>
    %238 = vector.extract_strided_slice %216 {offsets = [0, 256], sizes = [16, 128], strides = [1, 1]} : vector<16x384xf32> to vector<16x128xf32>
    %239 = vector.extract_strided_slice %221 {offsets = [0, 256], sizes = [16, 128], strides = [1, 1]} : vector<16x384xf32> to vector<16x128xf32>
    %240 = arith.mulf %229, %239 : vector<16x128xf32>
    %241 = arith.addf %238, %240 : vector<16x128xf32>
    %242 = math.tanh %241 : vector<16x128xf32>
    %cst_76 = arith.constant 1.000000e+00 : f32
    %243 = vector.broadcast %cst_76 : f32 to vector<16x128xf32>
    %244 = arith.subf %243, %237 : vector<16x128xf32>
    %245 = arith.mulf %244, %242 : vector<16x128xf32>
    %246 = arith.mulf %237, %217 : vector<16x128xf32>
    %247 = arith.addf %245, %246 : vector<16x128xf32>
    %c0_77 = arith.constant 0 : index
    %c0_78 = arith.constant 0 : index
    %248 = vector.load %arg6[%c0_77, %c0_78] : memref<16x128xf32, #tpu.memory_space<vmem>>, vector<16x128xf32>
    tpu.vector_store %arg6[%c0_77, %c0_78], %247 {strides = array<i32>} : memref<16x128xf32, #tpu.memory_space<vmem>>, vector<16x128xf32>,
    %249 = arith.index_cast %213 : i32 to index
    %c0_79 = arith.constant 0 : index
    %c0_80 = arith.constant 0 : index
    %250 = vector.load %arg5[%249, %c0_79, %c0_80] : memref<8x16x128xf32, #tpu.memory_space<vmem>>, vector<1x16x128xf32>
    %251 = vector.shape_cast %250 : vector<1x16x128xf32> to vector<16x128xf32>
    %252 = vector.shape_cast %247 : vector<16x128xf32> to vector<1x16x128xf32>
    tpu.vector_store %arg5[%249, %c0_79, %c0_80], %252 {strides = array<i32>} : memref<8x16x128xf32, #tpu.memory_space<vmem>>, vector<1x16x128xf32>,
    %c-5_i32 = arith.constant -5 : i32
    %253 = arith.muli %arg0, %c-5_i32 : i32
    %c6_i32 = arith.constant 6 : i32
    %254 = arith.addi %c6_i32, %253 : i32
    %255 = arith.index_cast %254 : i32 to index
    %c0_81 = arith.constant 0 : index
    %c0_82 = arith.constant 0 : index
    %256 = vector.load %arg2[%255, %c0_81, %c0_82] : memref<8x16x384xf32, #tpu.memory_space<vmem>>, vector<1x16x384xf32>
    %257 = vector.shape_cast %256 : vector<1x16x384xf32> to vector<16x384xf32>
    %c0_83 = arith.constant 0 : index
    %c0_84 = arith.constant 0 : index
    %258 = vector.load %arg6[%c0_83, %c0_84] : memref<16x128xf32, #tpu.memory_space<vmem>>, vector<16x128xf32>
    %259 = arith.truncf %258 : vector<16x128xf32> to vector<16x128xbf16>
    %cst_85 = arith.constant dense<0.000000e+00> : vector<16x384xf32>
    %260 = tpu.matmul %259, %4, %cst_85 {dimension_numbers = #tpu.dot_dimension_numbers<[1], [0], [0], [1], [0, 0, 1, 1], [], []>} : vector<16x128xbf16>, vector<128x384xbf16>, vector<16x384xf32> -> vector<16x384xf32>
    %261 = vector.broadcast %6 : vector<1x384xf32> to vector<16x384xf32>
    %262 = arith.addf %260, %261 : vector<16x384xf32>
    %263 = vector.extract_strided_slice %257 {offsets = [0, 0], sizes = [16, 128], strides = [1, 1]} : vector<16x384xf32> to vector<16x128xf32>
    %264 = vector.extract_strided_slice %262 {offsets = [0, 0], sizes = [16, 128], strides = [1, 1]} : vector<16x384xf32> to vector<16x128xf32>
    %265 = arith.addf %263, %264 : vector<16x128xf32>
    %266 = arith.negf %265 : vector<16x128xf32>
    %267 = math.exp %266 : vector<16x128xf32>
    %cst_86 = arith.constant 1.000000e+00 : f32
    %268 = vector.broadcast %cst_86 : f32 to vector<16x128xf32>
    %269 = arith.addf %268, %267 : vector<16x128xf32>
    %270 = arith.divf %268, %269 : vector<16x128xf32>
    %271 = vector.extract_strided_slice %257 {offsets = [0, 128], sizes = [16, 128], strides = [1, 1]} : vector<16x384xf32> to vector<16x128xf32>
    %272 = vector.extract_strided_slice %262 {offsets = [0, 128], sizes = [16, 128], strides = [1, 1]} : vector<16x384xf32> to vector<16x128xf32>
    %273 = arith.addf %271, %272 : vector<16x128xf32>
    %274 = arith.negf %273 : vector<16x128xf32>
    %275 = math.exp %274 : vector<16x128xf32>
    %cst_87 = arith.constant 1.000000e+00 : f32
    %276 = vector.broadcast %cst_87 : f32 to vector<16x128xf32>
    %277 = arith.addf %276, %275 : vector<16x128xf32>
    %278 = arith.divf %276, %277 : vector<16x128xf32>
    %279 = vector.extract_strided_slice %257 {offsets = [0, 256], sizes = [16, 128], strides = [1, 1]} : vector<16x384xf32> to vector<16x128xf32>
    %280 = vector.extract_strided_slice %262 {offsets = [0, 256], sizes = [16, 128], strides = [1, 1]} : vector<16x384xf32> to vector<16x128xf32>
    %281 = arith.mulf %270, %280 : vector<16x128xf32>
    %282 = arith.addf %279, %281 : vector<16x128xf32>
    %283 = math.tanh %282 : vector<16x128xf32>
    %cst_88 = arith.constant 1.000000e+00 : f32
    %284 = vector.broadcast %cst_88 : f32 to vector<16x128xf32>
    %285 = arith.subf %284, %278 : vector<16x128xf32>
    %286 = arith.mulf %285, %283 : vector<16x128xf32>
    %287 = arith.mulf %278, %258 : vector<16x128xf32>
    %288 = arith.addf %286, %287 : vector<16x128xf32>
    %c0_89 = arith.constant 0 : index
    %c0_90 = arith.constant 0 : index
    %289 = vector.load %arg6[%c0_89, %c0_90] : memref<16x128xf32, #tpu.memory_space<vmem>>, vector<16x128xf32>
    tpu.vector_store %arg6[%c0_89, %c0_90], %288 {strides = array<i32>} : memref<16x128xf32, #tpu.memory_space<vmem>>, vector<16x128xf32>,
    %290 = arith.index_cast %254 : i32 to index
    %c0_91 = arith.constant 0 : index
    %c0_92 = arith.constant 0 : index
    %291 = vector.load %arg5[%290, %c0_91, %c0_92] : memref<8x16x128xf32, #tpu.memory_space<vmem>>, vector<1x16x128xf32>
    %292 = vector.shape_cast %291 : vector<1x16x128xf32> to vector<16x128xf32>
    %293 = vector.shape_cast %288 : vector<16x128xf32> to vector<1x16x128xf32>
    tpu.vector_store %arg5[%290, %c0_91, %c0_92], %293 {strides = array<i32>} : memref<8x16x128xf32, #tpu.memory_space<vmem>>, vector<1x16x128xf32>,
    %c-7_i32 = arith.constant -7 : i32
    %294 = arith.muli %arg0, %c-7_i32 : i32
    %c7_i32_93 = arith.constant 7 : i32
    %295 = arith.addi %c7_i32_93, %294 : i32
    %296 = arith.index_cast %295 : i32 to index
    %c0_94 = arith.constant 0 : index
    %c0_95 = arith.constant 0 : index
    %297 = vector.load %arg2[%296, %c0_94, %c0_95] : memref<8x16x384xf32, #tpu.memory_space<vmem>>, vector<1x16x384xf32>
    %298 = vector.shape_cast %297 : vector<1x16x384xf32> to vector<16x384xf32>
    %c0_96 = arith.constant 0 : index
    %c0_97 = arith.constant 0 : index
    %299 = vector.load %arg6[%c0_96, %c0_97] : memref<16x128xf32, #tpu.memory_space<vmem>>, vector<16x128xf32>
    %300 = arith.truncf %299 : vector<16x128xf32> to vector<16x128xbf16>
    %cst_98 = arith.constant dense<0.000000e+00> : vector<16x384xf32>
    %301 = tpu.matmul %300, %4, %cst_98 {dimension_numbers = #tpu.dot_dimension_numbers<[1], [0], [0], [1], [0, 0, 1, 1], [], []>} : vector<16x128xbf16>, vector<128x384xbf16>, vector<16x384xf32> -> vector<16x384xf32>
    %302 = vector.broadcast %6 : vector<1x384xf32> to vector<16x384xf32>
    %303 = arith.addf %301, %302 : vector<16x384xf32>
    %304 = vector.extract_strided_slice %298 {offsets = [0, 0], sizes = [16, 128], strides = [1, 1]} : vector<16x384xf32> to vector<16x128xf32>
    %305 = vector.extract_strided_slice %303 {offsets = [0, 0], sizes = [16, 128], strides = [1, 1]} : vector<16x384xf32> to vector<16x128xf32>
    %306 = arith.addf %304, %305 : vector<16x128xf32>
    %307 = arith.negf %306 : vector<16x128xf32>
    %308 = math.exp %307 : vector<16x128xf32>
    %cst_99 = arith.constant 1.000000e+00 : f32
    %309 = vector.broadcast %cst_99 : f32 to vector<16x128xf32>
    %310 = arith.addf %309, %308 : vector<16x128xf32>
    %311 = arith.divf %309, %310 : vector<16x128xf32>
    %312 = vector.extract_strided_slice %298 {offsets = [0, 128], sizes = [16, 128], strides = [1, 1]} : vector<16x384xf32> to vector<16x128xf32>
    %313 = vector.extract_strided_slice %303 {offsets = [0, 128], sizes = [16, 128], strides = [1, 1]} : vector<16x384xf32> to vector<16x128xf32>
    %314 = arith.addf %312, %313 : vector<16x128xf32>
    %315 = arith.negf %314 : vector<16x128xf32>
    %316 = math.exp %315 : vector<16x128xf32>
    %cst_100 = arith.constant 1.000000e+00 : f32
    %317 = vector.broadcast %cst_100 : f32 to vector<16x128xf32>
    %318 = arith.addf %317, %316 : vector<16x128xf32>
    %319 = arith.divf %317, %318 : vector<16x128xf32>
    %320 = vector.extract_strided_slice %298 {offsets = [0, 256], sizes = [16, 128], strides = [1, 1]} : vector<16x384xf32> to vector<16x128xf32>
    %321 = vector.extract_strided_slice %303 {offsets = [0, 256], sizes = [16, 128], strides = [1, 1]} : vector<16x384xf32> to vector<16x128xf32>
    %322 = arith.mulf %311, %321 : vector<16x128xf32>
    %323 = arith.addf %320, %322 : vector<16x128xf32>
    %324 = math.tanh %323 : vector<16x128xf32>
    %cst_101 = arith.constant 1.000000e+00 : f32
    %325 = vector.broadcast %cst_101 : f32 to vector<16x128xf32>
    %326 = arith.subf %325, %319 : vector<16x128xf32>
    %327 = arith.mulf %326, %324 : vector<16x128xf32>
    %328 = arith.mulf %319, %299 : vector<16x128xf32>
    %329 = arith.addf %327, %328 : vector<16x128xf32>
    %c0_102 = arith.constant 0 : index
    %c0_103 = arith.constant 0 : index
    %330 = vector.load %arg6[%c0_102, %c0_103] : memref<16x128xf32, #tpu.memory_space<vmem>>, vector<16x128xf32>
    tpu.vector_store %arg6[%c0_102, %c0_103], %329 {strides = array<i32>} : memref<16x128xf32, #tpu.memory_space<vmem>>, vector<16x128xf32>,
    %331 = arith.index_cast %295 : i32 to index
    %c0_104 = arith.constant 0 : index
    %c0_105 = arith.constant 0 : index
    %332 = vector.load %arg5[%331, %c0_104, %c0_105] : memref<8x16x128xf32, #tpu.memory_space<vmem>>, vector<1x16x128xf32>
    %333 = vector.shape_cast %332 : vector<1x16x128xf32> to vector<16x128xf32>
    %334 = vector.shape_cast %329 : vector<16x128xf32> to vector<1x16x128xf32>
    tpu.vector_store %arg5[%331, %c0_104, %c0_105], %334 {strides = array<i32>} : memref<8x16x128xf32, #tpu.memory_space<vmem>>, vector<1x16x128xf32>,
    return
  }
  func.func @transform_0(%arg0: i32, %arg1: i32) -> (i32, i32, i32) {
    %c2_i32 = arith.constant 2 : i32
    %0 = arith.muli %c2_i32, %arg1 : i32
    %c0_i32 = arith.constant 0 : i32
    %1 = arith.subi %c0_i32, %0 : i32
    %2 = arith.muli %arg0, %1 : i32
    %3 = arith.addi %arg1, %2 : i32
    %c0_i32_0 = arith.constant 0 : i32
    %c0_i32_1 = arith.constant 0 : i32
    return %3, %c0_i32_0, %arg0 : i32, i32, i32
  }
  func.func @transform_1(%arg0: i32, %arg1: i32) -> (i32, i32, i32) {
    %c0_i32 = arith.constant 0 : i32
    %c0_i32_0 = arith.constant 0 : i32
    %c0_i32_1 = arith.constant 0 : i32
    return %arg0, %c0_i32, %c0_i32_0 : i32, i32, i32
  }
  func.func @transform_2(%arg0: i32, %arg1: i32) -> (i32, i32, i32) {
    %c0_i32 = arith.constant 0 : i32
    %c0_i32_0 = arith.constant 0 : i32
    %c0_i32_1 = arith.constant 0 : i32
    return %arg0, %c0_i32, %c0_i32_0 : i32, i32, i32
  }
  func.func @transform_3(%arg0: i32, %arg1: i32) -> (i32, i32, i32) {
    %c2_i32 = arith.constant 2 : i32
    %0 = arith.muli %c2_i32, %arg1 : i32
    %c0_i32 = arith.constant 0 : i32
    %1 = arith.subi %c0_i32, %0 : i32
    %2 = arith.muli %arg0, %1 : i32
    %3 = arith.addi %arg1, %2 : i32
    %c0_i32_0 = arith.constant 0 : i32
    %c0_i32_1 = arith.constant 0 : i32
    return %3, %c0_i32_0, %arg0 : i32, i32, i32
  }
}

</mosaic_0001>

<llo_original>
// kernel: forward.10
$region0: #{forward.10}
  #allocation0 [shape = 'u32[]', space=smem, size = 0x4, offset = 0x4, fixed_abs, tag = 'smem constant byte address 0x4 - core index']
  #allocation1 [shape = 'u32[144,128]{1,0:T(1,128)}', space=vmem, size = 0x12000, scoped, tag = 'internal scratch']
  %s0 = inlined_call_operand.vmem [shape: bf16[40,256], index: 0, kind: input, shape index: {}]
  %s1 = inlined_call_operand.vmem [shape: bf16[256,256], index: 1, kind: input, shape index: {}]
  %s2 = inlined_call_operand.vmem [shape: f32[1,256], index: 2, kind: input, shape index: {}]
  %s3 = inlined_call_operand.vmem [shape: f32[40,256], index: 3, kind: output, shape index: {}]
  %s4 = sld [smem:[#allocation0]]
  $region22: #{forward.10} parent=0
    _
  %s6 = ssub.s32 1, %s4
  %s7 = scalar_select 0, %s6, %s4
  // Predicated region
  $region2: #{forward.10} parent=0 // pred_check
    _
  $region3: #{forward.10} parent=0 // pred_check_branch
    %9 = sbr.rel (0) target = $region5
  $region4: #{forward.10} parent=0 // pred_region
    _
  $region5: #{forward.10} parent=0 // pred_fallthru
    _
  // Predicated region
  $region6: #{forward.10} parent=0 // pred_check
    _
  $region7: #{forward.10} parent=0 // pred_check_branch
    %11 = sbr.rel (0) target = $region9
  $region8: #{forward.10} parent=0 // pred_region
    _
  $region9: #{forward.10} parent=0 // pred_fallthru
    _
  // Predicated region
  $region10: #{forward.10} parent=0 // pred_check
    _
  $region11: #{forward.10} parent=0 // pred_check_branch
    %13 = sbr.rel (0) target = $region13
  $region12: #{forward.10} parent=0 // pred_region
    _
  $region13: #{forward.10} parent=0 // pred_fallthru
    _
  %v14 = vld [vmem:[%s0] sm:$0xff]
  %v15 = vld [vmem:[%s0 + $0x8] sm:$0xff]
  %v16 = vld [vmem:[%s0 + $0x10] sm:$0xff]
  %v17 = vld [vmem:[%s0 + $0x18] sm:$0xff]
  %v18 = vld [vmem:[%s0 + $0x20] sm:$0xff]
  %v19 = vld [vmem:[%s1] sm:$0xff]
  %v20 = vld [vmem:[%s1 + $0x8] sm:$0xff]
  %v21 = vld [vmem:[%s1 + $0x10] sm:$0xff]
  %v22 = vld [vmem:[%s1 + $0x18] sm:$0xff]
  %v23 = vld [vmem:[%s1 + $0x20] sm:$0xff]
  %v24 = vld [vmem:[%s1 + $0x28] sm:$0xff]
  %v25 = vld [vmem:[%s1 + $0x30] sm:$0xff]
  %v26 = vld [vmem:[%s1 + $0x38] sm:$0xff]
  %v27 = vld [vmem:[%s1 + $0x40] sm:$0xff]
  %v28 = vld [vmem:[%s1 + $0x48] sm:$0xff]
  %v29 = vld [vmem:[%s1 + $0x50] sm:$0xff]
  %v30 = vld [vmem:[%s1 + $0x58] sm:$0xff]
  %v31 = vld [vmem:[%s1 + $0x60] sm:$0xff]
  %v32 = vld [vmem:[%s1 + $0x68] sm:$0xff]
  %v33 = vld [vmem:[%s1 + $0x70] sm:$0xff]
  %v34 = vld [vmem:[%s1 + $0x78] sm:$0xff]
  %v35 = vld [vmem:[%s1 + $0x80] sm:$0xff]
  %v36 = vld [vmem:[%s1 + $0x88] sm:$0xff]
  %v37 = vld [vmem:[%s1 + $0x90] sm:$0xff]
  %v38 = vld [vmem:[%s1 + $0x98] sm:$0xff]
  %v39 = vld [vmem:[%s1 + $0xa0] sm:$0xff]
  %v40 = vld [vmem:[%s1 + $0xa8] sm:$0xff]
  %v41 = vld [vmem:[%s1 + $0xb0] sm:$0xff]
  %v42 = vld [vmem:[%s1 + $0xb8] sm:$0xff]
  %v43 = vld [vmem:[%s1 + $0xc0] sm:$0xff]
  %v44 = vld [vmem:[%s1 + $0xc8] sm:$0xff]
  %v45 = vld [vmem:[%s1 + $0xd0] sm:$0xff]
  %v46 = vld [vmem:[%s1 + $0xd8] sm:$0xff]
  %v47 = vld [vmem:[%s1 + $0xe0] sm:$0xff]
  %v48 = vld [vmem:[%s1 + $0xe8] sm:$0xff]
  %v49 = vld [vmem:[%s1 + $0xf0] sm:$0xff]
  %v50 = vld [vmem:[%s1 + $0xf8] sm:$0xff]
  %v51 = vld [vmem:[%s2] sm:$0x3]
  %v53 = vlaneseq
  %v54 = vshrl.u32 %v53, 7
  %v55 = vsub.s32 0, %v54
  %v56 = vrot.slane %v51, %v55
  %v57 = vlaneseq
  %v58 = vshrl.u32 %v57, 7
  %v59 = vsub.s32 1, %v58
  %v60 = vrot.slane %v51, %v59
  %v68 = vunpack.c.l.b16 %v14
  %v69 = vunpack.c.h.b16 %v14
  %v70 = vunpack.c.l.b16 %v15
  %v71 = vunpack.c.h.b16 %v15
  %v72 = vunpack.c.l.b16 %v16
  %v73 = vunpack.c.h.b16 %v16
  %v74 = vunpack.c.l.b16 %v17
  %v75 = vunpack.c.h.b16 %v17
  %v76 = vunpack.c.l.b16 %v18
  %v77 = vunpack.c.h.b16 %v18
  %v78 = vpack.c.b16 %v70, %v68
  %v79 = vpack.c.b16 %v71, %v69
  %v80 = vpack.c.b16 %v74, %v72
  %v81 = vpack.c.b16 %v75, %v73
  %v82 = vpack.c.b16 %v76, %v76
  %v83 = vpack.c.b16 %v77, %v77
  %v122 = vunpack.c.l.b16 %v19
  %v123 = vunpack.c.h.b16 %v19
  %v124 = vunpack.c.l.b16 %v20
  %v125 = vunpack.c.h.b16 %v20
  %v126 = vunpack.c.l.b16 %v21
  %v127 = vunpack.c.h.b16 %v21
  %v128 = vunpack.c.l.b16 %v22
  %v129 = vunpack.c.h.b16 %v22
  %v130 = vunpack.c.l.b16 %v23
  %v131 = vunpack.c.h.b16 %v23
  %v132 = vunpack.c.l.b16 %v24
  %v133 = vunpack.c.h.b16 %v24
  %v134 = vunpack.c.l.b16 %v25
  %v135 = vunpack.c.h.b16 %v25
  %v136 = vunpack.c.l.b16 %v26
  %v137 = vunpack.c.h.b16 %v26
  %v138 = vunpack.c.l.b16 %v27
  %v139 = vunpack.c.h.b16 %v27
  %v140 = vunpack.c.l.b16 %v28
  %v141 = vunpack.c.h.b16 %v28
  %v142 = vunpack.c.l.b16 %v29
  %v143 = vunpack.c.h.b16 %v29
  %v144 = vunpack.c.l.b16 %v30
  %v145 = vunpack.c.h.b16 %v30
  %v146 = vunpack.c.l.b16 %v31
  %v147 = vunpack.c.h.b16 %v31
  %v148 = vunpack.c.l.b16 %v32
  %v149 = vunpack.c.h.b16 %v32
  %v150 = vunpack.c.l.b16 %v33
  %v151 = vunpack.c.h.b16 %v33
  %v152 = vunpack.c.l.b16 %v34
  %v153 = vunpack.c.h.b16 %v34
  %v154 = vunpack.c.l.b16 %v35
  %v155 = vunpack.c.h.b16 %v35
  %v156 = vunpack.c.l.b16 %v36
  %v157 = vunpack.c.h.b16 %v36
  %v158 = vunpack.c.l.b16 %v37
  %v159 = vunpack.c.h.b16 %v37
  %v160 = vunpack.c.l.b16 %v38
  %v161 = vunpack.c.h.b16 %v38
  %v162 = vunpack.c.l.b16 %v39
  %v163 = vunpack.c.h.b16 %v39
  %v164 = vunpack.c.l.b16 %v40
  %v165 = vunpack.c.h.b16 %v40
  %v166 = vunpack.c.l.b16 %v41
  %v167 = vunpack.c.h.b16 %v41
  %v168 = vunpack.c.l.b16 %v42
  %v169 = vunpack.c.h.b16 %v42
  %v170 = vunpack.c.l.b16 %v43
  %v171 = vunpack.c.h.b16 %v43
  %v172 = vunpack.c.l.b16 %v44
  %v173 = vunpack.c.h.b16 %v44
  %v174 = vunpack.c.l.b16 %v45
  %v175 = vunpack.c.h.b16 %v45
  %v176 = vunpack.c.l.b16 %v46
  %v177 = vunpack.c.h.b16 %v46
  %v178 = vunpack.c.l.b16 %v47
  %v179 = vunpack.c.h.b16 %v47
  %v180 = vunpack.c.l.b16 %v48
  %v181 = vunpack.c.h.b16 %v48
  %v182 = vunpack.c.l.b16 %v49
  %v183 = vunpack.c.h.b16 %v49
  %v184 = vunpack.c.l.b16 %v50
  %v185 = vunpack.c.h.b16 %v50
  %v186 = vpack.c.b16 %v124, %v122
  %v187 = vpack.c.b16 %v125, %v123
  %v188 = vpack.c.b16 %v128, %v126
  %v189 = vpack.c.b16 %v129, %v127
  %v190 = vpack.c.b16 %v132, %v130
  %v191 = vpack.c.b16 %v133, %v131
  %v192 = vpack.c.b16 %v136, %v134
  %v193 = vpack.c.b16 %v137, %v135
  %v194 = vpack.c.b16 %v140, %v138
  %v195 = vpack.c.b16 %v141, %v139
  %v196 = vpack.c.b16 %v144, %v142
  %v197 = vpack.c.b16 %v145, %v143
  %v198 = vpack.c.b16 %v148, %v146
  %v199 = vpack.c.b16 %v149, %v147
  %v200 = vpack.c.b16 %v152, %v150
  %v201 = vpack.c.b16 %v153, %v151
  %v202 = vpack.c.b16 %v156, %v154
  %v203 = vpack.c.b16 %v157, %v155
  %v204 = vpack.c.b16 %v160, %v158
  %v205 = vpack.c.b16 %v161, %v159
  %v206 = vpack.c.b16 %v164, %v162
  %v207 = vpack.c.b16 %v165, %v163
  %v208 = vpack.c.b16 %v168, %v166
  %v209 = vpack.c.b16 %v169, %v167
  %v210 = vpack.c.b16 %v172, %v170
  %v211 = vpack.c.b16 %v173, %v171
  %v212 = vpack.c.b16 %v176, %v174
  %v213 = vpack.c.b16 %v177, %v175
  %v214 = vpack.c.b16 %v180, %v178
  %v215 = vpack.c.b16 %v181, %v179
  %v216 = vpack.c.b16 %v184, %v182
  %v217 = vpack.c.b16 %v185, %v183
  %250 = vmatprep.subr.bf16.mxu0 %v187
  %251 = vmatpush1.bf16.msra.mxu0 %v186
  %252 = vmatprep.subr.bf16.mxu0 %v189
  %253 = vmatpush1.bf16.msra.mxu0 %v188
  %254 = vmatprep.subr.bf16.mxu0 %v191
  %255 = vmatpush1.bf16.msra.mxu0 %v190
  %256 = vmatprep.subr.bf16.mxu0 %v193
  %257 = vmatpush1.bf16.msra.mxu0 %v192
  %258 = vmatprep.subr.bf16.mxu0 %v195
  %259 = vmatpush1.bf16.msra.mxu0 %v194
  %260 = vmatprep.subr.bf16.mxu0 %v197
  %261 = vmatpush1.bf16.msra.mxu0 %v196
  %262 = vmatprep.subr.bf16.mxu0 %v199
  %263 = vmatpush1.bf16.msra.mxu0 %v198
  %264 = vmatprep.subr.bf16.mxu0 %v201
  %265 = vmatpush1.bf16.msra.mxu0 %v200
  %266 = vmatprep.subr.bf16.mxu0 %v203
  %267 = vmatpush1.bf16.msra.mxu0 %v202
  %268 = vmatprep.subr.bf16.mxu0 %v205
  %269 = vmatpush1.bf16.msra.mxu0 %v204
  %270 = vmatprep.subr.bf16.mxu0 %v207
  %271 = vmatpush1.bf16.msra.mxu0 %v206
  %272 = vmatprep.subr.bf16.mxu0 %v209
  %273 = vmatpush1.bf16.msra.mxu0 %v208
  %274 = vmatprep.subr.bf16.mxu0 %v211
  %275 = vmatpush1.bf16.msra.mxu0 %v210
  %276 = vmatprep.subr.bf16.mxu0 %v213
  %277 = vmatpush1.bf16.msra.mxu0 %v212
  %278 = vmatprep.subr.bf16.mxu0 %v215
  %279 = vmatpush1.bf16.msra.mxu0 %v214
  %280 = vmatprep.subr.bf16.mxu0 %v217
  %281 = vmatpush1.bf16.msra.mxu0 %v216
  %282 = vmatprep.mubr.bf16.mxu0 %v79
  %283 = vmatmul.mubr.bf16.gmra.mrb[0].mxu0 %v78
  %v284 = vpop.f32.mrb[0].mxu0
  %v285 = vadd.f32 %v56, %v284
  %v286 = vpop.f32.mrb[0].mxu0
  %v287 = vadd.f32 %v60, %v286
  %v288 = vpop.f32.mrb[0].mxu0
  %v289 = vadd.f32 %v56, %v288
  %v290 = vpop.f32.mrb[0].mxu0
  %v291 = vadd.f32 %v60, %v290
  %292 = vmatprep.mubr.bf16.mxu0 %v81
  %293 = vmatmul.mubr.bf16.gmra.mrb[0].mxu0 %v80
  %v294 = vpop.f32.mrb[0].mxu0
  %v295 = vadd.f32 %v56, %v294
  %v296 = vpop.f32.mrb[0].mxu0
  %v297 = vadd.f32 %v60, %v296
  %v298 = vpop.f32.mrb[0].mxu0
  %v299 = vadd.f32 %v56, %v298
  %v300 = vpop.f32.mrb[0].mxu0
  %v301 = vadd.f32 %v60, %v300
  %302 = vmatprep.mubr.bf16.mxu0 %v83
  %303 = vmatmul.mubr.bf16.gmra.mrb[0].mxu0 %v82
  %v304 = vpop.f32.mrb[0].mxu0
  %v305 = vadd.f32 %v56, %v304
  %v306 = vpop.f32.mrb[0].mxu0
  %v307 = vadd.f32 %v60, %v306
  %v308 = vpop.f32.mrb[0].mxu0
  %v309 = vpop.f32.mrb[0].mxu0
  %310 = vdwg.mxu0
  %311 = vst [vmem:[%s3] sm:$0xff] %v285
  %312 = vst [vmem:[%s3 + $0x8] sm:$0xff] %v287
  %313 = vst [vmem:[%s3 + $0x10] sm:$0xff] %v289
  %314 = vst [vmem:[%s3 + $0x18] sm:$0xff] %v291
  %315 = vst [vmem:[%s3 + $0x20] sm:$0xff] %v295
  %316 = vst [vmem:[%s3 + $0x28] sm:$0xff] %v297
  %317 = vst [vmem:[%s3 + $0x30] sm:$0xff] %v299
  %318 = vst [vmem:[%s3 + $0x38] sm:$0xff] %v301
  %319 = vst [vmem:[%s3 + $0x40] sm:$0xff] %v305
  %320 = vst [vmem:[%s3 + $0x48] sm:$0xff] %v307
  // Predicated region
  $region14: #{forward.10} parent=0 // pred_check
    _
  $region15: #{forward.10} parent=0 // pred_check_branch
    %322 = sbr.rel (0) target = $region17
  $region16: #{forward.10} parent=0 // pred_region
    _
  $region17: #{forward.10} parent=0 // pred_fallthru
    _
  // Predicated region
  $region18: #{forward.10} parent=0 // pred_check
    _
  $region19: #{forward.10} parent=0 // pred_check_branch
    %324 = sbr.rel (0) target = $region21
  $region20: #{forward.10} parent=0 // pred_region
    _
  $region21: #{forward.10} parent=0 // pred_fallthru
    _

// kernel: forward.7
$region0: #{forward.7}
  #allocation0 [shape = 'u32[]', space=smem, size = 0x4, offset = 0x4, fixed_abs, tag = 'smem constant byte address 0x4 - core index']
  #allocation1 [shape = 'u32[144,128]{1,0:T(1,128)}', space=vmem, size = 0x12000, scoped, tag = 'internal scratch']
  %s0 = inlined_call_operand.vmem [shape: bf16[64,32], index: 0, kind: input, shape index: {}]
  %s1 = inlined_call_operand.vmem [shape: bf16[32,768], index: 1, kind: input, shape index: {}]
  %s2 = inlined_call_operand.vmem [shape: f32[1,768], index: 2, kind: input, shape index: {}]
  %s3 = inlined_call_operand.vmem [shape: f32[64,768], index: 3, kind: output, shape index: {}]
  %s4 = sld [smem:[#allocation0]]
  $region90: #{forward.7} parent=0
    _
  %s6 = ssub.s32 1, %s4
  %s7 = scalar_select 0, %s6, %s4
  $region1: #{forward.7} parent=0
    #allocation2 [shape = 'u8[49152]{0}', space=vmem, size = 0xc000, scoped, tag = 'input window, operand 1']
    #allocation3 [shape = 'u8[196608]{0}', space=vmem, size = 0x30000, scoped, tag = 'output window, operand 0']
    loop: start=0, step=1, limit=4
    $region2: #{forward.7} parent=1 // loop_pre_header
      _
    $region3: #{forward.7} parent=1 // loop_header
      %s9 = sphi 0, %s13
      %p10 = scmp.ge.s32.totalorder %s9, 4
      %s16 = sphi 0, %s28
      %s17 = sphi 0, %s24
      %s18 = sphi 0, %s16
      %s19 = sphi 0, %s17
      %s20 = sphi 0, %s18
      %s21 = sphi 0, %s19
      %s31 = sphi 0, %s33
      %s34 = sphi 0, %s31
      %s35 = sphi 0, %s34
      %s51 = sphi 0, %s35
      %s57 = sphi 0, %s59
      %s60 = sphi 0, %s57
      %s61 = sphi 0, %s60
      %s77 = sphi 0, %s61
      %s83 = sphi 0, %s85
      %s86 = sphi 0, %s83
      %s87 = sphi 0, %s86
      %s103 = sphi 0, %s87
      %s111 = sphi 0, %s113
      %s114 = sphi 0, %s111
      %s115 = sphi 0, %s114
      %s131 = sphi 0, %s115
    $region4: #{forward.7} parent=1 // loop_header_branch
      %12 = sbr.rel (%p10) target = $region8
    $region5: #{forward.7} parent=1 // loop_body
      %s14 = ssub.s32 %s9, 1
      %s15 = ssub.s32 %s9, 2
      %s22 = sadd.s32 1, %s17
      %p23 = scmp.ge.s32.totalorder %s22, 2
      %s24 = scalar_select %p23, 0, %s22
      %s25 = sadd.s32 1, %s16
      %s26 = scalar_select %p23, %s25, %s16
      %p27 = scmp.ge.s32.totalorder %s26, 1
      %s28 = scalar_select %p27, 0, %s26
      %s29 = ssub.s32 %s16, %s28
      %p30 = scmp.eq.s32.totalorder %s29, 0
      %s32 = sadd.s32 %s31, 1
      %s33 = scalar_select %p30, %s31, %s32
      %p36 = pneg %p30
      %p37 = scmp.eq.s32.totalorder %s9, 1
      %p38 = por %p36, %p37
      %p39 = scmp.ne.s32.totalorder %s31, %s34
      %p40 = scmp.eq.s32.totalorder %s9, 0
      %p41 = por %p39, %p40
      %p42 = scmp.ne.s32.totalorder %s31, %s34
      %p43 = scmp.eq.s32.totalorder %s14, 1
      %p44 = por %p42, %p43
      %p45 = scmp.ne.s32.totalorder %s34, %s35
      %p46 = scmp.eq.s32.totalorder %s14, 0
      %p47 = por %p45, %p46
      %p48 = scmp.ne.s32.totalorder %s34, %s35
      %p49 = scmp.eq.s32.totalorder %s15, 1
      %p50 = por %p48, %p49
      %p52 = scmp.ne.s32.totalorder %s35, %s51
      %p53 = scmp.eq.s32.totalorder %s15, 0
      %p54 = por %p52, %p53
      %s55 = ssub.s32 %s17, %s24
      %p56 = scmp.eq.s32.totalorder %s55, 0
      %s58 = sadd.s32 %s57, 1
      %s59 = scalar_select %p56, %s57, %s58
      %p62 = pneg %p56
      %p63 = scmp.eq.s32.totalorder %s9, 1
      %p64 = por %p62, %p63
      %p65 = scmp.ne.s32.totalorder %s57, %s60
      %p66 = scmp.eq.s32.totalorder %s9, 0
      %p67 = por %p65, %p66
      %p68 = scmp.ne.s32.totalorder %s57, %s60
      %p69 = scmp.eq.s32.totalorder %s14, 1
      %p70 = por %p68, %p69
      %p71 = scmp.ne.s32.totalorder %s60, %s61
      %p72 = scmp.eq.s32.totalorder %s14, 0
      %p73 = por %p71, %p72
      %p74 = scmp.ne.s32.totalorder %s60, %s61
      %p75 = scmp.eq.s32.totalorder %s15, 1
      %p76 = por %p74, %p75
      %p78 = scmp.ne.s32.totalorder %s61, %s77
      %p79 = scmp.eq.s32.totalorder %s15, 0
      %p80 = por %p78, %p79
      %s81 = ssub.s32 %s17, %s24
      %p82 = scmp.eq.s32.totalorder %s81, 0
      %s84 = sadd.s32 %s83, 1
      %s85 = scalar_select %p82, %s83, %s84
      %p88 = pneg %p82
      %p89 = scmp.eq.s32.totalorder %s9, 1
      %p90 = por %p88, %p89
      %p91 = scmp.ne.s32.totalorder %s83, %s86
      %p92 = scmp.eq.s32.totalorder %s9, 0
      %p93 = por %p91, %p92
      %p94 = scmp.ne.s32.totalorder %s83, %s86
      %p95 = scmp.eq.s32.totalorder %s14, 1
      %p96 = por %p94, %p95
      %p97 = scmp.ne.s32.totalorder %s86, %s87
      %p98 = scmp.eq.s32.totalorder %s14, 0
      %p99 = por %p97, %p98
      %p100 = scmp.ne.s32.totalorder %s86, %s87
      %p101 = scmp.eq.s32.totalorder %s15, 1
      %p102 = por %p100, %p101
      %p104 = scmp.ne.s32.totalorder %s87, %s103
      %p105 = scmp.eq.s32.totalorder %s15, 0
      %p106 = por %p104, %p105
      %s107 = ssub.s32 %s16, %s28
      %s108 = ssub.s32 %s17, %s24
      %s109 = sor.u32 %s107, %s108
      %p110 = scmp.eq.s32.totalorder %s109, 0
      %s112 = sadd.s32 %s111, 1
      %s113 = scalar_select %p110, %s111, %s112
      %p116 = pneg %p110
      %p117 = scmp.eq.s32.totalorder %s9, 1
      %p118 = por %p116, %p117
      %p119 = scmp.ne.s32.totalorder %s111, %s114
      %p120 = scmp.eq.s32.totalorder %s9, 0
      %p121 = por %p119, %p120
      %p122 = scmp.ne.s32.totalorder %s111, %s114
      %p123 = scmp.eq.s32.totalorder %s14, 1
      %p124 = por %p122, %p123
      %p125 = scmp.ne.s32.totalorder %s114, %s115
      %p126 = scmp.eq.s32.totalorder %s14, 0
      %p127 = por %p125, %p126
      %p128 = scmp.ne.s32.totalorder %s114, %s115
      %p129 = scmp.eq.s32.totalorder %s15, 1
      %p130 = por %p128, %p129
      %p132 = scmp.ne.s32.totalorder %s115, %s131
      %p133 = scmp.eq.s32.totalorder %s15, 0
      %p134 = por %p132, %p133
      %p135 = scmp.le.s32.totalorder 1, %s9
      %p136 = scmp.lt.s32.totalorder %s9, 3
      %p137 = pnand %p135, %p136
      %p138 = pneg %p137
      // Predicated region
      $region9: #{forward.7} parent=5 // pred_check
        _
      $region10: #{forward.7} parent=5 // pred_check_branch
        %140 = sbr.rel (%p137) target = $region12
      $region11: #{forward.7} parent=5 // pred_region
        %s141 = ssub.s32 %s9, 1
        // Predicated region
        $region13: #{forward.7} parent=11 // pred_check
          %p142 = pneg %p47
        $region14: #{forward.7} parent=11 // pred_check_branch
          %144 = sbr.rel (%p142) target = $region16
        $region15: #{forward.7} parent=11 // pred_region
          %s145 = smul.u32 8, %s18
          %p146 = scmp.lt.s32.totalorder %s145, 7
          %s147 = scalar_select %p146, %s145, 7
          %s148 = smul.addr %s147, 4
          %s149 = scalar_lea.vmem %s0, %s148
          %s150 = smul.u32 8, %s18
        $region16: #{forward.7} parent=11 // pred_fallthru
          _
      $region12: #{forward.7} parent=5 // pred_fallthru
        _
      %p151 = scmp.lt.s32.totalorder %s9, 2
      // Predicated region
      $region17: #{forward.7} parent=5 // pred_check
        %p152 = pneg %p151
      $region18: #{forward.7} parent=5 // pred_check_branch
        %154 = sbr.rel (%p152) target = $region20
      $region19: #{forward.7} parent=5 // pred_region
        // Predicated region
        $region21: #{forward.7} parent=19 // pred_check
          %p155 = pneg %p67
        $region22: #{forward.7} parent=19 // pred_check_branch
          %157 = sbr.rel (%p155) target = $region24
        $region23: #{forward.7} parent=19 // pred_region
          %s158 = sand.u32 %s57, 1
          %s159 = sand.u32 %s57, 1
          %s160 = smul.addr %s159, 48
          %s161 = scalar_lea.vmem [#allocation2], %s160
          %s162 = smul.u32 3, %s17
          %s163 = smul.addr %s162, 4
          %s164 = scalar_lea.vmem %s1, %s163
          // Predicated region
          $region25: #{forward.7} parent=23 // pred_check
            _
          $region26: #{forward.7} parent=23 // pred_check_branch
            %166 = sbr.rel (0) target = $region28
          $region27: #{forward.7} parent=23 // pred_region
            // Predicated region
            $region29: #{forward.7} parent=27 // pred_check
              _
            $region30: #{forward.7} parent=27 // pred_check_branch
              %168 = sbr.rel (0) target = $region32
            $region31: #{forward.7} parent=27 // pred_region
              %s169 = scalar_lea.vmem %s164, 8
              %s170 = scalar_lea.vmem %s161, 8 [#allocation2]
              loop: start=0, step=1, limit=1
              $region33: #{forward.7} parent=31 // loop_pre_header
                _
              $region34: #{forward.7} parent=31 // loop_header
                %s172 = sphi 0, %s176
                %p173 = scmp.ge.s32.totalorder %s172, 1
                %s177 = sphi %s164, %s164
                %s178 = sphi %s161, %s161
              $region35: #{forward.7} parent=31 // loop_header_branch
                %175 = sbr.rel (%p173) target = $region39
              $region36: #{forward.7} parent=31 // loop_body
                %v179 = vld [vmem:[%s177] sm:$0xff]
                %180 = vst [vmem:[%s178] sm:$0xff] %v179
                %v181 = vld [vmem:[%s177 + $0x18] sm:$0xff]
                %182 = vst [vmem:[%s178 + $0xc] sm:$0xff] %v181
                %v183 = vld [vmem:[%s177 + $0x30] sm:$0xff]
                %184 = vst [vmem:[%s178 + $0x18] sm:$0xff] %v183
                %v185 = vld [vmem:[%s177 + $0x48] sm:$0xff]
                %186 = vst [vmem:[%s178 + $0x24] sm:$0xff] %v185
              $region37: #{forward.7} parent=31 // loop_footer
                %s176 = sadd.s32 1, %s172
              $region38: #{forward.7} parent=31 // loop_footer_branch
                %171 = sbr.rel target = $region34
              $region39: #{forward.7} parent=31 // loop_exit
                _
              loop: start=0, step=1, limit=1
              $region40: #{forward.7} parent=31 // loop_pre_header
                _
              $region41: #{forward.7} parent=31 // loop_header
                %s189 = sphi 0, %s193
                %p190 = scmp.ge.s32.totalorder %s189, 1
                %s194 = sphi %s169, %s169
                %s195 = sphi %s170, %s170
              $region42: #{forward.7} parent=31 // loop_header_branch
                %192 = sbr.rel (%p190) target = $region46
              $region43: #{forward.7} parent=31 // loop_body
                %v196 = vld [vmem:[%s194] sm:$0xf]
                %197 = vst [vmem:[%s195] sm:$0xf] %v196
                %v198 = vld [vmem:[%s194 + $0x18] sm:$0xf]
                %199 = vst [vmem:[%s195 + $0xc] sm:$0xf] %v198
                %v200 = vld [vmem:[%s194 + $0x30] sm:$0xf]
                %201 = vst [vmem:[%s195 + $0x18] sm:$0xf] %v200
                %v202 = vld [vmem:[%s194 + $0x48] sm:$0xf]
                %203 = vst [vmem:[%s195 + $0x24] sm:$0xf] %v202
              $region44: #{forward.7} parent=31 // loop_footer
                %s193 = sadd.s32 1, %s189
              $region45: #{forward.7} parent=31 // loop_footer_branch
                %188 = sbr.rel target = $region41
              $region46: #{forward.7} parent=31 // loop_exit
                _
            $region32: #{forward.7} parent=27 // pred_fallthru
              _
          $region28: #{forward.7} parent=23 // pred_fallthru
            _
          %204 = vnop
        $region24: #{forward.7} parent=19 // pred_fallthru
          _
        // Predicated region
        $region47: #{forward.7} parent=19 // pred_check
          %p205 = pneg %p93
        $region48: #{forward.7} parent=19 // pred_check_branch
          %207 = sbr.rel (%p205) target = $region50
        $region49: #{forward.7} parent=19 // pred_region
          %s208 = smul.u32 3, %s17
          %p209 = scmp.lt.s32.totalorder %s208, 5
          %s210 = scalar_select %p209, %s208, 5
          %s211 = scalar_lea.vmem %s2, %s210
          %s212 = smul.u32 3, %s17
        $region50: #{forward.7} parent=19 // pred_fallthru
          _
      $region20: #{forward.7} parent=5 // pred_fallthru
        _
      %p213 = scmp.le.s32.totalorder 1, %s9
      %p214 = scmp.lt.s32.totalorder %s9, 3
      %p215 = pnand %p213, %p214
      %p216 = pneg %p215
      // Predicated region
      $region51: #{forward.7} parent=5 // pred_check
        _
      $region52: #{forward.7} parent=5 // pred_check_branch
        %218 = sbr.rel (%p215) target = $region54
      $region53: #{forward.7} parent=5 // pred_region
        %s219 = ssub.s32 %s9, 1
        %s220 = sand.u32 %s60, 1
        %s221 = sand.u32 %s60, 1
        %s222 = smul.addr %s221, 48
        %s223 = scalar_lea.vmem [#allocation2], %s222
        // Predicated region
        $region55: #{forward.7} parent=53 // pred_check
          %p224 = pneg %p73
        $region56: #{forward.7} parent=53 // pred_check_branch
          %226 = sbr.rel (%p224) target = $region58
        $region57: #{forward.7} parent=53 // pred_region
          _
        $region58: #{forward.7} parent=53 // pred_fallthru
          _
        %s227 = smul.u32 8, %s18
        %p228 = scmp.lt.s32.totalorder %s227, 7
        %s229 = scalar_select %p228, %s227, 7
        %s230 = smul.addr %s229, 4
        %s231 = scalar_lea.vmem %s0, %s230
        %p232 = pneg %p47
        %p233 = pneg %p44
        %s234 = sand.u32 %s60, 1
        %s235 = sand.u32 %s60, 1
        %s236 = smul.addr %s235, 48
        %s237 = scalar_lea.vmem [#allocation2], %s236
        %p238 = pneg %p73
        %p239 = pneg %p70
        %s240 = smul.u32 3, %s19
        %p241 = scmp.lt.s32.totalorder %s240, 5
        %s242 = scalar_select %p241, %s240, 5
        %s243 = scalar_lea.vmem %s2, %s242
        %p244 = pneg %p99
        %p245 = pneg %p96
        %p246 = pneg %p127
        %p247 = pneg %p124
        %s248 = sand.u32 %s114, 1
        %s249 = sand.u32 %s114, 1
        %s250 = smul.addr %s249, 192
        %s251 = scalar_lea.vmem [#allocation3], %s250
        %s252 = smul.u32 8, %s18
        %p253 = scmp.lt.s32.totalorder %s252, 7
        %s254 = scalar_select %p253, %s252, 7
        %s255 = smul.addr %s254, 4
        %s256 = scalar_lea.vmem %s0, %s255
        %s257 = smul.u32 8, %s18
        %s258 = smul.u32 3, %s19
        %s259 = smul.u32 3, %s19
        %p260 = scmp.lt.s32.totalorder %s259, 5
        %s261 = scalar_select %p260, %s259, 5
        %s262 = scalar_lea.vmem %s2, %s261
        %s263 = smul.u32 3, %s19
        %s264 = smul.u32 8, %s18
        %s265 = smul.u32 3, %s19
        %v267 = vld [vmem:[%s256] sm:$0xf]
        %v268 = vld [vmem:[%s256 + $0x4] sm:$0xf]
        %v269 = vld [vmem:[%s256 + $0x8] sm:$0xf]
        %v270 = vld [vmem:[%s256 + $0xc] sm:$0xf]
        %v271 = vld [vmem:[%s256 + $0x10] sm:$0xf]
        %v272 = vld [vmem:[%s256 + $0x14] sm:$0xf]
        %v273 = vld [vmem:[%s256 + $0x18] sm:$0xf]
        %v274 = vld [vmem:[%s256 + $0x1c] sm:$0xf]
        %v275 = vld [vmem:[%s223] sm:$0xff]
        %v276 = vld [vmem:[%s223 + $0x8] sm:$0xf]
        %v277 = vld [vmem:[%s223 + $0xc] sm:$0xff]
        %v278 = vld [vmem:[%s223 + $0x14] sm:$0xf]
        %v279 = vld [vmem:[%s223 + $0x18] sm:$0xff]
        %v280 = vld [vmem:[%s223 + $0x20] sm:$0xf]
        %v281 = vld [vmem:[%s223 + $0x24] sm:$0xff]
        %v282 = vld [vmem:[%s223 + $0x2c] sm:$0xf]
        %v283 = vld [vmem:[%s262] sm:$0x7]
        %v285 = vlaneseq
        %v286 = vshrl.u32 %v285, 7
        %v287 = vsub.s32 0, %v286
        %v288 = vrot.slane %v283, %v287
        %v289 = vlaneseq
        %v290 = vshrl.u32 %v289, 7
        %v291 = vsub.s32 1, %v290
        %v292 = vrot.slane %v283, %v291
        %v293 = vlaneseq
        %v294 = vshrl.u32 %v293, 7
        %v295 = vsub.s32 2, %v294
        %v296 = vrot.slane %v283, %v295
        %v308 = vunpack.c.l.b16 %v267
        %v309 = vunpack.c.l.b16 %v268
        %v310 = vunpack.c.l.b16 %v269
        %v311 = vunpack.c.l.b16 %v270
        %v312 = vunpack.c.l.b16 %v271
        %v313 = vunpack.c.l.b16 %v272
        %v314 = vunpack.c.l.b16 %v273
        %v315 = vunpack.c.l.b16 %v274
        %v316 = vpack.c.b16 %v309, %v308
        %v317 = vpack.c.b16 %v311, %v310
        %v318 = vpack.c.b16 %v313, %v312
        %v319 = vpack.c.b16 %v315, %v314
        %v328 = vunpack.c.l.b16 %v275
        %v329 = vunpack.c.h.b16 %v275
        %v330 = vunpack.c.l.b16 %v276
        %v331 = vunpack.c.l.b16 %v277
        %v332 = vunpack.c.h.b16 %v277
        %v333 = vunpack.c.l.b16 %v278
        %v334 = vunpack.c.l.b16 %v279
        %v335 = vunpack.c.h.b16 %v279
        %v336 = vunpack.c.l.b16 %v280
        %v337 = vunpack.c.l.b16 %v281
        %v338 = vunpack.c.h.b16 %v281
        %v339 = vunpack.c.l.b16 %v282
        %v340 = vpack.c.b16 %v331, %v328
        %v341 = vpack.c.b16 %v332, %v329
        %v342 = vpack.c.b16 %v333, %v330
        %v343 = vpack.c.b16 %v337, %v334
        %v344 = vpack.c.b16 %v338, %v335
        %v345 = vpack.c.b16 %v339, %v336
        %vm352 = vcmask 261120
        %v354 = vsel %vm352, %v316, 0
        %v357 = vsel %vm352, %v317, 0
        %v360 = vsel %vm352, %v318, 0
        %v363 = vsel %vm352, %v319, 0
        %365 = vmatprep.subr.bf16.mxu0 %v341
        %366 = vmatpush1.bf16.msra.mxu0 %v340
        %367 = vmatprep.subr.bf16.mxu0 %v344
        %368 = vmatpush1.bf16.msra.mxu0 %v343
        %369 = vmatprep.subr.bf16.mxu0 0
        %370 = vmatpush1.bf16.msra.mxu0 0
        %371 = vmatprep.subr.bf16.mxu0 0
        %372 = vmatpush1.bf16.msra.mxu0 0
        %373 = vmatprep.subr.bf16.mxu0 0
        %374 = vmatpush1.bf16.msra.mxu0 0
        %375 = vmatprep.subr.bf16.mxu0 0
        %376 = vmatpush1.bf16.msra.mxu0 0
        %377 = vmatprep.subr.bf16.mxu0 0
        %378 = vmatpush1.bf16.msra.mxu0 0
        %379 = vmatprep.subr.bf16.mxu0 0
        %380 = vmatpush1.bf16.msra.mxu0 0
        %381 = vmatprep.subr.bf16.mxu0 0
        %382 = vmatpush1.bf16.msra.mxu0 0
        %383 = vmatprep.subr.bf16.mxu0 0
        %384 = vmatpush1.bf16.msra.mxu0 0
        %385 = vmatprep.subr.bf16.mxu0 0
        %386 = vmatpush1.bf16.msra.mxu0 0
        %387 = vmatprep.subr.bf16.mxu0 0
        %388 = vmatpush1.bf16.msra.mxu0 0
        %389 = vmatprep.subr.bf16.mxu0 0
        %390 = vmatpush1.bf16.msra.mxu0 0
        %391 = vmatprep.subr.bf16.mxu0 0
        %392 = vmatpush1.bf16.msra.mxu0 0
        %393 = vmatprep.subr.bf16.mxu0 0
        %394 = vmatpush1.bf16.msra.mxu0 0
        %395 = vmatprep.subr.bf16.mxu0 0
        %396 = vmatpush1.bf16.msra.mxu0 0
        %397 = vmatprep.mubr.bf16.mxu0 0
        %398 = vmatmul.mubr.bf16.gmra.mrb[0].mxu0 %v354
        %v399 = vpop.f32.mrb[0].mxu0
        %v400 = vadd.f32 %v288, %v399
        %v401 = vpop.f32.mrb[0].mxu0
        %v402 = vadd.f32 %v292, %v401
        %v403 = vpop.f32.mrb[0].mxu0
        %v404 = vadd.f32 %v288, %v403
        %v405 = vpop.f32.mrb[0].mxu0
        %v406 = vadd.f32 %v292, %v405
        %407 = vmatprep.mubr.bf16.mxu0 0
        %408 = vmatmul.mubr.bf16.gmra.mrb[0].mxu0 %v357
        %v409 = vpop.f32.mrb[0].mxu0
        %v410 = vadd.f32 %v288, %v409
        %v411 = vpop.f32.mrb[0].mxu0
        %v412 = vadd.f32 %v292, %v411
        %v413 = vpop.f32.mrb[0].mxu0
        %v414 = vadd.f32 %v288, %v413
        %v415 = vpop.f32.mrb[0].mxu0
        %v416 = vadd.f32 %v292, %v415
        %417 = vmatprep.mubr.bf16.mxu0 0
        %418 = vmatmul.mubr.bf16.gmra.mrb[0].mxu0 %v360
        %v419 = vpop.f32.mrb[0].mxu0
        %v420 = vadd.f32 %v288, %v419
        %v421 = vpop.f32.mrb[0].mxu0
        %v422 = vadd.f32 %v292, %v421
        %v423 = vpop.f32.mrb[0].mxu0
        %v424 = vadd.f32 %v288, %v423
        %v425 = vpop.f32.mrb[0].mxu0
        %v426 = vadd.f32 %v292, %v425
        %427 = vmatprep.mubr.bf16.mxu0 0
        %428 = vmatmul.mubr.bf16.gmra.mrb[0].mxu0 %v363
        %v429 = vpop.f32.mrb[0].mxu0
        %v430 = vadd.f32 %v288, %v429
        %v431 = vpop.f32.mrb[0].mxu0
        %v432 = vadd.f32 %v292, %v431
        %v433 = vpop.f32.mrb[0].mxu0
        %v434 = vadd.f32 %v288, %v433
        %v435 = vpop.f32.mrb[0].mxu0
        %v436 = vadd.f32 %v292, %v435
        %437 = vdwg.mxu0
        %438 = vmatprep.subr.bf16.mxu0 0
        %439 = vmatpush1.bf16.msra.mxu0 %v342
        %440 = vmatprep.subr.bf16.mxu0 0
        %441 = vmatpush1.bf16.msra.mxu0 %v345
        %442 = vmatprep.subr.bf16.mxu0 0
        %443 = vmatpush1.bf16.msra.mxu0 0
        %444 = vmatprep.subr.bf16.mxu0 0
        %445 = vmatpush1.bf16.msra.mxu0 0
        %446 = vmatprep.subr.bf16.mxu0 0
        %447 = vmatpush1.bf16.msra.mxu0 0
        %448 = vmatprep.subr.bf16.mxu0 0
        %449 = vmatpush1.bf16.msra.mxu0 0
        %450 = vmatprep.subr.bf16.mxu0 0
        %451 = vmatpush1.bf16.msra.mxu0 0
        %452 = vmatprep.subr.bf16.mxu0 0
        %453 = vmatpush1.bf16.msra.mxu0 0
        %454 = vmatprep.subr.bf16.mxu0 0
        %455 = vmatpush1.bf16.msra.mxu0 0
        %456 = vmatprep.subr.bf16.mxu0 0
        %457 = vmatpush1.bf16.msra.mxu0 0
        %458 = vmatprep.subr.bf16.mxu0 0
        %459 = vmatpush1.bf16.msra.mxu0 0
        %460 = vmatprep.subr.bf16.mxu0 0
        %461 = vmatpush1.bf16.msra.mxu0 0
        %462 = vmatprep.subr.bf16.mxu0 0
        %463 = vmatpush1.bf16.msra.mxu0 0
        %464 = vmatprep.subr.bf16.mxu0 0
        %465 = vmatpush1.bf16.msra.mxu0 0
        %466 = vmatprep.subr.bf16.mxu0 0
        %467 = vmatpush1.bf16.msra.mxu0 0
        %468 = vmatprep.subr.bf16.mxu0 0
        %469 = vmatpush1.bf16.msra.mxu0 0
        %470 = vmatprep.mubr.bf16.mxu0 0
        %471 = vmatmul.mubr.bf16.gmra.mrb[0].mxu0 %v354
        %v472 = vpop.f32.mrb[0].mxu0
        %v473 = vadd.f32 %v296, %v472
        %v474 = vpop.f32.mrb[0].mxu0
        %v475 = vpop.f32.mrb[0].mxu0
        %v476 = vadd.f32 %v296, %v475
        %v477 = vpop.f32.mrb[0].mxu0
        %478 = vmatprep.mubr.bf16.mxu0 0
        %479 = vmatmul.mubr.bf16.gmra.mrb[0].mxu0 %v357
        %v480 = vpop.f32.mrb[0].mxu0
        %v481 = vadd.f32 %v296, %v480
        %v482 = vpop.f32.mrb[0].mxu0
        %v483 = vpop.f32.mrb[0].mxu0
        %v484 = vadd.f32 %v296, %v483
        %v485 = vpop.f32.mrb[0].mxu0
        %486 = vmatprep.mubr.bf16.mxu0 0
        %487 = vmatmul.mubr.bf16.gmra.mrb[0].mxu0 %v360
        %v488 = vpop.f32.mrb[0].mxu0
        %v489 = vadd.f32 %v296, %v488
        %v490 = vpop.f32.mrb[0].mxu0
        %v491 = vpop.f32.mrb[0].mxu0
        %v492 = vadd.f32 %v296, %v491
        %v493 = vpop.f32.mrb[0].mxu0
        %494 = vmatprep.mubr.bf16.mxu0 0
        %495 = vmatmul.mubr.bf16.gmra.mrb[0].mxu0 %v363
        %v496 = vpop.f32.mrb[0].mxu0
        %v497 = vadd.f32 %v296, %v496
        %v498 = vpop.f32.mrb[0].mxu0
        %v499 = vpop.f32.mrb[0].mxu0
        %v500 = vadd.f32 %v296, %v499
        %v501 = vpop.f32.mrb[0].mxu0
        %502 = vdwg.mxu0
        %503 = vst [vmem:[%s251] sm:$0xff] %v400
        %504 = vst [vmem:[%s251 + $0x8] sm:$0xff] %v402
        %505 = vst [vmem:[%s251 + $0x10] sm:$0xff] %v473
        %506 = vst [vmem:[%s251 + $0x18] sm:$0xff] %v404
        %507 = vst [vmem:[%s251 + $0x20] sm:$0xff] %v406
        %508 = vst [vmem:[%s251 + $0x28] sm:$0xff] %v476
        %509 = vst [vmem:[%s251 + $0x30] sm:$0xff] %v410
        %510 = vst [vmem:[%s251 + $0x38] sm:$0xff] %v412
        %511 = vst [vmem:[%s251 + $0x40] sm:$0xff] %v481
        %512 = vst [vmem:[%s251 + $0x48] sm:$0xff] %v414
        %513 = vst [vmem:[%s251 + $0x50] sm:$0xff] %v416
        %514 = vst [vmem:[%s251 + $0x58] sm:$0xff] %v484
        %515 = vst [vmem:[%s251 + $0x60] sm:$0xff] %v420
        %516 = vst [vmem:[%s251 + $0x68] sm:$0xff] %v422
        %517 = vst [vmem:[%s251 + $0x70] sm:$0xff] %v489
        %518 = vst [vmem:[%s251 + $0x78] sm:$0xff] %v424
        %519 = vst [vmem:[%s251 + $0x80] sm:$0xff] %v426
        %520 = vst [vmem:[%s251 + $0x88] sm:$0xff] %v492
        %521 = vst [vmem:[%s251 + $0x90] sm:$0xff] %v430
        %522 = vst [vmem:[%s251 + $0x98] sm:$0xff] %v432
        %523 = vst [vmem:[%s251 + $0xa0] sm:$0xff] %v497
        %524 = vst [vmem:[%s251 + $0xa8] sm:$0xff] %v434
        %525 = vst [vmem:[%s251 + $0xb0] sm:$0xff] %v436
        %526 = vst [vmem:[%s251 + $0xb8] sm:$0xff] %v500
        %s527 = sand.u32 %s114, 1
        %s528 = sand.u32 %s114, 1
        %s529 = smul.addr %s528, 192
        %s530 = scalar_lea.vmem [#allocation3], %s529
        // Predicated region
        $region59: #{forward.7} parent=53 // pred_check
          %p531 = pneg %p124
        $region60: #{forward.7} parent=53 // pred_check_branch
          %533 = sbr.rel (%p531) target = $region62
        $region61: #{forward.7} parent=53 // pred_region
          %s534 = smul.u32 8, %s18
          %s535 = smul.u32 3, %s19
          %s536 = smul.addr %s534, 6
          %s537 = sadd.s32 %s535, %s536
          %s538 = smul.addr %s537, 8
          %s539 = scalar_lea.vmem %s3, %s538
          // Predicated region
          $region63: #{forward.7} parent=61 // pred_check
            _
          $region64: #{forward.7} parent=61 // pred_check_branch
            %541 = sbr.rel (0) target = $region66
          $region65: #{forward.7} parent=61 // pred_region
            // Predicated region
            $region67: #{forward.7} parent=65 // pred_check
              _
            $region68: #{forward.7} parent=65 // pred_check_branch
              %543 = sbr.rel (0) target = $region70
            $region69: #{forward.7} parent=65 // pred_region
              loop: start=0, step=1, limit=1
              $region71: #{forward.7} parent=69 // loop_pre_header
                _
              $region72: #{forward.7} parent=69 // loop_header
                %s545 = sphi 0, %s549
                %p546 = scmp.ge.s32.totalorder %s545, 1
                %s550 = sphi %s530, %s530
                %s551 = sphi %s539, %s539
              $region73: #{forward.7} parent=69 // loop_header_branch
                %548 = sbr.rel (%p546) target = $region77
              $region74: #{forward.7} parent=69 // loop_body
                %v552 = vld [vmem:[%s550] sm:$0xff]
                %553 = vst [vmem:[%s551] sm:$0xff] %v552
                %v554 = vld [vmem:[%s550 + $0x8] sm:$0xff]
                %555 = vst [vmem:[%s551 + $0x8] sm:$0xff] %v554
                %v556 = vld [vmem:[%s550 + $0x10] sm:$0xff]
                %557 = vst [vmem:[%s551 + $0x10] sm:$0xff] %v556
                %v558 = vld [vmem:[%s550 + $0x18] sm:$0xff]
                %559 = vst [vmem:[%s551 + $0x30] sm:$0xff] %v558
                %v560 = vld [vmem:[%s550 + $0x20] sm:$0xff]
                %561 = vst [vmem:[%s551 + $0x38] sm:$0xff] %v560
                %v562 = vld [vmem:[%s550 + $0x28] sm:$0xff]
                %563 = vst [vmem:[%s551 + $0x40] sm:$0xff] %v562
                %v564 = vld [vmem:[%s550 + $0x30] sm:$0xff]
                %565 = vst [vmem:[%s551 + $0x60] sm:$0xff] %v564
                %v566 = vld [vmem:[%s550 + $0x38] sm:$0xff]
                %567 = vst [vmem:[%s551 + $0x68] sm:$0xff] %v566
                %v568 = vld [vmem:[%s550 + $0x40] sm:$0xff]
                %569 = vst [vmem:[%s551 + $0x70] sm:$0xff] %v568
                %v570 = vld [vmem:[%s550 + $0x48] sm:$0xff]
                %571 = vst [vmem:[%s551 + $0x90] sm:$0xff] %v570
                %v572 = vld [vmem:[%s550 + $0x50] sm:$0xff]
                %573 = vst [vmem:[%s551 + $0x98] sm:$0xff] %v572
                %v574 = vld [vmem:[%s550 + $0x58] sm:$0xff]
                %575 = vst [vmem:[%s551 + $0xa0] sm:$0xff] %v574
                %v576 = vld [vmem:[%s550 + $0x60] sm:$0xff]
                %577 = vst [vmem:[%s551 + $0xc0] sm:$0xff] %v576
                %v578 = vld [vmem:[%s550 + $0x68] sm:$0xff]
                %579 = vst [vmem:[%s551 + $0xc8] sm:$0xff] %v578
                %v580 = vld [vmem:[%s550 + $0x70] sm:$0xff]
                %581 = vst [vmem:[%s551 + $0xd0] sm:$0xff] %v580
                %v582 = vld [vmem:[%s550 + $0x78] sm:$0xff]
                %583 = vst [vmem:[%s551 + $0xf0] sm:$0xff] %v582
                %v584 = vld [vmem:[%s550 + $0x80] sm:$0xff]
                %585 = vst [vmem:[%s551 + $0xf8] sm:$0xff] %v584
                %v586 = vld [vmem:[%s550 + $0x88] sm:$0xff]
                %587 = vst [vmem:[%s551 + $0x100] sm:$0xff] %v586
                %v588 = vld [vmem:[%s550 + $0x90] sm:$0xff]
                %589 = vst [vmem:[%s551 + $0x120] sm:$0xff] %v588
                %v590 = vld [vmem:[%s550 + $0x98] sm:$0xff]
                %591 = vst [vmem:[%s551 + $0x128] sm:$0xff] %v590
                %v592 = vld [vmem:[%s550 + $0xa0] sm:$0xff]
                %593 = vst [vmem:[%s551 + $0x130] sm:$0xff] %v592
                %v594 = vld [vmem:[%s550 + $0xa8] sm:$0xff]
                %595 = vst [vmem:[%s551 + $0x150] sm:$0xff] %v594
                %v596 = vld [vmem:[%s550 + $0xb0] sm:$0xff]
                %597 = vst [vmem:[%s551 + $0x158] sm:$0xff] %v596
                %v598 = vld [vmem:[%s550 + $0xb8] sm:$0xff]
                %599 = vst [vmem:[%s551 + $0x160] sm:$0xff] %v598
              $region75: #{forward.7} parent=69 // loop_footer
                %s549 = sadd.s32 1, %s545
              $region76: #{forward.7} parent=69 // loop_footer_branch
                %544 = sbr.rel target = $region72
              $region77: #{forward.7} parent=69 // loop_exit
                _
            $region70: #{forward.7} parent=65 // pred_fallthru
              _
            // Predicated region
            $region78: #{forward.7} parent=65 // pred_check
              _
            $region79: #{forward.7} parent=65 // pred_check_branch
              %601 = sbr.rel target = $region81
            $region80: #{forward.7} parent=65 // pred_region
              _
            $region81: #{forward.7} parent=65 // pred_fallthru
              _
          $region66: #{forward.7} parent=61 // pred_fallthru
            _
          %602 = vnop
        $region62: #{forward.7} parent=53 // pred_fallthru
          _
      $region54: #{forward.7} parent=5 // pred_fallthru
        _
      %p603 = scmp.le.s32.totalorder 2, %s9
      // Predicated region
      $region82: #{forward.7} parent=5 // pred_check
        %p604 = pneg %p603
      $region83: #{forward.7} parent=5 // pred_check_branch
        %606 = sbr.rel (%p604) target = $region85
      $region84: #{forward.7} parent=5 // pred_region
        %s607 = ssub.s32 %s9, 2
        // Predicated region
        $region86: #{forward.7} parent=84 // pred_check
          %p608 = pneg %p130
        $region87: #{forward.7} parent=84 // pred_check_branch
          %610 = sbr.rel (%p608) target = $region89
        $region88: #{forward.7} parent=84 // pred_region
          %s611 = sand.u32 %s115, 1
          %s612 = sand.u32 %s115, 1
          %s613 = smul.addr %s612, 192
          %s614 = scalar_lea.vmem [#allocation3], %s613
        $region89: #{forward.7} parent=84 // pred_fallthru
          _
      $region85: #{forward.7} parent=5 // pred_fallthru
        _
    $region6: #{forward.7} parent=1 // loop_footer
      %s13 = sadd.s32 1, %s9
    $region7: #{forward.7} parent=1 // loop_footer_branch
      %8 = sbr.rel target = $region3
    $region8: #{forward.7} parent=1 // loop_exit
      _

// kernel: forward.9
$region0: #{forward.9}
  #allocation0 [shape = 'u32[]', space=smem, size = 0x4, offset = 0x4, fixed_abs, tag = 'smem constant byte address 0x4 - core index']
  #allocation1 [shape = 'u32[144,128]{1,0:T(1,128)}', space=vmem, size = 0x12000, scoped, tag = 'internal scratch']
  %s0 = inlined_call_operand.vmem [shape: bf16[16,256], index: 0, kind: input, shape index: {}]
  %s1 = inlined_call_operand.vmem [shape: bf16[256,256], index: 1, kind: input, shape index: {}]
  %s2 = inlined_call_operand.vmem [shape: f32[1,256], index: 2, kind: input, shape index: {}]
  %s3 = inlined_call_operand.vmem [shape: f32[16,256], index: 3, kind: output, shape index: {}]
  %s4 = sld [smem:[#allocation0]]
  $region22: #{forward.9} parent=0
    _
  %s6 = ssub.s32 1, %s4
  %s7 = scalar_select 0, %s6, %s4
  // Predicated region
  $region2: #{forward.9} parent=0 // pred_check
    _
  $region3: #{forward.9} parent=0 // pred_check_branch
    %9 = sbr.rel (0) target = $region5
  $region4: #{forward.9} parent=0 // pred_region
    _
  $region5: #{forward.9} parent=0 // pred_fallthru
    _
  // Predicated region
  $region6: #{forward.9} parent=0 // pred_check
    _
  $region7: #{forward.9} parent=0 // pred_check_branch
    %11 = sbr.rel (0) target = $region9
  $region8: #{forward.9} parent=0 // pred_region
    _
  $region9: #{forward.9} parent=0 // pred_fallthru
    _
  // Predicated region
  $region10: #{forward.9} parent=0 // pred_check
    _
  $region11: #{forward.9} parent=0 // pred_check_branch
    %13 = sbr.rel (0) target = $region13
  $region12: #{forward.9} parent=0 // pred_region
    _
  $region13: #{forward.9} parent=0 // pred_fallthru
    _
  %v14 = vld [vmem:[%s0] sm:$0xff]
  %v15 = vld [vmem:[%s0 + $0x8] sm:$0xff]
  %v16 = vld [vmem:[%s1] sm:$0xff]
  %v17 = vld [vmem:[%s1 + $0x8] sm:$0xff]
  %v18 = vld [vmem:[%s1 + $0x10] sm:$0xff]
  %v19 = vld [vmem:[%s1 + $0x18] sm:$0xff]
  %v20 = vld [vmem:[%s1 + $0x20] sm:$0xff]
  %v21 = vld [vmem:[%s1 + $0x28] sm:$0xff]
  %v22 = vld [vmem:[%s1 + $0x30] sm:$0xff]
  %v23 = vld [vmem:[%s1 + $0x38] sm:$0xff]
  %v24 = vld [vmem:[%s1 + $0x40] sm:$0xff]
  %v25 = vld [vmem:[%s1 + $0x48] sm:$0xff]
  %v26 = vld [vmem:[%s1 + $0x50] sm:$0xff]
  %v27 = vld [vmem:[%s1 + $0x58] sm:$0xff]
  %v28 = vld [vmem:[%s1 + $0x60] sm:$0xff]
  %v29 = vld [vmem:[%s1 + $0x68] sm:$0xff]
  %v30 = vld [vmem:[%s1 + $0x70] sm:$0xff]
  %v31 = vld [vmem:[%s1 + $0x78] sm:$0xff]
  %v32 = vld [vmem:[%s1 + $0x80] sm:$0xff]
  %v33 = vld [vmem:[%s1 + $0x88] sm:$0xff]
  %v34 = vld [vmem:[%s1 + $0x90] sm:$0xff]
  %v35 = vld [vmem:[%s1 + $0x98] sm:$0xff]
  %v36 = vld [vmem:[%s1 + $0xa0] sm:$0xff]
  %v37 = vld [vmem:[%s1 + $0xa8] sm:$0xff]
  %v38 = vld [vmem:[%s1 + $0xb0] sm:$0xff]
  %v39 = vld [vmem:[%s1 + $0xb8] sm:$0xff]
  %v40 = vld [vmem:[%s1 + $0xc0] sm:$0xff]
  %v41 = vld [vmem:[%s1 + $0xc8] sm:$0xff]
  %v42 = vld [vmem:[%s1 + $0xd0] sm:$0xff]
  %v43 = vld [vmem:[%s1 + $0xd8] sm:$0xff]
  %v44 = vld [vmem:[%s1 + $0xe0] sm:$0xff]
  %v45 = vld [vmem:[%s1 + $0xe8] sm:$0xff]
  %v46 = vld [vmem:[%s1 + $0xf0] sm:$0xff]
  %v47 = vld [vmem:[%s1 + $0xf8] sm:$0xff]
  %v48 = vld [vmem:[%s2] sm:$0x3]
  %v50 = vlaneseq
  %v51 = vshrl.u32 %v50, 7
  %v52 = vsub.s32 0, %v51
  %v53 = vrot.slane %v48, %v52
  %v54 = vlaneseq
  %v55 = vshrl.u32 %v54, 7
  %v56 = vsub.s32 1, %v55
  %v57 = vrot.slane %v48, %v56
  %v62 = vunpack.c.l.b16 %v14
  %v63 = vunpack.c.h.b16 %v14
  %v64 = vunpack.c.l.b16 %v15
  %v65 = vunpack.c.h.b16 %v15
  %v66 = vpack.c.b16 %v64, %v62
  %v67 = vpack.c.b16 %v65, %v63
  %v102 = vunpack.c.l.b16 %v16
  %v103 = vunpack.c.h.b16 %v16
  %v104 = vunpack.c.l.b16 %v17
  %v105 = vunpack.c.h.b16 %v17
  %v106 = vunpack.c.l.b16 %v18
  %v107 = vunpack.c.h.b16 %v18
  %v108 = vunpack.c.l.b16 %v19
  %v109 = vunpack.c.h.b16 %v19
  %v110 = vunpack.c.l.b16 %v20
  %v111 = vunpack.c.h.b16 %v20
  %v112 = vunpack.c.l.b16 %v21
  %v113 = vunpack.c.h.b16 %v21
  %v114 = vunpack.c.l.b16 %v22
  %v115 = vunpack.c.h.b16 %v22
  %v116 = vunpack.c.l.b16 %v23
  %v117 = vunpack.c.h.b16 %v23
  %v118 = vunpack.c.l.b16 %v24
  %v119 = vunpack.c.h.b16 %v24
  %v120 = vunpack.c.l.b16 %v25
  %v121 = vunpack.c.h.b16 %v25
  %v122 = vunpack.c.l.b16 %v26
  %v123 = vunpack.c.h.b16 %v26
  %v124 = vunpack.c.l.b16 %v27
  %v125 = vunpack.c.h.b16 %v27
  %v126 = vunpack.c.l.b16 %v28
  %v127 = vunpack.c.h.b16 %v28
  %v128 = vunpack.c.l.b16 %v29
  %v129 = vunpack.c.h.b16 %v29
  %v130 = vunpack.c.l.b16 %v30
  %v131 = vunpack.c.h.b16 %v30
  %v132 = vunpack.c.l.b16 %v31
  %v133 = vunpack.c.h.b16 %v31
  %v134 = vunpack.c.l.b16 %v32
  %v135 = vunpack.c.h.b16 %v32
  %v136 = vunpack.c.l.b16 %v33
  %v137 = vunpack.c.h.b16 %v33
  %v138 = vunpack.c.l.b16 %v34
  %v139 = vunpack.c.h.b16 %v34
  %v140 = vunpack.c.l.b16 %v35
  %v141 = vunpack.c.h.b16 %v35
  %v142 = vunpack.c.l.b16 %v36
  %v143 = vunpack.c.h.b16 %v36
  %v144 = vunpack.c.l.b16 %v37
  %v145 = vunpack.c.h.b16 %v37
  %v146 = vunpack.c.l.b16 %v38
  %v147 = vunpack.c.h.b16 %v38
  %v148 = vunpack.c.l.b16 %v39
  %v149 = vunpack.c.h.b16 %v39
  %v150 = vunpack.c.l.b16 %v40
  %v151 = vunpack.c.h.b16 %v40
  %v152 = vunpack.c.l.b16 %v41
  %v153 = vunpack.c.h.b16 %v41
  %v154 = vunpack.c.l.b16 %v42
  %v155 = vunpack.c.h.b16 %v42
  %v156 = vunpack.c.l.b16 %v43
  %v157 = vunpack.c.h.b16 %v43
  %v158 = vunpack.c.l.b16 %v44
  %v159 = vunpack.c.h.b16 %v44
  %v160 = vunpack.c.l.b16 %v45
  %v161 = vunpack.c.h.b16 %v45
  %v162 = vunpack.c.l.b16 %v46
  %v163 = vunpack.c.h.b16 %v46
  %v164 = vunpack.c.l.b16 %v47
  %v165 = vunpack.c.h.b16 %v47
  %v166 = vpack.c.b16 %v104, %v102
  %v167 = vpack.c.b16 %v105, %v103
  %v168 = vpack.c.b16 %v108, %v106
  %v169 = vpack.c.b16 %v109, %v107
  %v170 = vpack.c.b16 %v112, %v110
  %v171 = vpack.c.b16 %v113, %v111
  %v172 = vpack.c.b16 %v116, %v114
  %v173 = vpack.c.b16 %v117, %v115
  %v174 = vpack.c.b16 %v120, %v118
  %v175 = vpack.c.b16 %v121, %v119
  %v176 = vpack.c.b16 %v124, %v122
  %v177 = vpack.c.b16 %v125, %v123
  %v178 = vpack.c.b16 %v128, %v126
  %v179 = vpack.c.b16 %v129, %v127
  %v180 = vpack.c.b16 %v132, %v130
  %v181 = vpack.c.b16 %v133, %v131
  %v182 = vpack.c.b16 %v136, %v134
  %v183 = vpack.c.b16 %v137, %v135
  %v184 = vpack.c.b16 %v140, %v138
  %v185 = vpack.c.b16 %v141, %v139
  %v186 = vpack.c.b16 %v144, %v142
  %v187 = vpack.c.b16 %v145, %v143
  %v188 = vpack.c.b16 %v148, %v146
  %v189 = vpack.c.b16 %v149, %v147
  %v190 = vpack.c.b16 %v152, %v150
  %v191 = vpack.c.b16 %v153, %v151
  %v192 = vpack.c.b16 %v156, %v154
  %v193 = vpack.c.b16 %v157, %v155
  %v194 = vpack.c.b16 %v160, %v158
  %v195 = vpack.c.b16 %v161, %v159
  %v196 = vpack.c.b16 %v164, %v162
  %v197 = vpack.c.b16 %v165, %v163
  %230 = vmatprep.subr.bf16.mxu0 %v167
  %231 = vmatpush1.bf16.msra.mxu0 %v166
  %232 = vmatprep.subr.bf16.mxu0 %v169
  %233 = vmatpush1.bf16.msra.mxu0 %v168
  %234 = vmatprep.subr.bf16.mxu0 %v171
  %235 = vmatpush1.bf16.msra.mxu0 %v170
  %236 = vmatprep.subr.bf16.mxu0 %v173
  %237 = vmatpush1.bf16.msra.mxu0 %v172
  %238 = vmatprep.subr.bf16.mxu0 %v175
  %239 = vmatpush1.bf16.msra.mxu0 %v174
  %240 = vmatprep.subr.bf16.mxu0 %v177
  %241 = vmatpush1.bf16.msra.mxu0 %v176
  %242 = vmatprep.subr.bf16.mxu0 %v179
  %243 = vmatpush1.bf16.msra.mxu0 %v178
  %244 = vmatprep.subr.bf16.mxu0 %v181
  %245 = vmatpush1.bf16.msra.mxu0 %v180
  %246 = vmatprep.subr.bf16.mxu0 %v183
  %247 = vmatpush1.bf16.msra.mxu0 %v182
  %248 = vmatprep.subr.bf16.mxu0 %v185
  %249 = vmatpush1.bf16.msra.mxu0 %v184
  %250 = vmatprep.subr.bf16.mxu0 %v187
  %251 = vmatpush1.bf16.msra.mxu0 %v186
  %252 = vmatprep.subr.bf16.mxu0 %v189
  %253 = vmatpush1.bf16.msra.mxu0 %v188
  %254 = vmatprep.subr.bf16.mxu0 %v191
  %255 = vmatpush1.bf16.msra.mxu0 %v190
  %256 = vmatprep.subr.bf16.mxu0 %v193
  %257 = vmatpush1.bf16.msra.mxu0 %v192
  %258 = vmatprep.subr.bf16.mxu0 %v195
  %259 = vmatpush1.bf16.msra.mxu0 %v194
  %260 = vmatprep.subr.bf16.mxu0 %v197
  %261 = vmatpush1.bf16.msra.mxu0 %v196
  %262 = vmatprep.mubr.bf16.mxu0 %v67
  %263 = vmatmul.mubr.bf16.gmra.mrb[0].mxu0 %v66
  %v264 = vpop.f32.mrb[0].mxu0
  %v265 = vadd.f32 %v53, %v264
  %v266 = vpop.f32.mrb[0].mxu0
  %v267 = vadd.f32 %v57, %v266
  %v268 = vpop.f32.mrb[0].mxu0
  %v269 = vadd.f32 %v53, %v268
  %v270 = vpop.f32.mrb[0].mxu0
  %v271 = vadd.f32 %v57, %v270
  %272 = vdwg.mxu0
  %273 = vst [vmem:[%s3] sm:$0xff] %v265
  %274 = vst [vmem:[%s3 + $0x8] sm:$0xff] %v267
  %275 = vst [vmem:[%s3 + $0x10] sm:$0xff] %v269
  %276 = vst [vmem:[%s3 + $0x18] sm:$0xff] %v271
  // Predicated region
  $region14: #{forward.9} parent=0 // pred_check
    _
  $region15: #{forward.9} parent=0 // pred_check_branch
    %278 = sbr.rel (0) target = $region17
  $region16: #{forward.9} parent=0 // pred_region
    _
  $region17: #{forward.9} parent=0 // pred_fallthru
    _
  // Predicated region
  $region18: #{forward.9} parent=0 // pred_check
    _
  $region19: #{forward.9} parent=0 // pred_check_branch
    %280 = sbr.rel (0) target = $region21
  $region20: #{forward.9} parent=0 // pred_region
    _
  $region21: #{forward.9} parent=0 // pred_fallthru
    _

// kernel: forward.11
$region0: #{forward.11}
  #allocation0 [shape = 'u32[]', space=smem, size = 0x4, offset = 0x4, fixed_abs, tag = 'smem constant byte address 0x4 - core index']
  #allocation1 [shape = 'u32[144,128]{1,0:T(1,128)}', space=vmem, size = 0x12000, scoped, tag = 'internal scratch']
  #allocation2 [shape = 'f32[6,8]{1,0:T(8,128)}', space=vmem, size = 0x1000, scoped, tag = 'scratch operand']
  %s0 = inlined_call_operand.vmem [shape: f32[2,3,6,256], index: 0, kind: input, shape index: {}]
  %s1 = inlined_call_operand.vmem [shape: f32[2,8,256], index: 1, kind: input, shape index: {}]
  %s2 = inlined_call_operand.vmem [shape: f32[1,256], index: 2, kind: input, shape index: {}]
  %s3 = inlined_call_operand.vmem [shape: bf16[2,3,6,256], index: 3, kind: input, shape index: {}]
  %s4 = inlined_call_operand.vmem [shape: bf16[2,8,256], index: 4, kind: input, shape index: {}]
  %s5 = inlined_call_operand.vmem [shape: f32[2,3,8,256], index: 5, kind: output, shape index: {0}]
  %s6 = inlined_call_operand.vmem [shape: f32[2,3,6,256], index: 6, kind: output, shape index: {1}]
  %7 = xla_tuple %s5, %s6
  %s8 = sld [smem:[#allocation0]]
  $region61: #{forward.11} parent=0
    _
  %s10 = ssub.s32 1, %s8
  %s11 = scalar_select 0, %s10, %s8
  loop: start=0, step=1, limit=8
  $region2: #{forward.11} parent=0 // loop_pre_header
    _
  $region3: #{forward.11} parent=0 // loop_header
    %s13 = sphi 0, %s17
    %p14 = scmp.ge.s32.totalorder %s13, 8
    %s20 = sphi 0, %s32
    %s21 = sphi 0, %s28
    %s22 = sphi 0, %s20
    %s23 = sphi 0, %s21
    %s24 = sphi 0, %s22
    %s25 = sphi 0, %s23
    %s37 = sphi 0, %s39
    %s40 = sphi 0, %s37
    %s41 = sphi 0, %s40
    %s57 = sphi 0, %s41
    %s63 = sphi 0, %s65
    %s66 = sphi 0, %s63
    %s67 = sphi 0, %s66
    %s83 = sphi 0, %s67
    %s87 = sphi 0, %s87
    %s89 = sphi 0, %s87
    %s90 = sphi 0, %s89
    %s104 = sphi 0, %s90
    %s112 = sphi 0, %s114
    %s115 = sphi 0, %s112
    %s116 = sphi 0, %s115
    %s132 = sphi 0, %s116
    %s138 = sphi 0, %s140
    %s141 = sphi 0, %s138
    %s142 = sphi 0, %s141
    %s158 = sphi 0, %s142
    %s166 = sphi 0, %s168
    %s169 = sphi 0, %s166
    %s170 = sphi 0, %s169
    %s186 = sphi 0, %s170
    %s194 = sphi 0, %s196
    %s197 = sphi 0, %s194
    %s198 = sphi 0, %s197
    %s214 = sphi 0, %s198
  $region4: #{forward.11} parent=0 // loop_header_branch
    %16 = sbr.rel (%p14) target = $region8
  $region5: #{forward.11} parent=0 // loop_body
    %s18 = ssub.s32 %s13, 1
    %s19 = ssub.s32 %s13, 2
    %s26 = sadd.s32 1, %s21
    %p27 = scmp.ge.s32.totalorder %s26, 3
    %s28 = scalar_select %p27, 0, %s26
    %s29 = sadd.s32 1, %s20
    %s30 = scalar_select %p27, %s29, %s20
    %p31 = scmp.ge.s32.totalorder %s30, 2
    %s32 = scalar_select %p31, 0, %s30
    %s33 = ssub.s32 %s20, %s32
    %s34 = ssub.s32 %s21, %s28
    %s35 = sor.u32 %s33, %s34
    %p36 = scmp.eq.s32.totalorder %s35, 0
    %s38 = sadd.s32 %s37, 1
    %s39 = scalar_select %p36, %s37, %s38
    %p42 = pneg %p36
    %p43 = scmp.eq.s32.totalorder %s13, 5
    %p44 = por %p42, %p43
    %p45 = scmp.ne.s32.totalorder %s37, %s40
    %p46 = scmp.eq.s32.totalorder %s13, 0
    %p47 = por %p45, %p46
    %p48 = scmp.ne.s32.totalorder %s37, %s40
    %p49 = scmp.eq.s32.totalorder %s18, 5
    %p50 = por %p48, %p49
    %p51 = scmp.ne.s32.totalorder %s40, %s41
    %p52 = scmp.eq.s32.totalorder %s18, 0
    %p53 = por %p51, %p52
    %p54 = scmp.ne.s32.totalorder %s40, %s41
    %p55 = scmp.eq.s32.totalorder %s19, 5
    %p56 = por %p54, %p55
    %p58 = scmp.ne.s32.totalorder %s41, %s57
    %p59 = scmp.eq.s32.totalorder %s19, 0
    %p60 = por %p58, %p59
    %s61 = ssub.s32 %s20, %s32
    %p62 = scmp.eq.s32.totalorder %s61, 0
    %s64 = sadd.s32 %s63, 1
    %s65 = scalar_select %p62, %s63, %s64
    %p68 = pneg %p62
    %p69 = scmp.eq.s32.totalorder %s13, 5
    %p70 = por %p68, %p69
    %p71 = scmp.ne.s32.totalorder %s63, %s66
    %p72 = scmp.eq.s32.totalorder %s13, 0
    %p73 = por %p71, %p72
    %p74 = scmp.ne.s32.totalorder %s63, %s66
    %p75 = scmp.eq.s32.totalorder %s18, 5
    %p76 = por %p74, %p75
    %p77 = scmp.ne.s32.totalorder %s66, %s67
    %p78 = scmp.eq.s32.totalorder %s18, 0
    %p79 = por %p77, %p78
    %p80 = scmp.ne.s32.totalorder %s66, %s67
    %p81 = scmp.eq.s32.totalorder %s19, 5
    %p82 = por %p80, %p81
    %p84 = scmp.ne.s32.totalorder %s67, %s83
    %p85 = scmp.eq.s32.totalorder %s19, 0
    %p86 = por %p84, %p85
    %s88 = sadd.s32 %s87, 1
    %p91 = scmp.eq.s32.totalorder %s13, 5
    %p92 = scmp.ne.s32.totalorder %s87, %s89
    %p93 = scmp.eq.s32.totalorder %s13, 0
    %p94 = por %p92, %p93
    %p95 = scmp.ne.s32.totalorder %s87, %s89
    %p96 = scmp.eq.s32.totalorder %s18, 5
    %p97 = por %p95, %p96
    %p98 = scmp.ne.s32.totalorder %s89, %s90
    %p99 = scmp.eq.s32.totalorder %s18, 0
    %p100 = por %p98, %p99
    %p101 = scmp.ne.s32.totalorder %s89, %s90
    %p102 = scmp.eq.s32.totalorder %s19, 5
    %p103 = por %p101, %p102
    %p105 = scmp.ne.s32.totalorder %s90, %s104
    %p106 = scmp.eq.s32.totalorder %s19, 0
    %p107 = por %p105, %p106
    %s108 = ssub.s32 %s20, %s32
    %s109 = ssub.s32 %s21, %s28
    %s110 = sor.u32 %s108, %s109
    %p111 = scmp.eq.s32.totalorder %s110, 0
    %s113 = sadd.s32 %s112, 1
    %s114 = scalar_select %p111, %s112, %s113
    %p117 = pneg %p111
    %p118 = scmp.eq.s32.totalorder %s13, 5
    %p119 = por %p117, %p118
    %p120 = scmp.ne.s32.totalorder %s112, %s115
    %p121 = scmp.eq.s32.totalorder %s13, 0
    %p122 = por %p120, %p121
    %p123 = scmp.ne.s32.totalorder %s112, %s115
    %p124 = scmp.eq.s32.totalorder %s18, 5
    %p125 = por %p123, %p124
    %p126 = scmp.ne.s32.totalorder %s115, %s116
    %p127 = scmp.eq.s32.totalorder %s18, 0
    %p128 = por %p126, %p127
    %p129 = scmp.ne.s32.totalorder %s115, %s116
    %p130 = scmp.eq.s32.totalorder %s19, 5
    %p131 = por %p129, %p130
    %p133 = scmp.ne.s32.totalorder %s116, %s132
    %p134 = scmp.eq.s32.totalorder %s19, 0
    %p135 = por %p133, %p134
    %s136 = ssub.s32 %s20, %s32
    %p137 = scmp.eq.s32.totalorder %s136, 0
    %s139 = sadd.s32 %s138, 1
    %s140 = scalar_select %p137, %s138, %s139
    %p143 = pneg %p137
    %p144 = scmp.eq.s32.totalorder %s13, 5
    %p145 = por %p143, %p144
    %p146 = scmp.ne.s32.totalorder %s138, %s141
    %p147 = scmp.eq.s32.totalorder %s13, 0
    %p148 = por %p146, %p147
    %p149 = scmp.ne.s32.totalorder %s138, %s141
    %p150 = scmp.eq.s32.totalorder %s18, 5
    %p151 = por %p149, %p150
    %p152 = scmp.ne.s32.totalorder %s141, %s142
    %p153 = scmp.eq.s32.totalorder %s18, 0
    %p154 = por %p152, %p153
    %p155 = scmp.ne.s32.totalorder %s141, %s142
    %p156 = scmp.eq.s32.totalorder %s19, 5
    %p157 = por %p155, %p156
    %p159 = scmp.ne.s32.totalorder %s142, %s158
    %p160 = scmp.eq.s32.totalorder %s19, 0
    %p161 = por %p159, %p160
    %s162 = ssub.s32 %s20, %s32
    %s163 = ssub.s32 %s21, %s28
    %s164 = sor.u32 %s162, %s163
    %p165 = scmp.eq.s32.totalorder %s164, 0
    %s167 = sadd.s32 %s166, 1
    %s168 = scalar_select %p165, %s166, %s167
    %p171 = pneg %p165
    %p172 = scmp.eq.s32.totalorder %s13, 5
    %p173 = por %p171, %p172
    %p174 = scmp.ne.s32.totalorder %s166, %s169
    %p175 = scmp.eq.s32.totalorder %s13, 0
    %p176 = por %p174, %p175
    %p177 = scmp.ne.s32.totalorder %s166, %s169
    %p178 = scmp.eq.s32.totalorder %s18, 5
    %p179 = por %p177, %p178
    %p180 = scmp.ne.s32.totalorder %s169, %s170
    %p181 = scmp.eq.s32.totalorder %s18, 0
    %p182 = por %p180, %p181
    %p183 = scmp.ne.s32.totalorder %s169, %s170
    %p184 = scmp.eq.s32.totalorder %s19, 5
    %p185 = por %p183, %p184
    %p187 = scmp.ne.s32.totalorder %s170, %s186
    %p188 = scmp.eq.s32.totalorder %s19, 0
    %p189 = por %p187, %p188
    %s190 = ssub.s32 %s20, %s32
    %s191 = ssub.s32 %s21, %s28
    %s192 = sor.u32 %s190, %s191
    %p193 = scmp.eq.s32.totalorder %s192, 0
    %s195 = sadd.s32 %s194, 1
    %s196 = scalar_select %p193, %s194, %s195
    %p199 = pneg %p193
    %p200 = scmp.eq.s32.totalorder %s13, 5
    %p201 = por %p199, %p200
    %p202 = scmp.ne.s32.totalorder %s194, %s197
    %p203 = scmp.eq.s32.totalorder %s13, 0
    %p204 = por %p202, %p203
    %p205 = scmp.ne.s32.totalorder %s194, %s197
    %p206 = scmp.eq.s32.totalorder %s18, 5
    %p207 = por %p205, %p206
    %p208 = scmp.ne.s32.totalorder %s197, %s198
    %p209 = scmp.eq.s32.totalorder %s18, 0
    %p210 = por %p208, %p209
    %p211 = scmp.ne.s32.totalorder %s197, %s198
    %p212 = scmp.eq.s32.totalorder %s19, 5
    %p213 = por %p211, %p212
    %p215 = scmp.ne.s32.totalorder %s198, %s214
    %p216 = scmp.eq.s32.totalorder %s19, 0
    %p217 = por %p215, %p216
    %p218 = scmp.le.s32.totalorder 1, %s13
    %p219 = scmp.lt.s32.totalorder %s13, 7
    %p220 = pnand %p218, %p219
    %p221 = pneg %p220
    // Predicated region
    $region9: #{forward.11} parent=5 // pred_check
      _
    $region10: #{forward.11} parent=5 // pred_check_branch
      %223 = sbr.rel (%p220) target = $region12
    $region11: #{forward.11} parent=5 // pred_region
      %s224 = ssub.s32 %s13, 1
      // Predicated region
      $region13: #{forward.11} parent=11 // pred_check
        %p225 = pneg %p100
      $region14: #{forward.11} parent=11 // pred_check_branch
        %227 = sbr.rel (%p225) target = $region16
      $region15: #{forward.11} parent=11 // pred_region
        _
      $region16: #{forward.11} parent=11 // pred_fallthru
        _
    $region12: #{forward.11} parent=5 // pred_fallthru
      _
    %p228 = scmp.lt.s32.totalorder %s13, 6
    // Predicated region
    $region17: #{forward.11} parent=5 // pred_check
      %p229 = pneg %p228
    $region18: #{forward.11} parent=5 // pred_check_branch
      %231 = sbr.rel (%p229) target = $region20
    $region19: #{forward.11} parent=5 // pred_region
      // Predicated region
      $region21: #{forward.11} parent=19 // pred_check
        %p232 = pneg %p47
      $region22: #{forward.11} parent=19 // pred_check_branch
        %234 = sbr.rel (%p232) target = $region24
      $region23: #{forward.11} parent=19 // pred_region
        %p235 = scmp.lt.s32.totalorder %s20, 1
        %s236 = scalar_select %p235, %s20, 1
        %p237 = scmp.lt.s32.totalorder %s21, 2
        %s238 = scalar_select %p237, %s21, 2
        %s239 = smul.addr %s238, 2
        %s240 = smul.addr %s236, 6
        %s241 = sadd.s32 %s239, %s240
        %s242 = smul.addr %s241, 8
        %s243 = scalar_lea.vmem %s0, %s242
      $region24: #{forward.11} parent=19 // pred_fallthru
        _
      // Predicated region
      $region25: #{forward.11} parent=19 // pred_check
        %p244 = pneg %p73
      $region26: #{forward.11} parent=19 // pred_check_branch
        %246 = sbr.rel (%p244) target = $region28
      $region27: #{forward.11} parent=19 // pred_region
        %p247 = scmp.lt.s32.totalorder %s20, 1
        %s248 = scalar_select %p247, %s20, 1
        %s249 = smul.addr %s248, 2
        %s250 = smul.addr %s249, 8
        %s251 = scalar_lea.vmem %s1, %s250
      $region28: #{forward.11} parent=19 // pred_fallthru
        _
      // Predicated region
      $region29: #{forward.11} parent=19 // pred_check
        %p252 = pneg %p122
      $region30: #{forward.11} parent=19 // pred_check_branch
        %254 = sbr.rel (%p252) target = $region32
      $region31: #{forward.11} parent=19 // pred_region
        %p255 = scmp.lt.s32.totalorder %s20, 1
        %s256 = scalar_select %p255, %s20, 1
        %p257 = scmp.lt.s32.totalorder %s21, 2
        %s258 = scalar_select %p257, %s21, 2
        %s259 = smul.addr %s258, 2
        %s260 = smul.addr %s256, 6
        %s261 = sadd.s32 %s259, %s260
        %s262 = smul.addr %s261, 4
        %s263 = scalar_lea.vmem %s3, %s262
      $region32: #{forward.11} parent=19 // pred_fallthru
        _
      // Predicated region
      $region33: #{forward.11} parent=19 // pred_check
        %p264 = pneg %p148
      $region34: #{forward.11} parent=19 // pred_check_branch
        %266 = sbr.rel (%p264) target = $region36
      $region35: #{forward.11} parent=19 // pred_region
        %p267 = scmp.lt.s32.totalorder %s20, 1
        %s268 = scalar_select %p267, %s20, 1
        %s269 = smul.addr %s268, 2
        %s270 = smul.addr %s269, 4
        %s271 = scalar_lea.vmem %s4, %s270
      $region36: #{forward.11} parent=19 // pred_fallthru
        _
    $region20: #{forward.11} parent=5 // pred_fallthru
      _
    %p272 = scmp.le.s32.totalorder 1, %s13
    %p273 = scmp.lt.s32.totalorder %s13, 7
    %p274 = pnand %p272, %p273
    %p275 = pneg %p274
    // Predicated region
    $region37: #{forward.11} parent=5 // pred_check
      _
    $region38: #{forward.11} parent=5 // pred_check_branch
      %277 = sbr.rel (%p274) target = $region40
    $region39: #{forward.11} parent=5 // pred_region
      %s278 = ssub.s32 %s13, 1
      %p279 = scmp.lt.s32.totalorder %s22, 1
      %s280 = scalar_select %p279, %s22, 1
      %p281 = scmp.lt.s32.totalorder %s23, 2
      %s282 = scalar_select %p281, %s23, 2
      %s283 = smul.addr %s282, 2
      %s284 = smul.addr %s280, 6
      %s285 = sadd.s32 %s283, %s284
      %s286 = smul.addr %s285, 8
      %s287 = scalar_lea.vmem %s0, %s286
      %p288 = pneg %p53
      %p289 = pneg %p50
      %p290 = scmp.lt.s32.totalorder %s22, 1
      %s291 = scalar_select %p290, %s22, 1
      %s292 = smul.addr %s291, 2
      %s293 = smul.addr %s292, 8
      %s294 = scalar_lea.vmem %s1, %s293
      %p295 = pneg %p79
      %p296 = pneg %p76
      %p297 = pneg %p100
      %p298 = pneg %p97
      %p299 = scmp.lt.s32.totalorder %s22, 1
      %s300 = scalar_select %p299, %s22, 1
      %p301 = scmp.lt.s32.totalorder %s23, 2
      %s302 = scalar_select %p301, %s23, 2
      %s303 = smul.addr %s302, 2
      %s304 = smul.addr %s300, 6
      %s305 = sadd.s32 %s303, %s304
      %s306 = smul.addr %s305, 4
      %s307 = scalar_lea.vmem %s3, %s306
      %p308 = pneg %p128
      %p309 = pneg %p125
      %p310 = scmp.lt.s32.totalorder %s22, 1
      %s311 = scalar_select %p310, %s22, 1
      %s312 = smul.addr %s311, 2
      %s313 = smul.addr %s312, 4
      %s314 = scalar_lea.vmem %s4, %s313
      %p315 = pneg %p154
      %p316 = pneg %p151
      %p317 = pneg %p182
      %p318 = pneg %p179
      %p319 = scmp.lt.s32.totalorder %s22, 1
      %s320 = scalar_select %p319, %s22, 1
      %p321 = scmp.lt.s32.totalorder %s23, 2
      %s322 = scalar_select %p321, %s23, 2
      %s323 = smul.addr %s322, 2
      %s324 = smul.addr %s320, 6
      %s325 = sadd.s32 %s323, %s324
      %s326 = smul.addr %s325, 8
      %s327 = scalar_lea.vmem %s5, %s326
      %p328 = pneg %p210
      %p329 = pneg %p207
      %p330 = scmp.lt.s32.totalorder %s22, 1
      %s331 = scalar_select %p330, %s22, 1
      %p332 = scmp.lt.s32.totalorder %s23, 2
      %s333 = scalar_select %p332, %s23, 2
      %s334 = smul.addr %s333, 2
      %s335 = smul.addr %s331, 6
      %s336 = sadd.s32 %s334, %s335
      %s337 = smul.addr %s336, 8
      %s338 = scalar_lea.vmem %s6, %s337
      %p339 = scmp.lt.s32.totalorder %s22, 1
      %s340 = scalar_select %p339, %s22, 1
      %p341 = scmp.lt.s32.totalorder %s23, 2
      %s342 = scalar_select %p341, %s23, 2
      %s343 = smul.addr %s342, 2
      %s344 = smul.addr %s340, 6
      %s345 = sadd.s32 %s343, %s344
      %s346 = smul.addr %s345, 8
      %s347 = scalar_lea.vmem %s0, %s346
      %p348 = scmp.lt.s32.totalorder %s22, 1
      %s349 = scalar_select %p348, %s22, 1
      %s350 = smul.addr %s349, 2
      %s351 = smul.addr %s350, 8
      %s352 = scalar_lea.vmem %s1, %s351
      %p353 = scmp.lt.s32.totalorder %s22, 1
      %s354 = scalar_select %p353, %s22, 1
      %p355 = scmp.lt.s32.totalorder %s23, 2
      %s356 = scalar_select %p355, %s23, 2
      %s357 = smul.addr %s356, 2
      %s358 = smul.addr %s354, 6
      %s359 = sadd.s32 %s357, %s358
      %s360 = smul.addr %s359, 4
      %s361 = scalar_lea.vmem %s3, %s360
      %p362 = scmp.lt.s32.totalorder %s22, 1
      %s363 = scalar_select %p362, %s22, 1
      %s364 = smul.addr %s363, 2
      %s365 = smul.addr %s364, 4
      %s366 = scalar_lea.vmem %s4, %s365
      %p367 = scmp.lt.s32.totalorder %s22, 1
      %s368 = scalar_select %p367, %s22, 1
      %p369 = scmp.lt.s32.totalorder %s23, 2
      %s370 = scalar_select %p369, %s23, 2
      %s371 = smul.addr %s370, 2
      %s372 = smul.addr %s368, 6
      %s373 = sadd.s32 %s371, %s372
      %s374 = smul.addr %s373, 8
      %s375 = scalar_lea.vmem %s5, %s374
      %p376 = scmp.lt.s32.totalorder %s22, 1
      %s377 = scalar_select %p376, %s22, 1
      %p378 = scmp.lt.s32.totalorder %s23, 2
      %s379 = scalar_select %p378, %s23, 2
      %s380 = smul.addr %s379, 2
      %s381 = smul.addr %s377, 6
      %s382 = sadd.s32 %s380, %s381
      %s383 = smul.addr %s382, 8
      %s384 = scalar_lea.vmem %s6, %s383
      %v386 = vld [vmem:[%s347] sm:$0x3f]
      %v387 = vld [vmem:[%s347 + $0x8] sm:$0x3f]
      %v388 = vld [vmem:[%s2] sm:$0x3]
      %v389 = vld [vmem:[%s352] sm:$0xff]
      %v390 = vld [vmem:[%s352 + $0x8] sm:$0xff]
      %v393 = vcombine.low %v386, %v387
      %v394 = vcombine.high %v386, %v387
      %v396 = vunpack.c.l.s4 1966171168
      %v397 = vunpack.c.0.s8 %v396
      %v398 = vlaneseq
      %v399 = vshrl.u32 %v398, 7
      %v400 = vsub.s32 %v397, %v399
      %v401 = vrot.slane %v393, %v400
      %v403 = vunpack.c.l.s4 1966171168
      %v404 = vunpack.c.0.s8 %v403
      %v405 = vlaneseq
      %v406 = vshrl.u32 %v405, 7
      %v407 = vsub.s32 %v404, %v406
      %v408 = vrot.slane %v394, %v407
      %v409 = vcombine.high %v401, %v401
      %v410 = vcombine.high %v408, %v408
      %v412 = vunpack.c.l.s4 1966171168
      %v413 = vunpack.c.0.s8 %v412
      %v414 = vlaneseq
      %v415 = vshrl.u32 %v414, 7
      %v416 = vsub.s32 %v413, %v415
      %v417 = vrot.slane %v401, %v416
      %v419 = vunpack.c.l.s4 1966171168
      %v420 = vunpack.c.0.s8 %v419
      %v421 = vlaneseq
      %v422 = vshrl.u32 %v421, 7
      %v423 = vsub.s32 %v420, %v422
      %v424 = vrot.slane %v408, %v423
      %v426 = vunpack.c.l.s4 1966171168
      %v427 = vunpack.c.0.s8 %v426
      %v428 = vlaneseq
      %v429 = vshrl.u32 %v428, 7
      %v430 = vsub.s32 %v427, %v429
      %v431 = vrot.slane %v409, %v430
      %v433 = vunpack.c.l.s4 1966171168
      %v434 = vunpack.c.0.s8 %v433
      %v435 = vlaneseq
      %v436 = vshrl.u32 %v435, 7
      %v437 = vsub.s32 %v434, %v436
      %v438 = vrot.slane %v410, %v437
      %v439 = vcombine.high %v417, %v417
      %v440 = vcombine.high %v431, %v431
      %v441 = vlaneseq
      %v442 = vshrl.u32 %v441, 7
      %v443 = vsub.s32 0, %v442
      %v444 = vrot.slane %v417, %v443
      %v445 = vlaneseq
      %v446 = vshrl.u32 %v445, 7
      %v447 = vsub.s32 1, %v446
      %v448 = vrot.slane %v417, %v447
      %v449 = vlaneseq
      %v450 = vshrl.u32 %v449, 7
      %v451 = vsub.s32 0, %v450
      %v452 = vrot.slane %v431, %v451
      %v453 = vlaneseq
      %v454 = vshrl.u32 %v453, 7
      %v455 = vsub.s32 1, %v454
      %v456 = vrot.slane %v431, %v455
      %v457 = vlaneseq
      %v458 = vshrl.u32 %v457, 7
      %v459 = vsub.s32 0, %v458
      %v460 = vrot.slane %v439, %v459
      %v461 = vlaneseq
      %v462 = vshrl.u32 %v461, 7
      %v463 = vsub.s32 1, %v462
      %v464 = vrot.slane %v439, %v463
      %v465 = vlaneseq
      %v466 = vshrl.u32 %v465, 7
      %v467 = vsub.s32 0, %v466
      %v468 = vrot.slane %v440, %v467
      %v469 = vlaneseq
      %v470 = vshrl.u32 %v469, 7
      %v471 = vsub.s32 1, %v470
      %v472 = vrot.slane %v440, %v471
      %v473 = vlaneseq
      %v474 = vshrl.u32 %v473, 7
      %v475 = vsub.s32 0, %v474
      %v476 = vrot.slane %v424, %v475
      %v477 = vlaneseq
      %v478 = vshrl.u32 %v477, 7
      %v479 = vsub.s32 1, %v478
      %v480 = vrot.slane %v424, %v479
      %v481 = vlaneseq
      %v482 = vshrl.u32 %v481, 7
      %v483 = vsub.s32 0, %v482
      %v484 = vrot.slane %v438, %v483
      %v485 = vlaneseq
      %v486 = vshrl.u32 %v485, 7
      %v487 = vsub.s32 1, %v486
      %v488 = vrot.slane %v438, %v487
      %v501 = vadd.f32 %v444, %v389
      %v502 = vadd.f32 %v448, %v390
      %v503 = vadd.f32 %v452, %v389
      %v504 = vadd.f32 %v456, %v390
      %v505 = vadd.f32 %v460, %v389
      %v506 = vadd.f32 %v464, %v390
      %v507 = vadd.f32 %v468, %v389
      %v508 = vadd.f32 %v472, %v390
      %v509 = vadd.f32 %v476, %v389
      %v510 = vadd.f32 %v480, %v390
      %v511 = vadd.f32 %v484, %v389
      %v512 = vadd.f32 %v488, %v390
      %v513 = vtanh.pop %v501
      %v514 = vtanh.pop %v502
      %v515 = vtanh.pop %v503
      %v516 = vtanh.pop %v504
      %v517 = vtanh.pop %v505
      %v518 = vtanh.pop %v506
      %v519 = vtanh.pop %v507
      %v520 = vtanh.pop %v508
      %v521 = vtanh.pop %v509
      %v522 = vtanh.pop %v510
      %v523 = vtanh.pop %v511
      %v524 = vtanh.pop %v512
      %v526 = vlaneseq
      %v527 = vshrl.u32 %v526, 7
      %v528 = vsub.s32 0, %v527
      %v529 = vrot.slane %v388, %v528
      %v530 = vlaneseq
      %v531 = vshrl.u32 %v530, 7
      %v532 = vsub.s32 1, %v531
      %v533 = vrot.slane %v388, %v532
      %v536 = vmul.f32 %v513, %v529
      %v537 = vmul.f32 %v514, %v533
      %v538 = vmul.f32 %v515, %v529
      %v539 = vmul.f32 %v516, %v533
      %v540 = vmul.f32 %v517, %v529
      %v541 = vmul.f32 %v518, %v533
      %v542 = vmul.f32 %v519, %v529
      %v543 = vmul.f32 %v520, %v533
      %v544 = vmul.f32 %v521, %v529
      %v545 = vmul.f32 %v522, %v533
      %v546 = vmul.f32 %v523, %v529
      %v547 = vmul.f32 %v524, %v533
      %v548 = vadd.f32 %v536, %v537
      %549 = vadd.xlane.f32.xlu0 %v548
      %v550 = vpop.xlane.xlu0 %549
      %v551 = vadd.f32 %v538, %v539
      %552 = vadd.xlane.f32.xlu0 %v551
      %v553 = vpop.xlane.xlu0 %552
      %v554 = vadd.f32 %v540, %v541
      %555 = vadd.xlane.f32.xlu0 %v554
      %v556 = vpop.xlane.xlu0 %555
      %v557 = vadd.f32 %v542, %v543
      %558 = vadd.xlane.f32.xlu0 %v557
      %v559 = vpop.xlane.xlu0 %558
      %v560 = vadd.f32 %v544, %v545
      %561 = vadd.xlane.f32.xlu0 %v560
      %v562 = vpop.xlane.xlu0 %561
      %v563 = vadd.f32 %v546, %v547
      %564 = vadd.xlane.f32.xlu0 %v563
      %v565 = vpop.xlane.xlu0 %564
      %v572 = vlaneseq
      %v573 = vand.u32 %v572, 127
      %v574 = vlaneseq
      %v575 = vshrl.u32 %v574, 7
      %v576 = vsub.s32 %v573, %v575
      %v577 = vrot.slane %v550, %v576
      %v578 = vlaneseq
      %v579 = vshrl.u32 %v578, 7
      %v580 = vsub.s32 %v573, %v579
      %v581 = vrot.slane %v553, %v580
      %v582 = vlaneseq
      %v583 = vshrl.u32 %v582, 7
      %v584 = vsub.s32 %v573, %v583
      %v585 = vrot.slane %v556, %v584
      %v586 = vlaneseq
      %v587 = vshrl.u32 %v586, 7
      %v588 = vsub.s32 %v573, %v587
      %v589 = vrot.slane %v559, %v588
      %v590 = vlaneseq
      %v591 = vshrl.u32 %v590, 7
      %v592 = vsub.s32 %v573, %v591
      %v593 = vrot.slane %v562, %v592
      %v594 = vlaneseq
      %v595 = vshrl.u32 %v594, 7
      %v596 = vsub.s32 %v573, %v595
      %v597 = vrot.slane %v565, %v596
      %vm598 = vcmask 1041409
      %v599 = vsel %vm598, %v581, %v577
      %vm600 = vcmask 1042434
      %v601 = vsel %vm600, %v585, %v599
      %vm602 = vcmask 1043459
      %v603 = vsel %vm602, %v589, %v601
      %vm604 = vcmask 1044484
      %v605 = vsel %vm604, %v593, %v603
      %vm606 = vcmask 1045509
      %v607 = vsel %vm606, %v597, %v605
      %vm609 = vcmask 62464
      %610 = vst.msk [vmem:[#allocation2] sm:$0x3f] %vm609, %v607
      %v611 = vld [vmem:[#allocation2] sm:$0x3f]
      %v612 = vsel %vm609, %v611, -inf
      %v613 = vrot.slane %v612, 4
      %v614 = vmax.f32 %v612, %v613
      %v615 = vrot.slane %v614, 2
      %v616 = vmax.f32 %v614, %v615
      %v617 = vrot.slane %v616, 1
      %v618 = vmax.f32 %v616, %v617
      %v619 = vsub.f32 %v611, %v618
      %v620 = vmul.f32 %v619, 1.442695
      %v621 = vpow.pop %v620
      %v622 = vsel %vm609, %v621, 0.0
      %v623 = vrot.slane %v622, 4
      %v624 = vadd.f32 %v622, %v623
      %v625 = vrot.slane %v624, 2
      %v626 = vadd.f32 %v624, %v625
      %v627 = vrot.slane %v626, 1
      %v628 = vadd.f32 %v626, %v627
      %v629 = vrcp.pop %v628
      %v630 = vmul.f32 %v621, %v629
      %v631 = vpack.c.bf16 %v630, %v630
      %v632 = vld [vmem:[%s361] sm:$0x77]
      %633 = vxpose.xlu0.c.b16.start [1/8] %v631, 128
      %634 = vxpose.xlu0.c.b16.cont [2/8] 0, 128
      %635 = vxpose.xlu0.c.b16.cont [3/8] 0, 128
      %636 = vxpose.xlu0.c.b16.cont [4/8] 0, 128
      %637 = vxpose.xlu0.c.b16.cont [5/8] 0, 128
      %638 = vxpose.xlu0.c.b16.cont [6/8] 0, 128
      %639 = vxpose.xlu0.c.b16.cont [7/8] 0, 128
      %640 = vxpose.xlu0.c.b16.end [8/8] 0, 128
      %v641 = vpop.trf.xlu0
      %v642 = vpop.trf.xlu0
      %v643 = vpop.trf.xlu0
      %v644 = vpop.trf.xlu0
      %v645 = vpop.trf.xlu0
      %v646 = vpop.trf.xlu0
      %v647 = vpop.trf.xlu0
      %v648 = vpop.trf.xlu0
      %v650 = vunpack.c.l.b16 %v632
      %v651 = vunpack.c.h.b16 %v632
      %v652 = vpack.c.b16 %v650, %v650
      %v653 = vpack.c.b16 %v651, %v651
      %vm654 = vcmask 48128
      %v656 = vsel %vm654, %v641, 0
      %vm658 = vcmask 1042432
      %v660 = vsel %vm658, %v652, 0
      %v663 = vsel %vm658, %v653, 0
      %665 = vmatprep.subr.bf16.mxu0 %v663
      %666 = vmatpush1.bf16.msra.mxu0 %v660
      %667 = vmatprep.subr.bf16.mxu0 0
      %668 = vmatpush1.bf16.msra.mxu0 0
      %669 = vmatprep.subr.bf16.mxu0 0
      %670 = vmatpush1.bf16.msra.mxu0 0
      %671 = vmatprep.subr.bf16.mxu0 0
      %672 = vmatpush1.bf16.msra.mxu0 0
      %673 = vmatprep.subr.bf16.mxu0 0
      %674 = vmatpush1.bf16.msra.mxu0 0
      %675 = vmatprep.subr.bf16.mxu0 0
      %676 = vmatpush1.bf16.msra.mxu0 0
      %677 = vmatprep.subr.bf16.mxu0 0
      %678 = vmatpush1.bf16.msra.mxu0 0
      %679 = vmatprep.subr.bf16.mxu0 0
      %680 = vmatpush1.bf16.msra.mxu0 0
      %681 = vmatprep.subr.bf16.mxu0 0
      %682 = vmatpush1.bf16.msra.mxu0 0
      %683 = vmatprep.subr.bf16.mxu0 0
      %684 = vmatpush1.bf16.msra.mxu0 0
      %685 = vmatprep.subr.bf16.mxu0 0
      %686 = vmatpush1.bf16.msra.mxu0 0
      %687 = vmatprep.subr.bf16.mxu0 0
      %688 = vmatpush1.bf16.msra.mxu0 0
      %689 = vmatprep.subr.bf16.mxu0 0
      %690 = vmatpush1.bf16.msra.mxu0 0
      %691 = vmatprep.subr.bf16.mxu0 0
      %692 = vmatpush1.bf16.msra.mxu0 0
      %693 = vmatprep.subr.bf16.mxu0 0
      %694 = vmatpush1.bf16.msra.mxu0 0
      %695 = vmatprep.subr.bf16.mxu0 0
      %696 = vmatpush1.bf16.msra.mxu0 0
      %697 = vmatprep.mubr.bf16.mxu0 0
      %698 = vmatmul.mubr.bf16.gmra.mrb[0].mxu0 %v656
      %v699 = vpop.f32.mrb[0].mxu0
      %v700 = vadd.f32 0.0, %v699
      %v701 = vpop.f32.mrb[0].mxu0
      %v702 = vadd.f32 0.0, %v701
      %v703 = vpop.f32.mrb[0].mxu0
      %v704 = vpop.f32.mrb[0].mxu0
      %705 = vdwg.mxu0
      %706 = vst [vmem:[%s375] sm:$0xff] %v700
      %707 = vst [vmem:[%s375 + $0x8] sm:$0xff] %v702
      %708 = vmax.xlane.f32.xlu0 %v612
      %v709 = vpop.xlane.xlu0 %708
      %v710 = vsub.f32 %v611, %v709
      %v711 = vmul.f32 %v710, 1.442695
      %v712 = vpow.pop %v711
      %v713 = vsel %vm609, %v712, 0.0
      %714 = vadd.xlane.f32.xlu0 %v713
      %v715 = vpop.xlane.xlu0 %714
      %v716 = vrcp.pop %v715
      %v717 = vmul.f32 %v712, %v716
      %v718 = vpack.c.bf16 %v717, %v717
      %v719 = vld [vmem:[%s366] sm:$0xff]
      %v721 = vunpack.c.l.b16 %v719
      %v722 = vunpack.c.h.b16 %v719
      %v723 = vpack.c.b16 %v721, %v721
      %v724 = vpack.c.b16 %v722, %v722
      %vm725 = vcmask 64512
      %v727 = vsel %vm725, %v718, 0
      %vm729 = vcmask 1043456
      %v731 = vsel %vm729, %v723, 0
      %v734 = vsel %vm729, %v724, 0
      %736 = vmatprep.subr.bf16.mxu0 %v734
      %737 = vmatpush1.bf16.msra.mxu0 %v731
      %738 = vmatprep.subr.bf16.mxu0 0
      %739 = vmatpush1.bf16.msra.mxu0 0
      %740 = vmatprep.subr.bf16.mxu0 0
      %741 = vmatpush1.bf16.msra.mxu0 0
      %742 = vmatprep.subr.bf16.mxu0 0
      %743 = vmatpush1.bf16.msra.mxu0 0
      %744 = vmatprep.subr.bf16.mxu0 0
      %745 = vmatpush1.bf16.msra.mxu0 0
      %746 = vmatprep.subr.bf16.mxu0 0
      %747 = vmatpush1.bf16.msra.mxu0 0
      %748 = vmatprep.subr.bf16.mxu0 0
      %749 = vmatpush1.bf16.msra.mxu0 0
      %750 = vmatprep.subr.bf16.mxu0 0
      %751 = vmatpush1.bf16.msra.mxu0 0
      %752 = vmatprep.subr.bf16.mxu0 0
      %753 = vmatpush1.bf16.msra.mxu0 0
      %754 = vmatprep.subr.bf16.mxu0 0
      %755 = vmatpush1.bf16.msra.mxu0 0
      %756 = vmatprep.subr.bf16.mxu0 0
      %757 = vmatpush1.bf16.msra.mxu0 0
      %758 = vmatprep.subr.bf16.mxu0 0
      %759 = vmatpush1.bf16.msra.mxu0 0
      %760 = vmatprep.subr.bf16.mxu0 0
      %761 = vmatpush1.bf16.msra.mxu0 0
      %762 = vmatprep.subr.bf16.mxu0 0
      %763 = vmatpush1.bf16.msra.mxu0 0
      %764 = vmatprep.subr.bf16.mxu0 0
      %765 = vmatpush1.bf16.msra.mxu0 0
      %766 = vmatprep.subr.bf16.mxu0 0
      %767 = vmatpush1.bf16.msra.mxu0 0
      %768 = vmatprep.mubr.bf16.mxu0 0
      %769 = vmatmul.mubr.bf16.gmra.mrb[0].mxu0 %v727
      %v770 = vpop.f32.mrb[0].mxu0
      %v771 = vadd.f32 0.0, %v770
      %v772 = vpop.f32.mrb[0].mxu0
      %v773 = vadd.f32 0.0, %v772
      %v774 = vpop.f32.mrb[0].mxu0
      %v775 = vpop.f32.mrb[0].mxu0
      %776 = vdwg.mxu0
      %777 = vst [vmem:[%s384] sm:$0x3f] %v771
      %778 = vst [vmem:[%s384 + $0x8] sm:$0x3f] %v773
      %p779 = scmp.lt.s32.totalorder %s22, 1
      %s780 = scalar_select %p779, %s22, 1
      %p781 = scmp.lt.s32.totalorder %s23, 2
      %s782 = scalar_select %p781, %s23, 2
      %s783 = smul.addr %s782, 2
      %s784 = smul.addr %s780, 6
      %s785 = sadd.s32 %s783, %s784
      %s786 = smul.addr %s785, 8
      %s787 = scalar_lea.vmem %s5, %s786
      %p788 = scmp.lt.s32.totalorder %s22, 1
      %s789 = scalar_select %p788, %s22, 1
      %p790 = scmp.lt.s32.totalorder %s23, 2
      %s791 = scalar_select %p790, %s23, 2
      %s792 = smul.addr %s791, 2
      %s793 = smul.addr %s789, 6
      %s794 = sadd.s32 %s792, %s793
      %s795 = smul.addr %s794, 8
      %s796 = scalar_lea.vmem %s6, %s795
      // Predicated region
      $region41: #{forward.11} parent=39 // pred_check
        %p797 = pneg %p179
      $region42: #{forward.11} parent=39 // pred_check_branch
        %799 = sbr.rel (%p797) target = $region44
      $region43: #{forward.11} parent=39 // pred_region
        _
      $region44: #{forward.11} parent=39 // pred_fallthru
        _
      // Predicated region
      $region45: #{forward.11} parent=39 // pred_check
        %p800 = pneg %p207
      $region46: #{forward.11} parent=39 // pred_check_branch
        %802 = sbr.rel (%p800) target = $region48
      $region47: #{forward.11} parent=39 // pred_region
        _
      $region48: #{forward.11} parent=39 // pred_fallthru
        _
    $region40: #{forward.11} parent=5 // pred_fallthru
      _
    %p803 = scmp.le.s32.totalorder 2, %s13
    // Predicated region
    $region49: #{forward.11} parent=5 // pred_check
      %p804 = pneg %p803
    $region50: #{forward.11} parent=5 // pred_check_branch
      %806 = sbr.rel (%p804) target = $region52
    $region51: #{forward.11} parent=5 // pred_region
      %s807 = ssub.s32 %s13, 2
      // Predicated region
      $region53: #{forward.11} parent=51 // pred_check
        %p808 = pneg %p185
      $region54: #{forward.11} parent=51 // pred_check_branch
        %810 = sbr.rel (%p808) target = $region56
      $region55: #{forward.11} parent=51 // pred_region
        %p811 = scmp.lt.s32.totalorder %s24, 1
        %s812 = scalar_select %p811, %s24, 1
        %p813 = scmp.lt.s32.totalorder %s25, 2
        %s814 = scalar_select %p813, %s25, 2
        %s815 = smul.addr %s814, 2
        %s816 = smul.addr %s812, 6
        %s817 = sadd.s32 %s815, %s816
        %s818 = smul.addr %s817, 8
        %s819 = scalar_lea.vmem %s5, %s818
      $region56: #{forward.11} parent=51 // pred_fallthru
        _
      // Predicated region
      $region57: #{forward.11} parent=51 // pred_check
        %p820 = pneg %p213
      $region58: #{forward.11} parent=51 // pred_check_branch
        %822 = sbr.rel (%p820) target = $region60
      $region59: #{forward.11} parent=51 // pred_region
        %p823 = scmp.lt.s32.totalorder %s24, 1
        %s824 = scalar_select %p823, %s24, 1
        %p825 = scmp.lt.s32.totalorder %s25, 2
        %s826 = scalar_select %p825, %s25, 2
        %s827 = smul.addr %s826, 2
        %s828 = smul.addr %s824, 6
        %s829 = sadd.s32 %s827, %s828
        %s830 = smul.addr %s829, 8
        %s831 = scalar_lea.vmem %s6, %s830
      $region60: #{forward.11} parent=51 // pred_fallthru
        _
    $region52: #{forward.11} parent=5 // pred_fallthru
      _
  $region6: #{forward.11} parent=0 // loop_footer
    %s17 = sadd.s32 1, %s13
  $region7: #{forward.11} parent=0 // loop_footer_branch
    %12 = sbr.rel target = $region3
  $region8: #{forward.11} parent=0 // loop_exit
    _

// kernel: forward.8
$region0: #{forward.8}
  #allocation0 [shape = 'u32[]', space=smem, size = 0x4, offset = 0x4, fixed_abs, tag = 'smem constant byte address 0x4 - core index']
  #allocation1 [shape = 'u32[144,128]{1,0:T(1,128)}', space=vmem, size = 0x12000, scoped, tag = 'internal scratch']
  #allocation2 [shape = 'f32[8,128]{1,0:T(8,128)}', space=vmem, size = 0x1000, scoped, tag = 'scratch operand']
  %s0 = inlined_call_operand.vmem [shape: f32[8,8,768], index: 0, kind: input, shape index: {}]
  %s1 = inlined_call_operand.vmem [shape: bf16[2,128,384], index: 1, kind: input, shape index: {}]
  %s2 = inlined_call_operand.vmem [shape: f32[2,1,384], index: 2, kind: input, shape index: {}]
  %s3 = inlined_call_operand.vmem [shape: f32[8,8,256], index: 3, kind: output, shape index: {}]
  %s4 = sld [smem:[#allocation0]]
  $region106: #{forward.8} parent=0
    _
  %s6 = ssub.s32 1, %s4
  %s7 = scalar_select 0, %s6, %s4
  $region1: #{forward.8} parent=0
    #allocation3 [shape = 'u8[196608]{0}', space=vmem, size = 0x30000, scoped, tag = 'input window, operand 0']
    #allocation4 [shape = 'u8[65536]{0}', space=vmem, size = 0x10000, scoped, tag = 'output window, operand 0']
    loop: start=0, step=1, limit=4
    $region2: #{forward.8} parent=1 // loop_pre_header
      _
    $region3: #{forward.8} parent=1 // loop_header
      %s9 = sphi 0, %s13
      %p10 = scmp.ge.s32.totalorder %s9, 4
      %s16 = sphi 0, %s28
      %s17 = sphi 0, %s24
      %s18 = sphi 0, %s16
      %s19 = sphi 0, %s17
      %s20 = sphi 0, %s18
      %s21 = sphi 0, %s19
      %s41 = sphi 0, %s43
      %s44 = sphi 0, %s41
      %s45 = sphi 0, %s44
      %s61 = sphi 0, %s45
      %s67 = sphi 0, %s69
      %s70 = sphi 0, %s67
      %s71 = sphi 0, %s70
      %s87 = sphi 0, %s71
      %s93 = sphi 0, %s95
      %s96 = sphi 0, %s93
      %s97 = sphi 0, %s96
      %s113 = sphi 0, %s97
      %s129 = sphi 0, %s131
      %s132 = sphi 0, %s129
      %s133 = sphi 0, %s132
      %s149 = sphi 0, %s133
    $region4: #{forward.8} parent=1 // loop_header_branch
      %12 = sbr.rel (%p10) target = $region8
    $region5: #{forward.8} parent=1 // loop_body
      %s14 = ssub.s32 %s9, 1
      %s15 = ssub.s32 %s9, 2
      %s22 = sadd.s32 1, %s17
      %p23 = scmp.ge.s32.totalorder %s22, 1
      %s24 = scalar_select %p23, 0, %s22
      %s25 = sadd.s32 1, %s16
      %s26 = scalar_select %p23, %s25, %s16
      %p27 = scmp.ge.s32.totalorder %s26, 2
      %s28 = scalar_select %p27, 0, %s26
      %s29 = smul.u32 %s17, 2
      %s30 = ssub.s32 0, %s29
      %s31 = smul.u32 %s16, %s30
      %s32 = sadd.s32 %s17, %s31
      %s33 = smul.u32 %s24, 2
      %s34 = ssub.s32 0, %s33
      %s35 = smul.u32 %s28, %s34
      %s36 = sadd.s32 %s24, %s35
      %s37 = ssub.s32 %s32, %s36
      %s38 = ssub.s32 %s16, %s28
      %s39 = sor.u32 %s37, %s38
      %p40 = scmp.eq.s32.totalorder %s39, 0
      %s42 = sadd.s32 %s41, 1
      %s43 = scalar_select %p40, %s41, %s42
      %p46 = pneg %p40
      %p47 = scmp.eq.s32.totalorder %s9, 1
      %p48 = por %p46, %p47
      %p49 = scmp.ne.s32.totalorder %s41, %s44
      %p50 = scmp.eq.s32.totalorder %s9, 0
      %p51 = por %p49, %p50
      %p52 = scmp.ne.s32.totalorder %s41, %s44
      %p53 = scmp.eq.s32.totalorder %s14, 1
      %p54 = por %p52, %p53
      %p55 = scmp.ne.s32.totalorder %s44, %s45
      %p56 = scmp.eq.s32.totalorder %s14, 0
      %p57 = por %p55, %p56
      %p58 = scmp.ne.s32.totalorder %s44, %s45
      %p59 = scmp.eq.s32.totalorder %s15, 1
      %p60 = por %p58, %p59
      %p62 = scmp.ne.s32.totalorder %s45, %s61
      %p63 = scmp.eq.s32.totalorder %s15, 0
      %p64 = por %p62, %p63
      %s65 = ssub.s32 %s16, %s28
      %p66 = scmp.eq.s32.totalorder %s65, 0
      %s68 = sadd.s32 %s67, 1
      %s69 = scalar_select %p66, %s67, %s68
      %p72 = pneg %p66
      %p73 = scmp.eq.s32.totalorder %s9, 1
      %p74 = por %p72, %p73
      %p75 = scmp.ne.s32.totalorder %s67, %s70
      %p76 = scmp.eq.s32.totalorder %s9, 0
      %p77 = por %p75, %p76
      %p78 = scmp.ne.s32.totalorder %s67, %s70
      %p79 = scmp.eq.s32.totalorder %s14, 1
      %p80 = por %p78, %p79
      %p81 = scmp.ne.s32.totalorder %s70, %s71
      %p82 = scmp.eq.s32.totalorder %s14, 0
      %p83 = por %p81, %p82
      %p84 = scmp.ne.s32.totalorder %s70, %s71
      %p85 = scmp.eq.s32.totalorder %s15, 1
      %p86 = por %p84, %p85
      %p88 = scmp.ne.s32.totalorder %s71, %s87
      %p89 = scmp.eq.s32.totalorder %s15, 0
      %p90 = por %p88, %p89
      %s91 = ssub.s32 %s16, %s28
      %p92 = scmp.eq.s32.totalorder %s91, 0
      %s94 = sadd.s32 %s93, 1
      %s95 = scalar_select %p92, %s93, %s94
      %p98 = pneg %p92
      %p99 = scmp.eq.s32.totalorder %s9, 1
      %p100 = por %p98, %p99
      %p101 = scmp.ne.s32.totalorder %s93, %s96
      %p102 = scmp.eq.s32.totalorder %s9, 0
      %p103 = por %p101, %p102
      %p104 = scmp.ne.s32.totalorder %s93, %s96
      %p105 = scmp.eq.s32.totalorder %s14, 1
      %p106 = por %p104, %p105
      %p107 = scmp.ne.s32.totalorder %s96, %s97
      %p108 = scmp.eq.s32.totalorder %s14, 0
      %p109 = por %p107, %p108
      %p110 = scmp.ne.s32.totalorder %s96, %s97
      %p111 = scmp.eq.s32.totalorder %s15, 1
      %p112 = por %p110, %p111
      %p114 = scmp.ne.s32.totalorder %s97, %s113
      %p115 = scmp.eq.s32.totalorder %s15, 0
      %p116 = por %p114, %p115
      %s117 = smul.u32 %s17, 2
      %s118 = ssub.s32 0, %s117
      %s119 = smul.u32 %s16, %s118
      %s120 = sadd.s32 %s17, %s119
      %s121 = smul.u32 %s24, 2
      %s122 = ssub.s32 0, %s121
      %s123 = smul.u32 %s28, %s122
      %s124 = sadd.s32 %s24, %s123
      %s125 = ssub.s32 %s120, %s124
      %s126 = ssub.s32 %s16, %s28
      %s127 = sor.u32 %s125, %s126
      %p128 = scmp.eq.s32.totalorder %s127, 0
      %s130 = sadd.s32 %s129, 1
      %s131 = scalar_select %p128, %s129, %s130
      %p134 = pneg %p128
      %p135 = scmp.eq.s32.totalorder %s9, 1
      %p136 = por %p134, %p135
      %p137 = scmp.ne.s32.totalorder %s129, %s132
      %p138 = scmp.eq.s32.totalorder %s9, 0
      %p139 = por %p137, %p138
      %p140 = scmp.ne.s32.totalorder %s129, %s132
      %p141 = scmp.eq.s32.totalorder %s14, 1
      %p142 = por %p140, %p141
      %p143 = scmp.ne.s32.totalorder %s132, %s133
      %p144 = scmp.eq.s32.totalorder %s14, 0
      %p145 = por %p143, %p144
      %p146 = scmp.ne.s32.totalorder %s132, %s133
      %p147 = scmp.eq.s32.totalorder %s15, 1
      %p148 = por %p146, %p147
      %p150 = scmp.ne.s32.totalorder %s133, %s149
      %p151 = scmp.eq.s32.totalorder %s15, 0
      %p152 = por %p150, %p151
      %p153 = scmp.le.s32.totalorder 1, %s9
      %p154 = scmp.lt.s32.totalorder %s9, 3
      %p155 = pnand %p153, %p154
      %p156 = pneg %p155
      // Predicated region
      $region9: #{forward.8} parent=5 // pred_check
        _
      $region10: #{forward.8} parent=5 // pred_check_branch
        %158 = sbr.rel (%p155) target = $region12
      $region11: #{forward.8} parent=5 // pred_region
        %s159 = ssub.s32 %s9, 1
      $region12: #{forward.8} parent=5 // pred_fallthru
        _
      %p160 = scmp.lt.s32.totalorder %s9, 2
      // Predicated region
      $region13: #{forward.8} parent=5 // pred_check
        %p161 = pneg %p160
      $region14: #{forward.8} parent=5 // pred_check_branch
        %163 = sbr.rel (%p161) target = $region16
      $region15: #{forward.8} parent=5 // pred_region
        // Predicated region
        $region17: #{forward.8} parent=15 // pred_check
          %p164 = pneg %p51
        $region18: #{forward.8} parent=15 // pred_check_branch
          %166 = sbr.rel (%p164) target = $region20
        $region19: #{forward.8} parent=15 // pred_region
          %s167 = sand.u32 %s41, 1
          %s168 = sand.u32 %s41, 1
          %s169 = smul.addr %s168, 192
          %s170 = scalar_lea.vmem [#allocation3], %s169
          %s171 = smul.u32 %s17, 2
          %s172 = ssub.s32 0, %s171
          %s173 = smul.u32 %s16, %s172
          %s174 = sadd.s32 %s17, %s173
          %s175 = smul.u32 8, %s174
          %s176 = smul.u32 3, %s16
          %s177 = smul.addr %s175, 6
          %s178 = sadd.s32 %s176, %s177
          %s179 = smul.addr %s178, 8
          %s180 = scalar_lea.vmem %s0, %s179
          // Predicated region
          $region21: #{forward.8} parent=19 // pred_check
            _
          $region22: #{forward.8} parent=19 // pred_check_branch
            %182 = sbr.rel (0) target = $region24
          $region23: #{forward.8} parent=19 // pred_region
            // Predicated region
            $region25: #{forward.8} parent=23 // pred_check
              _
            $region26: #{forward.8} parent=23 // pred_check_branch
              %184 = sbr.rel (0) target = $region28
            $region27: #{forward.8} parent=23 // pred_region
              loop: start=0, step=1, limit=1
              $region29: #{forward.8} parent=27 // loop_pre_header
                _
              $region30: #{forward.8} parent=27 // loop_header
                %s186 = sphi 0, %s190
                %p187 = scmp.ge.s32.totalorder %s186, 1
                %s191 = sphi %s180, %s180
                %s192 = sphi %s170, %s170
              $region31: #{forward.8} parent=27 // loop_header_branch
                %189 = sbr.rel (%p187) target = $region35
              $region32: #{forward.8} parent=27 // loop_body
                %v193 = vld [vmem:[%s191] sm:$0xff]
                %194 = vst [vmem:[%s192] sm:$0xff] %v193
                %v195 = vld [vmem:[%s191 + $0x8] sm:$0xff]
                %196 = vst [vmem:[%s192 + $0x8] sm:$0xff] %v195
                %v197 = vld [vmem:[%s191 + $0x10] sm:$0xff]
                %198 = vst [vmem:[%s192 + $0x10] sm:$0xff] %v197
                %v199 = vld [vmem:[%s191 + $0x30] sm:$0xff]
                %200 = vst [vmem:[%s192 + $0x18] sm:$0xff] %v199
                %v201 = vld [vmem:[%s191 + $0x38] sm:$0xff]
                %202 = vst [vmem:[%s192 + $0x20] sm:$0xff] %v201
                %v203 = vld [vmem:[%s191 + $0x40] sm:$0xff]
                %204 = vst [vmem:[%s192 + $0x28] sm:$0xff] %v203
                %v205 = vld [vmem:[%s191 + $0x60] sm:$0xff]
                %206 = vst [vmem:[%s192 + $0x30] sm:$0xff] %v205
                %v207 = vld [vmem:[%s191 + $0x68] sm:$0xff]
                %208 = vst [vmem:[%s192 + $0x38] sm:$0xff] %v207
                %v209 = vld [vmem:[%s191 + $0x70] sm:$0xff]
                %210 = vst [vmem:[%s192 + $0x40] sm:$0xff] %v209
                %v211 = vld [vmem:[%s191 + $0x90] sm:$0xff]
                %212 = vst [vmem:[%s192 + $0x48] sm:$0xff] %v211
                %v213 = vld [vmem:[%s191 + $0x98] sm:$0xff]
                %214 = vst [vmem:[%s192 + $0x50] sm:$0xff] %v213
                %v215 = vld [vmem:[%s191 + $0xa0] sm:$0xff]
                %216 = vst [vmem:[%s192 + $0x58] sm:$0xff] %v215
                %v217 = vld [vmem:[%s191 + $0xc0] sm:$0xff]
                %218 = vst [vmem:[%s192 + $0x60] sm:$0xff] %v217
                %v219 = vld [vmem:[%s191 + $0xc8] sm:$0xff]
                %220 = vst [vmem:[%s192 + $0x68] sm:$0xff] %v219
                %v221 = vld [vmem:[%s191 + $0xd0] sm:$0xff]
                %222 = vst [vmem:[%s192 + $0x70] sm:$0xff] %v221
                %v223 = vld [vmem:[%s191 + $0xf0] sm:$0xff]
                %224 = vst [vmem:[%s192 + $0x78] sm:$0xff] %v223
                %v225 = vld [vmem:[%s191 + $0xf8] sm:$0xff]
                %226 = vst [vmem:[%s192 + $0x80] sm:$0xff] %v225
                %v227 = vld [vmem:[%s191 + $0x100] sm:$0xff]
                %228 = vst [vmem:[%s192 + $0x88] sm:$0xff] %v227
                %v229 = vld [vmem:[%s191 + $0x120] sm:$0xff]
                %230 = vst [vmem:[%s192 + $0x90] sm:$0xff] %v229
                %v231 = vld [vmem:[%s191 + $0x128] sm:$0xff]
                %232 = vst [vmem:[%s192 + $0x98] sm:$0xff] %v231
                %v233 = vld [vmem:[%s191 + $0x130] sm:$0xff]
                %234 = vst [vmem:[%s192 + $0xa0] sm:$0xff] %v233
                %v235 = vld [vmem:[%s191 + $0x150] sm:$0xff]
                %236 = vst [vmem:[%s192 + $0xa8] sm:$0xff] %v235
                %v237 = vld [vmem:[%s191 + $0x158] sm:$0xff]
                %238 = vst [vmem:[%s192 + $0xb0] sm:$0xff] %v237
                %v239 = vld [vmem:[%s191 + $0x160] sm:$0xff]
                %240 = vst [vmem:[%s192 + $0xb8] sm:$0xff] %v239
              $region33: #{forward.8} parent=27 // loop_footer
                %s190 = sadd.s32 1, %s186
              $region34: #{forward.8} parent=27 // loop_footer_branch
                %185 = sbr.rel target = $region30
              $region35: #{forward.8} parent=27 // loop_exit
                _
            $region28: #{forward.8} parent=23 // pred_fallthru
              _
            // Predicated region
            $region36: #{forward.8} parent=23 // pred_check
              _
            $region37: #{forward.8} parent=23 // pred_check_branch
              %242 = sbr.rel target = $region39
            $region38: #{forward.8} parent=23 // pred_region
              _
            $region39: #{forward.8} parent=23 // pred_fallthru
              _
          $region24: #{forward.8} parent=19 // pred_fallthru
            _
          %243 = vnop
        $region20: #{forward.8} parent=15 // pred_fallthru
          _
        // Predicated region
        $region40: #{forward.8} parent=15 // pred_check
          %p244 = pneg %p77
        $region41: #{forward.8} parent=15 // pred_check_branch
          %246 = sbr.rel (%p244) target = $region43
        $region42: #{forward.8} parent=15 // pred_region
          %p247 = scmp.lt.s32.totalorder %s16, 1
          %s248 = scalar_select %p247, %s16, 1
          %s249 = smul.addr %s248, 48
          %s250 = smul.addr %s249, 4
          %s251 = scalar_lea.vmem %s1, %s250
        $region43: #{forward.8} parent=15 // pred_fallthru
          _
        // Predicated region
        $region44: #{forward.8} parent=15 // pred_check
          %p252 = pneg %p103
        $region45: #{forward.8} parent=15 // pred_check_branch
          %254 = sbr.rel (%p252) target = $region47
        $region46: #{forward.8} parent=15 // pred_region
          %p255 = scmp.lt.s32.totalorder %s16, 1
          %s256 = scalar_select %p255, %s16, 1
          %s257 = smul.addr %s256, 3
          %s258 = scalar_lea.vmem %s2, %s257
        $region47: #{forward.8} parent=15 // pred_fallthru
          _
      $region16: #{forward.8} parent=5 // pred_fallthru
        _
      %p259 = scmp.le.s32.totalorder 1, %s9
      %p260 = scmp.lt.s32.totalorder %s9, 3
      %p261 = pnand %p259, %p260
      %p262 = pneg %p261
      // Predicated region
      $region48: #{forward.8} parent=5 // pred_check
        _
      $region49: #{forward.8} parent=5 // pred_check_branch
        %264 = sbr.rel (%p261) target = $region51
      $region50: #{forward.8} parent=5 // pred_region
        %s265 = ssub.s32 %s9, 1
        %s266 = sand.u32 %s44, 1
        %s267 = sand.u32 %s44, 1
        %s268 = smul.addr %s267, 192
        %s269 = scalar_lea.vmem [#allocation3], %s268
        // Predicated region
        $region52: #{forward.8} parent=50 // pred_check
          %p270 = pneg %p57
        $region53: #{forward.8} parent=50 // pred_check_branch
          %272 = sbr.rel (%p270) target = $region55
        $region54: #{forward.8} parent=50 // pred_region
          _
        $region55: #{forward.8} parent=50 // pred_fallthru
          _
        %s273 = sand.u32 %s44, 1
        %s274 = sand.u32 %s44, 1
        %s275 = smul.addr %s274, 192
        %s276 = scalar_lea.vmem [#allocation3], %s275
        %p277 = pneg %p57
        %p278 = pneg %p54
        %p279 = scmp.lt.s32.totalorder %s18, 1
        %s280 = scalar_select %p279, %s18, 1
        %s281 = smul.addr %s280, 48
        %s282 = smul.addr %s281, 4
        %s283 = scalar_lea.vmem %s1, %s282
        %p284 = pneg %p83
        %p285 = pneg %p80
        %p286 = scmp.lt.s32.totalorder %s18, 1
        %s287 = scalar_select %p286, %s18, 1
        %s288 = smul.addr %s287, 3
        %s289 = scalar_lea.vmem %s2, %s288
        %p290 = pneg %p109
        %p291 = pneg %p106
        %p292 = pneg %p145
        %p293 = pneg %p142
        %s294 = sand.u32 %s132, 1
        %s295 = sand.u32 %s132, 1
        %s296 = smul.addr %s295, 64
        %s297 = scalar_lea.vmem [#allocation4], %s296
        %s298 = smul.u32 %s19, 2
        %s299 = ssub.s32 0, %s298
        %s300 = smul.u32 %s18, %s299
        %s301 = sadd.s32 %s19, %s300
        %s302 = smul.u32 8, %s301
        %s303 = smul.u32 3, %s18
        %p304 = scmp.lt.s32.totalorder %s18, 1
        %s305 = scalar_select %p304, %s18, 1
        %s306 = smul.addr %s305, 48
        %s307 = smul.addr %s306, 4
        %s308 = scalar_lea.vmem %s1, %s307
        %p309 = scmp.lt.s32.totalorder %s18, 1
        %s310 = scalar_select %p309, %s18, 1
        %s311 = smul.addr %s310, 3
        %s312 = scalar_lea.vmem %s2, %s311
        %s313 = smul.u32 %s19, 2
        %s314 = ssub.s32 0, %s313
        %s315 = smul.u32 %s18, %s314
        %s316 = sadd.s32 %s19, %s315
        %s317 = smul.u32 8, %s316
        %p319 = scmp.eq.s32.totalorder %s19, 0
        // Predicated region
        $region56: #{forward.8} parent=50 // pred_check
          %p320 = pneg %p319
        $region57: #{forward.8} parent=50 // pred_check_branch
          %322 = sbr.rel (%p320) target = $region59
        $region58: #{forward.8} parent=50 // pred_region
          %323 = vst [vmem:[#allocation2] sm:$0xff] 0.0
        $region59: #{forward.8} parent=50 // pred_fallthru
          _
        %v324 = vld [vmem:[%s308] sm:$0xff]
        %v325 = vld [vmem:[%s308 + $0x8] sm:$0xf]
        %v326 = vld [vmem:[%s308 + $0xc] sm:$0xff]
        %v327 = vld [vmem:[%s308 + $0x14] sm:$0xf]
        %v328 = vld [vmem:[%s308 + $0x18] sm:$0xff]
        %v329 = vld [vmem:[%s308 + $0x20] sm:$0xf]
        %v330 = vld [vmem:[%s308 + $0x24] sm:$0xff]
        %v331 = vld [vmem:[%s308 + $0x2c] sm:$0xf]
        %v332 = vld [vmem:[%s308 + $0x30] sm:$0xff]
        %v333 = vld [vmem:[%s308 + $0x38] sm:$0xf]
        %v334 = vld [vmem:[%s308 + $0x3c] sm:$0xff]
        %v335 = vld [vmem:[%s308 + $0x44] sm:$0xf]
        %v336 = vld [vmem:[%s308 + $0x48] sm:$0xff]
        %v337 = vld [vmem:[%s308 + $0x50] sm:$0xf]
        %v338 = vld [vmem:[%s308 + $0x54] sm:$0xff]
        %v339 = vld [vmem:[%s308 + $0x5c] sm:$0xf]
        %v340 = vld [vmem:[%s308 + $0x60] sm:$0xff]
        %v341 = vld [vmem:[%s308 + $0x68] sm:$0xf]
        %v342 = vld [vmem:[%s308 + $0x6c] sm:$0xff]
        %v343 = vld [vmem:[%s308 + $0x74] sm:$0xf]
        %v344 = vld [vmem:[%s308 + $0x78] sm:$0xff]
        %v345 = vld [vmem:[%s308 + $0x80] sm:$0xf]
        %v346 = vld [vmem:[%s308 + $0x84] sm:$0xff]
        %v347 = vld [vmem:[%s308 + $0x8c] sm:$0xf]
        %v348 = vld [vmem:[%s308 + $0x90] sm:$0xff]
        %v349 = vld [vmem:[%s308 + $0x98] sm:$0xf]
        %v350 = vld [vmem:[%s308 + $0x9c] sm:$0xff]
        %v351 = vld [vmem:[%s308 + $0xa4] sm:$0xf]
        %v352 = vld [vmem:[%s308 + $0xa8] sm:$0xff]
        %v353 = vld [vmem:[%s308 + $0xb0] sm:$0xf]
        %v354 = vld [vmem:[%s308 + $0xb4] sm:$0xff]
        %v355 = vld [vmem:[%s308 + $0xbc] sm:$0xf]
        %v356 = vld [vmem:[%s312] sm:$0x7]
        %s357 = smul.u32 %s18, 7
        %s358 = smul.u32 %s357, 3
        %s359 = smul.addr %s358, 8
        %s360 = scalar_lea.vmem %s269, %s359 [#allocation3]
        %v361 = vld [vmem:[%s360] sm:$0xff]
        %v362 = vld [vmem:[%s360 + $0x8] sm:$0xff]
        %v363 = vld [vmem:[%s360 + $0x10] sm:$0xff]
        %v364 = vld [vmem:[#allocation2] sm:$0xff]
        %v365 = vpack.c.bf16 %v364, %v364
        %v367 = vlaneseq
        %v368 = vshrl.u32 %v367, 7
        %v369 = vsub.s32 0, %v368
        %v370 = vrot.slane %v356, %v369
        %v371 = vlaneseq
        %v372 = vshrl.u32 %v371, 7
        %v373 = vsub.s32 1, %v372
        %v374 = vrot.slane %v356, %v373
        %v375 = vlaneseq
        %v376 = vshrl.u32 %v375, 7
        %v377 = vsub.s32 2, %v376
        %v378 = vrot.slane %v356, %v377
        %v414 = vunpack.c.l.b16 %v324
        %v415 = vunpack.c.h.b16 %v324
        %v416 = vunpack.c.l.b16 %v325
        %v417 = vunpack.c.l.b16 %v326
        %v418 = vunpack.c.h.b16 %v326
        %v419 = vunpack.c.l.b16 %v327
        %v420 = vunpack.c.l.b16 %v328
        %v421 = vunpack.c.h.b16 %v328
        %v422 = vunpack.c.l.b16 %v329
        %v423 = vunpack.c.l.b16 %v330
        %v424 = vunpack.c.h.b16 %v330
        %v425 = vunpack.c.l.b16 %v331
        %v426 = vunpack.c.l.b16 %v332
        %v427 = vunpack.c.h.b16 %v332
        %v428 = vunpack.c.l.b16 %v333
        %v429 = vunpack.c.l.b16 %v334
        %v430 = vunpack.c.h.b16 %v334
        %v431 = vunpack.c.l.b16 %v335
        %v432 = vunpack.c.l.b16 %v336
        %v433 = vunpack.c.h.b16 %v336
        %v434 = vunpack.c.l.b16 %v337
        %v435 = vunpack.c.l.b16 %v338
        %v436 = vunpack.c.h.b16 %v338
        %v437 = vunpack.c.l.b16 %v339
        %v438 = vunpack.c.l.b16 %v340
        %v439 = vunpack.c.h.b16 %v340
        %v440 = vunpack.c.l.b16 %v341
        %v441 = vunpack.c.l.b16 %v342
        %v442 = vunpack.c.h.b16 %v342
        %v443 = vunpack.c.l.b16 %v343
        %v444 = vunpack.c.l.b16 %v344
        %v445 = vunpack.c.h.b16 %v344
        %v446 = vunpack.c.l.b16 %v345
        %v447 = vunpack.c.l.b16 %v346
        %v448 = vunpack.c.h.b16 %v346
        %v449 = vunpack.c.l.b16 %v347
        %v450 = vunpack.c.l.b16 %v348
        %v451 = vunpack.c.h.b16 %v348
        %v452 = vunpack.c.l.b16 %v349
        %v453 = vunpack.c.l.b16 %v350
        %v454 = vunpack.c.h.b16 %v350
        %v455 = vunpack.c.l.b16 %v351
        %v456 = vunpack.c.l.b16 %v352
        %v457 = vunpack.c.h.b16 %v352
        %v458 = vunpack.c.l.b16 %v353
        %v459 = vunpack.c.l.b16 %v354
        %v460 = vunpack.c.h.b16 %v354
        %v461 = vunpack.c.l.b16 %v355
        %v462 = vpack.c.b16 %v417, %v414
        %v463 = vpack.c.b16 %v418, %v415
        %v464 = vpack.c.b16 %v419, %v416
        %v465 = vpack.c.b16 %v423, %v420
        %v466 = vpack.c.b16 %v424, %v421
        %v467 = vpack.c.b16 %v425, %v422
        %v468 = vpack.c.b16 %v429, %v426
        %v469 = vpack.c.b16 %v430, %v427
        %v470 = vpack.c.b16 %v431, %v428
        %v471 = vpack.c.b16 %v435, %v432
        %v472 = vpack.c.b16 %v436, %v433
        %v473 = vpack.c.b16 %v437, %v434
        %v474 = vpack.c.b16 %v441, %v438
        %v475 = vpack.c.b16 %v442, %v439
        %v476 = vpack.c.b16 %v443, %v440
        %v477 = vpack.c.b16 %v447, %v444
        %v478 = vpack.c.b16 %v448, %v445
        %v479 = vpack.c.b16 %v449, %v446
        %v480 = vpack.c.b16 %v453, %v450
        %v481 = vpack.c.b16 %v454, %v451
        %v482 = vpack.c.b16 %v455, %v452
        %v483 = vpack.c.b16 %v459, %v456
        %v484 = vpack.c.b16 %v460, %v457
        %v485 = vpack.c.b16 %v461, %v458
        %510 = vmatprep.subr.bf16.mxu0 %v463
        %511 = vmatpush1.bf16.msra.mxu0 %v462
        %512 = vmatprep.subr.bf16.mxu0 %v466
        %513 = vmatpush1.bf16.msra.mxu0 %v465
        %514 = vmatprep.subr.bf16.mxu0 %v469
        %515 = vmatpush1.bf16.msra.mxu0 %v468
        %516 = vmatprep.subr.bf16.mxu0 %v472
        %517 = vmatpush1.bf16.msra.mxu0 %v471
        %518 = vmatprep.subr.bf16.mxu0 %v475
        %519 = vmatpush1.bf16.msra.mxu0 %v474
        %520 = vmatprep.subr.bf16.mxu0 %v478
        %521 = vmatpush1.bf16.msra.mxu0 %v477
        %522 = vmatprep.subr.bf16.mxu0 %v481
        %523 = vmatpush1.bf16.msra.mxu0 %v480
        %524 = vmatprep.subr.bf16.mxu0 %v484
        %525 = vmatpush1.bf16.msra.mxu0 %v483
        %526 = vmatprep.subr.bf16.mxu0 0
        %527 = vmatpush1.bf16.msra.mxu0 0
        %528 = vmatprep.subr.bf16.mxu0 0
        %529 = vmatpush1.bf16.msra.mxu0 0
        %530 = vmatprep.subr.bf16.mxu0 0
        %531 = vmatpush1.bf16.msra.mxu0 0
        %532 = vmatprep.subr.bf16.mxu0 0
        %533 = vmatpush1.bf16.msra.mxu0 0
        %534 = vmatprep.subr.bf16.mxu0 0
        %535 = vmatpush1.bf16.msra.mxu0 0
        %536 = vmatprep.subr.bf16.mxu0 0
        %537 = vmatpush1.bf16.msra.mxu0 0
        %538 = vmatprep.subr.bf16.mxu0 0
        %539 = vmatpush1.bf16.msra.mxu0 0
        %540 = vmatprep.subr.bf16.mxu0 0
        %541 = vmatpush1.bf16.msra.mxu0 0
        %542 = vmatprep.mubr.bf16.mxu0 0
        %543 = vmatmul.mubr.bf16.gmra.mrb[0].mxu0 %v365
        %v544 = vpop.f32.mrb[0].mxu0
        %v545 = vadd.f32 %v370, %v544
        %v546 = vpop.f32.mrb[0].mxu0
        %v547 = vadd.f32 %v374, %v546
        %v548 = vpop.f32.mrb[0].mxu0
        %v549 = vpop.f32.mrb[0].mxu0
        %550 = vdwg.mxu0
        %551 = vmatprep.subr.bf16.mxu0 0
        %552 = vmatpush1.bf16.msra.mxu0 %v464
        %553 = vmatprep.subr.bf16.mxu0 0
        %554 = vmatpush1.bf16.msra.mxu0 %v467
        %555 = vmatprep.subr.bf16.mxu0 0
        %556 = vmatpush1.bf16.msra.mxu0 %v470
        %557 = vmatprep.subr.bf16.mxu0 0
        %558 = vmatpush1.bf16.msra.mxu0 %v473
        %559 = vmatprep.subr.bf16.mxu0 0
        %560 = vmatpush1.bf16.msra.mxu0 %v476
        %561 = vmatprep.subr.bf16.mxu0 0
        %562 = vmatpush1.bf16.msra.mxu0 %v479
        %563 = vmatprep.subr.bf16.mxu0 0
        %564 = vmatpush1.bf16.msra.mxu0 %v482
        %565 = vmatprep.subr.bf16.mxu0 0
        %566 = vmatpush1.bf16.msra.mxu0 %v485
        %567 = vmatprep.subr.bf16.mxu0 0
        %568 = vmatpush1.bf16.msra.mxu0 0
        %569 = vmatprep.subr.bf16.mxu0 0
        %570 = vmatpush1.bf16.msra.mxu0 0
        %571 = vmatprep.subr.bf16.mxu0 0
        %572 = vmatpush1.bf16.msra.mxu0 0
        %573 = vmatprep.subr.bf16.mxu0 0
        %574 = vmatpush1.bf16.msra.mxu0 0
        %575 = vmatprep.subr.bf16.mxu0 0
        %576 = vmatpush1.bf16.msra.mxu0 0
        %577 = vmatprep.subr.bf16.mxu0 0
        %578 = vmatpush1.bf16.msra.mxu0 0
        %579 = vmatprep.subr.bf16.mxu0 0
        %580 = vmatpush1.bf16.msra.mxu0 0
        %581 = vmatprep.subr.bf16.mxu0 0
        %582 = vmatpush1.bf16.msra.mxu0 0
        %583 = vmatprep.mubr.bf16.mxu0 0
        %584 = vmatmul.mubr.bf16.gmra.mrb[0].mxu0 %v365
        %v585 = vpop.f32.mrb[0].mxu0
        %v586 = vadd.f32 %v378, %v585
        %v587 = vpop.f32.mrb[0].mxu0
        %v588 = vpop.f32.mrb[0].mxu0
        %v589 = vpop.f32.mrb[0].mxu0
        %590 = vdwg.mxu0
        %v591 = vadd.f32 %v361, %v545
        %v592 = vxor.u32 %v591, 2147483648
        %v593 = vmul.f32 %v592, 1.442695
        %v594 = vpow.pop %v593
        %v595 = vadd.f32 %v594, 1.0
        %v596 = vrcp.pop %v595
        %v597 = vmul.f32 1.0, %v596
        %v598 = vadd.f32 %v362, %v547
        %v599 = vxor.u32 %v598, 2147483648
        %v600 = vmul.f32 %v599, 1.442695
        %v601 = vpow.pop %v600
        %v602 = vadd.f32 %v601, 1.0
        %v603 = vrcp.pop %v602
        %v604 = vmul.f32 1.0, %v603
        %v605 = vmul.f32 %v597, %v586
        %v606 = vadd.f32 %v363, %v605
        %v607 = vtanh.pop %v606
        %v608 = vsub.f32 1.0, %v604
        %v609 = vmul.f32 %v608, %v607
        %v610 = vmul.f32 %v604, %v364
        %v611 = vadd.f32 %v609, %v610
        %612 = vst [vmem:[#allocation2] sm:$0xff] %v611
        %s613 = smul.u32 %s357, 8
        %s614 = scalar_lea.vmem %s297, %s613 [#allocation4]
        %615 = vst [vmem:[%s614] sm:$0xff] %v611
        %s616 = smul.u32 %s18, 5
        %s617 = sadd.s32 %s616, 1
        %s618 = smul.u32 %s617, 3
        %s619 = smul.addr %s618, 8
        %s620 = scalar_lea.vmem %s269, %s619 [#allocation3]
        %v621 = vld [vmem:[%s620] sm:$0xff]
        %v622 = vld [vmem:[%s620 + $0x8] sm:$0xff]
        %v623 = vld [vmem:[%s620 + $0x10] sm:$0xff]
        %v624 = vld [vmem:[#allocation2] sm:$0xff]
        %v625 = vpack.c.bf16 %v624, %v624
        %626 = vmatprep.subr.bf16.mxu0 %v463
        %627 = vmatpush1.bf16.msra.mxu0 %v462
        %628 = vmatprep.subr.bf16.mxu0 %v466
        %629 = vmatpush1.bf16.msra.mxu0 %v465
        %630 = vmatprep.subr.bf16.mxu0 %v469
        %631 = vmatpush1.bf16.msra.mxu0 %v468
        %632 = vmatprep.subr.bf16.mxu0 %v472
        %633 = vmatpush1.bf16.msra.mxu0 %v471
        %634 = vmatprep.subr.bf16.mxu0 %v475
        %635 = vmatpush1.bf16.msra.mxu0 %v474
        %636 = vmatprep.subr.bf16.mxu0 %v478
        %637 = vmatpush1.bf16.msra.mxu0 %v477
        %638 = vmatprep.subr.bf16.mxu0 %v481
        %639 = vmatpush1.bf16.msra.mxu0 %v480
        %640 = vmatprep.subr.bf16.mxu0 %v484
        %641 = vmatpush1.bf16.msra.mxu0 %v483
        %642 = vmatprep.subr.bf16.mxu0 0
        %643 = vmatpush1.bf16.msra.mxu0 0
        %644 = vmatprep.subr.bf16.mxu0 0
        %645 = vmatpush1.bf16.msra.mxu0 0
        %646 = vmatprep.subr.bf16.mxu0 0
        %647 = vmatpush1.bf16.msra.mxu0 0
        %648 = vmatprep.subr.bf16.mxu0 0
        %649 = vmatpush1.bf16.msra.mxu0 0
        %650 = vmatprep.subr.bf16.mxu0 0
        %651 = vmatpush1.bf16.msra.mxu0 0
        %652 = vmatprep.subr.bf16.mxu0 0
        %653 = vmatpush1.bf16.msra.mxu0 0
        %654 = vmatprep.subr.bf16.mxu0 0
        %655 = vmatpush1.bf16.msra.mxu0 0
        %656 = vmatprep.subr.bf16.mxu0 0
        %657 = vmatpush1.bf16.msra.mxu0 0
        %658 = vmatprep.mubr.bf16.mxu0 0
        %659 = vmatmul.mubr.bf16.gmra.mrb[0].mxu0 %v625
        %v660 = vpop.f32.mrb[0].mxu0
        %v661 = vadd.f32 %v370, %v660
        %v662 = vpop.f32.mrb[0].mxu0
        %v663 = vadd.f32 %v374, %v662
        %v664 = vpop.f32.mrb[0].mxu0
        %v665 = vpop.f32.mrb[0].mxu0
        %666 = vdwg.mxu0
        %667 = vmatprep.subr.bf16.mxu0 0
        %668 = vmatpush1.bf16.msra.mxu0 %v464
        %669 = vmatprep.subr.bf16.mxu0 0
        %670 = vmatpush1.bf16.msra.mxu0 %v467
        %671 = vmatprep.subr.bf16.mxu0 0
        %672 = vmatpush1.bf16.msra.mxu0 %v470
        %673 = vmatprep.subr.bf16.mxu0 0
        %674 = vmatpush1.bf16.msra.mxu0 %v473
        %675 = vmatprep.subr.bf16.mxu0 0
        %676 = vmatpush1.bf16.msra.mxu0 %v476
        %677 = vmatprep.subr.bf16.mxu0 0
        %678 = vmatpush1.bf16.msra.mxu0 %v479
        %679 = vmatprep.subr.bf16.mxu0 0
        %680 = vmatpush1.bf16.msra.mxu0 %v482
        %681 = vmatprep.subr.bf16.mxu0 0
        %682 = vmatpush1.bf16.msra.mxu0 %v485
        %683 = vmatprep.subr.bf16.mxu0 0
        %684 = vmatpush1.bf16.msra.mxu0 0
        %685 = vmatprep.subr.bf16.mxu0 0
        %686 = vmatpush1.bf16.msra.mxu0 0
        %687 = vmatprep.subr.bf16.mxu0 0
        %688 = vmatpush1.bf16.msra.mxu0 0
        %689 = vmatprep.subr.bf16.mxu0 0
        %690 = vmatpush1.bf16.msra.mxu0 0
        %691 = vmatprep.subr.bf16.mxu0 0
        %692 = vmatpush1.bf16.msra.mxu0 0
        %693 = vmatprep.subr.bf16.mxu0 0
        %694 = vmatpush1.bf16.msra.mxu0 0
        %695 = vmatprep.subr.bf16.mxu0 0
        %696 = vmatpush1.bf16.msra.mxu0 0
        %697 = vmatprep.subr.bf16.mxu0 0
        %698 = vmatpush1.bf16.msra.mxu0 0
        %699 = vmatprep.mubr.bf16.mxu0 0
        %700 = vmatmul.mubr.bf16.gmra.mrb[0].mxu0 %v625
        %v701 = vpop.f32.mrb[0].mxu0
        %v702 = vadd.f32 %v378, %v701
        %v703 = vpop.f32.mrb[0].mxu0
        %v704 = vpop.f32.mrb[0].mxu0
        %v705 = vpop.f32.mrb[0].mxu0
        %706 = vdwg.mxu0
        %v707 = vadd.f32 %v621, %v661
        %v708 = vxor.u32 %v707, 2147483648
        %v709 = vmul.f32 %v708, 1.442695
        %v710 = vpow.pop %v709
        %v711 = vadd.f32 %v710, 1.0
        %v712 = vrcp.pop %v711
        %v713 = vmul.f32 1.0, %v712
        %v714 = vadd.f32 %v622, %v663
        %v715 = vxor.u32 %v714, 2147483648
        %v716 = vmul.f32 %v715, 1.442695
        %v717 = vpow.pop %v716
        %v718 = vadd.f32 %v717, 1.0
        %v719 = vrcp.pop %v718
        %v720 = vmul.f32 1.0, %v719
        %v721 = vmul.f32 %v713, %v702
        %v722 = vadd.f32 %v623, %v721
        %v723 = vtanh.pop %v722
        %v724 = vsub.f32 1.0, %v720
        %v725 = vmul.f32 %v724, %v723
        %v726 = vmul.f32 %v720, %v624
        %v727 = vadd.f32 %v725, %v726
        %728 = vst [vmem:[#allocation2] sm:$0xff] %v727
        %s729 = smul.u32 %s617, 8
        %s730 = scalar_lea.vmem %s297, %s729 [#allocation4]
        %731 = vst [vmem:[%s730] sm:$0xff] %v727
        %s732 = smul.u32 %s18, 3
        %s733 = sadd.s32 %s732, 2
        %s734 = smul.u32 %s733, 3
        %s735 = smul.addr %s734, 8
        %s736 = scalar_lea.vmem %s269, %s735 [#allocation3]
        %v737 = vld [vmem:[%s736] sm:$0xff]
        %v738 = vld [vmem:[%s736 + $0x8] sm:$0xff]
        %v739 = vld [vmem:[%s736 + $0x10] sm:$0xff]
        %v740 = vld [vmem:[#allocation2] sm:$0xff]
        %v741 = vpack.c.bf16 %v740, %v740
        %742 = vmatprep.subr.bf16.mxu0 %v463
        %743 = vmatpush1.bf16.msra.mxu0 %v462
        %744 = vmatprep.subr.bf16.mxu0 %v466
        %745 = vmatpush1.bf16.msra.mxu0 %v465
        %746 = vmatprep.subr.bf16.mxu0 %v469
        %747 = vmatpush1.bf16.msra.mxu0 %v468
        %748 = vmatprep.subr.bf16.mxu0 %v472
        %749 = vmatpush1.bf16.msra.mxu0 %v471
        %750 = vmatprep.subr.bf16.mxu0 %v475
        %751 = vmatpush1.bf16.msra.mxu0 %v474
        %752 = vmatprep.subr.bf16.mxu0 %v478
        %753 = vmatpush1.bf16.msra.mxu0 %v477
        %754 = vmatprep.subr.bf16.mxu0 %v481
        %755 = vmatpush1.bf16.msra.mxu0 %v480
        %756 = vmatprep.subr.bf16.mxu0 %v484
        %757 = vmatpush1.bf16.msra.mxu0 %v483
        %758 = vmatprep.subr.bf16.mxu0 0
        %759 = vmatpush1.bf16.msra.mxu0 0
        %760 = vmatprep.subr.bf16.mxu0 0
        %761 = vmatpush1.bf16.msra.mxu0 0
        %762 = vmatprep.subr.bf16.mxu0 0
        %763 = vmatpush1.bf16.msra.mxu0 0
        %764 = vmatprep.subr.bf16.mxu0 0
        %765 = vmatpush1.bf16.msra.mxu0 0
        %766 = vmatprep.subr.bf16.mxu0 0
        %767 = vmatpush1.bf16.msra.mxu0 0
        %768 = vmatprep.subr.bf16.mxu0 0
        %769 = vmatpush1.bf16.msra.mxu0 0
        %770 = vmatprep.subr.bf16.mxu0 0
        %771 = vmatpush1.bf16.msra.mxu0 0
        %772 = vmatprep.subr.bf16.mxu0 0
        %773 = vmatpush1.bf16.msra.mxu0 0
        %774 = vmatprep.mubr.bf16.mxu0 0
        %775 = vmatmul.mubr.bf16.gmra.mrb[0].mxu0 %v741
        %v776 = vpop.f32.mrb[0].mxu0
        %v777 = vadd.f32 %v370, %v776
        %v778 = vpop.f32.mrb[0].mxu0
        %v779 = vadd.f32 %v374, %v778
        %v780 = vpop.f32.mrb[0].mxu0
        %v781 = vpop.f32.mrb[0].mxu0
        %782 = vdwg.mxu0
        %783 = vmatprep.subr.bf16.mxu0 0
        %784 = vmatpush1.bf16.msra.mxu0 %v464
        %785 = vmatprep.subr.bf16.mxu0 0
        %786 = vmatpush1.bf16.msra.mxu0 %v467
        %787 = vmatprep.subr.bf16.mxu0 0
        %788 = vmatpush1.bf16.msra.mxu0 %v470
        %789 = vmatprep.subr.bf16.mxu0 0
        %790 = vmatpush1.bf16.msra.mxu0 %v473
        %791 = vmatprep.subr.bf16.mxu0 0
        %792 = vmatpush1.bf16.msra.mxu0 %v476
        %793 = vmatprep.subr.bf16.mxu0 0
        %794 = vmatpush1.bf16.msra.mxu0 %v479
        %795 = vmatprep.subr.bf16.mxu0 0
        %796 = vmatpush1.bf16.msra.mxu0 %v482
        %797 = vmatprep.subr.bf16.mxu0 0
        %798 = vmatpush1.bf16.msra.mxu0 %v485
        %799 = vmatprep.subr.bf16.mxu0 0
        %800 = vmatpush1.bf16.msra.mxu0 0
        %801 = vmatprep.subr.bf16.mxu0 0
        %802 = vmatpush1.bf16.msra.mxu0 0
        %803 = vmatprep.subr.bf16.mxu0 0
        %804 = vmatpush1.bf16.msra.mxu0 0
        %805 = vmatprep.subr.bf16.mxu0 0
        %806 = vmatpush1.bf16.msra.mxu0 0
        %807 = vmatprep.subr.bf16.mxu0 0
        %808 = vmatpush1.bf16.msra.mxu0 0
        %809 = vmatprep.subr.bf16.mxu0 0
        %810 = vmatpush1.bf16.msra.mxu0 0
        %811 = vmatprep.subr.bf16.mxu0 0
        %812 = vmatpush1.bf16.msra.mxu0 0
        %813 = vmatprep.subr.bf16.mxu0 0
        %814 = vmatpush1.bf16.msra.mxu0 0
        %815 = vmatprep.mubr.bf16.mxu0 0
        %816 = vmatmul.mubr.bf16.gmra.mrb[0].mxu0 %v741
        %v817 = vpop.f32.mrb[0].mxu0
        %v818 = vadd.f32 %v378, %v817
        %v819 = vpop.f32.mrb[0].mxu0
        %v820 = vpop.f32.mrb[0].mxu0
        %v821 = vpop.f32.mrb[0].mxu0
        %822 = vdwg.mxu0
        %v823 = vadd.f32 %v737, %v777
        %v824 = vxor.u32 %v823, 2147483648
        %v825 = vmul.f32 %v824, 1.442695
        %v826 = vpow.pop %v825
        %v827 = vadd.f32 %v826, 1.0
        %v828 = vrcp.pop %v827
        %v829 = vmul.f32 1.0, %v828
        %v830 = vadd.f32 %v738, %v779
        %v831 = vxor.u32 %v830, 2147483648
        %v832 = vmul.f32 %v831, 1.442695
        %v833 = vpow.pop %v832
        %v834 = vadd.f32 %v833, 1.0
        %v835 = vrcp.pop %v834
        %v836 = vmul.f32 1.0, %v835
        %v837 = vmul.f32 %v829, %v818
        %v838 = vadd.f32 %v739, %v837
        %v839 = vtanh.pop %v838
        %v840 = vsub.f32 1.0, %v836
        %v841 = vmul.f32 %v840, %v839
        %v842 = vmul.f32 %v836, %v740
        %v843 = vadd.f32 %v841, %v842
        %844 = vst [vmem:[#allocation2] sm:$0xff] %v843
        %s845 = smul.u32 %s733, 8
        %s846 = scalar_lea.vmem %s297, %s845 [#allocation4]
        %847 = vst [vmem:[%s846] sm:$0xff] %v843
        %s848 = sadd.s32 %s18, 3
        %s849 = smul.u32 %s848, 3
        %s850 = smul.addr %s849, 8
        %s851 = scalar_lea.vmem %s269, %s850 [#allocation3]
        %v852 = vld [vmem:[%s851] sm:$0xff]
        %v853 = vld [vmem:[%s851 + $0x8] sm:$0xff]
        %v854 = vld [vmem:[%s851 + $0x10] sm:$0xff]
        %v855 = vld [vmem:[#allocation2] sm:$0xff]
        %v856 = vpack.c.bf16 %v855, %v855
        %857 = vmatprep.subr.bf16.mxu0 %v463
        %858 = vmatpush1.bf16.msra.mxu0 %v462
        %859 = vmatprep.subr.bf16.mxu0 %v466
        %860 = vmatpush1.bf16.msra.mxu0 %v465
        %861 = vmatprep.subr.bf16.mxu0 %v469
        %862 = vmatpush1.bf16.msra.mxu0 %v468
        %863 = vmatprep.subr.bf16.mxu0 %v472
        %864 = vmatpush1.bf16.msra.mxu0 %v471
        %865 = vmatprep.subr.bf16.mxu0 %v475
        %866 = vmatpush1.bf16.msra.mxu0 %v474
        %867 = vmatprep.subr.bf16.mxu0 %v478
        %868 = vmatpush1.bf16.msra.mxu0 %v477
        %869 = vmatprep.subr.bf16.mxu0 %v481
        %870 = vmatpush1.bf16.msra.mxu0 %v480
        %871 = vmatprep.subr.bf16.mxu0 %v484
        %872 = vmatpush1.bf16.msra.mxu0 %v483
        %873 = vmatprep.subr.bf16.mxu0 0
        %874 = vmatpush1.bf16.msra.mxu0 0
        %875 = vmatprep.subr.bf16.mxu0 0
        %876 = vmatpush1.bf16.msra.mxu0 0
        %877 = vmatprep.subr.bf16.mxu0 0
        %878 = vmatpush1.bf16.msra.mxu0 0
        %879 = vmatprep.subr.bf16.mxu0 0
        %880 = vmatpush1.bf16.msra.mxu0 0
        %881 = vmatprep.subr.bf16.mxu0 0
        %882 = vmatpush1.bf16.msra.mxu0 0
        %883 = vmatprep.subr.bf16.mxu0 0
        %884 = vmatpush1.bf16.msra.mxu0 0
        %885 = vmatprep.subr.bf16.mxu0 0
        %886 = vmatpush1.bf16.msra.mxu0 0
        %887 = vmatprep.subr.bf16.mxu0 0
        %888 = vmatpush1.bf16.msra.mxu0 0
        %889 = vmatprep.mubr.bf16.mxu0 0
        %890 = vmatmul.mubr.bf16.gmra.mrb[0].mxu0 %v856
        %v891 = vpop.f32.mrb[0].mxu0
        %v892 = vadd.f32 %v370, %v891
        %v893 = vpop.f32.mrb[0].mxu0
        %v894 = vadd.f32 %v374, %v893
        %v895 = vpop.f32.mrb[0].mxu0
        %v896 = vpop.f32.mrb[0].mxu0
        %897 = vdwg.mxu0
        %898 = vmatprep.subr.bf16.mxu0 0
        %899 = vmatpush1.bf16.msra.mxu0 %v464
        %900 = vmatprep.subr.bf16.mxu0 0
        %901 = vmatpush1.bf16.msra.mxu0 %v467
        %902 = vmatprep.subr.bf16.mxu0 0
        %903 = vmatpush1.bf16.msra.mxu0 %v470
        %904 = vmatprep.subr.bf16.mxu0 0
        %905 = vmatpush1.bf16.msra.mxu0 %v473
        %906 = vmatprep.subr.bf16.mxu0 0
        %907 = vmatpush1.bf16.msra.mxu0 %v476
        %908 = vmatprep.subr.bf16.mxu0 0
        %909 = vmatpush1.bf16.msra.mxu0 %v479
        %910 = vmatprep.subr.bf16.mxu0 0
        %911 = vmatpush1.bf16.msra.mxu0 %v482
        %912 = vmatprep.subr.bf16.mxu0 0
        %913 = vmatpush1.bf16.msra.mxu0 %v485
        %914 = vmatprep.subr.bf16.mxu0 0
        %915 = vmatpush1.bf16.msra.mxu0 0
        %916 = vmatprep.subr.bf16.mxu0 0
        %917 = vmatpush1.bf16.msra.mxu0 0
        %918 = vmatprep.subr.bf16.mxu0 0
        %919 = vmatpush1.bf16.msra.mxu0 0
        %920 = vmatprep.subr.bf16.mxu0 0
        %921 = vmatpush1.bf16.msra.mxu0 0
        %922 = vmatprep.subr.bf16.mxu0 0
        %923 = vmatpush1.bf16.msra.mxu0 0
        %924 = vmatprep.subr.bf16.mxu0 0
        %925 = vmatpush1.bf16.msra.mxu0 0
        %926 = vmatprep.subr.bf16.mxu0 0
        %927 = vmatpush1.bf16.msra.mxu0 0
        %928 = vmatprep.subr.bf16.mxu0 0
        %929 = vmatpush1.bf16.msra.mxu0 0
        %930 = vmatprep.mubr.bf16.mxu0 0
        %931 = vmatmul.mubr.bf16.gmra.mrb[0].mxu0 %v856
        %v932 = vpop.f32.mrb[0].mxu0
        %v933 = vadd.f32 %v378, %v932
        %v934 = vpop.f32.mrb[0].mxu0
        %v935 = vpop.f32.mrb[0].mxu0
        %v936 = vpop.f32.mrb[0].mxu0
        %937 = vdwg.mxu0
        %v938 = vadd.f32 %v852, %v892
        %v939 = vxor.u32 %v938, 2147483648
        %v940 = vmul.f32 %v939, 1.442695
        %v941 = vpow.pop %v940
        %v942 = vadd.f32 %v941, 1.0
        %v943 = vrcp.pop %v942
        %v944 = vmul.f32 1.0, %v943
        %v945 = vadd.f32 %v853, %v894
        %v946 = vxor.u32 %v945, 2147483648
        %v947 = vmul.f32 %v946, 1.442695
        %v948 = vpow.pop %v947
        %v949 = vadd.f32 %v948, 1.0
        %v950 = vrcp.pop %v949
        %v951 = vmul.f32 1.0, %v950
        %v952 = vmul.f32 %v944, %v933
        %v953 = vadd.f32 %v854, %v952
        %v954 = vtanh.pop %v953
        %v955 = vsub.f32 1.0, %v951
        %v956 = vmul.f32 %v955, %v954
        %v957 = vmul.f32 %v951, %v855
        %v958 = vadd.f32 %v956, %v957
        %959 = vst [vmem:[#allocation2] sm:$0xff] %v958
        %s960 = smul.u32 %s848, 8
        %s961 = scalar_lea.vmem %s297, %s960 [#allocation4]
        %962 = vst [vmem:[%s961] sm:$0xff] %v958
        %s963 = ssub.s32 4, %s18
        %s964 = smul.u32 %s963, 3
        %s965 = smul.addr %s964, 8
        %s966 = scalar_lea.vmem %s269, %s965 [#allocation3]
        %v967 = vld [vmem:[%s966] sm:$0xff]
        %v968 = vld [vmem:[%s966 + $0x8] sm:$0xff]
        %v969 = vld [vmem:[%s966 + $0x10] sm:$0xff]
        %v970 = vld [vmem:[#allocation2] sm:$0xff]
        %v971 = vpack.c.bf16 %v970, %v970
        %972 = vmatprep.subr.bf16.mxu0 %v463
        %973 = vmatpush1.bf16.msra.mxu0 %v462
        %974 = vmatprep.subr.bf16.mxu0 %v466
        %975 = vmatpush1.bf16.msra.mxu0 %v465
        %976 = vmatprep.subr.bf16.mxu0 %v469
        %977 = vmatpush1.bf16.msra.mxu0 %v468
        %978 = vmatprep.subr.bf16.mxu0 %v472
        %979 = vmatpush1.bf16.msra.mxu0 %v471
        %980 = vmatprep.subr.bf16.mxu0 %v475
        %981 = vmatpush1.bf16.msra.mxu0 %v474
        %982 = vmatprep.subr.bf16.mxu0 %v478
        %983 = vmatpush1.bf16.msra.mxu0 %v477
        %984 = vmatprep.subr.bf16.mxu0 %v481
        %985 = vmatpush1.bf16.msra.mxu0 %v480
        %986 = vmatprep.subr.bf16.mxu0 %v484
        %987 = vmatpush1.bf16.msra.mxu0 %v483
        %988 = vmatprep.subr.bf16.mxu0 0
        %989 = vmatpush1.bf16.msra.mxu0 0
        %990 = vmatprep.subr.bf16.mxu0 0
        %991 = vmatpush1.bf16.msra.mxu0 0
        %992 = vmatprep.subr.bf16.mxu0 0
        %993 = vmatpush1.bf16.msra.mxu0 0
        %994 = vmatprep.subr.bf16.mxu0 0
        %995 = vmatpush1.bf16.msra.mxu0 0
        %996 = vmatprep.subr.bf16.mxu0 0
        %997 = vmatpush1.bf16.msra.mxu0 0
        %998 = vmatprep.subr.bf16.mxu0 0
        %999 = vmatpush1.bf16.msra.mxu0 0
        %1000 = vmatprep.subr.bf16.mxu0 0
        %1001 = vmatpush1.bf16.msra.mxu0 0
        %1002 = vmatprep.subr.bf16.mxu0 0
        %1003 = vmatpush1.bf16.msra.mxu0 0
        %1004 = vmatprep.mubr.bf16.mxu0 0
        %1005 = vmatmul.mubr.bf16.gmra.mrb[0].mxu0 %v971
        %v1006 = vpop.f32.mrb[0].mxu0
        %v1007 = vadd.f32 %v370, %v1006
        %v1008 = vpop.f32.mrb[0].mxu0
        %v1009 = vadd.f32 %v374, %v1008
        %v1010 = vpop.f32.mrb[0].mxu0
        %v1011 = vpop.f32.mrb[0].mxu0
        %1012 = vdwg.mxu0
        %1013 = vmatprep.subr.bf16.mxu0 0
        %1014 = vmatpush1.bf16.msra.mxu0 %v464
        %1015 = vmatprep.subr.bf16.mxu0 0
        %1016 = vmatpush1.bf16.msra.mxu0 %v467
        %1017 = vmatprep.subr.bf16.mxu0 0
        %1018 = vmatpush1.bf16.msra.mxu0 %v470
        %1019 = vmatprep.subr.bf16.mxu0 0
        %1020 = vmatpush1.bf16.msra.mxu0 %v473
        %1021 = vmatprep.subr.bf16.mxu0 0
        %1022 = vmatpush1.bf16.msra.mxu0 %v476
        %1023 = vmatprep.subr.bf16.mxu0 0
        %1024 = vmatpush1.bf16.msra.mxu0 %v479
        %1025 = vmatprep.subr.bf16.mxu0 0
        %1026 = vmatpush1.bf16.msra.mxu0 %v482
        %1027 = vmatprep.subr.bf16.mxu0 0
        %1028 = vmatpush1.bf16.msra.mxu0 %v485
        %1029 = vmatprep.subr.bf16.mxu0 0
        %1030 = vmatpush1.bf16.msra.mxu0 0
        %1031 = vmatprep.subr.bf16.mxu0 0
        %1032 = vmatpush1.bf16.msra.mxu0 0
        %1033 = vmatprep.subr.bf16.mxu0 0
        %1034 = vmatpush1.bf16.msra.mxu0 0
        %1035 = vmatprep.subr.bf16.mxu0 0
        %1036 = vmatpush1.bf16.msra.mxu0 0
        %1037 = vmatprep.subr.bf16.mxu0 0
        %1038 = vmatpush1.bf16.msra.mxu0 0
        %1039 = vmatprep.subr.bf16.mxu0 0
        %1040 = vmatpush1.bf16.msra.mxu0 0
        %1041 = vmatprep.subr.bf16.mxu0 0
        %1042 = vmatpush1.bf16.msra.mxu0 0
        %1043 = vmatprep.subr.bf16.mxu0 0
        %1044 = vmatpush1.bf16.msra.mxu0 0
        %1045 = vmatprep.mubr.bf16.mxu0 0
        %1046 = vmatmul.mubr.bf16.gmra.mrb[0].mxu0 %v971
        %v1047 = vpop.f32.mrb[0].mxu0
        %v1048 = vadd.f32 %v378, %v1047
        %v1049 = vpop.f32.mrb[0].mxu0
        %v1050 = vpop.f32.mrb[0].mxu0
        %v1051 = vpop.f32.mrb[0].mxu0
        %1052 = vdwg.mxu0
        %v1053 = vadd.f32 %v967, %v1007
        %v1054 = vxor.u32 %v1053, 2147483648
        %v1055 = vmul.f32 %v1054, 1.442695
        %v1056 = vpow.pop %v1055
        %v1057 = vadd.f32 %v1056, 1.0
        %v1058 = vrcp.pop %v1057
        %v1059 = vmul.f32 1.0, %v1058
        %v1060 = vadd.f32 %v968, %v1009
        %v1061 = vxor.u32 %v1060, 2147483648
        %v1062 = vmul.f32 %v1061, 1.442695
        %v1063 = vpow.pop %v1062
        %v1064 = vadd.f32 %v1063, 1.0
        %v1065 = vrcp.pop %v1064
        %v1066 = vmul.f32 1.0, %v1065
        %v1067 = vmul.f32 %v1059, %v1048
        %v1068 = vadd.f32 %v969, %v1067
        %v1069 = vtanh.pop %v1068
        %v1070 = vsub.f32 1.0, %v1066
        %v1071 = vmul.f32 %v1070, %v1069
        %v1072 = vmul.f32 %v1066, %v970
        %v1073 = vadd.f32 %v1071, %v1072
        %1074 = vst [vmem:[#allocation2] sm:$0xff] %v1073
        %s1075 = smul.u32 %s963, 8
        %s1076 = scalar_lea.vmem %s297, %s1075 [#allocation4]
        %1077 = vst [vmem:[%s1076] sm:$0xff] %v1073
        %s1078 = smul.u32 %s18, 4294967293
        %s1079 = sadd.s32 %s1078, 5
        %s1080 = smul.u32 %s1079, 3
        %s1081 = smul.addr %s1080, 8
        %s1082 = scalar_lea.vmem %s269, %s1081 [#allocation3]
        %v1083 = vld [vmem:[%s1082] sm:$0xff]
        %v1084 = vld [vmem:[%s1082 + $0x8] sm:$0xff]
        %v1085 = vld [vmem:[%s1082 + $0x10] sm:$0xff]
        %v1086 = vld [vmem:[#allocation2] sm:$0xff]
        %v1087 = vpack.c.bf16 %v1086, %v1086
        %1088 = vmatprep.subr.bf16.mxu0 %v463
        %1089 = vmatpush1.bf16.msra.mxu0 %v462
        %1090 = vmatprep.subr.bf16.mxu0 %v466
        %1091 = vmatpush1.bf16.msra.mxu0 %v465
        %1092 = vmatprep.subr.bf16.mxu0 %v469
        %1093 = vmatpush1.bf16.msra.mxu0 %v468
        %1094 = vmatprep.subr.bf16.mxu0 %v472
        %1095 = vmatpush1.bf16.msra.mxu0 %v471
        %1096 = vmatprep.subr.bf16.mxu0 %v475
        %1097 = vmatpush1.bf16.msra.mxu0 %v474
        %1098 = vmatprep.subr.bf16.mxu0 %v478
        %1099 = vmatpush1.bf16.msra.mxu0 %v477
        %1100 = vmatprep.subr.bf16.mxu0 %v481
        %1101 = vmatpush1.bf16.msra.mxu0 %v480
        %1102 = vmatprep.subr.bf16.mxu0 %v484
        %1103 = vmatpush1.bf16.msra.mxu0 %v483
        %1104 = vmatprep.subr.bf16.mxu0 0
        %1105 = vmatpush1.bf16.msra.mxu0 0
        %1106 = vmatprep.subr.bf16.mxu0 0
        %1107 = vmatpush1.bf16.msra.mxu0 0
        %1108 = vmatprep.subr.bf16.mxu0 0
        %1109 = vmatpush1.bf16.msra.mxu0 0
        %1110 = vmatprep.subr.bf16.mxu0 0
        %1111 = vmatpush1.bf16.msra.mxu0 0
        %1112 = vmatprep.subr.bf16.mxu0 0
        %1113 = vmatpush1.bf16.msra.mxu0 0
        %1114 = vmatprep.subr.bf16.mxu0 0
        %1115 = vmatpush1.bf16.msra.mxu0 0
        %1116 = vmatprep.subr.bf16.mxu0 0
        %1117 = vmatpush1.bf16.msra.mxu0 0
        %1118 = vmatprep.subr.bf16.mxu0 0
        %1119 = vmatpush1.bf16.msra.mxu0 0
        %1120 = vmatprep.mubr.bf16.mxu0 0
        %1121 = vmatmul.mubr.bf16.gmra.mrb[0].mxu0 %v1087
        %v1122 = vpop.f32.mrb[0].mxu0
        %v1123 = vadd.f32 %v370, %v1122
        %v1124 = vpop.f32.mrb[0].mxu0
        %v1125 = vadd.f32 %v374, %v1124
        %v1126 = vpop.f32.mrb[0].mxu0
        %v1127 = vpop.f32.mrb[0].mxu0
        %1128 = vdwg.mxu0
        %1129 = vmatprep.subr.bf16.mxu0 0
        %1130 = vmatpush1.bf16.msra.mxu0 %v464
        %1131 = vmatprep.subr.bf16.mxu0 0
        %1132 = vmatpush1.bf16.msra.mxu0 %v467
        %1133 = vmatprep.subr.bf16.mxu0 0
        %1134 = vmatpush1.bf16.msra.mxu0 %v470
        %1135 = vmatprep.subr.bf16.mxu0 0
        %1136 = vmatpush1.bf16.msra.mxu0 %v473
        %1137 = vmatprep.subr.bf16.mxu0 0
        %1138 = vmatpush1.bf16.msra.mxu0 %v476
        %1139 = vmatprep.subr.bf16.mxu0 0
        %1140 = vmatpush1.bf16.msra.mxu0 %v479
        %1141 = vmatprep.subr.bf16.mxu0 0
        %1142 = vmatpush1.bf16.msra.mxu0 %v482
        %1143 = vmatprep.subr.bf16.mxu0 0
        %1144 = vmatpush1.bf16.msra.mxu0 %v485
        %1145 = vmatprep.subr.bf16.mxu0 0
        %1146 = vmatpush1.bf16.msra.mxu0 0
        %1147 = vmatprep.subr.bf16.mxu0 0
        %1148 = vmatpush1.bf16.msra.mxu0 0
        %1149 = vmatprep.subr.bf16.mxu0 0
        %1150 = vmatpush1.bf16.msra.mxu0 0
        %1151 = vmatprep.subr.bf16.mxu0 0
        %1152 = vmatpush1.bf16.msra.mxu0 0
        %1153 = vmatprep.subr.bf16.mxu0 0
        %1154 = vmatpush1.bf16.msra.mxu0 0
        %1155 = vmatprep.subr.bf16.mxu0 0
        %1156 = vmatpush1.bf16.msra.mxu0 0
        %1157 = vmatprep.subr.bf16.mxu0 0
        %1158 = vmatpush1.bf16.msra.mxu0 0
        %1159 = vmatprep.subr.bf16.mxu0 0
        %1160 = vmatpush1.bf16.msra.mxu0 0
        %1161 = vmatprep.mubr.bf16.mxu0 0
        %1162 = vmatmul.mubr.bf16.gmra.mrb[0].mxu0 %v1087
        %v1163 = vpop.f32.mrb[0].mxu0
        %v1164 = vadd.f32 %v378, %v1163
        %v1165 = vpop.f32.mrb[0].mxu0
        %v1166 = vpop.f32.mrb[0].mxu0
        %v1167 = vpop.f32.mrb[0].mxu0
        %1168 = vdwg.mxu0
        %v1169 = vadd.f32 %v1083, %v1123
        %v1170 = vxor.u32 %v1169, 2147483648
        %v1171 = vmul.f32 %v1170, 1.442695
        %v1172 = vpow.pop %v1171
        %v1173 = vadd.f32 %v1172, 1.0
        %v1174 = vrcp.pop %v1173
        %v1175 = vmul.f32 1.0, %v1174
        %v1176 = vadd.f32 %v1084, %v1125
        %v1177 = vxor.u32 %v1176, 2147483648
        %v1178 = vmul.f32 %v1177, 1.442695
        %v1179 = vpow.pop %v1178
        %v1180 = vadd.f32 %v1179, 1.0
        %v1181 = vrcp.pop %v1180
        %v1182 = vmul.f32 1.0, %v1181
        %v1183 = vmul.f32 %v1175, %v1164
        %v1184 = vadd.f32 %v1085, %v1183
        %v1185 = vtanh.pop %v1184
        %v1186 = vsub.f32 1.0, %v1182
        %v1187 = vmul.f32 %v1186, %v1185
        %v1188 = vmul.f32 %v1182, %v1086
        %v1189 = vadd.f32 %v1187, %v1188
        %1190 = vst [vmem:[#allocation2] sm:$0xff] %v1189
        %s1191 = smul.u32 %s1079, 8
        %s1192 = scalar_lea.vmem %s297, %s1191 [#allocation4]
        %1193 = vst [vmem:[%s1192] sm:$0xff] %v1189
        %s1194 = smul.u32 %s18, 4294967291
        %s1195 = sadd.s32 %s1194, 6
        %s1196 = smul.u32 %s1195, 3
        %s1197 = smul.addr %s1196, 8
        %s1198 = scalar_lea.vmem %s269, %s1197 [#allocation3]
        %v1199 = vld [vmem:[%s1198] sm:$0xff]
        %v1200 = vld [vmem:[%s1198 + $0x8] sm:$0xff]
        %v1201 = vld [vmem:[%s1198 + $0x10] sm:$0xff]
        %v1202 = vld [vmem:[#allocation2] sm:$0xff]
        %v1203 = vpack.c.bf16 %v1202, %v1202
        %1204 = vmatprep.subr.bf16.mxu0 %v463
        %1205 = vmatpush1.bf16.msra.mxu0 %v462
        %1206 = vmatprep.subr.bf16.mxu0 %v466
        %1207 = vmatpush1.bf16.msra.mxu0 %v465
        %1208 = vmatprep.subr.bf16.mxu0 %v469
        %1209 = vmatpush1.bf16.msra.mxu0 %v468
        %1210 = vmatprep.subr.bf16.mxu0 %v472
        %1211 = vmatpush1.bf16.msra.mxu0 %v471
        %1212 = vmatprep.subr.bf16.mxu0 %v475
        %1213 = vmatpush1.bf16.msra.mxu0 %v474
        %1214 = vmatprep.subr.bf16.mxu0 %v478
        %1215 = vmatpush1.bf16.msra.mxu0 %v477
        %1216 = vmatprep.subr.bf16.mxu0 %v481
        %1217 = vmatpush1.bf16.msra.mxu0 %v480
        %1218 = vmatprep.subr.bf16.mxu0 %v484
        %1219 = vmatpush1.bf16.msra.mxu0 %v483
        %1220 = vmatprep.subr.bf16.mxu0 0
        %1221 = vmatpush1.bf16.msra.mxu0 0
        %1222 = vmatprep.subr.bf16.mxu0 0
        %1223 = vmatpush1.bf16.msra.mxu0 0
        %1224 = vmatprep.subr.bf16.mxu0 0
        %1225 = vmatpush1.bf16.msra.mxu0 0
        %1226 = vmatprep.subr.bf16.mxu0 0
        %1227 = vmatpush1.bf16.msra.mxu0 0
        %1228 = vmatprep.subr.bf16.mxu0 0
        %1229 = vmatpush1.bf16.msra.mxu0 0
        %1230 = vmatprep.subr.bf16.mxu0 0
        %1231 = vmatpush1.bf16.msra.mxu0 0
        %1232 = vmatprep.subr.bf16.mxu0 0
        %1233 = vmatpush1.bf16.msra.mxu0 0
        %1234 = vmatprep.subr.bf16.mxu0 0
        %1235 = vmatpush1.bf16.msra.mxu0 0
        %1236 = vmatprep.mubr.bf16.mxu0 0
        %1237 = vmatmul.mubr.bf16.gmra.mrb[0].mxu0 %v1203
        %v1238 = vpop.f32.mrb[0].mxu0
        %v1239 = vadd.f32 %v370, %v1238
        %v1240 = vpop.f32.mrb[0].mxu0
        %v1241 = vadd.f32 %v374, %v1240
        %v1242 = vpop.f32.mrb[0].mxu0
        %v1243 = vpop.f32.mrb[0].mxu0
        %1244 = vdwg.mxu0
        %1245 = vmatprep.subr.bf16.mxu0 0
        %1246 = vmatpush1.bf16.msra.mxu0 %v464
        %1247 = vmatprep.subr.bf16.mxu0 0
        %1248 = vmatpush1.bf16.msra.mxu0 %v467
        %1249 = vmatprep.subr.bf16.mxu0 0
        %1250 = vmatpush1.bf16.msra.mxu0 %v470
        %1251 = vmatprep.subr.bf16.mxu0 0
        %1252 = vmatpush1.bf16.msra.mxu0 %v473
        %1253 = vmatprep.subr.bf16.mxu0 0
        %1254 = vmatpush1.bf16.msra.mxu0 %v476
        %1255 = vmatprep.subr.bf16.mxu0 0
        %1256 = vmatpush1.bf16.msra.mxu0 %v479
        %1257 = vmatprep.subr.bf16.mxu0 0
        %1258 = vmatpush1.bf16.msra.mxu0 %v482
        %1259 = vmatprep.subr.bf16.mxu0 0
        %1260 = vmatpush1.bf16.msra.mxu0 %v485
        %1261 = vmatprep.subr.bf16.mxu0 0
        %1262 = vmatpush1.bf16.msra.mxu0 0
        %1263 = vmatprep.subr.bf16.mxu0 0
        %1264 = vmatpush1.bf16.msra.mxu0 0
        %1265 = vmatprep.subr.bf16.mxu0 0
        %1266 = vmatpush1.bf16.msra.mxu0 0
        %1267 = vmatprep.subr.bf16.mxu0 0
        %1268 = vmatpush1.bf16.msra.mxu0 0
        %1269 = vmatprep.subr.bf16.mxu0 0
        %1270 = vmatpush1.bf16.msra.mxu0 0
        %1271 = vmatprep.subr.bf16.mxu0 0
        %1272 = vmatpush1.bf16.msra.mxu0 0
        %1273 = vmatprep.subr.bf16.mxu0 0
        %1274 = vmatpush1.bf16.msra.mxu0 0
        %1275 = vmatprep.subr.bf16.mxu0 0
        %1276 = vmatpush1.bf16.msra.mxu0 0
        %1277 = vmatprep.mubr.bf16.mxu0 0
        %1278 = vmatmul.mubr.bf16.gmra.mrb[0].mxu0 %v1203
        %v1279 = vpop.f32.mrb[0].mxu0
        %v1280 = vadd.f32 %v378, %v1279
        %v1281 = vpop.f32.mrb[0].mxu0
        %v1282 = vpop.f32.mrb[0].mxu0
        %v1283 = vpop.f32.mrb[0].mxu0
        %1284 = vdwg.mxu0
        %v1285 = vadd.f32 %v1199, %v1239
        %v1286 = vxor.u32 %v1285, 2147483648
        %v1287 = vmul.f32 %v1286, 1.442695
        %v1288 = vpow.pop %v1287
        %v1289 = vadd.f32 %v1288, 1.0
        %v1290 = vrcp.pop %v1289
        %v1291 = vmul.f32 1.0, %v1290
        %v1292 = vadd.f32 %v1200, %v1241
        %v1293 = vxor.u32 %v1292, 2147483648
        %v1294 = vmul.f32 %v1293, 1.442695
        %v1295 = vpow.pop %v1294
        %v1296 = vadd.f32 %v1295, 1.0
        %v1297 = vrcp.pop %v1296
        %v1298 = vmul.f32 1.0, %v1297
        %v1299 = vmul.f32 %v1291, %v1280
        %v1300 = vadd.f32 %v1201, %v1299
        %v1301 = vtanh.pop %v1300
        %v1302 = vsub.f32 1.0, %v1298
        %v1303 = vmul.f32 %v1302, %v1301
        %v1304 = vmul.f32 %v1298, %v1202
        %v1305 = vadd.f32 %v1303, %v1304
        %1306 = vst [vmem:[#allocation2] sm:$0xff] %v1305
        %s1307 = smul.u32 %s1195, 8
        %s1308 = scalar_lea.vmem %s297, %s1307 [#allocation4]
        %1309 = vst [vmem:[%s1308] sm:$0xff] %v1305
        %s1310 = smul.u32 %s18, 4294967289
        %s1311 = sadd.s32 %s1310, 7
        %s1312 = smul.u32 %s1311, 3
        %s1313 = smul.addr %s1312, 8
        %s1314 = scalar_lea.vmem %s269, %s1313 [#allocation3]
        %v1315 = vld [vmem:[%s1314] sm:$0xff]
        %v1316 = vld [vmem:[%s1314 + $0x8] sm:$0xff]
        %v1317 = vld [vmem:[%s1314 + $0x10] sm:$0xff]
        %v1318 = vld [vmem:[#allocation2] sm:$0xff]
        %v1319 = vpack.c.bf16 %v1318, %v1318
        %1320 = vmatprep.subr.bf16.mxu0 %v463
        %1321 = vmatpush1.bf16.msra.mxu0 %v462
        %1322 = vmatprep.subr.bf16.mxu0 %v466
        %1323 = vmatpush1.bf16.msra.mxu0 %v465
        %1324 = vmatprep.subr.bf16.mxu0 %v469
        %1325 = vmatpush1.bf16.msra.mxu0 %v468
        %1326 = vmatprep.subr.bf16.mxu0 %v472
        %1327 = vmatpush1.bf16.msra.mxu0 %v471
        %1328 = vmatprep.subr.bf16.mxu0 %v475
        %1329 = vmatpush1.bf16.msra.mxu0 %v474
        %1330 = vmatprep.subr.bf16.mxu0 %v478
        %1331 = vmatpush1.bf16.msra.mxu0 %v477
        %1332 = vmatprep.subr.bf16.mxu0 %v481
        %1333 = vmatpush1.bf16.msra.mxu0 %v480
        %1334 = vmatprep.subr.bf16.mxu0 %v484
        %1335 = vmatpush1.bf16.msra.mxu0 %v483
        %1336 = vmatprep.subr.bf16.mxu0 0
        %1337 = vmatpush1.bf16.msra.mxu0 0
        %1338 = vmatprep.subr.bf16.mxu0 0
        %1339 = vmatpush1.bf16.msra.mxu0 0
        %1340 = vmatprep.subr.bf16.mxu0 0
        %1341 = vmatpush1.bf16.msra.mxu0 0
        %1342 = vmatprep.subr.bf16.mxu0 0
        %1343 = vmatpush1.bf16.msra.mxu0 0
        %1344 = vmatprep.subr.bf16.mxu0 0
        %1345 = vmatpush1.bf16.msra.mxu0 0
        %1346 = vmatprep.subr.bf16.mxu0 0
        %1347 = vmatpush1.bf16.msra.mxu0 0
        %1348 = vmatprep.subr.bf16.mxu0 0
        %1349 = vmatpush1.bf16.msra.mxu0 0
        %1350 = vmatprep.subr.bf16.mxu0 0
        %1351 = vmatpush1.bf16.msra.mxu0 0
        %1352 = vmatprep.mubr.bf16.mxu0 0
        %1353 = vmatmul.mubr.bf16.gmra.mrb[0].mxu0 %v1319
        %v1354 = vpop.f32.mrb[0].mxu0
        %v1355 = vadd.f32 %v370, %v1354
        %v1356 = vpop.f32.mrb[0].mxu0
        %v1357 = vadd.f32 %v374, %v1356
        %v1358 = vpop.f32.mrb[0].mxu0
        %v1359 = vpop.f32.mrb[0].mxu0
        %1360 = vdwg.mxu0
        %1361 = vmatprep.subr.bf16.mxu0 0
        %1362 = vmatpush1.bf16.msra.mxu0 %v464
        %1363 = vmatprep.subr.bf16.mxu0 0
        %1364 = vmatpush1.bf16.msra.mxu0 %v467
        %1365 = vmatprep.subr.bf16.mxu0 0
        %1366 = vmatpush1.bf16.msra.mxu0 %v470
        %1367 = vmatprep.subr.bf16.mxu0 0
        %1368 = vmatpush1.bf16.msra.mxu0 %v473
        %1369 = vmatprep.subr.bf16.mxu0 0
        %1370 = vmatpush1.bf16.msra.mxu0 %v476
        %1371 = vmatprep.subr.bf16.mxu0 0
        %1372 = vmatpush1.bf16.msra.mxu0 %v479
        %1373 = vmatprep.subr.bf16.mxu0 0
        %1374 = vmatpush1.bf16.msra.mxu0 %v482
        %1375 = vmatprep.subr.bf16.mxu0 0
        %1376 = vmatpush1.bf16.msra.mxu0 %v485
        %1377 = vmatprep.subr.bf16.mxu0 0
        %1378 = vmatpush1.bf16.msra.mxu0 0
        %1379 = vmatprep.subr.bf16.mxu0 0
        %1380 = vmatpush1.bf16.msra.mxu0 0
        %1381 = vmatprep.subr.bf16.mxu0 0
        %1382 = vmatpush1.bf16.msra.mxu0 0
        %1383 = vmatprep.subr.bf16.mxu0 0
        %1384 = vmatpush1.bf16.msra.mxu0 0
        %1385 = vmatprep.subr.bf16.mxu0 0
        %1386 = vmatpush1.bf16.msra.mxu0 0
        %1387 = vmatprep.subr.bf16.mxu0 0
        %1388 = vmatpush1.bf16.msra.mxu0 0
        %1389 = vmatprep.subr.bf16.mxu0 0
        %1390 = vmatpush1.bf16.msra.mxu0 0
        %1391 = vmatprep.subr.bf16.mxu0 0
        %1392 = vmatpush1.bf16.msra.mxu0 0
        %1393 = vmatprep.mubr.bf16.mxu0 0
        %1394 = vmatmul.mubr.bf16.gmra.mrb[0].mxu0 %v1319
        %v1395 = vpop.f32.mrb[0].mxu0
        %v1396 = vadd.f32 %v378, %v1395
        %v1397 = vpop.f32.mrb[0].mxu0
        %v1398 = vpop.f32.mrb[0].mxu0
        %v1399 = vpop.f32.mrb[0].mxu0
        %1400 = vdwg.mxu0
        %v1401 = vadd.f32 %v1315, %v1355
        %v1402 = vxor.u32 %v1401, 2147483648
        %v1403 = vmul.f32 %v1402, 1.442695
        %v1404 = vpow.pop %v1403
        %v1405 = vadd.f32 %v1404, 1.0
        %v1406 = vrcp.pop %v1405
        %v1407 = vmul.f32 1.0, %v1406
        %v1408 = vadd.f32 %v1316, %v1357
        %v1409 = vxor.u32 %v1408, 2147483648
        %v1410 = vmul.f32 %v1409, 1.442695
        %v1411 = vpow.pop %v1410
        %v1412 = vadd.f32 %v1411, 1.0
        %v1413 = vrcp.pop %v1412
        %v1414 = vmul.f32 1.0, %v1413
        %v1415 = vmul.f32 %v1407, %v1396
        %v1416 = vadd.f32 %v1317, %v1415
        %v1417 = vtanh.pop %v1416
        %v1418 = vsub.f32 1.0, %v1414
        %v1419 = vmul.f32 %v1418, %v1417
        %v1420 = vmul.f32 %v1414, %v1318
        %v1421 = vadd.f32 %v1419, %v1420
        %1422 = vst [vmem:[#allocation2] sm:$0xff] %v1421
        %s1423 = smul.u32 %s1311, 8
        %s1424 = scalar_lea.vmem %s297, %s1423 [#allocation4]
        %1425 = vst [vmem:[%s1424] sm:$0xff] %v1421
        %s1426 = sand.u32 %s132, 1
        %s1427 = sand.u32 %s132, 1
        %s1428 = smul.addr %s1427, 64
        %s1429 = scalar_lea.vmem [#allocation4], %s1428
        // Predicated region
        $region60: #{forward.8} parent=50 // pred_check
          %p1430 = pneg %p142
        $region61: #{forward.8} parent=50 // pred_check_branch
          %1432 = sbr.rel (%p1430) target = $region63
        $region62: #{forward.8} parent=50 // pred_region
          %s1433 = smul.u32 %s19, 2
          %s1434 = ssub.s32 0, %s1433
          %s1435 = smul.u32 %s18, %s1434
          %s1436 = sadd.s32 %s19, %s1435
          %s1437 = smul.u32 8, %s1436
          %s1438 = smul.addr %s1437, 2
          %s1439 = sadd.s32 %s18, %s1438
          %s1440 = smul.addr %s1439, 8
          %s1441 = scalar_lea.vmem %s3, %s1440
          // Predicated region
          $region64: #{forward.8} parent=62 // pred_check
            _
          $region65: #{forward.8} parent=62 // pred_check_branch
            %1443 = sbr.rel (0) target = $region67
          $region66: #{forward.8} parent=62 // pred_region
            // Predicated region
            $region68: #{forward.8} parent=66 // pred_check
              _
            $region69: #{forward.8} parent=66 // pred_check_branch
              %1445 = sbr.rel (0) target = $region71
            $region70: #{forward.8} parent=66 // pred_region
              // Predicated region
              $region83: #{forward.8} parent=70 // pred_check
                _
              $region84: #{forward.8} parent=70 // pred_check_branch
                %1474 = sbr.rel (0) target = $region86
              $region85: #{forward.8} parent=70 // pred_region
                loop: start=0, step=1, limit=1
                $region87: #{forward.8} parent=85 // loop_pre_header
                  _
                $region88: #{forward.8} parent=85 // loop_header
                  %s1476 = sphi 0, %s1480
                  %p1477 = scmp.ge.s32.totalorder %s1476, 1
                  %s1481 = sphi %s1429, %s1429
                  %s1482 = sphi %s1441, %s1441
                $region89: #{forward.8} parent=85 // loop_header_branch
                  %1479 = sbr.rel (%p1477) target = $region93
                $region90: #{forward.8} parent=85 // loop_body
                  %v1483 = vld [vmem:[%s1481] sm:$0xff]
                  %1484 = vst [vmem:[%s1482] sm:$0xff] %v1483
                  %v1485 = vld [vmem:[%s1481 + $0x8] sm:$0xff]
                  %1486 = vst [vmem:[%s1482 + $0x10] sm:$0xff] %v1485
                  %v1487 = vld [vmem:[%s1481 + $0x10] sm:$0xff]
                  %1488 = vst [vmem:[%s1482 + $0x20] sm:$0xff] %v1487
                  %v1489 = vld [vmem:[%s1481 + $0x18] sm:$0xff]
                  %1490 = vst [vmem:[%s1482 + $0x30] sm:$0xff] %v1489
                  %v1491 = vld [vmem:[%s1481 + $0x20] sm:$0xff]
                  %1492 = vst [vmem:[%s1482 + $0x40] sm:$0xff] %v1491
                  %v1493 = vld [vmem:[%s1481 + $0x28] sm:$0xff]
                  %1494 = vst [vmem:[%s1482 + $0x50] sm:$0xff] %v1493
                  %v1495 = vld [vmem:[%s1481 + $0x30] sm:$0xff]
                  %1496 = vst [vmem:[%s1482 + $0x60] sm:$0xff] %v1495
                  %v1497 = vld [vmem:[%s1481 + $0x38] sm:$0xff]
                  %1498 = vst [vmem:[%s1482 + $0x70] sm:$0xff] %v1497
                $region91: #{forward.8} parent=85 // loop_footer
                  %s1480 = sadd.s32 1, %s1476
                $region92: #{forward.8} parent=85 // loop_footer_branch
                  %1475 = sbr.rel target = $region88
                $region93: #{forward.8} parent=85 // loop_exit
                  _
              $region86: #{forward.8} parent=70 // pred_fallthru
                _
              // Predicated region
              $region94: #{forward.8} parent=70 // pred_check
                _
              $region95: #{forward.8} parent=70 // pred_check_branch
                %1500 = sbr.rel target = $region97
              $region96: #{forward.8} parent=70 // pred_region
                _
              $region97: #{forward.8} parent=70 // pred_fallthru
                _
            $region71: #{forward.8} parent=66 // pred_fallthru
              _
            // Predicated region
            $region72: #{forward.8} parent=66 // pred_check
              _
            $region73: #{forward.8} parent=66 // pred_check_branch
              %1447 = sbr.rel target = $region75
            $region74: #{forward.8} parent=66 // pred_region
              loop: start=0, step=1, limit=1
              $region76: #{forward.8} parent=74 // loop_pre_header
                _
              $region77: #{forward.8} parent=74 // loop_header
                %s1450 = sphi 0, %s1454
                %p1451 = scmp.ge.s32.totalorder %s1450, 1
                %s1455 = sphi %s1429, %s1429
                %s1456 = sphi %s1441, %s1441
              $region78: #{forward.8} parent=74 // loop_header_branch
                %1453 = sbr.rel (%p1451) target = $region82
              $region79: #{forward.8} parent=74 // loop_body
                %v1457 = vld [vmem:[%s1455] sm:$0xff]
                %1458 = vst [vmem:[%s1456] sm:$0xff] %v1457
                %v1459 = vld [vmem:[%s1455 + $0x8] sm:$0xff]
                %1460 = vst [vmem:[%s1456 + $0x10] sm:$0xff] %v1459
                %v1461 = vld [vmem:[%s1455 + $0x10] sm:$0xff]
                %1462 = vst [vmem:[%s1456 + $0x20] sm:$0xff] %v1461
                %v1463 = vld [vmem:[%s1455 + $0x18] sm:$0xff]
                %1464 = vst [vmem:[%s1456 + $0x30] sm:$0xff] %v1463
                %v1465 = vld [vmem:[%s1455 + $0x20] sm:$0xff]
                %1466 = vst [vmem:[%s1456 + $0x40] sm:$0xff] %v1465
                %v1467 = vld [vmem:[%s1455 + $0x28] sm:$0xff]
                %1468 = vst [vmem:[%s1456 + $0x50] sm:$0xff] %v1467
                %v1469 = vld [vmem:[%s1455 + $0x30] sm:$0xff]
                %1470 = vst [vmem:[%s1456 + $0x60] sm:$0xff] %v1469
                %v1471 = vld [vmem:[%s1455 + $0x38] sm:$0xff]
                %1472 = vst [vmem:[%s1456 + $0x70] sm:$0xff] %v1471
              $region80: #{forward.8} parent=74 // loop_footer
                %s1454 = sadd.s32 1, %s1450
              $region81: #{forward.8} parent=74 // loop_footer_branch
                %1449 = sbr.rel target = $region77
              $region82: #{forward.8} parent=74 // loop_exit
                _
            $region75: #{forward.8} parent=66 // pred_fallthru
              _
          $region67: #{forward.8} parent=62 // pred_fallthru
            _
          %1501 = vnop
        $region63: #{forward.8} parent=50 // pred_fallthru
          _
      $region51: #{forward.8} parent=5 // pred_fallthru
        _
      %p1502 = scmp.le.s32.totalorder 2, %s9
      // Predicated region
      $region98: #{forward.8} parent=5 // pred_check
        %p1503 = pneg %p1502
      $region99: #{forward.8} parent=5 // pred_check_branch
        %1505 = sbr.rel (%p1503) target = $region101
      $region100: #{forward.8} parent=5 // pred_region
        %s1506 = ssub.s32 %s9, 2
        // Predicated region
        $region102: #{forward.8} parent=100 // pred_check
          %p1507 = pneg %p148
        $region103: #{forward.8} parent=100 // pred_check_branch
          %1509 = sbr.rel (%p1507) target = $region105
        $region104: #{forward.8} parent=100 // pred_region
          %s1510 = sand.u32 %s133, 1
          %s1511 = sand.u32 %s133, 1
          %s1512 = smul.addr %s1511, 64
          %s1513 = scalar_lea.vmem [#allocation4], %s1512
        $region105: #{forward.8} parent=100 // pred_fallthru
          _
      $region101: #{forward.8} parent=5 // pred_fallthru
        _
    $region6: #{forward.8} parent=1 // loop_footer
      %s13 = sadd.s32 1, %s9
    $region7: #{forward.8} parent=1 // loop_footer_branch
      %8 = sbr.rel target = $region3
    $region8: #{forward.8} parent=1 // loop_exit
      _

// kernel: squeeze.1
$region0: #{squeeze.1}
  %s0 = inlined_call_operand.vmem [shape: f32[6], index: 0, kind: input, shape index: {}]
  %s1 = inlined_call_operand.vmem [shape: f32[2,3], index: 1, kind: output, shape index: {}]
  $region1: #{squeeze.1} parent=0
    #allocation0 [shape = 'u8[4096]{0}', space=vmem, size = 0x1000, scoped, tag = 'scoped mem for output reshape']
    #allocation1 [shape = 'u8[4096]{0}', space=vmem, size = 0x1000, scoped, tag = 'scoped mem for input reshape']
    %s3 = sshllo.u32 0, 1
    %v4 = vld [vmem:[%s0] sm:%s3]
    %5 = vst [vmem:[#allocation1] sm:%s3] %v4
    %v6 = vld [vmem:[#allocation1] sm:$0x1]
    %vm7 = vcmask 23552
    %8 = vst.msk [vmem:[#allocation0] sm:$0x1] %vm7, %v6
    %v9 = vld [vmem:[#allocation1] sm:$0x1]
    %10 = vrot.lane.b32.xlu0 %v9, 125
    %v11 = vpop.permute.xlu0 %10
    %vm12 = vcmask 23552
    %s13 = scalar_lea.vmem [#allocation0], 1
    %14 = vst.msk [vmem:[%s13] sm:$0x1] %vm12, %v11
    %s16 = sshllo.u32 0, 2
    %v18 = vld [vmem:[#allocation0] sm:%s16]
    %s19 = sshllo.u32 0, 2
    %20 = vst [vmem:[%s1] sm:%s19] %v18

// kernel: forward.12
$region0: #{forward.12}
  #allocation0 [shape = 'u32[]', space=smem, size = 0x4, offset = 0x4, fixed_abs, tag = 'smem constant byte address 0x4 - core index']
  #allocation1 [shape = 'u32[144,128]{1,0:T(1,128)}', space=vmem, size = 0x12000, scoped, tag = 'internal scratch']
  %s0 = inlined_call_operand.vmem [shape: bf16[128,768], index: 0, kind: input, shape index: {}]
  %s1 = inlined_call_operand.vmem [shape: bf16[768,768], index: 1, kind: input, shape index: {}]
  %s2 = inlined_call_operand.vmem [shape: f32[1,768], index: 2, kind: input, shape index: {}]
  %s3 = inlined_call_operand.vmem [shape: f32[128,768], index: 3, kind: output, shape index: {}]
  %s4 = sld [smem:[#allocation0]]
  $region90: #{forward.12} parent=0
    _
  %s6 = ssub.s32 1, %s4
  %s7 = scalar_select 0, %s6, %s4
  $region1: #{forward.12} parent=0
    #allocation2 [shape = 'u8[1179648]{0}', space=vmem, size = 0x120000, scoped, tag = 'input window, operand 1']
    #allocation3 [shape = 'u8[393216]{0}', space=vmem, size = 0x60000, scoped, tag = 'output window, operand 0']
    loop: start=0, step=1, limit=4
    $region2: #{forward.12} parent=1 // loop_pre_header
      _
    $region3: #{forward.12} parent=1 // loop_header
      %s9 = sphi 0, %s13
      %p10 = scmp.ge.s32.totalorder %s9, 4
      %s16 = sphi 0, %s28
      %s17 = sphi 0, %s24
      %s18 = sphi 0, %s16
      %s19 = sphi 0, %s17
      %s20 = sphi 0, %s18
      %s21 = sphi 0, %s19
      %s31 = sphi 0, %s33
      %s34 = sphi 0, %s31
      %s35 = sphi 0, %s34
      %s51 = sphi 0, %s35
      %s57 = sphi 0, %s59
      %s60 = sphi 0, %s57
      %s61 = sphi 0, %s60
      %s77 = sphi 0, %s61
      %s83 = sphi 0, %s85
      %s86 = sphi 0, %s83
      %s87 = sphi 0, %s86
      %s103 = sphi 0, %s87
      %s111 = sphi 0, %s113
      %s114 = sphi 0, %s111
      %s115 = sphi 0, %s114
      %s131 = sphi 0, %s115
    $region4: #{forward.12} parent=1 // loop_header_branch
      %12 = sbr.rel (%p10) target = $region8
    $region5: #{forward.12} parent=1 // loop_body
      %s14 = ssub.s32 %s9, 1
      %s15 = ssub.s32 %s9, 2
      %s22 = sadd.s32 1, %s17
      %p23 = scmp.ge.s32.totalorder %s22, 2
      %s24 = scalar_select %p23, 0, %s22
      %s25 = sadd.s32 1, %s16
      %s26 = scalar_select %p23, %s25, %s16
      %p27 = scmp.ge.s32.totalorder %s26, 1
      %s28 = scalar_select %p27, 0, %s26
      %s29 = ssub.s32 %s16, %s28
      %p30 = scmp.eq.s32.totalorder %s29, 0
      %s32 = sadd.s32 %s31, 1
      %s33 = scalar_select %p30, %s31, %s32
      %p36 = pneg %p30
      %p37 = scmp.eq.s32.totalorder %s9, 1
      %p38 = por %p36, %p37
      %p39 = scmp.ne.s32.totalorder %s31, %s34
      %p40 = scmp.eq.s32.totalorder %s9, 0
      %p41 = por %p39, %p40
      %p42 = scmp.ne.s32.totalorder %s31, %s34
      %p43 = scmp.eq.s32.totalorder %s14, 1
      %p44 = por %p42, %p43
      %p45 = scmp.ne.s32.totalorder %s34, %s35
      %p46 = scmp.eq.s32.totalorder %s14, 0
      %p47 = por %p45, %p46
      %p48 = scmp.ne.s32.totalorder %s34, %s35
      %p49 = scmp.eq.s32.totalorder %s15, 1
      %p50 = por %p48, %p49
      %p52 = scmp.ne.s32.totalorder %s35, %s51
      %p53 = scmp.eq.s32.totalorder %s15, 0
      %p54 = por %p52, %p53
      %s55 = ssub.s32 %s17, %s24
      %p56 = scmp.eq.s32.totalorder %s55, 0
      %s58 = sadd.s32 %s57, 1
      %s59 = scalar_select %p56, %s57, %s58
      %p62 = pneg %p56
      %p63 = scmp.eq.s32.totalorder %s9, 1
      %p64 = por %p62, %p63
      %p65 = scmp.ne.s32.totalorder %s57, %s60
      %p66 = scmp.eq.s32.totalorder %s9, 0
      %p67 = por %p65, %p66
      %p68 = scmp.ne.s32.totalorder %s57, %s60
      %p69 = scmp.eq.s32.totalorder %s14, 1
      %p70 = por %p68, %p69
      %p71 = scmp.ne.s32.totalorder %s60, %s61
      %p72 = scmp.eq.s32.totalorder %s14, 0
      %p73 = por %p71, %p72
      %p74 = scmp.ne.s32.totalorder %s60, %s61
      %p75 = scmp.eq.s32.totalorder %s15, 1
      %p76 = por %p74, %p75
      %p78 = scmp.ne.s32.totalorder %s61, %s77
      %p79 = scmp.eq.s32.totalorder %s15, 0
      %p80 = por %p78, %p79
      %s81 = ssub.s32 %s17, %s24
      %p82 = scmp.eq.s32.totalorder %s81, 0
      %s84 = sadd.s32 %s83, 1
      %s85 = scalar_select %p82, %s83, %s84
      %p88 = pneg %p82
      %p89 = scmp.eq.s32.totalorder %s9, 1
      %p90 = por %p88, %p89
      %p91 = scmp.ne.s32.totalorder %s83, %s86
      %p92 = scmp.eq.s32.totalorder %s9, 0
      %p93 = por %p91, %p92
      %p94 = scmp.ne.s32.totalorder %s83, %s86
      %p95 = scmp.eq.s32.totalorder %s14, 1
      %p96 = por %p94, %p95
      %p97 = scmp.ne.s32.totalorder %s86, %s87
      %p98 = scmp.eq.s32.totalorder %s14, 0
      %p99 = por %p97, %p98
      %p100 = scmp.ne.s32.totalorder %s86, %s87
      %p101 = scmp.eq.s32.totalorder %s15, 1
      %p102 = por %p100, %p101
      %p104 = scmp.ne.s32.totalorder %s87, %s103
      %p105 = scmp.eq.s32.totalorder %s15, 0
      %p106 = por %p104, %p105
      %s107 = ssub.s32 %s16, %s28
      %s108 = ssub.s32 %s17, %s24
      %s109 = sor.u32 %s107, %s108
      %p110 = scmp.eq.s32.totalorder %s109, 0
      %s112 = sadd.s32 %s111, 1
      %s113 = scalar_select %p110, %s111, %s112
      %p116 = pneg %p110
      %p117 = scmp.eq.s32.totalorder %s9, 1
      %p118 = por %p116, %p117
      %p119 = scmp.ne.s32.totalorder %s111, %s114
      %p120 = scmp.eq.s32.totalorder %s9, 0
      %p121 = por %p119, %p120
      %p122 = scmp.ne.s32.totalorder %s111, %s114
      %p123 = scmp.eq.s32.totalorder %s14, 1
      %p124 = por %p122, %p123
      %p125 = scmp.ne.s32.totalorder %s114, %s115
      %p126 = scmp.eq.s32.totalorder %s14, 0
      %p127 = por %p125, %p126
      %p128 = scmp.ne.s32.totalorder %s114, %s115
      %p129 = scmp.eq.s32.totalorder %s15, 1
      %p130 = por %p128, %p129
      %p132 = scmp.ne.s32.totalorder %s115, %s131
      %p133 = scmp.eq.s32.totalorder %s15, 0
      %p134 = por %p132, %p133
      %p135 = scmp.le.s32.totalorder 1, %s9
      %p136 = scmp.lt.s32.totalorder %s9, 3
      %p137 = pnand %p135, %p136
      %p138 = pneg %p137
      // Predicated region
      $region9: #{forward.12} parent=5 // pred_check
        _
      $region10: #{forward.12} parent=5 // pred_check_branch
        %140 = sbr.rel (%p137) target = $region12
      $region11: #{forward.12} parent=5 // pred_region
        %s141 = ssub.s32 %s9, 1
        // Predicated region
        $region13: #{forward.12} parent=11 // pred_check
          %p142 = pneg %p47
        $region14: #{forward.12} parent=11 // pred_check_branch
          %144 = sbr.rel (%p142) target = $region16
        $region15: #{forward.12} parent=11 // pred_region
          %s145 = smul.u32 16, %s18
          %p146 = scmp.lt.s32.totalorder %s145, 15
          %s147 = scalar_select %p146, %s145, 15
          %s148 = smul.addr %s147, 6
          %s149 = smul.addr %s148, 4
          %s150 = scalar_lea.vmem %s0, %s149
          %s151 = smul.u32 16, %s18
        $region16: #{forward.12} parent=11 // pred_fallthru
          _
      $region12: #{forward.12} parent=5 // pred_fallthru
        _
      %p152 = scmp.lt.s32.totalorder %s9, 2
      // Predicated region
      $region17: #{forward.12} parent=5 // pred_check
        %p153 = pneg %p152
      $region18: #{forward.12} parent=5 // pred_check_branch
        %155 = sbr.rel (%p153) target = $region20
      $region19: #{forward.12} parent=5 // pred_region
        // Predicated region
        $region21: #{forward.12} parent=19 // pred_check
          %p156 = pneg %p67
        $region22: #{forward.12} parent=19 // pred_check_branch
          %158 = sbr.rel (%p156) target = $region24
        $region23: #{forward.12} parent=19 // pred_region
          %s159 = sand.u32 %s57, 1
          %s160 = sand.u32 %s57, 1
          %s161 = smul.addr %s160, 1152
          %s162 = scalar_lea.vmem [#allocation2], %s161
          %s163 = smul.u32 3, %s17
          %s164 = smul.addr %s163, 4
          %s165 = scalar_lea.vmem %s1, %s164
          // Predicated region
          $region25: #{forward.12} parent=23 // pred_check
            _
          $region26: #{forward.12} parent=23 // pred_check_branch
            %167 = sbr.rel (0) target = $region28
          $region27: #{forward.12} parent=23 // pred_region
            // Predicated region
            $region29: #{forward.12} parent=27 // pred_check
              _
            $region30: #{forward.12} parent=27 // pred_check_branch
              %169 = sbr.rel (0) target = $region32
            $region31: #{forward.12} parent=27 // pred_region
              %s170 = scalar_lea.vmem %s165, 8
              %s171 = scalar_lea.vmem %s162, 8 [#allocation2]
              loop: start=0, step=1, limit=1
              $region33: #{forward.12} parent=31 // loop_pre_header
                _
              $region34: #{forward.12} parent=31 // loop_header
                %s173 = sphi 0, %s177
                %p174 = scmp.ge.s32.totalorder %s173, 1
                %s178 = sphi %s165, %s165
                %s179 = sphi %s162, %s162
              $region35: #{forward.12} parent=31 // loop_header_branch
                %176 = sbr.rel (%p174) target = $region39
              $region36: #{forward.12} parent=31 // loop_body
                %v180 = vld [vmem:[%s178] sm:$0xff]
                %181 = vst [vmem:[%s179] sm:$0xff] %v180
                %v182 = vld [vmem:[%s178 + $0x18] sm:$0xff]
                %183 = vst [vmem:[%s179 + $0xc] sm:$0xff] %v182
                %v184 = vld [vmem:[%s178 + $0x30] sm:$0xff]
                %185 = vst [vmem:[%s179 + $0x18] sm:$0xff] %v184
                %v186 = vld [vmem:[%s178 + $0x48] sm:$0xff]
                %187 = vst [vmem:[%s179 + $0x24] sm:$0xff] %v186
                %v188 = vld [vmem:[%s178 + $0x60] sm:$0xff]
                %189 = vst [vmem:[%s179 + $0x30] sm:$0xff] %v188
                %v190 = vld [vmem:[%s178 + $0x78] sm:$0xff]
                %191 = vst [vmem:[%s179 + $0x3c] sm:$0xff] %v190
                %v192 = vld [vmem:[%s178 + $0x90] sm:$0xff]
                %193 = vst [vmem:[%s179 + $0x48] sm:$0xff] %v192
                %v194 = vld [vmem:[%s178 + $0xa8] sm:$0xff]
                %195 = vst [vmem:[%s179 + $0x54] sm:$0xff] %v194
                %v196 = vld [vmem:[%s178 + $0xc0] sm:$0xff]
                %197 = vst [vmem:[%s179 + $0x60] sm:$0xff] %v196
                %v198 = vld [vmem:[%s178 + $0xd8] sm:$0xff]
                %199 = vst [vmem:[%s179 + $0x6c] sm:$0xff] %v198
                %v200 = vld [vmem:[%s178 + $0xf0] sm:$0xff]
                %201 = vst [vmem:[%s179 + $0x78] sm:$0xff] %v200
                %v202 = vld [vmem:[%s178 + $0x108] sm:$0xff]
                %203 = vst [vmem:[%s179 + $0x84] sm:$0xff] %v202
                %v204 = vld [vmem:[%s178 + $0x120] sm:$0xff]
                %205 = vst [vmem:[%s179 + $0x90] sm:$0xff] %v204
                %v206 = vld [vmem:[%s178 + $0x138] sm:$0xff]
                %207 = vst [vmem:[%s179 + $0x9c] sm:$0xff] %v206
                %v208 = vld [vmem:[%s178 + $0x150] sm:$0xff]
                %209 = vst [vmem:[%s179 + $0xa8] sm:$0xff] %v208
                %v210 = vld [vmem:[%s178 + $0x168] sm:$0xff]
                %211 = vst [vmem:[%s179 + $0xb4] sm:$0xff] %v210
                %v212 = vld [vmem:[%s178 + $0x180] sm:$0xff]
                %213 = vst [vmem:[%s179 + $0xc0] sm:$0xff] %v212
                %v214 = vld [vmem:[%s178 + $0x198] sm:$0xff]
                %215 = vst [vmem:[%s179 + $0xcc] sm:$0xff] %v214
                %v216 = vld [vmem:[%s178 + $0x1b0] sm:$0xff]
                %217 = vst [vmem:[%s179 + $0xd8] sm:$0xff] %v216
                %v218 = vld [vmem:[%s178 + $0x1c8] sm:$0xff]
                %219 = vst [vmem:[%s179 + $0xe4] sm:$0xff] %v218
                %v220 = vld [vmem:[%s178 + $0x1e0] sm:$0xff]
                %221 = vst [vmem:[%s179 + $0xf0] sm:$0xff] %v220
                %v222 = vld [vmem:[%s178 + $0x1f8] sm:$0xff]
                %223 = vst [vmem:[%s179 + $0xfc] sm:$0xff] %v222
                %v224 = vld [vmem:[%s178 + $0x210] sm:$0xff]
                %225 = vst [vmem:[%s179 + $0x108] sm:$0xff] %v224
                %v226 = vld [vmem:[%s178 + $0x228] sm:$0xff]
                %227 = vst [vmem:[%s179 + $0x114] sm:$0xff] %v226
                %v228 = vld [vmem:[%s178 + $0x240] sm:$0xff]
                %229 = vst [vmem:[%s179 + $0x120] sm:$0xff] %v228
                %v230 = vld [vmem:[%s178 + $0x258] sm:$0xff]
                %231 = vst [vmem:[%s179 + $0x12c] sm:$0xff] %v230
                %v232 = vld [vmem:[%s178 + $0x270] sm:$0xff]
                %233 = vst [vmem:[%s179 + $0x138] sm:$0xff] %v232
                %v234 = vld [vmem:[%s178 + $0x288] sm:$0xff]
                %235 = vst [vmem:[%s179 + $0x144] sm:$0xff] %v234
                %v236 = vld [vmem:[%s178 + $0x2a0] sm:$0xff]
                %237 = vst [vmem:[%s179 + $0x150] sm:$0xff] %v236
                %v238 = vld [vmem:[%s178 + $0x2b8] sm:$0xff]
                %239 = vst [vmem:[%s179 + $0x15c] sm:$0xff] %v238
                %v240 = vld [vmem:[%s178 + $0x2d0] sm:$0xff]
                %241 = vst [vmem:[%s179 + $0x168] sm:$0xff] %v240
                %v242 = vld [vmem:[%s178 + $0x2e8] sm:$0xff]
                %243 = vst [vmem:[%s179 + $0x174] sm:$0xff] %v242
                %v244 = vld [vmem:[%s178 + $0x300] sm:$0xff]
                %245 = vst [vmem:[%s179 + $0x180] sm:$0xff] %v244
                %v246 = vld [vmem:[%s178 + $0x318] sm:$0xff]
                %247 = vst [vmem:[%s179 + $0x18c] sm:$0xff] %v246
                %v248 = vld [vmem:[%s178 + $0x330] sm:$0xff]
                %249 = vst [vmem:[%s179 + $0x198] sm:$0xff] %v248
                %v250 = vld [vmem:[%s178 + $0x348] sm:$0xff]
                %251 = vst [vmem:[%s179 + $0x1a4] sm:$0xff] %v250
                %v252 = vld [vmem:[%s178 + $0x360] sm:$0xff]
                %253 = vst [vmem:[%s179 + $0x1b0] sm:$0xff] %v252
                %v254 = vld [vmem:[%s178 + $0x378] sm:$0xff]
                %255 = vst [vmem:[%s179 + $0x1bc] sm:$0xff] %v254
                %v256 = vld [vmem:[%s178 + $0x390] sm:$0xff]
                %257 = vst [vmem:[%s179 + $0x1c8] sm:$0xff] %v256
                %v258 = vld [vmem:[%s178 + $0x3a8] sm:$0xff]
                %259 = vst [vmem:[%s179 + $0x1d4] sm:$0xff] %v258
                %v260 = vld [vmem:[%s178 + $0x3c0] sm:$0xff]
                %261 = vst [vmem:[%s179 + $0x1e0] sm:$0xff] %v260
                %v262 = vld [vmem:[%s178 + $0x3d8] sm:$0xff]
                %263 = vst [vmem:[%s179 + $0x1ec] sm:$0xff] %v262
                %v264 = vld [vmem:[%s178 + $0x3f0] sm:$0xff]
                %265 = vst [vmem:[%s179 + $0x1f8] sm:$0xff] %v264
                %v266 = vld [vmem:[%s178 + $0x408] sm:$0xff]
                %267 = vst [vmem:[%s179 + $0x204] sm:$0xff] %v266
                %v268 = vld [vmem:[%s178 + $0x420] sm:$0xff]
                %269 = vst [vmem:[%s179 + $0x210] sm:$0xff] %v268
                %v270 = vld [vmem:[%s178 + $0x438] sm:$0xff]
                %271 = vst [vmem:[%s179 + $0x21c] sm:$0xff] %v270
                %v272 = vld [vmem:[%s178 + $0x450] sm:$0xff]
                %273 = vst [vmem:[%s179 + $0x228] sm:$0xff] %v272
                %v274 = vld [vmem:[%s178 + $0x468] sm:$0xff]
                %275 = vst [vmem:[%s179 + $0x234] sm:$0xff] %v274
                %v276 = vld [vmem:[%s178 + $0x480] sm:$0xff]
                %277 = vst [vmem:[%s179 + $0x240] sm:$0xff] %v276
                %v278 = vld [vmem:[%s178 + $0x498] sm:$0xff]
                %279 = vst [vmem:[%s179 + $0x24c] sm:$0xff] %v278
                %v280 = vld [vmem:[%s178 + $0x4b0] sm:$0xff]
                %281 = vst [vmem:[%s179 + $0x258] sm:$0xff] %v280
                %v282 = vld [vmem:[%s178 + $0x4c8] sm:$0xff]
                %283 = vst [vmem:[%s179 + $0x264] sm:$0xff] %v282
                %v284 = vld [vmem:[%s178 + $0x4e0] sm:$0xff]
                %285 = vst [vmem:[%s179 + $0x270] sm:$0xff] %v284
                %v286 = vld [vmem:[%s178 + $0x4f8] sm:$0xff]
                %287 = vst [vmem:[%s179 + $0x27c] sm:$0xff] %v286
                %v288 = vld [vmem:[%s178 + $0x510] sm:$0xff]
                %289 = vst [vmem:[%s179 + $0x288] sm:$0xff] %v288
                %v290 = vld [vmem:[%s178 + $0x528] sm:$0xff]
                %291 = vst [vmem:[%s179 + $0x294] sm:$0xff] %v290
                %v292 = vld [vmem:[%s178 + $0x540] sm:$0xff]
                %293 = vst [vmem:[%s179 + $0x2a0] sm:$0xff] %v292
                %v294 = vld [vmem:[%s178 + $0x558] sm:$0xff]
                %295 = vst [vmem:[%s179 + $0x2ac] sm:$0xff] %v294
                %v296 = vld [vmem:[%s178 + $0x570] sm:$0xff]
                %297 = vst [vmem:[%s179 + $0x2b8] sm:$0xff] %v296
                %v298 = vld [vmem:[%s178 + $0x588] sm:$0xff]
                %299 = vst [vmem:[%s179 + $0x2c4] sm:$0xff] %v298
                %v300 = vld [vmem:[%s178 + $0x5a0] sm:$0xff]
                %301 = vst [vmem:[%s179 + $0x2d0] sm:$0xff] %v300
                %v302 = vld [vmem:[%s178 + $0x5b8] sm:$0xff]
                %303 = vst [vmem:[%s179 + $0x2dc] sm:$0xff] %v302
                %v304 = vld [vmem:[%s178 + $0x5d0] sm:$0xff]
                %305 = vst [vmem:[%s179 + $0x2e8] sm:$0xff] %v304
                %v306 = vld [vmem:[%s178 + $0x5e8] sm:$0xff]
                %307 = vst [vmem:[%s179 + $0x2f4] sm:$0xff] %v306
                %v308 = vld [vmem:[%s178 + $0x600] sm:$0xff]
                %309 = vst [vmem:[%s179 + $0x300] sm:$0xff] %v308
                %v310 = vld [vmem:[%s178 + $0x618] sm:$0xff]
                %311 = vst [vmem:[%s179 + $0x30c] sm:$0xff] %v310
                %v312 = vld [vmem:[%s178 + $0x630] sm:$0xff]
                %313 = vst [vmem:[%s179 + $0x318] sm:$0xff] %v312
                %v314 = vld [vmem:[%s178 + $0x648] sm:$0xff]
                %315 = vst [vmem:[%s179 + $0x324] sm:$0xff] %v314
                %v316 = vld [vmem:[%s178 + $0x660] sm:$0xff]
                %317 = vst [vmem:[%s179 + $0x330] sm:$0xff] %v316
                %v318 = vld [vmem:[%s178 + $0x678] sm:$0xff]
                %319 = vst [vmem:[%s179 + $0x33c] sm:$0xff] %v318
                %v320 = vld [vmem:[%s178 + $0x690] sm:$0xff]
                %321 = vst [vmem:[%s179 + $0x348] sm:$0xff] %v320
                %v322 = vld [vmem:[%s178 + $0x6a8] sm:$0xff]
                %323 = vst [vmem:[%s179 + $0x354] sm:$0xff] %v322
                %v324 = vld [vmem:[%s178 + $0x6c0] sm:$0xff]
                %325 = vst [vmem:[%s179 + $0x360] sm:$0xff] %v324
                %v326 = vld [vmem:[%s178 + $0x6d8] sm:$0xff]
                %327 = vst [vmem:[%s179 + $0x36c] sm:$0xff] %v326
                %v328 = vld [vmem:[%s178 + $0x6f0] sm:$0xff]
                %329 = vst [vmem:[%s179 + $0x378] sm:$0xff] %v328
                %v330 = vld [vmem:[%s178 + $0x708] sm:$0xff]
                %331 = vst [vmem:[%s179 + $0x384] sm:$0xff] %v330
                %v332 = vld [vmem:[%s178 + $0x720] sm:$0xff]
                %333 = vst [vmem:[%s179 + $0x390] sm:$0xff] %v332
                %v334 = vld [vmem:[%s178 + $0x738] sm:$0xff]
                %335 = vst [vmem:[%s179 + $0x39c] sm:$0xff] %v334
                %v336 = vld [vmem:[%s178 + $0x750] sm:$0xff]
                %337 = vst [vmem:[%s179 + $0x3a8] sm:$0xff] %v336
                %v338 = vld [vmem:[%s178 + $0x768] sm:$0xff]
                %339 = vst [vmem:[%s179 + $0x3b4] sm:$0xff] %v338
                %v340 = vld [vmem:[%s178 + $0x780] sm:$0xff]
                %341 = vst [vmem:[%s179 + $0x3c0] sm:$0xff] %v340
                %v342 = vld [vmem:[%s178 + $0x798] sm:$0xff]
                %343 = vst [vmem:[%s179 + $0x3cc] sm:$0xff] %v342
                %v344 = vld [vmem:[%s178 + $0x7b0] sm:$0xff]
                %345 = vst [vmem:[%s179 + $0x3d8] sm:$0xff] %v344
                %v346 = vld [vmem:[%s178 + $0x7c8] sm:$0xff]
                %347 = vst [vmem:[%s179 + $0x3e4] sm:$0xff] %v346
                %v348 = vld [vmem:[%s178 + $0x7e0] sm:$0xff]
                %349 = vst [vmem:[%s179 + $0x3f0] sm:$0xff] %v348
                %v350 = vld [vmem:[%s178 + $0x7f8] sm:$0xff]
                %351 = vst [vmem:[%s179 + $0x3fc] sm:$0xff] %v350
                %v352 = vld [vmem:[%s178 + $0x810] sm:$0xff]
                %353 = vst [vmem:[%s179 + $0x408] sm:$0xff] %v352
                %v354 = vld [vmem:[%s178 + $0x828] sm:$0xff]
                %355 = vst [vmem:[%s179 + $0x414] sm:$0xff] %v354
                %v356 = vld [vmem:[%s178 + $0x840] sm:$0xff]
                %357 = vst [vmem:[%s179 + $0x420] sm:$0xff] %v356
                %v358 = vld [vmem:[%s178 + $0x858] sm:$0xff]
                %359 = vst [vmem:[%s179 + $0x42c] sm:$0xff] %v358
                %v360 = vld [vmem:[%s178 + $0x870] sm:$0xff]
                %361 = vst [vmem:[%s179 + $0x438] sm:$0xff] %v360
                %v362 = vld [vmem:[%s178 + $0x888] sm:$0xff]
                %363 = vst [vmem:[%s179 + $0x444] sm:$0xff] %v362
                %v364 = vld [vmem:[%s178 + $0x8a0] sm:$0xff]
                %365 = vst [vmem:[%s179 + $0x450] sm:$0xff] %v364
                %v366 = vld [vmem:[%s178 + $0x8b8] sm:$0xff]
                %367 = vst [vmem:[%s179 + $0x45c] sm:$0xff] %v366
                %v368 = vld [vmem:[%s178 + $0x8d0] sm:$0xff]
                %369 = vst [vmem:[%s179 + $0x468] sm:$0xff] %v368
                %v370 = vld [vmem:[%s178 + $0x8e8] sm:$0xff]
                %371 = vst [vmem:[%s179 + $0x474] sm:$0xff] %v370
              $region37: #{forward.12} parent=31 // loop_footer
                %s177 = sadd.s32 1, %s173
              $region38: #{forward.12} parent=31 // loop_footer_branch
                %172 = sbr.rel target = $region34
              $region39: #{forward.12} parent=31 // loop_exit
                _
              loop: start=0, step=1, limit=1
              $region40: #{forward.12} parent=31 // loop_pre_header
                _
              $region41: #{forward.12} parent=31 // loop_header
                %s374 = sphi 0, %s378
                %p375 = scmp.ge.s32.totalorder %s374, 1
                %s379 = sphi %s170, %s170
                %s380 = sphi %s171, %s171
              $region42: #{forward.12} parent=31 // loop_header_branch
                %377 = sbr.rel (%p375) target = $region46
              $region43: #{forward.12} parent=31 // loop_body
                %v381 = vld [vmem:[%s379] sm:$0xf]
                %382 = vst [vmem:[%s380] sm:$0xf] %v381
                %v383 = vld [vmem:[%s379 + $0x18] sm:$0xf]
                %384 = vst [vmem:[%s380 + $0xc] sm:$0xf] %v383
                %v385 = vld [vmem:[%s379 + $0x30] sm:$0xf]
                %386 = vst [vmem:[%s380 + $0x18] sm:$0xf] %v385
                %v387 = vld [vmem:[%s379 + $0x48] sm:$0xf]
                %388 = vst [vmem:[%s380 + $0x24] sm:$0xf] %v387
                %v389 = vld [vmem:[%s379 + $0x60] sm:$0xf]
                %390 = vst [vmem:[%s380 + $0x30] sm:$0xf] %v389
                %v391 = vld [vmem:[%s379 + $0x78] sm:$0xf]
                %392 = vst [vmem:[%s380 + $0x3c] sm:$0xf] %v391
                %v393 = vld [vmem:[%s379 + $0x90] sm:$0xf]
                %394 = vst [vmem:[%s380 + $0x48] sm:$0xf] %v393
                %v395 = vld [vmem:[%s379 + $0xa8] sm:$0xf]
                %396 = vst [vmem:[%s380 + $0x54] sm:$0xf] %v395
                %v397 = vld [vmem:[%s379 + $0xc0] sm:$0xf]
                %398 = vst [vmem:[%s380 + $0x60] sm:$0xf] %v397
                %v399 = vld [vmem:[%s379 + $0xd8] sm:$0xf]
                %400 = vst [vmem:[%s380 + $0x6c] sm:$0xf] %v399
                %v401 = vld [vmem:[%s379 + $0xf0] sm:$0xf]
                %402 = vst [vmem:[%s380 + $0x78] sm:$0xf] %v401
                %v403 = vld [vmem:[%s379 + $0x108] sm:$0xf]
                %404 = vst [vmem:[%s380 + $0x84] sm:$0xf] %v403
                %v405 = vld [vmem:[%s379 + $0x120] sm:$0xf]
                %406 = vst [vmem:[%s380 + $0x90] sm:$0xf] %v405
                %v407 = vld [vmem:[%s379 + $0x138] sm:$0xf]
                %408 = vst [vmem:[%s380 + $0x9c] sm:$0xf] %v407
                %v409 = vld [vmem:[%s379 + $0x150] sm:$0xf]
                %410 = vst [vmem:[%s380 + $0xa8] sm:$0xf] %v409
                %v411 = vld [vmem:[%s379 + $0x168] sm:$0xf]
                %412 = vst [vmem:[%s380 + $0xb4] sm:$0xf] %v411
                %v413 = vld [vmem:[%s379 + $0x180] sm:$0xf]
                %414 = vst [vmem:[%s380 + $0xc0] sm:$0xf] %v413
                %v415 = vld [vmem:[%s379 + $0x198] sm:$0xf]
                %416 = vst [vmem:[%s380 + $0xcc] sm:$0xf] %v415
                %v417 = vld [vmem:[%s379 + $0x1b0] sm:$0xf]
                %418 = vst [vmem:[%s380 + $0xd8] sm:$0xf] %v417
                %v419 = vld [vmem:[%s379 + $0x1c8] sm:$0xf]
                %420 = vst [vmem:[%s380 + $0xe4] sm:$0xf] %v419
                %v421 = vld [vmem:[%s379 + $0x1e0] sm:$0xf]
                %422 = vst [vmem:[%s380 + $0xf0] sm:$0xf] %v421
                %v423 = vld [vmem:[%s379 + $0x1f8] sm:$0xf]
                %424 = vst [vmem:[%s380 + $0xfc] sm:$0xf] %v423
                %v425 = vld [vmem:[%s379 + $0x210] sm:$0xf]
                %426 = vst [vmem:[%s380 + $0x108] sm:$0xf] %v425
                %v427 = vld [vmem:[%s379 + $0x228] sm:$0xf]
                %428 = vst [vmem:[%s380 + $0x114] sm:$0xf] %v427
                %v429 = vld [vmem:[%s379 + $0x240] sm:$0xf]
                %430 = vst [vmem:[%s380 + $0x120] sm:$0xf] %v429
                %v431 = vld [vmem:[%s379 + $0x258] sm:$0xf]
                %432 = vst [vmem:[%s380 + $0x12c] sm:$0xf] %v431
                %v433 = vld [vmem:[%s379 + $0x270] sm:$0xf]
                %434 = vst [vmem:[%s380 + $0x138] sm:$0xf] %v433
                %v435 = vld [vmem:[%s379 + $0x288] sm:$0xf]
                %436 = vst [vmem:[%s380 + $0x144] sm:$0xf] %v435
                %v437 = vld [vmem:[%s379 + $0x2a0] sm:$0xf]
                %438 = vst [vmem:[%s380 + $0x150] sm:$0xf] %v437
                %v439 = vld [vmem:[%s379 + $0x2b8] sm:$0xf]
                %440 = vst [vmem:[%s380 + $0x15c] sm:$0xf] %v439
                %v441 = vld [vmem:[%s379 + $0x2d0] sm:$0xf]
                %442 = vst [vmem:[%s380 + $0x168] sm:$0xf] %v441
                %v443 = vld [vmem:[%s379 + $0x2e8] sm:$0xf]
                %444 = vst [vmem:[%s380 + $0x174] sm:$0xf] %v443
                %v445 = vld [vmem:[%s379 + $0x300] sm:$0xf]
                %446 = vst [vmem:[%s380 + $0x180] sm:$0xf] %v445
                %v447 = vld [vmem:[%s379 + $0x318] sm:$0xf]
                %448 = vst [vmem:[%s380 + $0x18c] sm:$0xf] %v447
                %v449 = vld [vmem:[%s379 + $0x330] sm:$0xf]
                %450 = vst [vmem:[%s380 + $0x198] sm:$0xf] %v449
                %v451 = vld [vmem:[%s379 + $0x348] sm:$0xf]
                %452 = vst [vmem:[%s380 + $0x1a4] sm:$0xf] %v451
                %v453 = vld [vmem:[%s379 + $0x360] sm:$0xf]
                %454 = vst [vmem:[%s380 + $0x1b0] sm:$0xf] %v453
                %v455 = vld [vmem:[%s379 + $0x378] sm:$0xf]
                %456 = vst [vmem:[%s380 + $0x1bc] sm:$0xf] %v455
                %v457 = vld [vmem:[%s379 + $0x390] sm:$0xf]
                %458 = vst [vmem:[%s380 + $0x1c8] sm:$0xf] %v457
                %v459 = vld [vmem:[%s379 + $0x3a8] sm:$0xf]
                %460 = vst [vmem:[%s380 + $0x1d4] sm:$0xf] %v459
                %v461 = vld [vmem:[%s379 + $0x3c0] sm:$0xf]
                %462 = vst [vmem:[%s380 + $0x1e0] sm:$0xf] %v461
                %v463 = vld [vmem:[%s379 + $0x3d8] sm:$0xf]
                %464 = vst [vmem:[%s380 + $0x1ec] sm:$0xf] %v463
                %v465 = vld [vmem:[%s379 + $0x3f0] sm:$0xf]
                %466 = vst [vmem:[%s380 + $0x1f8] sm:$0xf] %v465
                %v467 = vld [vmem:[%s379 + $0x408] sm:$0xf]
                %468 = vst [vmem:[%s380 + $0x204] sm:$0xf] %v467
                %v469 = vld [vmem:[%s379 + $0x420] sm:$0xf]
                %470 = vst [vmem:[%s380 + $0x210] sm:$0xf] %v469
                %v471 = vld [vmem:[%s379 + $0x438] sm:$0xf]
                %472 = vst [vmem:[%s380 + $0x21c] sm:$0xf] %v471
                %v473 = vld [vmem:[%s379 + $0x450] sm:$0xf]
                %474 = vst [vmem:[%s380 + $0x228] sm:$0xf] %v473
                %v475 = vld [vmem:[%s379 + $0x468] sm:$0xf]
                %476 = vst [vmem:[%s380 + $0x234] sm:$0xf] %v475
                %v477 = vld [vmem:[%s379 + $0x480] sm:$0xf]
                %478 = vst [vmem:[%s380 + $0x240] sm:$0xf] %v477
                %v479 = vld [vmem:[%s379 + $0x498] sm:$0xf]
                %480 = vst [vmem:[%s380 + $0x24c] sm:$0xf] %v479
                %v481 = vld [vmem:[%s379 + $0x4b0] sm:$0xf]
                %482 = vst [vmem:[%s380 + $0x258] sm:$0xf] %v481
                %v483 = vld [vmem:[%s379 + $0x4c8] sm:$0xf]
                %484 = vst [vmem:[%s380 + $0x264] sm:$0xf] %v483
                %v485 = vld [vmem:[%s379 + $0x4e0] sm:$0xf]
                %486 = vst [vmem:[%s380 + $0x270] sm:$0xf] %v485
                %v487 = vld [vmem:[%s379 + $0x4f8] sm:$0xf]
                %488 = vst [vmem:[%s380 + $0x27c] sm:$0xf] %v487
                %v489 = vld [vmem:[%s379 + $0x510] sm:$0xf]
                %490 = vst [vmem:[%s380 + $0x288] sm:$0xf] %v489
                %v491 = vld [vmem:[%s379 + $0x528] sm:$0xf]
                %492 = vst [vmem:[%s380 + $0x294] sm:$0xf] %v491
                %v493 = vld [vmem:[%s379 + $0x540] sm:$0xf]
                %494 = vst [vmem:[%s380 + $0x2a0] sm:$0xf] %v493
                %v495 = vld [vmem:[%s379 + $0x558] sm:$0xf]
                %496 = vst [vmem:[%s380 + $0x2ac] sm:$0xf] %v495
                %v497 = vld [vmem:[%s379 + $0x570] sm:$0xf]
                %498 = vst [vmem:[%s380 + $0x2b8] sm:$0xf] %v497
                %v499 = vld [vmem:[%s379 + $0x588] sm:$0xf]
                %500 = vst [vmem:[%s380 + $0x2c4] sm:$0xf] %v499
                %v501 = vld [vmem:[%s379 + $0x5a0] sm:$0xf]
                %502 = vst [vmem:[%s380 + $0x2d0] sm:$0xf] %v501
                %v503 = vld [vmem:[%s379 + $0x5b8] sm:$0xf]
                %504 = vst [vmem:[%s380 + $0x2dc] sm:$0xf] %v503
                %v505 = vld [vmem:[%s379 + $0x5d0] sm:$0xf]
                %506 = vst [vmem:[%s380 + $0x2e8] sm:$0xf] %v505
                %v507 = vld [vmem:[%s379 + $0x5e8] sm:$0xf]
                %508 = vst [vmem:[%s380 + $0x2f4] sm:$0xf] %v507
                %v509 = vld [vmem:[%s379 + $0x600] sm:$0xf]
                %510 = vst [vmem:[%s380 + $0x300] sm:$0xf] %v509
                %v511 = vld [vmem:[%s379 + $0x618] sm:$0xf]
                %512 = vst [vmem:[%s380 + $0x30c] sm:$0xf] %v511
                %v513 = vld [vmem:[%s379 + $0x630] sm:$0xf]
                %514 = vst [vmem:[%s380 + $0x318] sm:$0xf] %v513
                %v515 = vld [vmem:[%s379 + $0x648] sm:$0xf]
                %516 = vst [vmem:[%s380 + $0x324] sm:$0xf] %v515
                %v517 = vld [vmem:[%s379 + $0x660] sm:$0xf]
                %518 = vst [vmem:[%s380 + $0x330] sm:$0xf] %v517
                %v519 = vld [vmem:[%s379 + $0x678] sm:$0xf]
                %520 = vst [vmem:[%s380 + $0x33c] sm:$0xf] %v519
                %v521 = vld [vmem:[%s379 + $0x690] sm:$0xf]
                %522 = vst [vmem:[%s380 + $0x348] sm:$0xf] %v521
                %v523 = vld [vmem:[%s379 + $0x6a8] sm:$0xf]
                %524 = vst [vmem:[%s380 + $0x354] sm:$0xf] %v523
                %v525 = vld [vmem:[%s379 + $0x6c0] sm:$0xf]
                %526 = vst [vmem:[%s380 + $0x360] sm:$0xf] %v525
                %v527 = vld [vmem:[%s379 + $0x6d8] sm:$0xf]
                %528 = vst [vmem:[%s380 + $0x36c] sm:$0xf] %v527
                %v529 = vld [vmem:[%s379 + $0x6f0] sm:$0xf]
                %530 = vst [vmem:[%s380 + $0x378] sm:$0xf] %v529
                %v531 = vld [vmem:[%s379 + $0x708] sm:$0xf]
                %532 = vst [vmem:[%s380 + $0x384] sm:$0xf] %v531
                %v533 = vld [vmem:[%s379 + $0x720] sm:$0xf]
                %534 = vst [vmem:[%s380 + $0x390] sm:$0xf] %v533
                %v535 = vld [vmem:[%s379 + $0x738] sm:$0xf]
                %536 = vst [vmem:[%s380 + $0x39c] sm:$0xf] %v535
                %v537 = vld [vmem:[%s379 + $0x750] sm:$0xf]
                %538 = vst [vmem:[%s380 + $0x3a8] sm:$0xf] %v537
                %v539 = vld [vmem:[%s379 + $0x768] sm:$0xf]
                %540 = vst [vmem:[%s380 + $0x3b4] sm:$0xf] %v539
                %v541 = vld [vmem:[%s379 + $0x780] sm:$0xf]
                %542 = vst [vmem:[%s380 + $0x3c0] sm:$0xf] %v541
                %v543 = vld [vmem:[%s379 + $0x798] sm:$0xf]
                %544 = vst [vmem:[%s380 + $0x3cc] sm:$0xf] %v543
                %v545 = vld [vmem:[%s379 + $0x7b0] sm:$0xf]
                %546 = vst [vmem:[%s380 + $0x3d8] sm:$0xf] %v545
                %v547 = vld [vmem:[%s379 + $0x7c8] sm:$0xf]
                %548 = vst [vmem:[%s380 + $0x3e4] sm:$0xf] %v547
                %v549 = vld [vmem:[%s379 + $0x7e0] sm:$0xf]
                %550 = vst [vmem:[%s380 + $0x3f0] sm:$0xf] %v549
                %v551 = vld [vmem:[%s379 + $0x7f8] sm:$0xf]
                %552 = vst [vmem:[%s380 + $0x3fc] sm:$0xf] %v551
                %v553 = vld [vmem:[%s379 + $0x810] sm:$0xf]
                %554 = vst [vmem:[%s380 + $0x408] sm:$0xf] %v553
                %v555 = vld [vmem:[%s379 + $0x828] sm:$0xf]
                %556 = vst [vmem:[%s380 + $0x414] sm:$0xf] %v555
                %v557 = vld [vmem:[%s379 + $0x840] sm:$0xf]
                %558 = vst [vmem:[%s380 + $0x420] sm:$0xf] %v557
                %v559 = vld [vmem:[%s379 + $0x858] sm:$0xf]
                %560 = vst [vmem:[%s380 + $0x42c] sm:$0xf] %v559
                %v561 = vld [vmem:[%s379 + $0x870] sm:$0xf]
                %562 = vst [vmem:[%s380 + $0x438] sm:$0xf] %v561
                %v563 = vld [vmem:[%s379 + $0x888] sm:$0xf]
                %564 = vst [vmem:[%s380 + $0x444] sm:$0xf] %v563
                %v565 = vld [vmem:[%s379 + $0x8a0] sm:$0xf]
                %566 = vst [vmem:[%s380 + $0x450] sm:$0xf] %v565
                %v567 = vld [vmem:[%s379 + $0x8b8] sm:$0xf]
                %568 = vst [vmem:[%s380 + $0x45c] sm:$0xf] %v567
                %v569 = vld [vmem:[%s379 + $0x8d0] sm:$0xf]
                %570 = vst [vmem:[%s380 + $0x468] sm:$0xf] %v569
                %v571 = vld [vmem:[%s379 + $0x8e8] sm:$0xf]
                %572 = vst [vmem:[%s380 + $0x474] sm:$0xf] %v571
              $region44: #{forward.12} parent=31 // loop_footer
                %s378 = sadd.s32 1, %s374
              $region45: #{forward.12} parent=31 // loop_footer_branch
                %373 = sbr.rel target = $region41
              $region46: #{forward.12} parent=31 // loop_exit
                _
            $region32: #{forward.12} parent=27 // pred_fallthru
              _
          $region28: #{forward.12} parent=23 // pred_fallthru
            _
          %573 = vnop
        $region24: #{forward.12} parent=19 // pred_fallthru
          _
        // Predicated region
        $region47: #{forward.12} parent=19 // pred_check
          %p574 = pneg %p93
        $region48: #{forward.12} parent=19 // pred_check_branch
          %576 = sbr.rel (%p574) target = $region50
        $region49: #{forward.12} parent=19 // pred_region
          %s577 = smul.u32 3, %s17
          %p578 = scmp.lt.s32.totalorder %s577, 5
          %s579 = scalar_select %p578, %s577, 5
          %s580 = scalar_lea.vmem %s2, %s579
          %s581 = smul.u32 3, %s17
        $region50: #{forward.12} parent=19 // pred_fallthru
          _
      $region20: #{forward.12} parent=5 // pred_fallthru
        _
      %p582 = scmp.le.s32.totalorder 1, %s9
      %p583 = scmp.lt.s32.totalorder %s9, 3
      %p584 = pnand %p582, %p583
      %p585 = pneg %p584
      // Predicated region
      $region51: #{forward.12} parent=5 // pred_check
        _
      $region52: #{forward.12} parent=5 // pred_check_branch
        %587 = sbr.rel (%p584) target = $region54
      $region53: #{forward.12} parent=5 // pred_region
        %s588 = ssub.s32 %s9, 1
        %s589 = sand.u32 %s60, 1
        %s590 = sand.u32 %s60, 1
        %s591 = smul.addr %s590, 1152
        %s592 = scalar_lea.vmem [#allocation2], %s591
        // Predicated region
        $region55: #{forward.12} parent=53 // pred_check
          %p593 = pneg %p73
        $region56: #{forward.12} parent=53 // pred_check_branch
          %595 = sbr.rel (%p593) target = $region58
        $region57: #{forward.12} parent=53 // pred_region
          _
        $region58: #{forward.12} parent=53 // pred_fallthru
          _
        %s596 = smul.u32 16, %s18
        %p597 = scmp.lt.s32.totalorder %s596, 15
        %s598 = scalar_select %p597, %s596, 15
        %s599 = smul.addr %s598, 6
        %s600 = smul.addr %s599, 4
        %s601 = scalar_lea.vmem %s0, %s600
        %p602 = pneg %p47
        %p603 = pneg %p44
        %s604 = sand.u32 %s60, 1
        %s605 = sand.u32 %s60, 1
        %s606 = smul.addr %s605, 1152
        %s607 = scalar_lea.vmem [#allocation2], %s606
        %p608 = pneg %p73
        %p609 = pneg %p70
        %s610 = smul.u32 3, %s19
        %p611 = scmp.lt.s32.totalorder %s610, 5
        %s612 = scalar_select %p611, %s610, 5
        %s613 = scalar_lea.vmem %s2, %s612
        %p614 = pneg %p99
        %p615 = pneg %p96
        %p616 = pneg %p127
        %p617 = pneg %p124
        %s618 = sand.u32 %s114, 1
        %s619 = sand.u32 %s114, 1
        %s620 = smul.addr %s619, 384
        %s621 = scalar_lea.vmem [#allocation3], %s620
        %s622 = smul.u32 16, %s18
        %p623 = scmp.lt.s32.totalorder %s622, 15
        %s624 = scalar_select %p623, %s622, 15
        %s625 = smul.addr %s624, 6
        %s626 = smul.addr %s625, 4
        %s627 = scalar_lea.vmem %s0, %s626
        %s628 = smul.u32 16, %s18
        %s629 = smul.u32 3, %s19
        %s630 = smul.u32 3, %s19
        %p631 = scmp.lt.s32.totalorder %s630, 5
        %s632 = scalar_select %p631, %s630, 5
        %s633 = scalar_lea.vmem %s2, %s632
        %s634 = smul.u32 3, %s19
        %s635 = smul.u32 16, %s18
        %s636 = smul.u32 3, %s19
        %v638 = vld [vmem:[%s627] sm:$0xff]
        %v639 = vld [vmem:[%s627 + $0x8] sm:$0xff]
        %v640 = vld [vmem:[%s627 + $0x10] sm:$0xff]
        %v641 = vld [vmem:[%s627 + $0x18] sm:$0xff]
        %v642 = vld [vmem:[%s627 + $0x20] sm:$0xff]
        %v643 = vld [vmem:[%s627 + $0x28] sm:$0xff]
        %v644 = vld [vmem:[%s627 + $0x30] sm:$0xff]
        %v645 = vld [vmem:[%s627 + $0x38] sm:$0xff]
        %v646 = vld [vmem:[%s627 + $0x40] sm:$0xff]
        %v647 = vld [vmem:[%s627 + $0x48] sm:$0xff]
        %v648 = vld [vmem:[%s627 + $0x50] sm:$0xff]
        %v649 = vld [vmem:[%s627 + $0x58] sm:$0xff]
        %v650 = vld [vmem:[%s627 + $0x60] sm:$0xff]
        %v651 = vld [vmem:[%s627 + $0x68] sm:$0xff]
        %v652 = vld [vmem:[%s627 + $0x70] sm:$0xff]
        %v653 = vld [vmem:[%s627 + $0x78] sm:$0xff]
        %v654 = vld [vmem:[%s627 + $0x80] sm:$0xff]
        %v655 = vld [vmem:[%s627 + $0x88] sm:$0xff]
        %v656 = vld [vmem:[%s627 + $0x90] sm:$0xff]
        %v657 = vld [vmem:[%s627 + $0x98] sm:$0xff]
        %v658 = vld [vmem:[%s627 + $0xa0] sm:$0xff]
        %v659 = vld [vmem:[%s627 + $0xa8] sm:$0xff]
        %v660 = vld [vmem:[%s627 + $0xb0] sm:$0xff]
        %v661 = vld [vmem:[%s627 + $0xb8] sm:$0xff]
        %v662 = vld [vmem:[%s627 + $0xc0] sm:$0xff]
        %v663 = vld [vmem:[%s627 + $0xc8] sm:$0xff]
        %v664 = vld [vmem:[%s627 + $0xd0] sm:$0xff]
        %v665 = vld [vmem:[%s627 + $0xd8] sm:$0xff]
        %v666 = vld [vmem:[%s627 + $0xe0] sm:$0xff]
        %v667 = vld [vmem:[%s627 + $0xe8] sm:$0xff]
        %v668 = vld [vmem:[%s627 + $0xf0] sm:$0xff]
        %v669 = vld [vmem:[%s627 + $0xf8] sm:$0xff]
        %v670 = vld [vmem:[%s627 + $0x100] sm:$0xff]
        %v671 = vld [vmem:[%s627 + $0x108] sm:$0xff]
        %v672 = vld [vmem:[%s627 + $0x110] sm:$0xff]
        %v673 = vld [vmem:[%s627 + $0x118] sm:$0xff]
        %v674 = vld [vmem:[%s627 + $0x120] sm:$0xff]
        %v675 = vld [vmem:[%s627 + $0x128] sm:$0xff]
        %v676 = vld [vmem:[%s627 + $0x130] sm:$0xff]
        %v677 = vld [vmem:[%s627 + $0x138] sm:$0xff]
        %v678 = vld [vmem:[%s627 + $0x140] sm:$0xff]
        %v679 = vld [vmem:[%s627 + $0x148] sm:$0xff]
        %v680 = vld [vmem:[%s627 + $0x150] sm:$0xff]
        %v681 = vld [vmem:[%s627 + $0x158] sm:$0xff]
        %v682 = vld [vmem:[%s627 + $0x160] sm:$0xff]
        %v683 = vld [vmem:[%s627 + $0x168] sm:$0xff]
        %v684 = vld [vmem:[%s627 + $0x170] sm:$0xff]
        %v685 = vld [vmem:[%s627 + $0x178] sm:$0xff]
        %v686 = vld [vmem:[%s592] sm:$0xff]
        %v687 = vld [vmem:[%s592 + $0x8] sm:$0xf]
        %v688 = vld [vmem:[%s592 + $0xc] sm:$0xff]
        %v689 = vld [vmem:[%s592 + $0x14] sm:$0xf]
        %v690 = vld [vmem:[%s592 + $0x18] sm:$0xff]
        %v691 = vld [vmem:[%s592 + $0x20] sm:$0xf]
        %v692 = vld [vmem:[%s592 + $0x24] sm:$0xff]
        %v693 = vld [vmem:[%s592 + $0x2c] sm:$0xf]
        %v694 = vld [vmem:[%s592 + $0x30] sm:$0xff]
        %v695 = vld [vmem:[%s592 + $0x38] sm:$0xf]
        %v696 = vld [vmem:[%s592 + $0x3c] sm:$0xff]
        %v697 = vld [vmem:[%s592 + $0x44] sm:$0xf]
        %v698 = vld [vmem:[%s592 + $0x48] sm:$0xff]
        %v699 = vld [vmem:[%s592 + $0x50] sm:$0xf]
        %v700 = vld [vmem:[%s592 + $0x54] sm:$0xff]
        %v701 = vld [vmem:[%s592 + $0x5c] sm:$0xf]
        %v702 = vld [vmem:[%s592 + $0x60] sm:$0xff]
        %v703 = vld [vmem:[%s592 + $0x68] sm:$0xf]
        %v704 = vld [vmem:[%s592 + $0x6c] sm:$0xff]
        %v705 = vld [vmem:[%s592 + $0x74] sm:$0xf]
        %v706 = vld [vmem:[%s592 + $0x78] sm:$0xff]
        %v707 = vld [vmem:[%s592 + $0x80] sm:$0xf]
        %v708 = vld [vmem:[%s592 + $0x84] sm:$0xff]
        %v709 = vld [vmem:[%s592 + $0x8c] sm:$0xf]
        %v710 = vld [vmem:[%s592 + $0x90] sm:$0xff]
        %v711 = vld [vmem:[%s592 + $0x98] sm:$0xf]
        %v712 = vld [vmem:[%s592 + $0x9c] sm:$0xff]
        %v713 = vld [vmem:[%s592 + $0xa4] sm:$0xf]
        %v714 = vld [vmem:[%s592 + $0xa8] sm:$0xff]
        %v715 = vld [vmem:[%s592 + $0xb0] sm:$0xf]
        %v716 = vld [vmem:[%s592 + $0xb4] sm:$0xff]
        %v717 = vld [vmem:[%s592 + $0xbc] sm:$0xf]
        %v718 = vld [vmem:[%s592 + $0xc0] sm:$0xff]
        %v719 = vld [vmem:[%s592 + $0xc8] sm:$0xf]
        %v720 = vld [vmem:[%s592 + $0xcc] sm:$0xff]
        %v721 = vld [vmem:[%s592 + $0xd4] sm:$0xf]
        %v722 = vld [vmem:[%s592 + $0xd8] sm:$0xff]
        %v723 = vld [vmem:[%s592 + $0xe0] sm:$0xf]
        %v724 = vld [vmem:[%s592 + $0xe4] sm:$0xff]
        %v725 = vld [vmem:[%s592 + $0xec] sm:$0xf]
        %v726 = vld [vmem:[%s592 + $0xf0] sm:$0xff]
        %v727 = vld [vmem:[%s592 + $0xf8] sm:$0xf]
        %v728 = vld [vmem:[%s592 + $0xfc] sm:$0xff]
        %v729 = vld [vmem:[%s592 + $0x104] sm:$0xf]
        %v730 = vld [vmem:[%s592 + $0x108] sm:$0xff]
        %v731 = vld [vmem:[%s592 + $0x110] sm:$0xf]
        %v732 = vld [vmem:[%s592 + $0x114] sm:$0xff]
        %v733 = vld [vmem:[%s592 + $0x11c] sm:$0xf]
        %v734 = vld [vmem:[%s592 + $0x120] sm:$0xff]
        %v735 = vld [vmem:[%s592 + $0x128] sm:$0xf]
        %v736 = vld [vmem:[%s592 + $0x12c] sm:$0xff]
        %v737 = vld [vmem:[%s592 + $0x134] sm:$0xf]
        %v738 = vld [vmem:[%s592 + $0x138] sm:$0xff]
        %v739 = vld [vmem:[%s592 + $0x140] sm:$0xf]
        %v740 = vld [vmem:[%s592 + $0x144] sm:$0xff]
        %v741 = vld [vmem:[%s592 + $0x14c] sm:$0xf]
        %v742 = vld [vmem:[%s592 + $0x150] sm:$0xff]
        %v743 = vld [vmem:[%s592 + $0x158] sm:$0xf]
        %v744 = vld [vmem:[%s592 + $0x15c] sm:$0xff]
        %v745 = vld [vmem:[%s592 + $0x164] sm:$0xf]
        %v746 = vld [vmem:[%s592 + $0x168] sm:$0xff]
        %v747 = vld [vmem:[%s592 + $0x170] sm:$0xf]
        %v748 = vld [vmem:[%s592 + $0x174] sm:$0xff]
        %v749 = vld [vmem:[%s592 + $0x17c] sm:$0xf]
        %v750 = vld [vmem:[%s592 + $0x180] sm:$0xff]
        %v751 = vld [vmem:[%s592 + $0x188] sm:$0xf]
        %v752 = vld [vmem:[%s592 + $0x18c] sm:$0xff]
        %v753 = vld [vmem:[%s592 + $0x194] sm:$0xf]
        %v754 = vld [vmem:[%s592 + $0x198] sm:$0xff]
        %v755 = vld [vmem:[%s592 + $0x1a0] sm:$0xf]
        %v756 = vld [vmem:[%s592 + $0x1a4] sm:$0xff]
        %v757 = vld [vmem:[%s592 + $0x1ac] sm:$0xf]
        %v758 = vld [vmem:[%s592 + $0x1b0] sm:$0xff]
        %v759 = vld [vmem:[%s592 + $0x1b8] sm:$0xf]
        %v760 = vld [vmem:[%s592 + $0x1bc] sm:$0xff]
        %v761 = vld [vmem:[%s592 + $0x1c4] sm:$0xf]
        %v762 = vld [vmem:[%s592 + $0x1c8] sm:$0xff]
        %v763 = vld [vmem:[%s592 + $0x1d0] sm:$0xf]
        %v764 = vld [vmem:[%s592 + $0x1d4] sm:$0xff]
        %v765 = vld [vmem:[%s592 + $0x1dc] sm:$0xf]
        %v766 = vld [vmem:[%s592 + $0x1e0] sm:$0xff]
        %v767 = vld [vmem:[%s592 + $0x1e8] sm:$0xf]
        %v768 = vld [vmem:[%s592 + $0x1ec] sm:$0xff]
        %v769 = vld [vmem:[%s592 + $0x1f4] sm:$0xf]
        %v770 = vld [vmem:[%s592 + $0x1f8] sm:$0xff]
        %v771 = vld [vmem:[%s592 + $0x200] sm:$0xf]
        %v772 = vld [vmem:[%s592 + $0x204] sm:$0xff]
        %v773 = vld [vmem:[%s592 + $0x20c] sm:$0xf]
        %v774 = vld [vmem:[%s592 + $0x210] sm:$0xff]
        %v775 = vld [vmem:[%s592 + $0x218] sm:$0xf]
        %v776 = vld [vmem:[%s592 + $0x21c] sm:$0xff]
        %v777 = vld [vmem:[%s592 + $0x224] sm:$0xf]
        %v778 = vld [vmem:[%s592 + $0x228] sm:$0xff]
        %v779 = vld [vmem:[%s592 + $0x230] sm:$0xf]
        %v780 = vld [vmem:[%s592 + $0x234] sm:$0xff]
        %v781 = vld [vmem:[%s592 + $0x23c] sm:$0xf]
        %v782 = vld [vmem:[%s592 + $0x240] sm:$0xff]
        %v783 = vld [vmem:[%s592 + $0x248] sm:$0xf]
        %v784 = vld [vmem:[%s592 + $0x24c] sm:$0xff]
        %v785 = vld [vmem:[%s592 + $0x254] sm:$0xf]
        %v786 = vld [vmem:[%s592 + $0x258] sm:$0xff]
        %v787 = vld [vmem:[%s592 + $0x260] sm:$0xf]
        %v788 = vld [vmem:[%s592 + $0x264] sm:$0xff]
        %v789 = vld [vmem:[%s592 + $0x26c] sm:$0xf]
        %v790 = vld [vmem:[%s592 + $0x270] sm:$0xff]
        %v791 = vld [vmem:[%s592 + $0x278] sm:$0xf]
        %v792 = vld [vmem:[%s592 + $0x27c] sm:$0xff]
        %v793 = vld [vmem:[%s592 + $0x284] sm:$0xf]
        %v794 = vld [vmem:[%s592 + $0x288] sm:$0xff]
        %v795 = vld [vmem:[%s592 + $0x290] sm:$0xf]
        %v796 = vld [vmem:[%s592 + $0x294] sm:$0xff]
        %v797 = vld [vmem:[%s592 + $0x29c] sm:$0xf]
        %v798 = vld [vmem:[%s592 + $0x2a0] sm:$0xff]
        %v799 = vld [vmem:[%s592 + $0x2a8] sm:$0xf]
        %v800 = vld [vmem:[%s592 + $0x2ac] sm:$0xff]
        %v801 = vld [vmem:[%s592 + $0x2b4] sm:$0xf]
        %v802 = vld [vmem:[%s592 + $0x2b8] sm:$0xff]
        %v803 = vld [vmem:[%s592 + $0x2c0] sm:$0xf]
        %v804 = vld [vmem:[%s592 + $0x2c4] sm:$0xff]
        %v805 = vld [vmem:[%s592 + $0x2cc] sm:$0xf]
        %v806 = vld [vmem:[%s592 + $0x2d0] sm:$0xff]
        %v807 = vld [vmem:[%s592 + $0x2d8] sm:$0xf]
        %v808 = vld [vmem:[%s592 + $0x2dc] sm:$0xff]
        %v809 = vld [vmem:[%s592 + $0x2e4] sm:$0xf]
        %v810 = vld [vmem:[%s592 + $0x2e8] sm:$0xff]
        %v811 = vld [vmem:[%s592 + $0x2f0] sm:$0xf]
        %v812 = vld [vmem:[%s592 + $0x2f4] sm:$0xff]
        %v813 = vld [vmem:[%s592 + $0x2fc] sm:$0xf]
        %v814 = vld [vmem:[%s592 + $0x300] sm:$0xff]
        %v815 = vld [vmem:[%s592 + $0x308] sm:$0xf]
        %v816 = vld [vmem:[%s592 + $0x30c] sm:$0xff]
        %v817 = vld [vmem:[%s592 + $0x314] sm:$0xf]
        %v818 = vld [vmem:[%s592 + $0x318] sm:$0xff]
        %v819 = vld [vmem:[%s592 + $0x320] sm:$0xf]
        %v820 = vld [vmem:[%s592 + $0x324] sm:$0xff]
        %v821 = vld [vmem:[%s592 + $0x32c] sm:$0xf]
        %v822 = vld [vmem:[%s592 + $0x330] sm:$0xff]
        %v823 = vld [vmem:[%s592 + $0x338] sm:$0xf]
        %v824 = vld [vmem:[%s592 + $0x33c] sm:$0xff]
        %v825 = vld [vmem:[%s592 + $0x344] sm:$0xf]
        %v826 = vld [vmem:[%s592 + $0x348] sm:$0xff]
        %v827 = vld [vmem:[%s592 + $0x350] sm:$0xf]
        %v828 = vld [vmem:[%s592 + $0x354] sm:$0xff]
        %v829 = vld [vmem:[%s592 + $0x35c] sm:$0xf]
        %v830 = vld [vmem:[%s592 + $0x360] sm:$0xff]
        %v831 = vld [vmem:[%s592 + $0x368] sm:$0xf]
        %v832 = vld [vmem:[%s592 + $0x36c] sm:$0xff]
        %v833 = vld [vmem:[%s592 + $0x374] sm:$0xf]
        %v834 = vld [vmem:[%s592 + $0x378] sm:$0xff]
        %v835 = vld [vmem:[%s592 + $0x380] sm:$0xf]
        %v836 = vld [vmem:[%s592 + $0x384] sm:$0xff]
        %v837 = vld [vmem:[%s592 + $0x38c] sm:$0xf]
        %v838 = vld [vmem:[%s592 + $0x390] sm:$0xff]
        %v839 = vld [vmem:[%s592 + $0x398] sm:$0xf]
        %v840 = vld [vmem:[%s592 + $0x39c] sm:$0xff]
        %v841 = vld [vmem:[%s592 + $0x3a4] sm:$0xf]
        %v842 = vld [vmem:[%s592 + $0x3a8] sm:$0xff]
        %v843 = vld [vmem:[%s592 + $0x3b0] sm:$0xf]
        %v844 = vld [vmem:[%s592 + $0x3b4] sm:$0xff]
        %v845 = vld [vmem:[%s592 + $0x3bc] sm:$0xf]
        %v846 = vld [vmem:[%s592 + $0x3c0] sm:$0xff]
        %v847 = vld [vmem:[%s592 + $0x3c8] sm:$0xf]
        %v848 = vld [vmem:[%s592 + $0x3cc] sm:$0xff]
        %v849 = vld [vmem:[%s592 + $0x3d4] sm:$0xf]
        %v850 = vld [vmem:[%s592 + $0x3d8] sm:$0xff]
        %v851 = vld [vmem:[%s592 + $0x3e0] sm:$0xf]
        %v852 = vld [vmem:[%s592 + $0x3e4] sm:$0xff]
        %v853 = vld [vmem:[%s592 + $0x3ec] sm:$0xf]
        %v854 = vld [vmem:[%s592 + $0x3f0] sm:$0xff]
        %v855 = vld [vmem:[%s592 + $0x3f8] sm:$0xf]
        %v856 = vld [vmem:[%s592 + $0x3fc] sm:$0xff]
        %v857 = vld [vmem:[%s592 + $0x404] sm:$0xf]
        %v858 = vld [vmem:[%s592 + $0x408] sm:$0xff]
        %v859 = vld [vmem:[%s592 + $0x410] sm:$0xf]
        %v860 = vld [vmem:[%s592 + $0x414] sm:$0xff]
        %v861 = vld [vmem:[%s592 + $0x41c] sm:$0xf]
        %v862 = vld [vmem:[%s592 + $0x420] sm:$0xff]
        %v863 = vld [vmem:[%s592 + $0x428] sm:$0xf]
        %v864 = vld [vmem:[%s592 + $0x42c] sm:$0xff]
        %v865 = vld [vmem:[%s592 + $0x434] sm:$0xf]
        %v866 = vld [vmem:[%s592 + $0x438] sm:$0xff]
        %v867 = vld [vmem:[%s592 + $0x440] sm:$0xf]
        %v868 = vld [vmem:[%s592 + $0x444] sm:$0xff]
        %v869 = vld [vmem:[%s592 + $0x44c] sm:$0xf]
        %v870 = vld [vmem:[%s592 + $0x450] sm:$0xff]
        %v871 = vld [vmem:[%s592 + $0x458] sm:$0xf]
        %v872 = vld [vmem:[%s592 + $0x45c] sm:$0xff]
        %v873 = vld [vmem:[%s592 + $0x464] sm:$0xf]
        %v874 = vld [vmem:[%s592 + $0x468] sm:$0xff]
        %v875 = vld [vmem:[%s592 + $0x470] sm:$0xf]
        %v876 = vld [vmem:[%s592 + $0x474] sm:$0xff]
        %v877 = vld [vmem:[%s592 + $0x47c] sm:$0xf]
        %v878 = vld [vmem:[%s633] sm:$0x7]
        %v880 = vlaneseq
        %v881 = vshrl.u32 %v880, 7
        %v882 = vsub.s32 0, %v881
        %v883 = vrot.slane %v878, %v882
        %v884 = vlaneseq
        %v885 = vshrl.u32 %v884, 7
        %v886 = vsub.s32 1, %v885
        %v887 = vrot.slane %v878, %v886
        %v888 = vlaneseq
        %v889 = vshrl.u32 %v888, 7
        %v890 = vsub.s32 2, %v889
        %v891 = vrot.slane %v878, %v890
        %v943 = vunpack.c.l.b16 %v638
        %v944 = vunpack.c.h.b16 %v638
        %v945 = vunpack.c.l.b16 %v639
        %v946 = vunpack.c.h.b16 %v639
        %v947 = vunpack.c.l.b16 %v640
        %v948 = vunpack.c.h.b16 %v640
        %v949 = vunpack.c.l.b16 %v641
        %v950 = vunpack.c.h.b16 %v641
        %v951 = vunpack.c.l.b16 %v642
        %v952 = vunpack.c.h.b16 %v642
        %v953 = vunpack.c.l.b16 %v643
        %v954 = vunpack.c.h.b16 %v643
        %v955 = vunpack.c.l.b16 %v644
        %v956 = vunpack.c.h.b16 %v644
        %v957 = vunpack.c.l.b16 %v645
        %v958 = vunpack.c.h.b16 %v645
        %v959 = vunpack.c.l.b16 %v646
        %v960 = vunpack.c.h.b16 %v646
        %v961 = vunpack.c.l.b16 %v647
        %v962 = vunpack.c.h.b16 %v647
        %v963 = vunpack.c.l.b16 %v648
        %v964 = vunpack.c.h.b16 %v648
        %v965 = vunpack.c.l.b16 %v649
        %v966 = vunpack.c.h.b16 %v649
        %v967 = vunpack.c.l.b16 %v650
        %v968 = vunpack.c.h.b16 %v650
        %v969 = vunpack.c.l.b16 %v651
        %v970 = vunpack.c.h.b16 %v651
        %v971 = vunpack.c.l.b16 %v652
        %v972 = vunpack.c.h.b16 %v652
        %v973 = vunpack.c.l.b16 %v653
        %v974 = vunpack.c.h.b16 %v653
        %v975 = vunpack.c.l.b16 %v654
        %v976 = vunpack.c.h.b16 %v654
        %v977 = vunpack.c.l.b16 %v655
        %v978 = vunpack.c.h.b16 %v655
        %v979 = vunpack.c.l.b16 %v656
        %v980 = vunpack.c.h.b16 %v656
        %v981 = vunpack.c.l.b16 %v657
        %v982 = vunpack.c.h.b16 %v657
        %v983 = vunpack.c.l.b16 %v658
        %v984 = vunpack.c.h.b16 %v658
        %v985 = vunpack.c.l.b16 %v659
        %v986 = vunpack.c.h.b16 %v659
        %v987 = vunpack.c.l.b16 %v660
        %v988 = vunpack.c.h.b16 %v660
        %v989 = vunpack.c.l.b16 %v661
        %v990 = vunpack.c.h.b16 %v661
        %v991 = vunpack.c.l.b16 %v662
        %v992 = vunpack.c.h.b16 %v662
        %v993 = vunpack.c.l.b16 %v663
        %v994 = vunpack.c.h.b16 %v663
        %v995 = vunpack.c.l.b16 %v664
        %v996 = vunpack.c.h.b16 %v664
        %v997 = vunpack.c.l.b16 %v665
        %v998 = vunpack.c.h.b16 %v665
        %v999 = vunpack.c.l.b16 %v666
        %v1000 = vunpack.c.h.b16 %v666
        %v1001 = vunpack.c.l.b16 %v667
        %v1002 = vunpack.c.h.b16 %v667
        %v1003 = vunpack.c.l.b16 %v668
        %v1004 = vunpack.c.h.b16 %v668
        %v1005 = vunpack.c.l.b16 %v669
        %v1006 = vunpack.c.h.b16 %v669
        %v1007 = vunpack.c.l.b16 %v670
        %v1008 = vunpack.c.h.b16 %v670
        %v1009 = vunpack.c.l.b16 %v671
        %v1010 = vunpack.c.h.b16 %v671
        %v1011 = vunpack.c.l.b16 %v672
        %v1012 = vunpack.c.h.b16 %v672
        %v1013 = vunpack.c.l.b16 %v673
        %v1014 = vunpack.c.h.b16 %v673
        %v1015 = vunpack.c.l.b16 %v674
        %v1016 = vunpack.c.h.b16 %v674
        %v1017 = vunpack.c.l.b16 %v675
        %v1018 = vunpack.c.h.b16 %v675
        %v1019 = vunpack.c.l.b16 %v676
        %v1020 = vunpack.c.h.b16 %v676
        %v1021 = vunpack.c.l.b16 %v677
        %v1022 = vunpack.c.h.b16 %v677
        %v1023 = vunpack.c.l.b16 %v678
        %v1024 = vunpack.c.h.b16 %v678
        %v1025 = vunpack.c.l.b16 %v679
        %v1026 = vunpack.c.h.b16 %v679
        %v1027 = vunpack.c.l.b16 %v680
        %v1028 = vunpack.c.h.b16 %v680
        %v1029 = vunpack.c.l.b16 %v681
        %v1030 = vunpack.c.h.b16 %v681
        %v1031 = vunpack.c.l.b16 %v682
        %v1032 = vunpack.c.h.b16 %v682
        %v1033 = vunpack.c.l.b16 %v683
        %v1034 = vunpack.c.h.b16 %v683
        %v1035 = vunpack.c.l.b16 %v684
        %v1036 = vunpack.c.h.b16 %v684
        %v1037 = vunpack.c.l.b16 %v685
        %v1038 = vunpack.c.h.b16 %v685
        %v1039 = vpack.c.b16 %v949, %v943
        %v1040 = vpack.c.b16 %v950, %v944
        %v1041 = vpack.c.b16 %v951, %v945
        %v1042 = vpack.c.b16 %v952, %v946
        %v1043 = vpack.c.b16 %v953, %v947
        %v1044 = vpack.c.b16 %v954, %v948
        %v1045 = vpack.c.b16 %v961, %v955
        %v1046 = vpack.c.b16 %v962, %v956
        %v1047 = vpack.c.b16 %v963, %v957
        %v1048 = vpack.c.b16 %v964, %v958
        %v1049 = vpack.c.b16 %v965, %v959
        %v1050 = vpack.c.b16 %v966, %v960
        %v1051 = vpack.c.b16 %v973, %v967
        %v1052 = vpack.c.b16 %v974, %v968
        %v1053 = vpack.c.b16 %v975, %v969
        %v1054 = vpack.c.b16 %v976, %v970
        %v1055 = vpack.c.b16 %v977, %v971
        %v1056 = vpack.c.b16 %v978, %v972
        %v1057 = vpack.c.b16 %v985, %v979
        %v1058 = vpack.c.b16 %v986, %v980
        %v1059 = vpack.c.b16 %v987, %v981
        %v1060 = vpack.c.b16 %v988, %v982
        %v1061 = vpack.c.b16 %v989, %v983
        %v1062 = vpack.c.b16 %v990, %v984
        %v1063 = vpack.c.b16 %v997, %v991
        %v1064 = vpack.c.b16 %v998, %v992
        %v1065 = vpack.c.b16 %v999, %v993
        %v1066 = vpack.c.b16 %v1000, %v994
        %v1067 = vpack.c.b16 %v1001, %v995
        %v1068 = vpack.c.b16 %v1002, %v996
        %v1069 = vpack.c.b16 %v1009, %v1003
        %v1070 = vpack.c.b16 %v1010, %v1004
        %v1071 = vpack.c.b16 %v1011, %v1005
        %v1072 = vpack.c.b16 %v1012, %v1006
        %v1073 = vpack.c.b16 %v1013, %v1007
        %v1074 = vpack.c.b16 %v1014, %v1008
        %v1075 = vpack.c.b16 %v1021, %v1015
        %v1076 = vpack.c.b16 %v1022, %v1016
        %v1077 = vpack.c.b16 %v1023, %v1017
        %v1078 = vpack.c.b16 %v1024, %v1018
        %v1079 = vpack.c.b16 %v1025, %v1019
        %v1080 = vpack.c.b16 %v1026, %v1020
        %v1081 = vpack.c.b16 %v1033, %v1027
        %v1082 = vpack.c.b16 %v1034, %v1028
        %v1083 = vpack.c.b16 %v1035, %v1029
        %v1084 = vpack.c.b16 %v1036, %v1030
        %v1085 = vpack.c.b16 %v1037, %v1031
        %v1086 = vpack.c.b16 %v1038, %v1032
        %v1327 = vunpack.c.l.b16 %v686
        %v1328 = vunpack.c.h.b16 %v686
        %v1329 = vunpack.c.l.b16 %v687
        %v1330 = vunpack.c.l.b16 %v688
        %v1331 = vunpack.c.h.b16 %v688
        %v1332 = vunpack.c.l.b16 %v689
        %v1333 = vunpack.c.l.b16 %v690
        %v1334 = vunpack.c.h.b16 %v690
        %v1335 = vunpack.c.l.b16 %v691
        %v1336 = vunpack.c.l.b16 %v692
        %v1337 = vunpack.c.h.b16 %v692
        %v1338 = vunpack.c.l.b16 %v693
        %v1339 = vunpack.c.l.b16 %v694
        %v1340 = vunpack.c.h.b16 %v694
        %v1341 = vunpack.c.l.b16 %v695
        %v1342 = vunpack.c.l.b16 %v696
        %v1343 = vunpack.c.h.b16 %v696
        %v1344 = vunpack.c.l.b16 %v697
        %v1345 = vunpack.c.l.b16 %v698
        %v1346 = vunpack.c.h.b16 %v698
        %v1347 = vunpack.c.l.b16 %v699
        %v1348 = vunpack.c.l.b16 %v700
        %v1349 = vunpack.c.h.b16 %v700
        %v1350 = vunpack.c.l.b16 %v701
        %v1351 = vunpack.c.l.b16 %v702
        %v1352 = vunpack.c.h.b16 %v702
        %v1353 = vunpack.c.l.b16 %v703
        %v1354 = vunpack.c.l.b16 %v704
        %v1355 = vunpack.c.h.b16 %v704
        %v1356 = vunpack.c.l.b16 %v705
        %v1357 = vunpack.c.l.b16 %v706
        %v1358 = vunpack.c.h.b16 %v706
        %v1359 = vunpack.c.l.b16 %v707
        %v1360 = vunpack.c.l.b16 %v708
        %v1361 = vunpack.c.h.b16 %v708
        %v1362 = vunpack.c.l.b16 %v709
        %v1363 = vunpack.c.l.b16 %v710
        %v1364 = vunpack.c.h.b16 %v710
        %v1365 = vunpack.c.l.b16 %v711
        %v1366 = vunpack.c.l.b16 %v712
        %v1367 = vunpack.c.h.b16 %v712
        %v1368 = vunpack.c.l.b16 %v713
        %v1369 = vunpack.c.l.b16 %v714
        %v1370 = vunpack.c.h.b16 %v714
        %v1371 = vunpack.c.l.b16 %v715
        %v1372 = vunpack.c.l.b16 %v716
        %v1373 = vunpack.c.h.b16 %v716
        %v1374 = vunpack.c.l.b16 %v717
        %v1375 = vunpack.c.l.b16 %v718
        %v1376 = vunpack.c.h.b16 %v718
        %v1377 = vunpack.c.l.b16 %v719
        %v1378 = vunpack.c.l.b16 %v720
        %v1379 = vunpack.c.h.b16 %v720
        %v1380 = vunpack.c.l.b16 %v721
        %v1381 = vunpack.c.l.b16 %v722
        %v1382 = vunpack.c.h.b16 %v722
        %v1383 = vunpack.c.l.b16 %v723
        %v1384 = vunpack.c.l.b16 %v724
        %v1385 = vunpack.c.h.b16 %v724
        %v1386 = vunpack.c.l.b16 %v725
        %v1387 = vunpack.c.l.b16 %v726
        %v1388 = vunpack.c.h.b16 %v726
        %v1389 = vunpack.c.l.b16 %v727
        %v1390 = vunpack.c.l.b16 %v728
        %v1391 = vunpack.c.h.b16 %v728
        %v1392 = vunpack.c.l.b16 %v729
        %v1393 = vunpack.c.l.b16 %v730
        %v1394 = vunpack.c.h.b16 %v730
        %v1395 = vunpack.c.l.b16 %v731
        %v1396 = vunpack.c.l.b16 %v732
        %v1397 = vunpack.c.h.b16 %v732
        %v1398 = vunpack.c.l.b16 %v733
        %v1399 = vunpack.c.l.b16 %v734
        %v1400 = vunpack.c.h.b16 %v734
        %v1401 = vunpack.c.l.b16 %v735
        %v1402 = vunpack.c.l.b16 %v736
        %v1403 = vunpack.c.h.b16 %v736
        %v1404 = vunpack.c.l.b16 %v737
        %v1405 = vunpack.c.l.b16 %v738
        %v1406 = vunpack.c.h.b16 %v738
        %v1407 = vunpack.c.l.b16 %v739
        %v1408 = vunpack.c.l.b16 %v740
        %v1409 = vunpack.c.h.b16 %v740
        %v1410 = vunpack.c.l.b16 %v741
        %v1411 = vunpack.c.l.b16 %v742
        %v1412 = vunpack.c.h.b16 %v742
        %v1413 = vunpack.c.l.b16 %v743
        %v1414 = vunpack.c.l.b16 %v744
        %v1415 = vunpack.c.h.b16 %v744
        %v1416 = vunpack.c.l.b16 %v745
        %v1417 = vunpack.c.l.b16 %v746
        %v1418 = vunpack.c.h.b16 %v746
        %v1419 = vunpack.c.l.b16 %v747
        %v1420 = vunpack.c.l.b16 %v748
        %v1421 = vunpack.c.h.b16 %v748
        %v1422 = vunpack.c.l.b16 %v749
        %v1423 = vunpack.c.l.b16 %v750
        %v1424 = vunpack.c.h.b16 %v750
        %v1425 = vunpack.c.l.b16 %v751
        %v1426 = vunpack.c.l.b16 %v752
        %v1427 = vunpack.c.h.b16 %v752
        %v1428 = vunpack.c.l.b16 %v753
        %v1429 = vunpack.c.l.b16 %v754
        %v1430 = vunpack.c.h.b16 %v754
        %v1431 = vunpack.c.l.b16 %v755
        %v1432 = vunpack.c.l.b16 %v756
        %v1433 = vunpack.c.h.b16 %v756
        %v1434 = vunpack.c.l.b16 %v757
        %v1435 = vunpack.c.l.b16 %v758
        %v1436 = vunpack.c.h.b16 %v758
        %v1437 = vunpack.c.l.b16 %v759
        %v1438 = vunpack.c.l.b16 %v760
        %v1439 = vunpack.c.h.b16 %v760
        %v1440 = vunpack.c.l.b16 %v761
        %v1441 = vunpack.c.l.b16 %v762
        %v1442 = vunpack.c.h.b16 %v762
        %v1443 = vunpack.c.l.b16 %v763
        %v1444 = vunpack.c.l.b16 %v764
        %v1445 = vunpack.c.h.b16 %v764
        %v1446 = vunpack.c.l.b16 %v765
        %v1447 = vunpack.c.l.b16 %v766
        %v1448 = vunpack.c.h.b16 %v766
        %v1449 = vunpack.c.l.b16 %v767
        %v1450 = vunpack.c.l.b16 %v768
        %v1451 = vunpack.c.h.b16 %v768
        %v1452 = vunpack.c.l.b16 %v769
        %v1453 = vunpack.c.l.b16 %v770
        %v1454 = vunpack.c.h.b16 %v770
        %v1455 = vunpack.c.l.b16 %v771
        %v1456 = vunpack.c.l.b16 %v772
        %v1457 = vunpack.c.h.b16 %v772
        %v1458 = vunpack.c.l.b16 %v773
        %v1459 = vunpack.c.l.b16 %v774
        %v1460 = vunpack.c.h.b16 %v774
        %v1461 = vunpack.c.l.b16 %v775
        %v1462 = vunpack.c.l.b16 %v776
        %v1463 = vunpack.c.h.b16 %v776
        %v1464 = vunpack.c.l.b16 %v777
        %v1465 = vunpack.c.l.b16 %v778
        %v1466 = vunpack.c.h.b16 %v778
        %v1467 = vunpack.c.l.b16 %v779
        %v1468 = vunpack.c.l.b16 %v780
        %v1469 = vunpack.c.h.b16 %v780
        %v1470 = vunpack.c.l.b16 %v781
        %v1471 = vunpack.c.l.b16 %v782
        %v1472 = vunpack.c.h.b16 %v782
        %v1473 = vunpack.c.l.b16 %v783
        %v1474 = vunpack.c.l.b16 %v784
        %v1475 = vunpack.c.h.b16 %v784
        %v1476 = vunpack.c.l.b16 %v785
        %v1477 = vunpack.c.l.b16 %v786
        %v1478 = vunpack.c.h.b16 %v786
        %v1479 = vunpack.c.l.b16 %v787
        %v1480 = vunpack.c.l.b16 %v788
        %v1481 = vunpack.c.h.b16 %v788
        %v1482 = vunpack.c.l.b16 %v789
        %v1483 = vunpack.c.l.b16 %v790
        %v1484 = vunpack.c.h.b16 %v790
        %v1485 = vunpack.c.l.b16 %v791
        %v1486 = vunpack.c.l.b16 %v792
        %v1487 = vunpack.c.h.b16 %v792
        %v1488 = vunpack.c.l.b16 %v793
        %v1489 = vunpack.c.l.b16 %v794
        %v1490 = vunpack.c.h.b16 %v794
        %v1491 = vunpack.c.l.b16 %v795
        %v1492 = vunpack.c.l.b16 %v796
        %v1493 = vunpack.c.h.b16 %v796
        %v1494 = vunpack.c.l.b16 %v797
        %v1495 = vunpack.c.l.b16 %v798
        %v1496 = vunpack.c.h.b16 %v798
        %v1497 = vunpack.c.l.b16 %v799
        %v1498 = vunpack.c.l.b16 %v800
        %v1499 = vunpack.c.h.b16 %v800
        %v1500 = vunpack.c.l.b16 %v801
        %v1501 = vunpack.c.l.b16 %v802
        %v1502 = vunpack.c.h.b16 %v802
        %v1503 = vunpack.c.l.b16 %v803
        %v1504 = vunpack.c.l.b16 %v804
        %v1505 = vunpack.c.h.b16 %v804
        %v1506 = vunpack.c.l.b16 %v805
        %v1507 = vunpack.c.l.b16 %v806
        %v1508 = vunpack.c.h.b16 %v806
        %v1509 = vunpack.c.l.b16 %v807
        %v1510 = vunpack.c.l.b16 %v808
        %v1511 = vunpack.c.h.b16 %v808
        %v1512 = vunpack.c.l.b16 %v809
        %v1513 = vunpack.c.l.b16 %v810
        %v1514 = vunpack.c.h.b16 %v810
        %v1515 = vunpack.c.l.b16 %v811
        %v1516 = vunpack.c.l.b16 %v812
        %v1517 = vunpack.c.h.b16 %v812
        %v1518 = vunpack.c.l.b16 %v813
        %v1519 = vunpack.c.l.b16 %v814
        %v1520 = vunpack.c.h.b16 %v814
        %v1521 = vunpack.c.l.b16 %v815
        %v1522 = vunpack.c.l.b16 %v816
        %v1523 = vunpack.c.h.b16 %v816
        %v1524 = vunpack.c.l.b16 %v817
        %v1525 = vunpack.c.l.b16 %v818
        %v1526 = vunpack.c.h.b16 %v818
        %v1527 = vunpack.c.l.b16 %v819
        %v1528 = vunpack.c.l.b16 %v820
        %v1529 = vunpack.c.h.b16 %v820
        %v1530 = vunpack.c.l.b16 %v821
        %v1531 = vunpack.c.l.b16 %v822
        %v1532 = vunpack.c.h.b16 %v822
        %v1533 = vunpack.c.l.b16 %v823
        %v1534 = vunpack.c.l.b16 %v824
        %v1535 = vunpack.c.h.b16 %v824
        %v1536 = vunpack.c.l.b16 %v825
        %v1537 = vunpack.c.l.b16 %v826
        %v1538 = vunpack.c.h.b16 %v826
        %v1539 = vunpack.c.l.b16 %v827
        %v1540 = vunpack.c.l.b16 %v828
        %v1541 = vunpack.c.h.b16 %v828
        %v1542 = vunpack.c.l.b16 %v829
        %v1543 = vunpack.c.l.b16 %v830
        %v1544 = vunpack.c.h.b16 %v830
        %v1545 = vunpack.c.l.b16 %v831
        %v1546 = vunpack.c.l.b16 %v832
        %v1547 = vunpack.c.h.b16 %v832
        %v1548 = vunpack.c.l.b16 %v833
        %v1549 = vunpack.c.l.b16 %v834
        %v1550 = vunpack.c.h.b16 %v834
        %v1551 = vunpack.c.l.b16 %v835
        %v1552 = vunpack.c.l.b16 %v836
        %v1553 = vunpack.c.h.b16 %v836
        %v1554 = vunpack.c.l.b16 %v837
        %v1555 = vunpack.c.l.b16 %v838
        %v1556 = vunpack.c.h.b16 %v838
        %v1557 = vunpack.c.l.b16 %v839
        %v1558 = vunpack.c.l.b16 %v840
        %v1559 = vunpack.c.h.b16 %v840
        %v1560 = vunpack.c.l.b16 %v841
        %v1561 = vunpack.c.l.b16 %v842
        %v1562 = vunpack.c.h.b16 %v842
        %v1563 = vunpack.c.l.b16 %v843
        %v1564 = vunpack.c.l.b16 %v844
        %v1565 = vunpack.c.h.b16 %v844
        %v1566 = vunpack.c.l.b16 %v845
        %v1567 = vunpack.c.l.b16 %v846
        %v1568 = vunpack.c.h.b16 %v846
        %v1569 = vunpack.c.l.b16 %v847
        %v1570 = vunpack.c.l.b16 %v848
        %v1571 = vunpack.c.h.b16 %v848
        %v1572 = vunpack.c.l.b16 %v849
        %v1573 = vunpack.c.l.b16 %v850
        %v1574 = vunpack.c.h.b16 %v850
        %v1575 = vunpack.c.l.b16 %v851
        %v1576 = vunpack.c.l.b16 %v852
        %v1577 = vunpack.c.h.b16 %v852
        %v1578 = vunpack.c.l.b16 %v853
        %v1579 = vunpack.c.l.b16 %v854
        %v1580 = vunpack.c.h.b16 %v854
        %v1581 = vunpack.c.l.b16 %v855
        %v1582 = vunpack.c.l.b16 %v856
        %v1583 = vunpack.c.h.b16 %v856
        %v1584 = vunpack.c.l.b16 %v857
        %v1585 = vunpack.c.l.b16 %v858
        %v1586 = vunpack.c.h.b16 %v858
        %v1587 = vunpack.c.l.b16 %v859
        %v1588 = vunpack.c.l.b16 %v860
        %v1589 = vunpack.c.h.b16 %v860
        %v1590 = vunpack.c.l.b16 %v861
        %v1591 = vunpack.c.l.b16 %v862
        %v1592 = vunpack.c.h.b16 %v862
        %v1593 = vunpack.c.l.b16 %v863
        %v1594 = vunpack.c.l.b16 %v864
        %v1595 = vunpack.c.h.b16 %v864
        %v1596 = vunpack.c.l.b16 %v865
        %v1597 = vunpack.c.l.b16 %v866
        %v1598 = vunpack.c.h.b16 %v866
        %v1599 = vunpack.c.l.b16 %v867
        %v1600 = vunpack.c.l.b16 %v868
        %v1601 = vunpack.c.h.b16 %v868
        %v1602 = vunpack.c.l.b16 %v869
        %v1603 = vunpack.c.l.b16 %v870
        %v1604 = vunpack.c.h.b16 %v870
        %v1605 = vunpack.c.l.b16 %v871
        %v1606 = vunpack.c.l.b16 %v872
        %v1607 = vunpack.c.h.b16 %v872
        %v1608 = vunpack.c.l.b16 %v873
        %v1609 = vunpack.c.l.b16 %v874
        %v1610 = vunpack.c.h.b16 %v874
        %v1611 = vunpack.c.l.b16 %v875
        %v1612 = vunpack.c.l.b16 %v876
        %v1613 = vunpack.c.h.b16 %v876
        %v1614 = vunpack.c.l.b16 %v877
        %v1615 = vpack.c.b16 %v1330, %v1327
        %v1616 = vpack.c.b16 %v1331, %v1328
        %v1617 = vpack.c.b16 %v1332, %v1329
        %v1618 = vpack.c.b16 %v1336, %v1333
        %v1619 = vpack.c.b16 %v1337, %v1334
        %v1620 = vpack.c.b16 %v1338, %v1335
        %v1621 = vpack.c.b16 %v1342, %v1339
        %v1622 = vpack.c.b16 %v1343, %v1340
        %v1623 = vpack.c.b16 %v1344, %v1341
        %v1624 = vpack.c.b16 %v1348, %v1345
        %v1625 = vpack.c.b16 %v1349, %v1346
        %v1626 = vpack.c.b16 %v1350, %v1347
        %v1627 = vpack.c.b16 %v1354, %v1351
        %v1628 = vpack.c.b16 %v1355, %v1352
        %v1629 = vpack.c.b16 %v1356, %v1353
        %v1630 = vpack.c.b16 %v1360, %v1357
        %v1631 = vpack.c.b16 %v1361, %v1358
        %v1632 = vpack.c.b16 %v1362, %v1359
        %v1633 = vpack.c.b16 %v1366, %v1363
        %v1634 = vpack.c.b16 %v1367, %v1364
        %v1635 = vpack.c.b16 %v1368, %v1365
        %v1636 = vpack.c.b16 %v1372, %v1369
        %v1637 = vpack.c.b16 %v1373, %v1370
        %v1638 = vpack.c.b16 %v1374, %v1371
        %v1639 = vpack.c.b16 %v1378, %v1375
        %v1640 = vpack.c.b16 %v1379, %v1376
        %v1641 = vpack.c.b16 %v1380, %v1377
        %v1642 = vpack.c.b16 %v1384, %v1381
        %v1643 = vpack.c.b16 %v1385, %v1382
        %v1644 = vpack.c.b16 %v1386, %v1383
        %v1645 = vpack.c.b16 %v1390, %v1387
        %v1646 = vpack.c.b16 %v1391, %v1388
        %v1647 = vpack.c.b16 %v1392, %v1389
        %v1648 = vpack.c.b16 %v1396, %v1393
        %v1649 = vpack.c.b16 %v1397, %v1394
        %v1650 = vpack.c.b16 %v1398, %v1395
        %v1651 = vpack.c.b16 %v1402, %v1399
        %v1652 = vpack.c.b16 %v1403, %v1400
        %v1653 = vpack.c.b16 %v1404, %v1401
        %v1654 = vpack.c.b16 %v1408, %v1405
        %v1655 = vpack.c.b16 %v1409, %v1406
        %v1656 = vpack.c.b16 %v1410, %v1407
        %v1657 = vpack.c.b16 %v1414, %v1411
        %v1658 = vpack.c.b16 %v1415, %v1412
        %v1659 = vpack.c.b16 %v1416, %v1413
        %v1660 = vpack.c.b16 %v1420, %v1417
        %v1661 = vpack.c.b16 %v1421, %v1418
        %v1662 = vpack.c.b16 %v1422, %v1419
        %v1663 = vpack.c.b16 %v1426, %v1423
        %v1664 = vpack.c.b16 %v1427, %v1424
        %v1665 = vpack.c.b16 %v1428, %v1425
        %v1666 = vpack.c.b16 %v1432, %v1429
        %v1667 = vpack.c.b16 %v1433, %v1430
        %v1668 = vpack.c.b16 %v1434, %v1431
        %v1669 = vpack.c.b16 %v1438, %v1435
        %v1670 = vpack.c.b16 %v1439, %v1436
        %v1671 = vpack.c.b16 %v1440, %v1437
        %v1672 = vpack.c.b16 %v1444, %v1441
        %v1673 = vpack.c.b16 %v1445, %v1442
        %v1674 = vpack.c.b16 %v1446, %v1443
        %v1675 = vpack.c.b16 %v1450, %v1447
        %v1676 = vpack.c.b16 %v1451, %v1448
        %v1677 = vpack.c.b16 %v1452, %v1449
        %v1678 = vpack.c.b16 %v1456, %v1453
        %v1679 = vpack.c.b16 %v1457, %v1454
        %v1680 = vpack.c.b16 %v1458, %v1455
        %v1681 = vpack.c.b16 %v1462, %v1459
        %v1682 = vpack.c.b16 %v1463, %v1460
        %v1683 = vpack.c.b16 %v1464, %v1461
        %v1684 = vpack.c.b16 %v1468, %v1465
        %v1685 = vpack.c.b16 %v1469, %v1466
        %v1686 = vpack.c.b16 %v1470, %v1467
        %v1687 = vpack.c.b16 %v1474, %v1471
        %v1688 = vpack.c.b16 %v1475, %v1472
        %v1689 = vpack.c.b16 %v1476, %v1473
        %v1690 = vpack.c.b16 %v1480, %v1477
        %v1691 = vpack.c.b16 %v1481, %v1478
        %v1692 = vpack.c.b16 %v1482, %v1479
        %v1693 = vpack.c.b16 %v1486, %v1483
        %v1694 = vpack.c.b16 %v1487, %v1484
        %v1695 = vpack.c.b16 %v1488, %v1485
        %v1696 = vpack.c.b16 %v1492, %v1489
        %v1697 = vpack.c.b16 %v1493, %v1490
        %v1698 = vpack.c.b16 %v1494, %v1491
        %v1699 = vpack.c.b16 %v1498, %v1495
        %v1700 = vpack.c.b16 %v1499, %v1496
        %v1701 = vpack.c.b16 %v1500, %v1497
        %v1702 = vpack.c.b16 %v1504, %v1501
        %v1703 = vpack.c.b16 %v1505, %v1502
        %v1704 = vpack.c.b16 %v1506, %v1503
        %v1705 = vpack.c.b16 %v1510, %v1507
        %v1706 = vpack.c.b16 %v1511, %v1508
        %v1707 = vpack.c.b16 %v1512, %v1509
        %v1708 = vpack.c.b16 %v1516, %v1513
        %v1709 = vpack.c.b16 %v1517, %v1514
        %v1710 = vpack.c.b16 %v1518, %v1515
        %v1711 = vpack.c.b16 %v1522, %v1519
        %v1712 = vpack.c.b16 %v1523, %v1520
        %v1713 = vpack.c.b16 %v1524, %v1521
        %v1714 = vpack.c.b16 %v1528, %v1525
        %v1715 = vpack.c.b16 %v1529, %v1526
        %v1716 = vpack.c.b16 %v1530, %v1527
        %v1717 = vpack.c.b16 %v1534, %v1531
        %v1718 = vpack.c.b16 %v1535, %v1532
        %v1719 = vpack.c.b16 %v1536, %v1533
        %v1720 = vpack.c.b16 %v1540, %v1537
        %v1721 = vpack.c.b16 %v1541, %v1538
        %v1722 = vpack.c.b16 %v1542, %v1539
        %v1723 = vpack.c.b16 %v1546, %v1543
        %v1724 = vpack.c.b16 %v1547, %v1544
        %v1725 = vpack.c.b16 %v1548, %v1545
        %v1726 = vpack.c.b16 %v1552, %v1549
        %v1727 = vpack.c.b16 %v1553, %v1550
        %v1728 = vpack.c.b16 %v1554, %v1551
        %v1729 = vpack.c.b16 %v1558, %v1555
        %v1730 = vpack.c.b16 %v1559, %v1556
        %v1731 = vpack.c.b16 %v1560, %v1557
        %v1732 = vpack.c.b16 %v1564, %v1561
        %v1733 = vpack.c.b16 %v1565, %v1562
        %v1734 = vpack.c.b16 %v1566, %v1563
        %v1735 = vpack.c.b16 %v1570, %v1567
        %v1736 = vpack.c.b16 %v1571, %v1568
        %v1737 = vpack.c.b16 %v1572, %v1569
        %v1738 = vpack.c.b16 %v1576, %v1573
        %v1739 = vpack.c.b16 %v1577, %v1574
        %v1740 = vpack.c.b16 %v1578, %v1575
        %v1741 = vpack.c.b16 %v1582, %v1579
        %v1742 = vpack.c.b16 %v1583, %v1580
        %v1743 = vpack.c.b16 %v1584, %v1581
        %v1744 = vpack.c.b16 %v1588, %v1585
        %v1745 = vpack.c.b16 %v1589, %v1586
        %v1746 = vpack.c.b16 %v1590, %v1587
        %v1747 = vpack.c.b16 %v1594, %v1591
        %v1748 = vpack.c.b16 %v1595, %v1592
        %v1749 = vpack.c.b16 %v1596, %v1593
        %v1750 = vpack.c.b16 %v1600, %v1597
        %v1751 = vpack.c.b16 %v1601, %v1598
        %v1752 = vpack.c.b16 %v1602, %v1599
        %v1753 = vpack.c.b16 %v1606, %v1603
        %v1754 = vpack.c.b16 %v1607, %v1604
        %v1755 = vpack.c.b16 %v1608, %v1605
        %v1756 = vpack.c.b16 %v1612, %v1609
        %v1757 = vpack.c.b16 %v1613, %v1610
        %v1758 = vpack.c.b16 %v1614, %v1611
        %1903 = vmatprep.subr.bf16.mxu0 %v1616
        %1904 = vmatpush1.bf16.msra.mxu0 %v1615
        %1905 = vmatprep.subr.bf16.mxu0 %v1619
        %1906 = vmatpush1.bf16.msra.mxu0 %v1618
        %1907 = vmatprep.subr.bf16.mxu0 %v1622
        %1908 = vmatpush1.bf16.msra.mxu0 %v1621
        %1909 = vmatprep.subr.bf16.mxu0 %v1625
        %1910 = vmatpush1.bf16.msra.mxu0 %v1624
        %1911 = vmatprep.subr.bf16.mxu0 %v1628
        %1912 = vmatpush1.bf16.msra.mxu0 %v1627
        %1913 = vmatprep.subr.bf16.mxu0 %v1631
        %1914 = vmatpush1.bf16.msra.mxu0 %v1630
        %1915 = vmatprep.subr.bf16.mxu0 %v1634
        %1916 = vmatpush1.bf16.msra.mxu0 %v1633
        %1917 = vmatprep.subr.bf16.mxu0 %v1637
        %1918 = vmatpush1.bf16.msra.mxu0 %v1636
        %1919 = vmatprep.subr.bf16.mxu0 %v1640
        %1920 = vmatpush1.bf16.msra.mxu0 %v1639
        %1921 = vmatprep.subr.bf16.mxu0 %v1643
        %1922 = vmatpush1.bf16.msra.mxu0 %v1642
        %1923 = vmatprep.subr.bf16.mxu0 %v1646
        %1924 = vmatpush1.bf16.msra.mxu0 %v1645
        %1925 = vmatprep.subr.bf16.mxu0 %v1649
        %1926 = vmatpush1.bf16.msra.mxu0 %v1648
        %1927 = vmatprep.subr.bf16.mxu0 %v1652
        %1928 = vmatpush1.bf16.msra.mxu0 %v1651
        %1929 = vmatprep.subr.bf16.mxu0 %v1655
        %1930 = vmatpush1.bf16.msra.mxu0 %v1654
        %1931 = vmatprep.subr.bf16.mxu0 %v1658
        %1932 = vmatpush1.bf16.msra.mxu0 %v1657
        %1933 = vmatprep.subr.bf16.mxu0 %v1661
        %1934 = vmatpush1.bf16.msra.mxu0 %v1660
        %1935 = vmatprep.mubr.bf16.mxu0 %v1040
        %1936 = vmatmul.mubr.bf16.gmra.mrb[0].mxu0 %v1039
        %v1937 = vpop.f32.mrb[0].mxu0
        %v1938 = vadd.f32 %v883, %v1937
        %v1939 = vpop.f32.mrb[0].mxu0
        %v1940 = vadd.f32 %v887, %v1939
        %v1941 = vpop.f32.mrb[0].mxu0
        %v1942 = vadd.f32 %v883, %v1941
        %v1943 = vpop.f32.mrb[0].mxu0
        %v1944 = vadd.f32 %v887, %v1943
        %1945 = vmatprep.mubr.bf16.mxu0 %v1046
        %1946 = vmatmul.mubr.bf16.gmra.mrb[0].mxu0 %v1045
        %v1947 = vpop.f32.mrb[0].mxu0
        %v1948 = vadd.f32 %v883, %v1947
        %v1949 = vpop.f32.mrb[0].mxu0
        %v1950 = vadd.f32 %v887, %v1949
        %v1951 = vpop.f32.mrb[0].mxu0
        %v1952 = vadd.f32 %v883, %v1951
        %v1953 = vpop.f32.mrb[0].mxu0
        %v1954 = vadd.f32 %v887, %v1953
        %1955 = vmatprep.mubr.bf16.mxu0 %v1052
        %1956 = vmatmul.mubr.bf16.gmra.mrb[0].mxu0 %v1051
        %v1957 = vpop.f32.mrb[0].mxu0
        %v1958 = vadd.f32 %v883, %v1957
        %v1959 = vpop.f32.mrb[0].mxu0
        %v1960 = vadd.f32 %v887, %v1959
        %v1961 = vpop.f32.mrb[0].mxu0
        %v1962 = vadd.f32 %v883, %v1961
        %v1963 = vpop.f32.mrb[0].mxu0
        %v1964 = vadd.f32 %v887, %v1963
        %1965 = vmatprep.mubr.bf16.mxu0 %v1058
        %1966 = vmatmul.mubr.bf16.gmra.mrb[0].mxu0 %v1057
        %v1967 = vpop.f32.mrb[0].mxu0
        %v1968 = vadd.f32 %v883, %v1967
        %v1969 = vpop.f32.mrb[0].mxu0
        %v1970 = vadd.f32 %v887, %v1969
        %v1971 = vpop.f32.mrb[0].mxu0
        %v1972 = vadd.f32 %v883, %v1971
        %v1973 = vpop.f32.mrb[0].mxu0
        %v1974 = vadd.f32 %v887, %v1973
        %1975 = vmatprep.mubr.bf16.mxu0 %v1064
        %1976 = vmatmul.mubr.bf16.gmra.mrb[0].mxu0 %v1063
        %v1977 = vpop.f32.mrb[0].mxu0
        %v1978 = vadd.f32 %v883, %v1977
        %v1979 = vpop.f32.mrb[0].mxu0
        %v1980 = vadd.f32 %v887, %v1979
        %v1981 = vpop.f32.mrb[0].mxu0
        %v1982 = vadd.f32 %v883, %v1981
        %v1983 = vpop.f32.mrb[0].mxu0
        %v1984 = vadd.f32 %v887, %v1983
        %1985 = vmatprep.mubr.bf16.mxu0 %v1070
        %1986 = vmatmul.mubr.bf16.gmra.mrb[0].mxu0 %v1069
        %v1987 = vpop.f32.mrb[0].mxu0
        %v1988 = vadd.f32 %v883, %v1987
        %v1989 = vpop.f32.mrb[0].mxu0
        %v1990 = vadd.f32 %v887, %v1989
        %v1991 = vpop.f32.mrb[0].mxu0
        %v1992 = vadd.f32 %v883, %v1991
        %v1993 = vpop.f32.mrb[0].mxu0
        %v1994 = vadd.f32 %v887, %v1993
        %1995 = vmatprep.mubr.bf16.mxu0 %v1076
        %1996 = vmatmul.mubr.bf16.gmra.mrb[0].mxu0 %v1075
        %v1997 = vpop.f32.mrb[0].mxu0
        %v1998 = vadd.f32 %v883, %v1997
        %v1999 = vpop.f32.mrb[0].mxu0
        %v2000 = vadd.f32 %v887, %v1999
        %v2001 = vpop.f32.mrb[0].mxu0
        %v2002 = vadd.f32 %v883, %v2001
        %v2003 = vpop.f32.mrb[0].mxu0
        %v2004 = vadd.f32 %v887, %v2003
        %2005 = vmatprep.mubr.bf16.mxu0 %v1082
        %2006 = vmatmul.mubr.bf16.gmra.mrb[0].mxu0 %v1081
        %v2007 = vpop.f32.mrb[0].mxu0
        %v2008 = vadd.f32 %v883, %v2007
        %v2009 = vpop.f32.mrb[0].mxu0
        %v2010 = vadd.f32 %v887, %v2009
        %v2011 = vpop.f32.mrb[0].mxu0
        %v2012 = vadd.f32 %v883, %v2011
        %v2013 = vpop.f32.mrb[0].mxu0
        %v2014 = vadd.f32 %v887, %v2013
        %2015 = vdwg.mxu0
        %2016 = vmatprep.subr.bf16.mxu0 %v1664
        %2017 = vmatpush1.bf16.msra.mxu0 %v1663
        %2018 = vmatprep.subr.bf16.mxu0 %v1667
        %2019 = vmatpush1.bf16.msra.mxu0 %v1666
        %2020 = vmatprep.subr.bf16.mxu0 %v1670
        %2021 = vmatpush1.bf16.msra.mxu0 %v1669
        %2022 = vmatprep.subr.bf16.mxu0 %v1673
        %2023 = vmatpush1.bf16.msra.mxu0 %v1672
        %2024 = vmatprep.subr.bf16.mxu0 %v1676
        %2025 = vmatpush1.bf16.msra.mxu0 %v1675
        %2026 = vmatprep.subr.bf16.mxu0 %v1679
        %2027 = vmatpush1.bf16.msra.mxu0 %v1678
        %2028 = vmatprep.subr.bf16.mxu0 %v1682
        %2029 = vmatpush1.bf16.msra.mxu0 %v1681
        %2030 = vmatprep.subr.bf16.mxu0 %v1685
        %2031 = vmatpush1.bf16.msra.mxu0 %v1684
        %2032 = vmatprep.subr.bf16.mxu0 %v1688
        %2033 = vmatpush1.bf16.msra.mxu0 %v1687
        %2034 = vmatprep.subr.bf16.mxu0 %v1691
        %2035 = vmatpush1.bf16.msra.mxu0 %v1690
        %2036 = vmatprep.subr.bf16.mxu0 %v1694
        %2037 = vmatpush1.bf16.msra.mxu0 %v1693
        %2038 = vmatprep.subr.bf16.mxu0 %v1697
        %2039 = vmatpush1.bf16.msra.mxu0 %v1696
        %2040 = vmatprep.subr.bf16.mxu0 %v1700
        %2041 = vmatpush1.bf16.msra.mxu0 %v1699
        %2042 = vmatprep.subr.bf16.mxu0 %v1703
        %2043 = vmatpush1.bf16.msra.mxu0 %v1702
        %2044 = vmatprep.subr.bf16.mxu0 %v1706
        %2045 = vmatpush1.bf16.msra.mxu0 %v1705
        %2046 = vmatprep.subr.bf16.mxu0 %v1709
        %2047 = vmatpush1.bf16.msra.mxu0 %v1708
        %2048 = vmatprep.mubr.bf16.mxu0 %v1042
        %2049 = vmatmul.mubr.bf16.gmra.mrb[0].mxu0 %v1041
        %v2050 = vpop.f32.mrb[0].mxu0
        %v2051 = vadd.f32 %v1938, %v2050
        %v2052 = vpop.f32.mrb[0].mxu0
        %v2053 = vadd.f32 %v1940, %v2052
        %v2054 = vpop.f32.mrb[0].mxu0
        %v2055 = vadd.f32 %v1942, %v2054
        %v2056 = vpop.f32.mrb[0].mxu0
        %v2057 = vadd.f32 %v1944, %v2056
        %2058 = vmatprep.mubr.bf16.mxu0 %v1048
        %2059 = vmatmul.mubr.bf16.gmra.mrb[0].mxu0 %v1047
        %v2060 = vpop.f32.mrb[0].mxu0
        %v2061 = vadd.f32 %v1948, %v2060
        %v2062 = vpop.f32.mrb[0].mxu0
        %v2063 = vadd.f32 %v1950, %v2062
        %v2064 = vpop.f32.mrb[0].mxu0
        %v2065 = vadd.f32 %v1952, %v2064
        %v2066 = vpop.f32.mrb[0].mxu0
        %v2067 = vadd.f32 %v1954, %v2066
        %2068 = vmatprep.mubr.bf16.mxu0 %v1054
        %2069 = vmatmul.mubr.bf16.gmra.mrb[0].mxu0 %v1053
        %v2070 = vpop.f32.mrb[0].mxu0
        %v2071 = vadd.f32 %v1958, %v2070
        %v2072 = vpop.f32.mrb[0].mxu0
        %v2073 = vadd.f32 %v1960, %v2072
        %v2074 = vpop.f32.mrb[0].mxu0
        %v2075 = vadd.f32 %v1962, %v2074
        %v2076 = vpop.f32.mrb[0].mxu0
        %v2077 = vadd.f32 %v1964, %v2076
        %2078 = vmatprep.mubr.bf16.mxu0 %v1060
        %2079 = vmatmul.mubr.bf16.gmra.mrb[0].mxu0 %v1059
        %v2080 = vpop.f32.mrb[0].mxu0
        %v2081 = vadd.f32 %v1968, %v2080
        %v2082 = vpop.f32.mrb[0].mxu0
        %v2083 = vadd.f32 %v1970, %v2082
        %v2084 = vpop.f32.mrb[0].mxu0
        %v2085 = vadd.f32 %v1972, %v2084
        %v2086 = vpop.f32.mrb[0].mxu0
        %v2087 = vadd.f32 %v1974, %v2086
        %2088 = vmatprep.mubr.bf16.mxu0 %v1066
        %2089 = vmatmul.mubr.bf16.gmra.mrb[0].mxu0 %v1065
        %v2090 = vpop.f32.mrb[0].mxu0
        %v2091 = vadd.f32 %v1978, %v2090
        %v2092 = vpop.f32.mrb[0].mxu0
        %v2093 = vadd.f32 %v1980, %v2092
        %v2094 = vpop.f32.mrb[0].mxu0
        %v2095 = vadd.f32 %v1982, %v2094
        %v2096 = vpop.f32.mrb[0].mxu0
        %v2097 = vadd.f32 %v1984, %v2096
        %2098 = vmatprep.mubr.bf16.mxu0 %v1072
        %2099 = vmatmul.mubr.bf16.gmra.mrb[0].mxu0 %v1071
        %v2100 = vpop.f32.mrb[0].mxu0
        %v2101 = vadd.f32 %v1988, %v2100
        %v2102 = vpop.f32.mrb[0].mxu0
        %v2103 = vadd.f32 %v1990, %v2102
        %v2104 = vpop.f32.mrb[0].mxu0
        %v2105 = vadd.f32 %v1992, %v2104
        %v2106 = vpop.f32.mrb[0].mxu0
        %v2107 = vadd.f32 %v1994, %v2106
        %2108 = vmatprep.mubr.bf16.mxu0 %v1078
        %2109 = vmatmul.mubr.bf16.gmra.mrb[0].mxu0 %v1077
        %v2110 = vpop.f32.mrb[0].mxu0
        %v2111 = vadd.f32 %v1998, %v2110
        %v2112 = vpop.f32.mrb[0].mxu0
        %v2113 = vadd.f32 %v2000, %v2112
        %v2114 = vpop.f32.mrb[0].mxu0
        %v2115 = vadd.f32 %v2002, %v2114
        %v2116 = vpop.f32.mrb[0].mxu0
        %v2117 = vadd.f32 %v2004, %v2116
        %2118 = vmatprep.mubr.bf16.mxu0 %v1084
        %2119 = vmatmul.mubr.bf16.gmra.mrb[0].mxu0 %v1083
        %v2120 = vpop.f32.mrb[0].mxu0
        %v2121 = vadd.f32 %v2008, %v2120
        %v2122 = vpop.f32.mrb[0].mxu0
        %v2123 = vadd.f32 %v2010, %v2122
        %v2124 = vpop.f32.mrb[0].mxu0
        %v2125 = vadd.f32 %v2012, %v2124
        %v2126 = vpop.f32.mrb[0].mxu0
        %v2127 = vadd.f32 %v2014, %v2126
        %2128 = vdwg.mxu0
        %2129 = vmatprep.subr.bf16.mxu0 %v1712
        %2130 = vmatpush1.bf16.msra.mxu0 %v1711
        %2131 = vmatprep.subr.bf16.mxu0 %v1715
        %2132 = vmatpush1.bf16.msra.mxu0 %v1714
        %2133 = vmatprep.subr.bf16.mxu0 %v1718
        %2134 = vmatpush1.bf16.msra.mxu0 %v1717
        %2135 = vmatprep.subr.bf16.mxu0 %v1721
        %2136 = vmatpush1.bf16.msra.mxu0 %v1720
        %2137 = vmatprep.subr.bf16.mxu0 %v1724
        %2138 = vmatpush1.bf16.msra.mxu0 %v1723
        %2139 = vmatprep.subr.bf16.mxu0 %v1727
        %2140 = vmatpush1.bf16.msra.mxu0 %v1726
        %2141 = vmatprep.subr.bf16.mxu0 %v1730
        %2142 = vmatpush1.bf16.msra.mxu0 %v1729
        %2143 = vmatprep.subr.bf16.mxu0 %v1733
        %2144 = vmatpush1.bf16.msra.mxu0 %v1732
        %2145 = vmatprep.subr.bf16.mxu0 %v1736
        %2146 = vmatpush1.bf16.msra.mxu0 %v1735
        %2147 = vmatprep.subr.bf16.mxu0 %v1739
        %2148 = vmatpush1.bf16.msra.mxu0 %v1738
        %2149 = vmatprep.subr.bf16.mxu0 %v1742
        %2150 = vmatpush1.bf16.msra.mxu0 %v1741
        %2151 = vmatprep.subr.bf16.mxu0 %v1745
        %2152 = vmatpush1.bf16.msra.mxu0 %v1744
        %2153 = vmatprep.subr.bf16.mxu0 %v1748
        %2154 = vmatpush1.bf16.msra.mxu0 %v1747
        %2155 = vmatprep.subr.bf16.mxu0 %v1751
        %2156 = vmatpush1.bf16.msra.mxu0 %v1750
        %2157 = vmatprep.subr.bf16.mxu0 %v1754
        %2158 = vmatpush1.bf16.msra.mxu0 %v1753
        %2159 = vmatprep.subr.bf16.mxu0 %v1757
        %2160 = vmatpush1.bf16.msra.mxu0 %v1756
        %2161 = vmatprep.mubr.bf16.mxu0 %v1044
        %2162 = vmatmul.mubr.bf16.gmra.mrb[0].mxu0 %v1043
        %v2163 = vpop.f32.mrb[0].mxu0
        %v2164 = vadd.f32 %v2051, %v2163
        %v2165 = vpop.f32.mrb[0].mxu0
        %v2166 = vadd.f32 %v2053, %v2165
        %v2167 = vpop.f32.mrb[0].mxu0
        %v2168 = vadd.f32 %v2055, %v2167
        %v2169 = vpop.f32.mrb[0].mxu0
        %v2170 = vadd.f32 %v2057, %v2169
        %2171 = vmatprep.mubr.bf16.mxu0 %v1050
        %2172 = vmatmul.mubr.bf16.gmra.mrb[0].mxu0 %v1049
        %v2173 = vpop.f32.mrb[0].mxu0
        %v2174 = vadd.f32 %v2061, %v2173
        %v2175 = vpop.f32.mrb[0].mxu0
        %v2176 = vadd.f32 %v2063, %v2175
        %v2177 = vpop.f32.mrb[0].mxu0
        %v2178 = vadd.f32 %v2065, %v2177
        %v2179 = vpop.f32.mrb[0].mxu0
        %v2180 = vadd.f32 %v2067, %v2179
        %2181 = vmatprep.mubr.bf16.mxu0 %v1056
        %2182 = vmatmul.mubr.bf16.gmra.mrb[0].mxu0 %v1055
        %v2183 = vpop.f32.mrb[0].mxu0
        %v2184 = vadd.f32 %v2071, %v2183
        %v2185 = vpop.f32.mrb[0].mxu0
        %v2186 = vadd.f32 %v2073, %v2185
        %v2187 = vpop.f32.mrb[0].mxu0
        %v2188 = vadd.f32 %v2075, %v2187
        %v2189 = vpop.f32.mrb[0].mxu0
        %v2190 = vadd.f32 %v2077, %v2189
        %2191 = vmatprep.mubr.bf16.mxu0 %v1062
        %2192 = vmatmul.mubr.bf16.gmra.mrb[0].mxu0 %v1061
        %v2193 = vpop.f32.mrb[0].mxu0
        %v2194 = vadd.f32 %v2081, %v2193
        %v2195 = vpop.f32.mrb[0].mxu0
        %v2196 = vadd.f32 %v2083, %v2195
        %v2197 = vpop.f32.mrb[0].mxu0
        %v2198 = vadd.f32 %v2085, %v2197
        %v2199 = vpop.f32.mrb[0].mxu0
        %v2200 = vadd.f32 %v2087, %v2199
        %2201 = vmatprep.mubr.bf16.mxu0 %v1068
        %2202 = vmatmul.mubr.bf16.gmra.mrb[0].mxu0 %v1067
        %v2203 = vpop.f32.mrb[0].mxu0
        %v2204 = vadd.f32 %v2091, %v2203
        %v2205 = vpop.f32.mrb[0].mxu0
        %v2206 = vadd.f32 %v2093, %v2205
        %v2207 = vpop.f32.mrb[0].mxu0
        %v2208 = vadd.f32 %v2095, %v2207
        %v2209 = vpop.f32.mrb[0].mxu0
        %v2210 = vadd.f32 %v2097, %v2209
        %2211 = vmatprep.mubr.bf16.mxu0 %v1074
        %2212 = vmatmul.mubr.bf16.gmra.mrb[0].mxu0 %v1073
        %v2213 = vpop.f32.mrb[0].mxu0
        %v2214 = vadd.f32 %v2101, %v2213
        %v2215 = vpop.f32.mrb[0].mxu0
        %v2216 = vadd.f32 %v2103, %v2215
        %v2217 = vpop.f32.mrb[0].mxu0
        %v2218 = vadd.f32 %v2105, %v2217
        %v2219 = vpop.f32.mrb[0].mxu0
        %v2220 = vadd.f32 %v2107, %v2219
        %2221 = vmatprep.mubr.bf16.mxu0 %v1080
        %2222 = vmatmul.mubr.bf16.gmra.mrb[0].mxu0 %v1079
        %v2223 = vpop.f32.mrb[0].mxu0
        %v2224 = vadd.f32 %v2111, %v2223
        %v2225 = vpop.f32.mrb[0].mxu0
        %v2226 = vadd.f32 %v2113, %v2225
        %v2227 = vpop.f32.mrb[0].mxu0
        %v2228 = vadd.f32 %v2115, %v2227
        %v2229 = vpop.f32.mrb[0].mxu0
        %v2230 = vadd.f32 %v2117, %v2229
        %2231 = vmatprep.mubr.bf16.mxu0 %v1086
        %2232 = vmatmul.mubr.bf16.gmra.mrb[0].mxu0 %v1085
        %v2233 = vpop.f32.mrb[0].mxu0
        %v2234 = vadd.f32 %v2121, %v2233
        %v2235 = vpop.f32.mrb[0].mxu0
        %v2236 = vadd.f32 %v2123, %v2235
        %v2237 = vpop.f32.mrb[0].mxu0
        %v2238 = vadd.f32 %v2125, %v2237
        %v2239 = vpop.f32.mrb[0].mxu0
        %v2240 = vadd.f32 %v2127, %v2239
        %2241 = vdwg.mxu0
        %2242 = vmatprep.subr.bf16.mxu0 0
        %2243 = vmatpush1.bf16.msra.mxu0 %v1617
        %2244 = vmatprep.subr.bf16.mxu0 0
        %2245 = vmatpush1.bf16.msra.mxu0 %v1620
        %2246 = vmatprep.subr.bf16.mxu0 0
        %2247 = vmatpush1.bf16.msra.mxu0 %v1623
        %2248 = vmatprep.subr.bf16.mxu0 0
        %2249 = vmatpush1.bf16.msra.mxu0 %v1626
        %2250 = vmatprep.subr.bf16.mxu0 0
        %2251 = vmatpush1.bf16.msra.mxu0 %v1629
        %2252 = vmatprep.subr.bf16.mxu0 0
        %2253 = vmatpush1.bf16.msra.mxu0 %v1632
        %2254 = vmatprep.subr.bf16.mxu0 0
        %2255 = vmatpush1.bf16.msra.mxu0 %v1635
        %2256 = vmatprep.subr.bf16.mxu0 0
        %2257 = vmatpush1.bf16.msra.mxu0 %v1638
        %2258 = vmatprep.subr.bf16.mxu0 0
        %2259 = vmatpush1.bf16.msra.mxu0 %v1641
        %2260 = vmatprep.subr.bf16.mxu0 0
        %2261 = vmatpush1.bf16.msra.mxu0 %v1644
        %2262 = vmatprep.subr.bf16.mxu0 0
        %2263 = vmatpush1.bf16.msra.mxu0 %v1647
        %2264 = vmatprep.subr.bf16.mxu0 0
        %2265 = vmatpush1.bf16.msra.mxu0 %v1650
        %2266 = vmatprep.subr.bf16.mxu0 0
        %2267 = vmatpush1.bf16.msra.mxu0 %v1653
        %2268 = vmatprep.subr.bf16.mxu0 0
        %2269 = vmatpush1.bf16.msra.mxu0 %v1656
        %2270 = vmatprep.subr.bf16.mxu0 0
        %2271 = vmatpush1.bf16.msra.mxu0 %v1659
        %2272 = vmatprep.subr.bf16.mxu0 0
        %2273 = vmatpush1.bf16.msra.mxu0 %v1662
        %2274 = vmatprep.mubr.bf16.mxu0 %v1040
        %2275 = vmatmul.mubr.bf16.gmra.mrb[0].mxu0 %v1039
        %v2276 = vpop.f32.mrb[0].mxu0
        %v2277 = vadd.f32 %v891, %v2276
        %v2278 = vpop.f32.mrb[0].mxu0
        %v2279 = vpop.f32.mrb[0].mxu0
        %v2280 = vadd.f32 %v891, %v2279
        %v2281 = vpop.f32.mrb[0].mxu0
        %2282 = vmatprep.mubr.bf16.mxu0 %v1046
        %2283 = vmatmul.mubr.bf16.gmra.mrb[0].mxu0 %v1045
        %v2284 = vpop.f32.mrb[0].mxu0
        %v2285 = vadd.f32 %v891, %v2284
        %v2286 = vpop.f32.mrb[0].mxu0
        %v2287 = vpop.f32.mrb[0].mxu0
        %v2288 = vadd.f32 %v891, %v2287
        %v2289 = vpop.f32.mrb[0].mxu0
        %2290 = vmatprep.mubr.bf16.mxu0 %v1052
        %2291 = vmatmul.mubr.bf16.gmra.mrb[0].mxu0 %v1051
        %v2292 = vpop.f32.mrb[0].mxu0
        %v2293 = vadd.f32 %v891, %v2292
        %v2294 = vpop.f32.mrb[0].mxu0
        %v2295 = vpop.f32.mrb[0].mxu0
        %v2296 = vadd.f32 %v891, %v2295
        %v2297 = vpop.f32.mrb[0].mxu0
        %2298 = vmatprep.mubr.bf16.mxu0 %v1058
        %2299 = vmatmul.mubr.bf16.gmra.mrb[0].mxu0 %v1057
        %v2300 = vpop.f32.mrb[0].mxu0
        %v2301 = vadd.f32 %v891, %v2300
        %v2302 = vpop.f32.mrb[0].mxu0
        %v2303 = vpop.f32.mrb[0].mxu0
        %v2304 = vadd.f32 %v891, %v2303
        %v2305 = vpop.f32.mrb[0].mxu0
        %2306 = vmatprep.mubr.bf16.mxu0 %v1064
        %2307 = vmatmul.mubr.bf16.gmra.mrb[0].mxu0 %v1063
        %v2308 = vpop.f32.mrb[0].mxu0
        %v2309 = vadd.f32 %v891, %v2308
        %v2310 = vpop.f32.mrb[0].mxu0
        %v2311 = vpop.f32.mrb[0].mxu0
        %v2312 = vadd.f32 %v891, %v2311
        %v2313 = vpop.f32.mrb[0].mxu0
        %2314 = vmatprep.mubr.bf16.mxu0 %v1070
        %2315 = vmatmul.mubr.bf16.gmra.mrb[0].mxu0 %v1069
        %v2316 = vpop.f32.mrb[0].mxu0
        %v2317 = vadd.f32 %v891, %v2316
        %v2318 = vpop.f32.mrb[0].mxu0
        %v2319 = vpop.f32.mrb[0].mxu0
        %v2320 = vadd.f32 %v891, %v2319
        %v2321 = vpop.f32.mrb[0].mxu0
        %2322 = vmatprep.mubr.bf16.mxu0 %v1076
        %2323 = vmatmul.mubr.bf16.gmra.mrb[0].mxu0 %v1075
        %v2324 = vpop.f32.mrb[0].mxu0
        %v2325 = vadd.f32 %v891, %v2324
        %v2326 = vpop.f32.mrb[0].mxu0
        %v2327 = vpop.f32.mrb[0].mxu0
        %v2328 = vadd.f32 %v891, %v2327
        %v2329 = vpop.f32.mrb[0].mxu0
        %2330 = vmatprep.mubr.bf16.mxu0 %v1082
        %2331 = vmatmul.mubr.bf16.gmra.mrb[0].mxu0 %v1081
        %v2332 = vpop.f32.mrb[0].mxu0
        %v2333 = vadd.f32 %v891, %v2332
        %v2334 = vpop.f32.mrb[0].mxu0
        %v2335 = vpop.f32.mrb[0].mxu0
        %v2336 = vadd.f32 %v891, %v2335
        %v2337 = vpop.f32.mrb[0].mxu0
        %2338 = vdwg.mxu0
        %2339 = vmatprep.subr.bf16.mxu0 0
        %2340 = vmatpush1.bf16.msra.mxu0 %v1665
        %2341 = vmatprep.subr.bf16.mxu0 0
        %2342 = vmatpush1.bf16.msra.mxu0 %v1668
        %2343 = vmatprep.subr.bf16.mxu0 0
        %2344 = vmatpush1.bf16.msra.mxu0 %v1671
        %2345 = vmatprep.subr.bf16.mxu0 0
        %2346 = vmatpush1.bf16.msra.mxu0 %v1674
        %2347 = vmatprep.subr.bf16.mxu0 0
        %2348 = vmatpush1.bf16.msra.mxu0 %v1677
        %2349 = vmatprep.subr.bf16.mxu0 0
        %2350 = vmatpush1.bf16.msra.mxu0 %v1680
        %2351 = vmatprep.subr.bf16.mxu0 0
        %2352 = vmatpush1.bf16.msra.mxu0 %v1683
        %2353 = vmatprep.subr.bf16.mxu0 0
        %2354 = vmatpush1.bf16.msra.mxu0 %v1686
        %2355 = vmatprep.subr.bf16.mxu0 0
        %2356 = vmatpush1.bf16.msra.mxu0 %v1689
        %2357 = vmatprep.subr.bf16.mxu0 0
        %2358 = vmatpush1.bf16.msra.mxu0 %v1692
        %2359 = vmatprep.subr.bf16.mxu0 0
        %2360 = vmatpush1.bf16.msra.mxu0 %v1695
        %2361 = vmatprep.subr.bf16.mxu0 0
        %2362 = vmatpush1.bf16.msra.mxu0 %v1698
        %2363 = vmatprep.subr.bf16.mxu0 0
        %2364 = vmatpush1.bf16.msra.mxu0 %v1701
        %2365 = vmatprep.subr.bf16.mxu0 0
        %2366 = vmatpush1.bf16.msra.mxu0 %v1704
        %2367 = vmatprep.subr.bf16.mxu0 0
        %2368 = vmatpush1.bf16.msra.mxu0 %v1707
        %2369 = vmatprep.subr.bf16.mxu0 0
        %2370 = vmatpush1.bf16.msra.mxu0 %v1710
        %2371 = vmatprep.mubr.bf16.mxu0 %v1042
        %2372 = vmatmul.mubr.bf16.gmra.mrb[0].mxu0 %v1041
        %v2373 = vpop.f32.mrb[0].mxu0
        %v2374 = vadd.f32 %v2277, %v2373
        %v2375 = vpop.f32.mrb[0].mxu0
        %v2376 = vpop.f32.mrb[0].mxu0
        %v2377 = vadd.f32 %v2280, %v2376
        %v2378 = vpop.f32.mrb[0].mxu0
        %2379 = vmatprep.mubr.bf16.mxu0 %v1048
        %2380 = vmatmul.mubr.bf16.gmra.mrb[0].mxu0 %v1047
        %v2381 = vpop.f32.mrb[0].mxu0
        %v2382 = vadd.f32 %v2285, %v2381
        %v2383 = vpop.f32.mrb[0].mxu0
        %v2384 = vpop.f32.mrb[0].mxu0
        %v2385 = vadd.f32 %v2288, %v2384
        %v2386 = vpop.f32.mrb[0].mxu0
        %2387 = vmatprep.mubr.bf16.mxu0 %v1054
        %2388 = vmatmul.mubr.bf16.gmra.mrb[0].mxu0 %v1053
        %v2389 = vpop.f32.mrb[0].mxu0
        %v2390 = vadd.f32 %v2293, %v2389
        %v2391 = vpop.f32.mrb[0].mxu0
        %v2392 = vpop.f32.mrb[0].mxu0
        %v2393 = vadd.f32 %v2296, %v2392
        %v2394 = vpop.f32.mrb[0].mxu0
        %2395 = vmatprep.mubr.bf16.mxu0 %v1060
        %2396 = vmatmul.mubr.bf16.gmra.mrb[0].mxu0 %v1059
        %v2397 = vpop.f32.mrb[0].mxu0
        %v2398 = vadd.f32 %v2301, %v2397
        %v2399 = vpop.f32.mrb[0].mxu0
        %v2400 = vpop.f32.mrb[0].mxu0
        %v2401 = vadd.f32 %v2304, %v2400
        %v2402 = vpop.f32.mrb[0].mxu0
        %2403 = vmatprep.mubr.bf16.mxu0 %v1066
        %2404 = vmatmul.mubr.bf16.gmra.mrb[0].mxu0 %v1065
        %v2405 = vpop.f32.mrb[0].mxu0
        %v2406 = vadd.f32 %v2309, %v2405
        %v2407 = vpop.f32.mrb[0].mxu0
        %v2408 = vpop.f32.mrb[0].mxu0
        %v2409 = vadd.f32 %v2312, %v2408
        %v2410 = vpop.f32.mrb[0].mxu0
        %2411 = vmatprep.mubr.bf16.mxu0 %v1072
        %2412 = vmatmul.mubr.bf16.gmra.mrb[0].mxu0 %v1071
        %v2413 = vpop.f32.mrb[0].mxu0
        %v2414 = vadd.f32 %v2317, %v2413
        %v2415 = vpop.f32.mrb[0].mxu0
        %v2416 = vpop.f32.mrb[0].mxu0
        %v2417 = vadd.f32 %v2320, %v2416
        %v2418 = vpop.f32.mrb[0].mxu0
        %2419 = vmatprep.mubr.bf16.mxu0 %v1078
        %2420 = vmatmul.mubr.bf16.gmra.mrb[0].mxu0 %v1077
        %v2421 = vpop.f32.mrb[0].mxu0
        %v2422 = vadd.f32 %v2325, %v2421
        %v2423 = vpop.f32.mrb[0].mxu0
        %v2424 = vpop.f32.mrb[0].mxu0
        %v2425 = vadd.f32 %v2328, %v2424
        %v2426 = vpop.f32.mrb[0].mxu0
        %2427 = vmatprep.mubr.bf16.mxu0 %v1084
        %2428 = vmatmul.mubr.bf16.gmra.mrb[0].mxu0 %v1083
        %v2429 = vpop.f32.mrb[0].mxu0
        %v2430 = vadd.f32 %v2333, %v2429
        %v2431 = vpop.f32.mrb[0].mxu0
        %v2432 = vpop.f32.mrb[0].mxu0
        %v2433 = vadd.f32 %v2336, %v2432
        %v2434 = vpop.f32.mrb[0].mxu0
        %2435 = vdwg.mxu0
        %2436 = vmatprep.subr.bf16.mxu0 0
        %2437 = vmatpush1.bf16.msra.mxu0 %v1713
        %2438 = vmatprep.subr.bf16.mxu0 0
        %2439 = vmatpush1.bf16.msra.mxu0 %v1716
        %2440 = vmatprep.subr.bf16.mxu0 0
        %2441 = vmatpush1.bf16.msra.mxu0 %v1719
        %2442 = vmatprep.subr.bf16.mxu0 0
        %2443 = vmatpush1.bf16.msra.mxu0 %v1722
        %2444 = vmatprep.subr.bf16.mxu0 0
        %2445 = vmatpush1.bf16.msra.mxu0 %v1725
        %2446 = vmatprep.subr.bf16.mxu0 0
        %2447 = vmatpush1.bf16.msra.mxu0 %v1728
        %2448 = vmatprep.subr.bf16.mxu0 0
        %2449 = vmatpush1.bf16.msra.mxu0 %v1731
        %2450 = vmatprep.subr.bf16.mxu0 0
        %2451 = vmatpush1.bf16.msra.mxu0 %v1734
        %2452 = vmatprep.subr.bf16.mxu0 0
        %2453 = vmatpush1.bf16.msra.mxu0 %v1737
        %2454 = vmatprep.subr.bf16.mxu0 0
        %2455 = vmatpush1.bf16.msra.mxu0 %v1740
        %2456 = vmatprep.subr.bf16.mxu0 0
        %2457 = vmatpush1.bf16.msra.mxu0 %v1743
        %2458 = vmatprep.subr.bf16.mxu0 0
        %2459 = vmatpush1.bf16.msra.mxu0 %v1746
        %2460 = vmatprep.subr.bf16.mxu0 0
        %2461 = vmatpush1.bf16.msra.mxu0 %v1749
        %2462 = vmatprep.subr.bf16.mxu0 0
        %2463 = vmatpush1.bf16.msra.mxu0 %v1752
        %2464 = vmatprep.subr.bf16.mxu0 0
        %2465 = vmatpush1.bf16.msra.mxu0 %v1755
        %2466 = vmatprep.subr.bf16.mxu0 0
        %2467 = vmatpush1.bf16.msra.mxu0 %v1758
        %2468 = vmatprep.mubr.bf16.mxu0 %v1044
        %2469 = vmatmul.mubr.bf16.gmra.mrb[0].mxu0 %v1043
        %v2470 = vpop.f32.mrb[0].mxu0
        %v2471 = vadd.f32 %v2374, %v2470
        %v2472 = vpop.f32.mrb[0].mxu0
        %v2473 = vpop.f32.mrb[0].mxu0
        %v2474 = vadd.f32 %v2377, %v2473
        %v2475 = vpop.f32.mrb[0].mxu0
        %2476 = vmatprep.mubr.bf16.mxu0 %v1050
        %2477 = vmatmul.mubr.bf16.gmra.mrb[0].mxu0 %v1049
        %v2478 = vpop.f32.mrb[0].mxu0
        %v2479 = vadd.f32 %v2382, %v2478
        %v2480 = vpop.f32.mrb[0].mxu0
        %v2481 = vpop.f32.mrb[0].mxu0
        %v2482 = vadd.f32 %v2385, %v2481
        %v2483 = vpop.f32.mrb[0].mxu0
        %2484 = vmatprep.mubr.bf16.mxu0 %v1056
        %2485 = vmatmul.mubr.bf16.gmra.mrb[0].mxu0 %v1055
        %v2486 = vpop.f32.mrb[0].mxu0
        %v2487 = vadd.f32 %v2390, %v2486
        %v2488 = vpop.f32.mrb[0].mxu0
        %v2489 = vpop.f32.mrb[0].mxu0
        %v2490 = vadd.f32 %v2393, %v2489
        %v2491 = vpop.f32.mrb[0].mxu0
        %2492 = vmatprep.mubr.bf16.mxu0 %v1062
        %2493 = vmatmul.mubr.bf16.gmra.mrb[0].mxu0 %v1061
        %v2494 = vpop.f32.mrb[0].mxu0
        %v2495 = vadd.f32 %v2398, %v2494
        %v2496 = vpop.f32.mrb[0].mxu0
        %v2497 = vpop.f32.mrb[0].mxu0
        %v2498 = vadd.f32 %v2401, %v2497
        %v2499 = vpop.f32.mrb[0].mxu0
        %2500 = vmatprep.mubr.bf16.mxu0 %v1068
        %2501 = vmatmul.mubr.bf16.gmra.mrb[0].mxu0 %v1067
        %v2502 = vpop.f32.mrb[0].mxu0
        %v2503 = vadd.f32 %v2406, %v2502
        %v2504 = vpop.f32.mrb[0].mxu0
        %v2505 = vpop.f32.mrb[0].mxu0
        %v2506 = vadd.f32 %v2409, %v2505
        %v2507 = vpop.f32.mrb[0].mxu0
        %2508 = vmatprep.mubr.bf16.mxu0 %v1074
        %2509 = vmatmul.mubr.bf16.gmra.mrb[0].mxu0 %v1073
        %v2510 = vpop.f32.mrb[0].mxu0
        %v2511 = vadd.f32 %v2414, %v2510
        %v2512 = vpop.f32.mrb[0].mxu0
        %v2513 = vpop.f32.mrb[0].mxu0
        %v2514 = vadd.f32 %v2417, %v2513
        %v2515 = vpop.f32.mrb[0].mxu0
        %2516 = vmatprep.mubr.bf16.mxu0 %v1080
        %2517 = vmatmul.mubr.bf16.gmra.mrb[0].mxu0 %v1079
        %v2518 = vpop.f32.mrb[0].mxu0
        %v2519 = vadd.f32 %v2422, %v2518
        %v2520 = vpop.f32.mrb[0].mxu0
        %v2521 = vpop.f32.mrb[0].mxu0
        %v2522 = vadd.f32 %v2425, %v2521
        %v2523 = vpop.f32.mrb[0].mxu0
        %2524 = vmatprep.mubr.bf16.mxu0 %v1086
        %2525 = vmatmul.mubr.bf16.gmra.mrb[0].mxu0 %v1085
        %v2526 = vpop.f32.mrb[0].mxu0
        %v2527 = vadd.f32 %v2430, %v2526
        %v2528 = vpop.f32.mrb[0].mxu0
        %v2529 = vpop.f32.mrb[0].mxu0
        %v2530 = vadd.f32 %v2433, %v2529
        %v2531 = vpop.f32.mrb[0].mxu0
        %2532 = vdwg.mxu0
        %2533 = vst [vmem:[%s621] sm:$0xff] %v2164
        %2534 = vst [vmem:[%s621 + $0x8] sm:$0xff] %v2166
        %2535 = vst [vmem:[%s621 + $0x10] sm:$0xff] %v2471
        %2536 = vst [vmem:[%s621 + $0x18] sm:$0xff] %v2168
        %2537 = vst [vmem:[%s621 + $0x20] sm:$0xff] %v2170
        %2538 = vst [vmem:[%s621 + $0x28] sm:$0xff] %v2474
        %2539 = vst [vmem:[%s621 + $0x30] sm:$0xff] %v2174
        %2540 = vst [vmem:[%s621 + $0x38] sm:$0xff] %v2176
        %2541 = vst [vmem:[%s621 + $0x40] sm:$0xff] %v2479
        %2542 = vst [vmem:[%s621 + $0x48] sm:$0xff] %v2178
        %2543 = vst [vmem:[%s621 + $0x50] sm:$0xff] %v2180
        %2544 = vst [vmem:[%s621 + $0x58] sm:$0xff] %v2482
        %2545 = vst [vmem:[%s621 + $0x60] sm:$0xff] %v2184
        %2546 = vst [vmem:[%s621 + $0x68] sm:$0xff] %v2186
        %2547 = vst [vmem:[%s621 + $0x70] sm:$0xff] %v2487
        %2548 = vst [vmem:[%s621 + $0x78] sm:$0xff] %v2188
        %2549 = vst [vmem:[%s621 + $0x80] sm:$0xff] %v2190
        %2550 = vst [vmem:[%s621 + $0x88] sm:$0xff] %v2490
        %2551 = vst [vmem:[%s621 + $0x90] sm:$0xff] %v2194
        %2552 = vst [vmem:[%s621 + $0x98] sm:$0xff] %v2196
        %2553 = vst [vmem:[%s621 + $0xa0] sm:$0xff] %v2495
        %2554 = vst [vmem:[%s621 + $0xa8] sm:$0xff] %v2198
        %2555 = vst [vmem:[%s621 + $0xb0] sm:$0xff] %v2200
        %2556 = vst [vmem:[%s621 + $0xb8] sm:$0xff] %v2498
        %2557 = vst [vmem:[%s621 + $0xc0] sm:$0xff] %v2204
        %2558 = vst [vmem:[%s621 + $0xc8] sm:$0xff] %v2206
        %2559 = vst [vmem:[%s621 + $0xd0] sm:$0xff] %v2503
        %2560 = vst [vmem:[%s621 + $0xd8] sm:$0xff] %v2208
        %2561 = vst [vmem:[%s621 + $0xe0] sm:$0xff] %v2210
        %2562 = vst [vmem:[%s621 + $0xe8] sm:$0xff] %v2506
        %2563 = vst [vmem:[%s621 + $0xf0] sm:$0xff] %v2214
        %2564 = vst [vmem:[%s621 + $0xf8] sm:$0xff] %v2216
        %2565 = vst [vmem:[%s621 + $0x100] sm:$0xff] %v2511
        %2566 = vst [vmem:[%s621 + $0x108] sm:$0xff] %v2218
        %2567 = vst [vmem:[%s621 + $0x110] sm:$0xff] %v2220
        %2568 = vst [vmem:[%s621 + $0x118] sm:$0xff] %v2514
        %2569 = vst [vmem:[%s621 + $0x120] sm:$0xff] %v2224
        %2570 = vst [vmem:[%s621 + $0x128] sm:$0xff] %v2226
        %2571 = vst [vmem:[%s621 + $0x130] sm:$0xff] %v2519
        %2572 = vst [vmem:[%s621 + $0x138] sm:$0xff] %v2228
        %2573 = vst [vmem:[%s621 + $0x140] sm:$0xff] %v2230
        %2574 = vst [vmem:[%s621 + $0x148] sm:$0xff] %v2522
        %2575 = vst [vmem:[%s621 + $0x150] sm:$0xff] %v2234
        %2576 = vst [vmem:[%s621 + $0x158] sm:$0xff] %v2236
        %2577 = vst [vmem:[%s621 + $0x160] sm:$0xff] %v2527
        %2578 = vst [vmem:[%s621 + $0x168] sm:$0xff] %v2238
        %2579 = vst [vmem:[%s621 + $0x170] sm:$0xff] %v2240
        %2580 = vst [vmem:[%s621 + $0x178] sm:$0xff] %v2530
        %s2581 = sand.u32 %s114, 1
        %s2582 = sand.u32 %s114, 1
        %s2583 = smul.addr %s2582, 384
        %s2584 = scalar_lea.vmem [#allocation3], %s2583
        // Predicated region
        $region59: #{forward.12} parent=53 // pred_check
          %p2585 = pneg %p124
        $region60: #{forward.12} parent=53 // pred_check_branch
          %2587 = sbr.rel (%p2585) target = $region62
        $region61: #{forward.12} parent=53 // pred_region
          %s2588 = smul.u32 16, %s18
          %s2589 = smul.u32 3, %s19
          %s2590 = smul.addr %s2588, 6
          %s2591 = sadd.s32 %s2589, %s2590
          %s2592 = smul.addr %s2591, 8
          %s2593 = scalar_lea.vmem %s3, %s2592
          // Predicated region
          $region63: #{forward.12} parent=61 // pred_check
            _
          $region64: #{forward.12} parent=61 // pred_check_branch
            %2595 = sbr.rel (0) target = $region66
          $region65: #{forward.12} parent=61 // pred_region
            // Predicated region
            $region67: #{forward.12} parent=65 // pred_check
              _
            $region68: #{forward.12} parent=65 // pred_check_branch
              %2597 = sbr.rel (0) target = $region70
            $region69: #{forward.12} parent=65 // pred_region
              loop: start=0, step=1, limit=1
              $region71: #{forward.12} parent=69 // loop_pre_header
                _
              $region72: #{forward.12} parent=69 // loop_header
                %s2599 = sphi 0, %s2603
                %p2600 = scmp.ge.s32.totalorder %s2599, 1
                %s2604 = sphi %s2584, %s2584
                %s2605 = sphi %s2593, %s2593
              $region73: #{forward.12} parent=69 // loop_header_branch
                %2602 = sbr.rel (%p2600) target = $region77
              $region74: #{forward.12} parent=69 // loop_body
                %v2606 = vld [vmem:[%s2604] sm:$0xff]
                %2607 = vst [vmem:[%s2605] sm:$0xff] %v2606
                %v2608 = vld [vmem:[%s2604 + $0x8] sm:$0xff]
                %2609 = vst [vmem:[%s2605 + $0x8] sm:$0xff] %v2608
                %v2610 = vld [vmem:[%s2604 + $0x10] sm:$0xff]
                %2611 = vst [vmem:[%s2605 + $0x10] sm:$0xff] %v2610
                %v2612 = vld [vmem:[%s2604 + $0x18] sm:$0xff]
                %2613 = vst [vmem:[%s2605 + $0x30] sm:$0xff] %v2612
                %v2614 = vld [vmem:[%s2604 + $0x20] sm:$0xff]
                %2615 = vst [vmem:[%s2605 + $0x38] sm:$0xff] %v2614
                %v2616 = vld [vmem:[%s2604 + $0x28] sm:$0xff]
                %2617 = vst [vmem:[%s2605 + $0x40] sm:$0xff] %v2616
                %v2618 = vld [vmem:[%s2604 + $0x30] sm:$0xff]
                %2619 = vst [vmem:[%s2605 + $0x60] sm:$0xff] %v2618
                %v2620 = vld [vmem:[%s2604 + $0x38] sm:$0xff]
                %2621 = vst [vmem:[%s2605 + $0x68] sm:$0xff] %v2620
                %v2622 = vld [vmem:[%s2604 + $0x40] sm:$0xff]
                %2623 = vst [vmem:[%s2605 + $0x70] sm:$0xff] %v2622
                %v2624 = vld [vmem:[%s2604 + $0x48] sm:$0xff]
                %2625 = vst [vmem:[%s2605 + $0x90] sm:$0xff] %v2624
                %v2626 = vld [vmem:[%s2604 + $0x50] sm:$0xff]
                %2627 = vst [vmem:[%s2605 + $0x98] sm:$0xff] %v2626
                %v2628 = vld [vmem:[%s2604 + $0x58] sm:$0xff]
                %2629 = vst [vmem:[%s2605 + $0xa0] sm:$0xff] %v2628
                %v2630 = vld [vmem:[%s2604 + $0x60] sm:$0xff]
                %2631 = vst [vmem:[%s2605 + $0xc0] sm:$0xff] %v2630
                %v2632 = vld [vmem:[%s2604 + $0x68] sm:$0xff]
                %2633 = vst [vmem:[%s2605 + $0xc8] sm:$0xff] %v2632
                %v2634 = vld [vmem:[%s2604 + $0x70] sm:$0xff]
                %2635 = vst [vmem:[%s2605 + $0xd0] sm:$0xff] %v2634
                %v2636 = vld [vmem:[%s2604 + $0x78] sm:$0xff]
                %2637 = vst [vmem:[%s2605 + $0xf0] sm:$0xff] %v2636
                %v2638 = vld [vmem:[%s2604 + $0x80] sm:$0xff]
                %2639 = vst [vmem:[%s2605 + $0xf8] sm:$0xff] %v2638
                %v2640 = vld [vmem:[%s2604 + $0x88] sm:$0xff]
                %2641 = vst [vmem:[%s2605 + $0x100] sm:$0xff] %v2640
                %v2642 = vld [vmem:[%s2604 + $0x90] sm:$0xff]
                %2643 = vst [vmem:[%s2605 + $0x120] sm:$0xff] %v2642
                %v2644 = vld [vmem:[%s2604 + $0x98] sm:$0xff]
                %2645 = vst [vmem:[%s2605 + $0x128] sm:$0xff] %v2644
                %v2646 = vld [vmem:[%s2604 + $0xa0] sm:$0xff]
                %2647 = vst [vmem:[%s2605 + $0x130] sm:$0xff] %v2646
                %v2648 = vld [vmem:[%s2604 + $0xa8] sm:$0xff]
                %2649 = vst [vmem:[%s2605 + $0x150] sm:$0xff] %v2648
                %v2650 = vld [vmem:[%s2604 + $0xb0] sm:$0xff]
                %2651 = vst [vmem:[%s2605 + $0x158] sm:$0xff] %v2650
                %v2652 = vld [vmem:[%s2604 + $0xb8] sm:$0xff]
                %2653 = vst [vmem:[%s2605 + $0x160] sm:$0xff] %v2652
                %v2654 = vld [vmem:[%s2604 + $0xc0] sm:$0xff]
                %2655 = vst [vmem:[%s2605 + $0x180] sm:$0xff] %v2654
                %v2656 = vld [vmem:[%s2604 + $0xc8] sm:$0xff]
                %2657 = vst [vmem:[%s2605 + $0x188] sm:$0xff] %v2656
                %v2658 = vld [vmem:[%s2604 + $0xd0] sm:$0xff]
                %2659 = vst [vmem:[%s2605 + $0x190] sm:$0xff] %v2658
                %v2660 = vld [vmem:[%s2604 + $0xd8] sm:$0xff]
                %2661 = vst [vmem:[%s2605 + $0x1b0] sm:$0xff] %v2660
                %v2662 = vld [vmem:[%s2604 + $0xe0] sm:$0xff]
                %2663 = vst [vmem:[%s2605 + $0x1b8] sm:$0xff] %v2662
                %v2664 = vld [vmem:[%s2604 + $0xe8] sm:$0xff]
                %2665 = vst [vmem:[%s2605 + $0x1c0] sm:$0xff] %v2664
                %v2666 = vld [vmem:[%s2604 + $0xf0] sm:$0xff]
                %2667 = vst [vmem:[%s2605 + $0x1e0] sm:$0xff] %v2666
                %v2668 = vld [vmem:[%s2604 + $0xf8] sm:$0xff]
                %2669 = vst [vmem:[%s2605 + $0x1e8] sm:$0xff] %v2668
                %v2670 = vld [vmem:[%s2604 + $0x100] sm:$0xff]
                %2671 = vst [vmem:[%s2605 + $0x1f0] sm:$0xff] %v2670
                %v2672 = vld [vmem:[%s2604 + $0x108] sm:$0xff]
                %2673 = vst [vmem:[%s2605 + $0x210] sm:$0xff] %v2672
                %v2674 = vld [vmem:[%s2604 + $0x110] sm:$0xff]
                %2675 = vst [vmem:[%s2605 + $0x218] sm:$0xff] %v2674
                %v2676 = vld [vmem:[%s2604 + $0x118] sm:$0xff]
                %2677 = vst [vmem:[%s2605 + $0x220] sm:$0xff] %v2676
                %v2678 = vld [vmem:[%s2604 + $0x120] sm:$0xff]
                %2679 = vst [vmem:[%s2605 + $0x240] sm:$0xff] %v2678
                %v2680 = vld [vmem:[%s2604 + $0x128] sm:$0xff]
                %2681 = vst [vmem:[%s2605 + $0x248] sm:$0xff] %v2680
                %v2682 = vld [vmem:[%s2604 + $0x130] sm:$0xff]
                %2683 = vst [vmem:[%s2605 + $0x250] sm:$0xff] %v2682
                %v2684 = vld [vmem:[%s2604 + $0x138] sm:$0xff]
                %2685 = vst [vmem:[%s2605 + $0x270] sm:$0xff] %v2684
                %v2686 = vld [vmem:[%s2604 + $0x140] sm:$0xff]
                %2687 = vst [vmem:[%s2605 + $0x278] sm:$0xff] %v2686
                %v2688 = vld [vmem:[%s2604 + $0x148] sm:$0xff]
                %2689 = vst [vmem:[%s2605 + $0x280] sm:$0xff] %v2688
                %v2690 = vld [vmem:[%s2604 + $0x150] sm:$0xff]
                %2691 = vst [vmem:[%s2605 + $0x2a0] sm:$0xff] %v2690
                %v2692 = vld [vmem:[%s2604 + $0x158] sm:$0xff]
                %2693 = vst [vmem:[%s2605 + $0x2a8] sm:$0xff] %v2692
                %v2694 = vld [vmem:[%s2604 + $0x160] sm:$0xff]
                %2695 = vst [vmem:[%s2605 + $0x2b0] sm:$0xff] %v2694
                %v2696 = vld [vmem:[%s2604 + $0x168] sm:$0xff]
                %2697 = vst [vmem:[%s2605 + $0x2d0] sm:$0xff] %v2696
                %v2698 = vld [vmem:[%s2604 + $0x170] sm:$0xff]
                %2699 = vst [vmem:[%s2605 + $0x2d8] sm:$0xff] %v2698
                %v2700 = vld [vmem:[%s2604 + $0x178] sm:$0xff]
                %2701 = vst [vmem:[%s2605 + $0x2e0] sm:$0xff] %v2700
              $region75: #{forward.12} parent=69 // loop_footer
                %s2603 = sadd.s32 1, %s2599
              $region76: #{forward.12} parent=69 // loop_footer_branch
                %2598 = sbr.rel target = $region72
              $region77: #{forward.12} parent=69 // loop_exit
                _
            $region70: #{forward.12} parent=65 // pred_fallthru
              _
            // Predicated region
            $region78: #{forward.12} parent=65 // pred_check
              _
            $region79: #{forward.12} parent=65 // pred_check_branch
              %2703 = sbr.rel target = $region81
            $region80: #{forward.12} parent=65 // pred_region
              _
            $region81: #{forward.12} parent=65 // pred_fallthru
              _
          $region66: #{forward.12} parent=61 // pred_fallthru
            _
          %2704 = vnop
        $region62: #{forward.12} parent=53 // pred_fallthru
          _
      $region54: #{forward.12} parent=5 // pred_fallthru
        _
      %p2705 = scmp.le.s32.totalorder 2, %s9
      // Predicated region
      $region82: #{forward.12} parent=5 // pred_check
        %p2706 = pneg %p2705
      $region83: #{forward.12} parent=5 // pred_check_branch
        %2708 = sbr.rel (%p2706) target = $region85
      $region84: #{forward.12} parent=5 // pred_region
        %s2709 = ssub.s32 %s9, 2
        // Predicated region
        $region86: #{forward.12} parent=84 // pred_check
          %p2710 = pneg %p130
        $region87: #{forward.12} parent=84 // pred_check_branch
          %2712 = sbr.rel (%p2710) target = $region89
        $region88: #{forward.12} parent=84 // pred_region
          %s2713 = sand.u32 %s115, 1
          %s2714 = sand.u32 %s115, 1
          %s2715 = smul.addr %s2714, 384
          %s2716 = scalar_lea.vmem [#allocation3], %s2715
        $region89: #{forward.12} parent=84 // pred_fallthru
          _
      $region85: #{forward.12} parent=5 // pred_fallthru
        _
    $region6: #{forward.12} parent=1 // loop_footer
      %s13 = sadd.s32 1, %s9
    $region7: #{forward.12} parent=1 // loop_footer_branch
      %8 = sbr.rel target = $region3
    $region8: #{forward.12} parent=1 // loop_exit
      _

// kernel: forward.13
$region0: #{forward.13}
  #allocation0 [shape = 'u32[]', space=smem, size = 0x4, offset = 0x4, fixed_abs, tag = 'smem constant byte address 0x4 - core index']
  #allocation1 [shape = 'u32[144,128]{1,0:T(1,128)}', space=vmem, size = 0x12000, scoped, tag = 'internal scratch']
  #allocation2 [shape = 'f32[16,128]{1,0:T(8,128)}', space=vmem, size = 0x2000, scoped, tag = 'scratch operand']
  %s0 = inlined_call_operand.vmem [shape: f32[8,16,768], index: 0, kind: input, shape index: {}]
  %s1 = inlined_call_operand.vmem [shape: bf16[2,128,384], index: 1, kind: input, shape index: {}]
  %s2 = inlined_call_operand.vmem [shape: f32[2,1,384], index: 2, kind: input, shape index: {}]
  %s3 = inlined_call_operand.vmem [shape: f32[8,16,256], index: 3, kind: output, shape index: {}]
  %s4 = sld [smem:[#allocation0]]
  $region106: #{forward.13} parent=0
    _
  %s6 = ssub.s32 1, %s4
  %s7 = scalar_select 0, %s6, %s4
  $region1: #{forward.13} parent=0
    #allocation3 [shape = 'u8[393216]{0}', space=vmem, size = 0x60000, scoped, tag = 'input window, operand 0']
    #allocation4 [shape = 'u8[131072]{0}', space=vmem, size = 0x20000, scoped, tag = 'output window, operand 0']
    loop: start=0, step=1, limit=4
    $region2: #{forward.13} parent=1 // loop_pre_header
      _
    $region3: #{forward.13} parent=1 // loop_header
      %s9 = sphi 0, %s13
      %p10 = scmp.ge.s32.totalorder %s9, 4
      %s16 = sphi 0, %s28
      %s17 = sphi 0, %s24
      %s18 = sphi 0, %s16
      %s19 = sphi 0, %s17
      %s20 = sphi 0, %s18
      %s21 = sphi 0, %s19
      %s41 = sphi 0, %s43
      %s44 = sphi 0, %s41
      %s45 = sphi 0, %s44
      %s61 = sphi 0, %s45
      %s67 = sphi 0, %s69
      %s70 = sphi 0, %s67
      %s71 = sphi 0, %s70
      %s87 = sphi 0, %s71
      %s93 = sphi 0, %s95
      %s96 = sphi 0, %s93
      %s97 = sphi 0, %s96
      %s113 = sphi 0, %s97
      %s129 = sphi 0, %s131
      %s132 = sphi 0, %s129
      %s133 = sphi 0, %s132
      %s149 = sphi 0, %s133
    $region4: #{forward.13} parent=1 // loop_header_branch
      %12 = sbr.rel (%p10) target = $region8
    $region5: #{forward.13} parent=1 // loop_body
      %s14 = ssub.s32 %s9, 1
      %s15 = ssub.s32 %s9, 2
      %s22 = sadd.s32 1, %s17
      %p23 = scmp.ge.s32.totalorder %s22, 1
      %s24 = scalar_select %p23, 0, %s22
      %s25 = sadd.s32 1, %s16
      %s26 = scalar_select %p23, %s25, %s16
      %p27 = scmp.ge.s32.totalorder %s26, 2
      %s28 = scalar_select %p27, 0, %s26
      %s29 = smul.u32 %s17, 2
      %s30 = ssub.s32 0, %s29
      %s31 = smul.u32 %s16, %s30
      %s32 = sadd.s32 %s17, %s31
      %s33 = smul.u32 %s24, 2
      %s34 = ssub.s32 0, %s33
      %s35 = smul.u32 %s28, %s34
      %s36 = sadd.s32 %s24, %s35
      %s37 = ssub.s32 %s32, %s36
      %s38 = ssub.s32 %s16, %s28
      %s39 = sor.u32 %s37, %s38
      %p40 = scmp.eq.s32.totalorder %s39, 0
      %s42 = sadd.s32 %s41, 1
      %s43 = scalar_select %p40, %s41, %s42
      %p46 = pneg %p40
      %p47 = scmp.eq.s32.totalorder %s9, 1
      %p48 = por %p46, %p47
      %p49 = scmp.ne.s32.totalorder %s41, %s44
      %p50 = scmp.eq.s32.totalorder %s9, 0
      %p51 = por %p49, %p50
      %p52 = scmp.ne.s32.totalorder %s41, %s44
      %p53 = scmp.eq.s32.totalorder %s14, 1
      %p54 = por %p52, %p53
      %p55 = scmp.ne.s32.totalorder %s44, %s45
      %p56 = scmp.eq.s32.totalorder %s14, 0
      %p57 = por %p55, %p56
      %p58 = scmp.ne.s32.totalorder %s44, %s45
      %p59 = scmp.eq.s32.totalorder %s15, 1
      %p60 = por %p58, %p59
      %p62 = scmp.ne.s32.totalorder %s45, %s61
      %p63 = scmp.eq.s32.totalorder %s15, 0
      %p64 = por %p62, %p63
      %s65 = ssub.s32 %s16, %s28
      %p66 = scmp.eq.s32.totalorder %s65, 0
      %s68 = sadd.s32 %s67, 1
      %s69 = scalar_select %p66, %s67, %s68
      %p72 = pneg %p66
      %p73 = scmp.eq.s32.totalorder %s9, 1
      %p74 = por %p72, %p73
      %p75 = scmp.ne.s32.totalorder %s67, %s70
      %p76 = scmp.eq.s32.totalorder %s9, 0
      %p77 = por %p75, %p76
      %p78 = scmp.ne.s32.totalorder %s67, %s70
      %p79 = scmp.eq.s32.totalorder %s14, 1
      %p80 = por %p78, %p79
      %p81 = scmp.ne.s32.totalorder %s70, %s71
      %p82 = scmp.eq.s32.totalorder %s14, 0
      %p83 = por %p81, %p82
      %p84 = scmp.ne.s32.totalorder %s70, %s71
      %p85 = scmp.eq.s32.totalorder %s15, 1
      %p86 = por %p84, %p85
      %p88 = scmp.ne.s32.totalorder %s71, %s87
      %p89 = scmp.eq.s32.totalorder %s15, 0
      %p90 = por %p88, %p89
      %s91 = ssub.s32 %s16, %s28
      %p92 = scmp.eq.s32.totalorder %s91, 0
      %s94 = sadd.s32 %s93, 1
      %s95 = scalar_select %p92, %s93, %s94
      %p98 = pneg %p92
      %p99 = scmp.eq.s32.totalorder %s9, 1
      %p100 = por %p98, %p99
      %p101 = scmp.ne.s32.totalorder %s93, %s96
      %p102 = scmp.eq.s32.totalorder %s9, 0
      %p103 = por %p101, %p102
      %p104 = scmp.ne.s32.totalorder %s93, %s96
      %p105 = scmp.eq.s32.totalorder %s14, 1
      %p106 = por %p104, %p105
      %p107 = scmp.ne.s32.totalorder %s96, %s97
      %p108 = scmp.eq.s32.totalorder %s14, 0
      %p109 = por %p107, %p108
      %p110 = scmp.ne.s32.totalorder %s96, %s97
      %p111 = scmp.eq.s32.totalorder %s15, 1
      %p112 = por %p110, %p111
      %p114 = scmp.ne.s32.totalorder %s97, %s113
      %p115 = scmp.eq.s32.totalorder %s15, 0
      %p116 = por %p114, %p115
      %s117 = smul.u32 %s17, 2
      %s118 = ssub.s32 0, %s117
      %s119 = smul.u32 %s16, %s118
      %s120 = sadd.s32 %s17, %s119
      %s121 = smul.u32 %s24, 2
      %s122 = ssub.s32 0, %s121
      %s123 = smul.u32 %s28, %s122
      %s124 = sadd.s32 %s24, %s123
      %s125 = ssub.s32 %s120, %s124
      %s126 = ssub.s32 %s16, %s28
      %s127 = sor.u32 %s125, %s126
      %p128 = scmp.eq.s32.totalorder %s127, 0
      %s130 = sadd.s32 %s129, 1
      %s131 = scalar_select %p128, %s129, %s130
      %p134 = pneg %p128
      %p135 = scmp.eq.s32.totalorder %s9, 1
      %p136 = por %p134, %p135
      %p137 = scmp.ne.s32.totalorder %s129, %s132
      %p138 = scmp.eq.s32.totalorder %s9, 0
      %p139 = por %p137, %p138
      %p140 = scmp.ne.s32.totalorder %s129, %s132
      %p141 = scmp.eq.s32.totalorder %s14, 1
      %p142 = por %p140, %p141
      %p143 = scmp.ne.s32.totalorder %s132, %s133
      %p144 = scmp.eq.s32.totalorder %s14, 0
      %p145 = por %p143, %p144
      %p146 = scmp.ne.s32.totalorder %s132, %s133
      %p147 = scmp.eq.s32.totalorder %s15, 1
      %p148 = por %p146, %p147
      %p150 = scmp.ne.s32.totalorder %s133, %s149
      %p151 = scmp.eq.s32.totalorder %s15, 0
      %p152 = por %p150, %p151
      %p153 = scmp.le.s32.totalorder 1, %s9
      %p154 = scmp.lt.s32.totalorder %s9, 3
      %p155 = pnand %p153, %p154
      %p156 = pneg %p155
      // Predicated region
      $region9: #{forward.13} parent=5 // pred_check
        _
      $region10: #{forward.13} parent=5 // pred_check_branch
        %158 = sbr.rel (%p155) target = $region12
      $region11: #{forward.13} parent=5 // pred_region
        %s159 = ssub.s32 %s9, 1
      $region12: #{forward.13} parent=5 // pred_fallthru
        _
      %p160 = scmp.lt.s32.totalorder %s9, 2
      // Predicated region
      $region13: #{forward.13} parent=5 // pred_check
        %p161 = pneg %p160
      $region14: #{forward.13} parent=5 // pred_check_branch
        %163 = sbr.rel (%p161) target = $region16
      $region15: #{forward.13} parent=5 // pred_region
        // Predicated region
        $region17: #{forward.13} parent=15 // pred_check
          %p164 = pneg %p51
        $region18: #{forward.13} parent=15 // pred_check_branch
          %166 = sbr.rel (%p164) target = $region20
        $region19: #{forward.13} parent=15 // pred_region
          %s167 = sand.u32 %s41, 1
          %s168 = sand.u32 %s41, 1
          %s169 = smul.addr %s168, 384
          %s170 = scalar_lea.vmem [#allocation3], %s169
          %s171 = smul.u32 %s17, 2
          %s172 = ssub.s32 0, %s171
          %s173 = smul.u32 %s16, %s172
          %s174 = sadd.s32 %s17, %s173
          %s175 = smul.u32 8, %s174
          %s176 = smul.u32 3, %s16
          %s177 = smul.addr %s175, 12
          %s178 = sadd.s32 %s176, %s177
          %s179 = smul.addr %s178, 8
          %s180 = scalar_lea.vmem %s0, %s179
          // Predicated region
          $region21: #{forward.13} parent=19 // pred_check
            _
          $region22: #{forward.13} parent=19 // pred_check_branch
            %182 = sbr.rel (0) target = $region24
          $region23: #{forward.13} parent=19 // pred_region
            // Predicated region
            $region25: #{forward.13} parent=23 // pred_check
              _
            $region26: #{forward.13} parent=23 // pred_check_branch
              %184 = sbr.rel (0) target = $region28
            $region27: #{forward.13} parent=23 // pred_region
              loop: start=0, step=1, limit=1
              $region29: #{forward.13} parent=27 // loop_pre_header
                _
              $region30: #{forward.13} parent=27 // loop_header
                %s186 = sphi 0, %s190
                %p187 = scmp.ge.s32.totalorder %s186, 1
                %s191 = sphi %s180, %s180
                %s192 = sphi %s170, %s170
              $region31: #{forward.13} parent=27 // loop_header_branch
                %189 = sbr.rel (%p187) target = $region35
              $region32: #{forward.13} parent=27 // loop_body
                %v193 = vld [vmem:[%s191] sm:$0xff]
                %194 = vst [vmem:[%s192] sm:$0xff] %v193
                %v195 = vld [vmem:[%s191 + $0x8] sm:$0xff]
                %196 = vst [vmem:[%s192 + $0x8] sm:$0xff] %v195
                %v197 = vld [vmem:[%s191 + $0x10] sm:$0xff]
                %198 = vst [vmem:[%s192 + $0x10] sm:$0xff] %v197
                %v199 = vld [vmem:[%s191 + $0x30] sm:$0xff]
                %200 = vst [vmem:[%s192 + $0x18] sm:$0xff] %v199
                %v201 = vld [vmem:[%s191 + $0x38] sm:$0xff]
                %202 = vst [vmem:[%s192 + $0x20] sm:$0xff] %v201
                %v203 = vld [vmem:[%s191 + $0x40] sm:$0xff]
                %204 = vst [vmem:[%s192 + $0x28] sm:$0xff] %v203
                %v205 = vld [vmem:[%s191 + $0x60] sm:$0xff]
                %206 = vst [vmem:[%s192 + $0x30] sm:$0xff] %v205
                %v207 = vld [vmem:[%s191 + $0x68] sm:$0xff]
                %208 = vst [vmem:[%s192 + $0x38] sm:$0xff] %v207
                %v209 = vld [vmem:[%s191 + $0x70] sm:$0xff]
                %210 = vst [vmem:[%s192 + $0x40] sm:$0xff] %v209
                %v211 = vld [vmem:[%s191 + $0x90] sm:$0xff]
                %212 = vst [vmem:[%s192 + $0x48] sm:$0xff] %v211
                %v213 = vld [vmem:[%s191 + $0x98] sm:$0xff]
                %214 = vst [vmem:[%s192 + $0x50] sm:$0xff] %v213
                %v215 = vld [vmem:[%s191 + $0xa0] sm:$0xff]
                %216 = vst [vmem:[%s192 + $0x58] sm:$0xff] %v215
                %v217 = vld [vmem:[%s191 + $0xc0] sm:$0xff]
                %218 = vst [vmem:[%s192 + $0x60] sm:$0xff] %v217
                %v219 = vld [vmem:[%s191 + $0xc8] sm:$0xff]
                %220 = vst [vmem:[%s192 + $0x68] sm:$0xff] %v219
                %v221 = vld [vmem:[%s191 + $0xd0] sm:$0xff]
                %222 = vst [vmem:[%s192 + $0x70] sm:$0xff] %v221
                %v223 = vld [vmem:[%s191 + $0xf0] sm:$0xff]
                %224 = vst [vmem:[%s192 + $0x78] sm:$0xff] %v223
                %v225 = vld [vmem:[%s191 + $0xf8] sm:$0xff]
                %226 = vst [vmem:[%s192 + $0x80] sm:$0xff] %v225
                %v227 = vld [vmem:[%s191 + $0x100] sm:$0xff]
                %228 = vst [vmem:[%s192 + $0x88] sm:$0xff] %v227
                %v229 = vld [vmem:[%s191 + $0x120] sm:$0xff]
                %230 = vst [vmem:[%s192 + $0x90] sm:$0xff] %v229
                %v231 = vld [vmem:[%s191 + $0x128] sm:$0xff]
                %232 = vst [vmem:[%s192 + $0x98] sm:$0xff] %v231
                %v233 = vld [vmem:[%s191 + $0x130] sm:$0xff]
                %234 = vst [vmem:[%s192 + $0xa0] sm:$0xff] %v233
                %v235 = vld [vmem:[%s191 + $0x150] sm:$0xff]
                %236 = vst [vmem:[%s192 + $0xa8] sm:$0xff] %v235
                %v237 = vld [vmem:[%s191 + $0x158] sm:$0xff]
                %238 = vst [vmem:[%s192 + $0xb0] sm:$0xff] %v237
                %v239 = vld [vmem:[%s191 + $0x160] sm:$0xff]
                %240 = vst [vmem:[%s192 + $0xb8] sm:$0xff] %v239
                %v241 = vld [vmem:[%s191 + $0x180] sm:$0xff]
                %242 = vst [vmem:[%s192 + $0xc0] sm:$0xff] %v241
                %v243 = vld [vmem:[%s191 + $0x188] sm:$0xff]
                %244 = vst [vmem:[%s192 + $0xc8] sm:$0xff] %v243
                %v245 = vld [vmem:[%s191 + $0x190] sm:$0xff]
                %246 = vst [vmem:[%s192 + $0xd0] sm:$0xff] %v245
                %v247 = vld [vmem:[%s191 + $0x1b0] sm:$0xff]
                %248 = vst [vmem:[%s192 + $0xd8] sm:$0xff] %v247
                %v249 = vld [vmem:[%s191 + $0x1b8] sm:$0xff]
                %250 = vst [vmem:[%s192 + $0xe0] sm:$0xff] %v249
                %v251 = vld [vmem:[%s191 + $0x1c0] sm:$0xff]
                %252 = vst [vmem:[%s192 + $0xe8] sm:$0xff] %v251
                %v253 = vld [vmem:[%s191 + $0x1e0] sm:$0xff]
                %254 = vst [vmem:[%s192 + $0xf0] sm:$0xff] %v253
                %v255 = vld [vmem:[%s191 + $0x1e8] sm:$0xff]
                %256 = vst [vmem:[%s192 + $0xf8] sm:$0xff] %v255
                %v257 = vld [vmem:[%s191 + $0x1f0] sm:$0xff]
                %258 = vst [vmem:[%s192 + $0x100] sm:$0xff] %v257
                %v259 = vld [vmem:[%s191 + $0x210] sm:$0xff]
                %260 = vst [vmem:[%s192 + $0x108] sm:$0xff] %v259
                %v261 = vld [vmem:[%s191 + $0x218] sm:$0xff]
                %262 = vst [vmem:[%s192 + $0x110] sm:$0xff] %v261
                %v263 = vld [vmem:[%s191 + $0x220] sm:$0xff]
                %264 = vst [vmem:[%s192 + $0x118] sm:$0xff] %v263
                %v265 = vld [vmem:[%s191 + $0x240] sm:$0xff]
                %266 = vst [vmem:[%s192 + $0x120] sm:$0xff] %v265
                %v267 = vld [vmem:[%s191 + $0x248] sm:$0xff]
                %268 = vst [vmem:[%s192 + $0x128] sm:$0xff] %v267
                %v269 = vld [vmem:[%s191 + $0x250] sm:$0xff]
                %270 = vst [vmem:[%s192 + $0x130] sm:$0xff] %v269
                %v271 = vld [vmem:[%s191 + $0x270] sm:$0xff]
                %272 = vst [vmem:[%s192 + $0x138] sm:$0xff] %v271
                %v273 = vld [vmem:[%s191 + $0x278] sm:$0xff]
                %274 = vst [vmem:[%s192 + $0x140] sm:$0xff] %v273
                %v275 = vld [vmem:[%s191 + $0x280] sm:$0xff]
                %276 = vst [vmem:[%s192 + $0x148] sm:$0xff] %v275
                %v277 = vld [vmem:[%s191 + $0x2a0] sm:$0xff]
                %278 = vst [vmem:[%s192 + $0x150] sm:$0xff] %v277
                %v279 = vld [vmem:[%s191 + $0x2a8] sm:$0xff]
                %280 = vst [vmem:[%s192 + $0x158] sm:$0xff] %v279
                %v281 = vld [vmem:[%s191 + $0x2b0] sm:$0xff]
                %282 = vst [vmem:[%s192 + $0x160] sm:$0xff] %v281
                %v283 = vld [vmem:[%s191 + $0x2d0] sm:$0xff]
                %284 = vst [vmem:[%s192 + $0x168] sm:$0xff] %v283
                %v285 = vld [vmem:[%s191 + $0x2d8] sm:$0xff]
                %286 = vst [vmem:[%s192 + $0x170] sm:$0xff] %v285
                %v287 = vld [vmem:[%s191 + $0x2e0] sm:$0xff]
                %288 = vst [vmem:[%s192 + $0x178] sm:$0xff] %v287
              $region33: #{forward.13} parent=27 // loop_footer
                %s190 = sadd.s32 1, %s186
              $region34: #{forward.13} parent=27 // loop_footer_branch
                %185 = sbr.rel target = $region30
              $region35: #{forward.13} parent=27 // loop_exit
                _
            $region28: #{forward.13} parent=23 // pred_fallthru
              _
            // Predicated region
            $region36: #{forward.13} parent=23 // pred_check
              _
            $region37: #{forward.13} parent=23 // pred_check_branch
              %290 = sbr.rel target = $region39
            $region38: #{forward.13} parent=23 // pred_region
              _
            $region39: #{forward.13} parent=23 // pred_fallthru
              _
          $region24: #{forward.13} parent=19 // pred_fallthru
            _
          %291 = vnop
        $region20: #{forward.13} parent=15 // pred_fallthru
          _
        // Predicated region
        $region40: #{forward.13} parent=15 // pred_check
          %p292 = pneg %p77
        $region41: #{forward.13} parent=15 // pred_check_branch
          %294 = sbr.rel (%p292) target = $region43
        $region42: #{forward.13} parent=15 // pred_region
          %p295 = scmp.lt.s32.totalorder %s16, 1
          %s296 = scalar_select %p295, %s16, 1
          %s297 = smul.addr %s296, 48
          %s298 = smul.addr %s297, 4
          %s299 = scalar_lea.vmem %s1, %s298
        $region43: #{forward.13} parent=15 // pred_fallthru
          _
        // Predicated region
        $region44: #{forward.13} parent=15 // pred_check
          %p300 = pneg %p103
        $region45: #{forward.13} parent=15 // pred_check_branch
          %302 = sbr.rel (%p300) target = $region47
        $region46: #{forward.13} parent=15 // pred_region
          %p303 = scmp.lt.s32.totalorder %s16, 1
          %s304 = scalar_select %p303, %s16, 1
          %s305 = smul.addr %s304, 3
          %s306 = scalar_lea.vmem %s2, %s305
        $region47: #{forward.13} parent=15 // pred_fallthru
          _
      $region16: #{forward.13} parent=5 // pred_fallthru
        _
      %p307 = scmp.le.s32.totalorder 1, %s9
      %p308 = scmp.lt.s32.totalorder %s9, 3
      %p309 = pnand %p307, %p308
      %p310 = pneg %p309
      // Predicated region
      $region48: #{forward.13} parent=5 // pred_check
        _
      $region49: #{forward.13} parent=5 // pred_check_branch
        %312 = sbr.rel (%p309) target = $region51
      $region50: #{forward.13} parent=5 // pred_region
        %s313 = ssub.s32 %s9, 1
        %s314 = sand.u32 %s44, 1
        %s315 = sand.u32 %s44, 1
        %s316 = smul.addr %s315, 384
        %s317 = scalar_lea.vmem [#allocation3], %s316
        // Predicated region
        $region52: #{forward.13} parent=50 // pred_check
          %p318 = pneg %p57
        $region53: #{forward.13} parent=50 // pred_check_branch
          %320 = sbr.rel (%p318) target = $region55
        $region54: #{forward.13} parent=50 // pred_region
          _
        $region55: #{forward.13} parent=50 // pred_fallthru
          _
        %s321 = sand.u32 %s44, 1
        %s322 = sand.u32 %s44, 1
        %s323 = smul.addr %s322, 384
        %s324 = scalar_lea.vmem [#allocation3], %s323
        %p325 = pneg %p57
        %p326 = pneg %p54
        %p327 = scmp.lt.s32.totalorder %s18, 1
        %s328 = scalar_select %p327, %s18, 1
        %s329 = smul.addr %s328, 48
        %s330 = smul.addr %s329, 4
        %s331 = scalar_lea.vmem %s1, %s330
        %p332 = pneg %p83
        %p333 = pneg %p80
        %p334 = scmp.lt.s32.totalorder %s18, 1
        %s335 = scalar_select %p334, %s18, 1
        %s336 = smul.addr %s335, 3
        %s337 = scalar_lea.vmem %s2, %s336
        %p338 = pneg %p109
        %p339 = pneg %p106
        %p340 = pneg %p145
        %p341 = pneg %p142
        %s342 = sand.u32 %s132, 1
        %s343 = sand.u32 %s132, 1
        %s344 = smul.addr %s343, 128
        %s345 = scalar_lea.vmem [#allocation4], %s344
        %s346 = smul.u32 %s19, 2
        %s347 = ssub.s32 0, %s346
        %s348 = smul.u32 %s18, %s347
        %s349 = sadd.s32 %s19, %s348
        %s350 = smul.u32 8, %s349
        %s351 = smul.u32 3, %s18
        %p352 = scmp.lt.s32.totalorder %s18, 1
        %s353 = scalar_select %p352, %s18, 1
        %s354 = smul.addr %s353, 48
        %s355 = smul.addr %s354, 4
        %s356 = scalar_lea.vmem %s1, %s355
        %p357 = scmp.lt.s32.totalorder %s18, 1
        %s358 = scalar_select %p357, %s18, 1
        %s359 = smul.addr %s358, 3
        %s360 = scalar_lea.vmem %s2, %s359
        %s361 = smul.u32 %s19, 2
        %s362 = ssub.s32 0, %s361
        %s363 = smul.u32 %s18, %s362
        %s364 = sadd.s32 %s19, %s363
        %s365 = smul.u32 8, %s364
        %p367 = scmp.eq.s32.totalorder %s19, 0
        // Predicated region
        $region56: #{forward.13} parent=50 // pred_check
          %p368 = pneg %p367
        $region57: #{forward.13} parent=50 // pred_check_branch
          %370 = sbr.rel (%p368) target = $region59
        $region58: #{forward.13} parent=50 // pred_region
          %371 = vst [vmem:[#allocation2] sm:$0xff] 0.0
          %372 = vst [vmem:[#allocation2 + $0x8] sm:$0xff] 0.0
        $region59: #{forward.13} parent=50 // pred_fallthru
          _
        %v373 = vld [vmem:[%s356] sm:$0xff]
        %v374 = vld [vmem:[%s356 + $0x8] sm:$0xf]
        %v375 = vld [vmem:[%s356 + $0xc] sm:$0xff]
        %v376 = vld [vmem:[%s356 + $0x14] sm:$0xf]
        %v377 = vld [vmem:[%s356 + $0x18] sm:$0xff]
        %v378 = vld [vmem:[%s356 + $0x20] sm:$0xf]
        %v379 = vld [vmem:[%s356 + $0x24] sm:$0xff]
        %v380 = vld [vmem:[%s356 + $0x2c] sm:$0xf]
        %v381 = vld [vmem:[%s356 + $0x30] sm:$0xff]
        %v382 = vld [vmem:[%s356 + $0x38] sm:$0xf]
        %v383 = vld [vmem:[%s356 + $0x3c] sm:$0xff]
        %v384 = vld [vmem:[%s356 + $0x44] sm:$0xf]
        %v385 = vld [vmem:[%s356 + $0x48] sm:$0xff]
        %v386 = vld [vmem:[%s356 + $0x50] sm:$0xf]
        %v387 = vld [vmem:[%s356 + $0x54] sm:$0xff]
        %v388 = vld [vmem:[%s356 + $0x5c] sm:$0xf]
        %v389 = vld [vmem:[%s356 + $0x60] sm:$0xff]
        %v390 = vld [vmem:[%s356 + $0x68] sm:$0xf]
        %v391 = vld [vmem:[%s356 + $0x6c] sm:$0xff]
        %v392 = vld [vmem:[%s356 + $0x74] sm:$0xf]
        %v393 = vld [vmem:[%s356 + $0x78] sm:$0xff]
        %v394 = vld [vmem:[%s356 + $0x80] sm:$0xf]
        %v395 = vld [vmem:[%s356 + $0x84] sm:$0xff]
        %v396 = vld [vmem:[%s356 + $0x8c] sm:$0xf]
        %v397 = vld [vmem:[%s356 + $0x90] sm:$0xff]
        %v398 = vld [vmem:[%s356 + $0x98] sm:$0xf]
        %v399 = vld [vmem:[%s356 + $0x9c] sm:$0xff]
        %v400 = vld [vmem:[%s356 + $0xa4] sm:$0xf]
        %v401 = vld [vmem:[%s356 + $0xa8] sm:$0xff]
        %v402 = vld [vmem:[%s356 + $0xb0] sm:$0xf]
        %v403 = vld [vmem:[%s356 + $0xb4] sm:$0xff]
        %v404 = vld [vmem:[%s356 + $0xbc] sm:$0xf]
        %v405 = vld [vmem:[%s360] sm:$0x7]
        %s406 = smul.u32 %s18, 7
        %s407 = smul.u32 %s406, 6
        %s408 = smul.addr %s407, 8
        %s409 = scalar_lea.vmem %s317, %s408 [#allocation3]
        %v410 = vld [vmem:[%s409] sm:$0xff]
        %v411 = vld [vmem:[%s409 + $0x8] sm:$0xff]
        %v412 = vld [vmem:[%s409 + $0x10] sm:$0xff]
        %v413 = vld [vmem:[%s409 + $0x18] sm:$0xff]
        %v414 = vld [vmem:[%s409 + $0x20] sm:$0xff]
        %v415 = vld [vmem:[%s409 + $0x28] sm:$0xff]
        %v416 = vld [vmem:[#allocation2] sm:$0xff]
        %v417 = vld [vmem:[#allocation2 + $0x8] sm:$0xff]
        %v418 = vpack.c.bf16 %v417, %v416
        %v420 = vlaneseq
        %v421 = vshrl.u32 %v420, 7
        %v422 = vsub.s32 0, %v421
        %v423 = vrot.slane %v405, %v422
        %v424 = vlaneseq
        %v425 = vshrl.u32 %v424, 7
        %v426 = vsub.s32 1, %v425
        %v427 = vrot.slane %v405, %v426
        %v428 = vlaneseq
        %v429 = vshrl.u32 %v428, 7
        %v430 = vsub.s32 2, %v429
        %v431 = vrot.slane %v405, %v430
        %v467 = vunpack.c.l.b16 %v373
        %v468 = vunpack.c.h.b16 %v373
        %v469 = vunpack.c.l.b16 %v374
        %v470 = vunpack.c.l.b16 %v375
        %v471 = vunpack.c.h.b16 %v375
        %v472 = vunpack.c.l.b16 %v376
        %v473 = vunpack.c.l.b16 %v377
        %v474 = vunpack.c.h.b16 %v377
        %v475 = vunpack.c.l.b16 %v378
        %v476 = vunpack.c.l.b16 %v379
        %v477 = vunpack.c.h.b16 %v379
        %v478 = vunpack.c.l.b16 %v380
        %v479 = vunpack.c.l.b16 %v381
        %v480 = vunpack.c.h.b16 %v381
        %v481 = vunpack.c.l.b16 %v382
        %v482 = vunpack.c.l.b16 %v383
        %v483 = vunpack.c.h.b16 %v383
        %v484 = vunpack.c.l.b16 %v384
        %v485 = vunpack.c.l.b16 %v385
        %v486 = vunpack.c.h.b16 %v385
        %v487 = vunpack.c.l.b16 %v386
        %v488 = vunpack.c.l.b16 %v387
        %v489 = vunpack.c.h.b16 %v387
        %v490 = vunpack.c.l.b16 %v388
        %v491 = vunpack.c.l.b16 %v389
        %v492 = vunpack.c.h.b16 %v389
        %v493 = vunpack.c.l.b16 %v390
        %v494 = vunpack.c.l.b16 %v391
        %v495 = vunpack.c.h.b16 %v391
        %v496 = vunpack.c.l.b16 %v392
        %v497 = vunpack.c.l.b16 %v393
        %v498 = vunpack.c.h.b16 %v393
        %v499 = vunpack.c.l.b16 %v394
        %v500 = vunpack.c.l.b16 %v395
        %v501 = vunpack.c.h.b16 %v395
        %v502 = vunpack.c.l.b16 %v396
        %v503 = vunpack.c.l.b16 %v397
        %v504 = vunpack.c.h.b16 %v397
        %v505 = vunpack.c.l.b16 %v398
        %v506 = vunpack.c.l.b16 %v399
        %v507 = vunpack.c.h.b16 %v399
        %v508 = vunpack.c.l.b16 %v400
        %v509 = vunpack.c.l.b16 %v401
        %v510 = vunpack.c.h.b16 %v401
        %v511 = vunpack.c.l.b16 %v402
        %v512 = vunpack.c.l.b16 %v403
        %v513 = vunpack.c.h.b16 %v403
        %v514 = vunpack.c.l.b16 %v404
        %v515 = vpack.c.b16 %v470, %v467
        %v516 = vpack.c.b16 %v471, %v468
        %v517 = vpack.c.b16 %v472, %v469
        %v518 = vpack.c.b16 %v476, %v473
        %v519 = vpack.c.b16 %v477, %v474
        %v520 = vpack.c.b16 %v478, %v475
        %v521 = vpack.c.b16 %v482, %v479
        %v522 = vpack.c.b16 %v483, %v480
        %v523 = vpack.c.b16 %v484, %v481
        %v524 = vpack.c.b16 %v488, %v485
        %v525 = vpack.c.b16 %v489, %v486
        %v526 = vpack.c.b16 %v490, %v487
        %v527 = vpack.c.b16 %v494, %v491
        %v528 = vpack.c.b16 %v495, %v492
        %v529 = vpack.c.b16 %v496, %v493
        %v530 = vpack.c.b16 %v500, %v497
        %v531 = vpack.c.b16 %v501, %v498
        %v532 = vpack.c.b16 %v502, %v499
        %v533 = vpack.c.b16 %v506, %v503
        %v534 = vpack.c.b16 %v507, %v504
        %v535 = vpack.c.b16 %v508, %v505
        %v536 = vpack.c.b16 %v512, %v509
        %v537 = vpack.c.b16 %v513, %v510
        %v538 = vpack.c.b16 %v514, %v511
        %563 = vmatprep.subr.bf16.mxu0 %v516
        %564 = vmatpush1.bf16.msra.mxu0 %v515
        %565 = vmatprep.subr.bf16.mxu0 %v519
        %566 = vmatpush1.bf16.msra.mxu0 %v518
        %567 = vmatprep.subr.bf16.mxu0 %v522
        %568 = vmatpush1.bf16.msra.mxu0 %v521
        %569 = vmatprep.subr.bf16.mxu0 %v525
        %570 = vmatpush1.bf16.msra.mxu0 %v524
        %571 = vmatprep.subr.bf16.mxu0 %v528
        %572 = vmatpush1.bf16.msra.mxu0 %v527
        %573 = vmatprep.subr.bf16.mxu0 %v531
        %574 = vmatpush1.bf16.msra.mxu0 %v530
        %575 = vmatprep.subr.bf16.mxu0 %v534
        %576 = vmatpush1.bf16.msra.mxu0 %v533
        %577 = vmatprep.subr.bf16.mxu0 %v537
        %578 = vmatpush1.bf16.msra.mxu0 %v536
        %579 = vmatprep.subr.bf16.mxu0 0
        %580 = vmatpush1.bf16.msra.mxu0 0
        %581 = vmatprep.subr.bf16.mxu0 0
        %582 = vmatpush1.bf16.msra.mxu0 0
        %583 = vmatprep.subr.bf16.mxu0 0
        %584 = vmatpush1.bf16.msra.mxu0 0
        %585 = vmatprep.subr.bf16.mxu0 0
        %586 = vmatpush1.bf16.msra.mxu0 0
        %587 = vmatprep.subr.bf16.mxu0 0
        %588 = vmatpush1.bf16.msra.mxu0 0
        %589 = vmatprep.subr.bf16.mxu0 0
        %590 = vmatpush1.bf16.msra.mxu0 0
        %591 = vmatprep.subr.bf16.mxu0 0
        %592 = vmatpush1.bf16.msra.mxu0 0
        %593 = vmatprep.subr.bf16.mxu0 0
        %594 = vmatpush1.bf16.msra.mxu0 0
        %595 = vmatprep.mubr.bf16.mxu0 0
        %596 = vmatmul.mubr.bf16.gmra.mrb[0].mxu0 %v418
        %v597 = vpop.f32.mrb[0].mxu0
        %v598 = vadd.f32 %v423, %v597
        %v599 = vpop.f32.mrb[0].mxu0
        %v600 = vadd.f32 %v427, %v599
        %v601 = vpop.f32.mrb[0].mxu0
        %v602 = vadd.f32 %v423, %v601
        %v603 = vpop.f32.mrb[0].mxu0
        %v604 = vadd.f32 %v427, %v603
        %605 = vdwg.mxu0
        %606 = vmatprep.subr.bf16.mxu0 0
        %607 = vmatpush1.bf16.msra.mxu0 %v517
        %608 = vmatprep.subr.bf16.mxu0 0
        %609 = vmatpush1.bf16.msra.mxu0 %v520
        %610 = vmatprep.subr.bf16.mxu0 0
        %611 = vmatpush1.bf16.msra.mxu0 %v523
        %612 = vmatprep.subr.bf16.mxu0 0
        %613 = vmatpush1.bf16.msra.mxu0 %v526
        %614 = vmatprep.subr.bf16.mxu0 0
        %615 = vmatpush1.bf16.msra.mxu0 %v529
        %616 = vmatprep.subr.bf16.mxu0 0
        %617 = vmatpush1.bf16.msra.mxu0 %v532
        %618 = vmatprep.subr.bf16.mxu0 0
        %619 = vmatpush1.bf16.msra.mxu0 %v535
        %620 = vmatprep.subr.bf16.mxu0 0
        %621 = vmatpush1.bf16.msra.mxu0 %v538
        %622 = vmatprep.subr.bf16.mxu0 0
        %623 = vmatpush1.bf16.msra.mxu0 0
        %624 = vmatprep.subr.bf16.mxu0 0
        %625 = vmatpush1.bf16.msra.mxu0 0
        %626 = vmatprep.subr.bf16.mxu0 0
        %627 = vmatpush1.bf16.msra.mxu0 0
        %628 = vmatprep.subr.bf16.mxu0 0
        %629 = vmatpush1.bf16.msra.mxu0 0
        %630 = vmatprep.subr.bf16.mxu0 0
        %631 = vmatpush1.bf16.msra.mxu0 0
        %632 = vmatprep.subr.bf16.mxu0 0
        %633 = vmatpush1.bf16.msra.mxu0 0
        %634 = vmatprep.subr.bf16.mxu0 0
        %635 = vmatpush1.bf16.msra.mxu0 0
        %636 = vmatprep.subr.bf16.mxu0 0
        %637 = vmatpush1.bf16.msra.mxu0 0
        %638 = vmatprep.mubr.bf16.mxu0 0
        %639 = vmatmul.mubr.bf16.gmra.mrb[0].mxu0 %v418
        %v640 = vpop.f32.mrb[0].mxu0
        %v641 = vadd.f32 %v431, %v640
        %v642 = vpop.f32.mrb[0].mxu0
        %v643 = vpop.f32.mrb[0].mxu0
        %v644 = vadd.f32 %v431, %v643
        %v645 = vpop.f32.mrb[0].mxu0
        %646 = vdwg.mxu0
        %v647 = vadd.f32 %v410, %v598
        %v648 = vadd.f32 %v413, %v602
        %v649 = vxor.u32 %v647, 2147483648
        %v650 = vxor.u32 %v648, 2147483648
        %v651 = vmul.f32 %v649, 1.442695
        %v652 = vpow.pop %v651
        %v653 = vmul.f32 %v650, 1.442695
        %v654 = vpow.pop %v653
        %v655 = vadd.f32 %v652, 1.0
        %v656 = vadd.f32 %v654, 1.0
        %v657 = vrcp.pop %v655
        %v658 = vmul.f32 1.0, %v657
        %v659 = vrcp.pop %v656
        %v660 = vmul.f32 1.0, %v659
        %v661 = vadd.f32 %v411, %v600
        %v662 = vadd.f32 %v414, %v604
        %v663 = vxor.u32 %v661, 2147483648
        %v664 = vxor.u32 %v662, 2147483648
        %v665 = vmul.f32 %v663, 1.442695
        %v666 = vpow.pop %v665
        %v667 = vmul.f32 %v664, 1.442695
        %v668 = vpow.pop %v667
        %v669 = vadd.f32 %v666, 1.0
        %v670 = vadd.f32 %v668, 1.0
        %v671 = vrcp.pop %v669
        %v672 = vmul.f32 1.0, %v671
        %v673 = vrcp.pop %v670
        %v674 = vmul.f32 1.0, %v673
        %v675 = vmul.f32 %v658, %v641
        %v676 = vmul.f32 %v660, %v644
        %v677 = vadd.f32 %v412, %v675
        %v678 = vadd.f32 %v415, %v676
        %v679 = vtanh.pop %v677
        %v680 = vtanh.pop %v678
        %v681 = vsub.f32 1.0, %v672
        %v682 = vsub.f32 1.0, %v674
        %v683 = vmul.f32 %v681, %v679
        %v684 = vmul.f32 %v682, %v680
        %v685 = vmul.f32 %v672, %v416
        %v686 = vmul.f32 %v674, %v417
        %v687 = vadd.f32 %v683, %v685
        %v688 = vadd.f32 %v684, %v686
        %689 = vst [vmem:[#allocation2] sm:$0xff] %v687
        %690 = vst [vmem:[#allocation2 + $0x8] sm:$0xff] %v688
        %s691 = smul.u32 %s406, 16
        %s692 = scalar_lea.vmem %s345, %s691 [#allocation4]
        %693 = vst [vmem:[%s692] sm:$0xff] %v687
        %694 = vst [vmem:[%s692 + $0x8] sm:$0xff] %v688
        %s695 = smul.u32 %s18, 5
        %s696 = sadd.s32 %s695, 1
        %s697 = smul.u32 %s696, 6
        %s698 = smul.addr %s697, 8
        %s699 = scalar_lea.vmem %s317, %s698 [#allocation3]
        %v700 = vld [vmem:[%s699] sm:$0xff]
        %v701 = vld [vmem:[%s699 + $0x8] sm:$0xff]
        %v702 = vld [vmem:[%s699 + $0x10] sm:$0xff]
        %v703 = vld [vmem:[%s699 + $0x18] sm:$0xff]
        %v704 = vld [vmem:[%s699 + $0x20] sm:$0xff]
        %v705 = vld [vmem:[%s699 + $0x28] sm:$0xff]
        %v706 = vld [vmem:[#allocation2] sm:$0xff]
        %v707 = vld [vmem:[#allocation2 + $0x8] sm:$0xff]
        %v708 = vpack.c.bf16 %v707, %v706
        %709 = vmatprep.subr.bf16.mxu0 %v516
        %710 = vmatpush1.bf16.msra.mxu0 %v515
        %711 = vmatprep.subr.bf16.mxu0 %v519
        %712 = vmatpush1.bf16.msra.mxu0 %v518
        %713 = vmatprep.subr.bf16.mxu0 %v522
        %714 = vmatpush1.bf16.msra.mxu0 %v521
        %715 = vmatprep.subr.bf16.mxu0 %v525
        %716 = vmatpush1.bf16.msra.mxu0 %v524
        %717 = vmatprep.subr.bf16.mxu0 %v528
        %718 = vmatpush1.bf16.msra.mxu0 %v527
        %719 = vmatprep.subr.bf16.mxu0 %v531
        %720 = vmatpush1.bf16.msra.mxu0 %v530
        %721 = vmatprep.subr.bf16.mxu0 %v534
        %722 = vmatpush1.bf16.msra.mxu0 %v533
        %723 = vmatprep.subr.bf16.mxu0 %v537
        %724 = vmatpush1.bf16.msra.mxu0 %v536
        %725 = vmatprep.subr.bf16.mxu0 0
        %726 = vmatpush1.bf16.msra.mxu0 0
        %727 = vmatprep.subr.bf16.mxu0 0
        %728 = vmatpush1.bf16.msra.mxu0 0
        %729 = vmatprep.subr.bf16.mxu0 0
        %730 = vmatpush1.bf16.msra.mxu0 0
        %731 = vmatprep.subr.bf16.mxu0 0
        %732 = vmatpush1.bf16.msra.mxu0 0
        %733 = vmatprep.subr.bf16.mxu0 0
        %734 = vmatpush1.bf16.msra.mxu0 0
        %735 = vmatprep.subr.bf16.mxu0 0
        %736 = vmatpush1.bf16.msra.mxu0 0
        %737 = vmatprep.subr.bf16.mxu0 0
        %738 = vmatpush1.bf16.msra.mxu0 0
        %739 = vmatprep.subr.bf16.mxu0 0
        %740 = vmatpush1.bf16.msra.mxu0 0
        %741 = vmatprep.mubr.bf16.mxu0 0
        %742 = vmatmul.mubr.bf16.gmra.mrb[0].mxu0 %v708
        %v743 = vpop.f32.mrb[0].mxu0
        %v744 = vadd.f32 %v423, %v743
        %v745 = vpop.f32.mrb[0].mxu0
        %v746 = vadd.f32 %v427, %v745
        %v747 = vpop.f32.mrb[0].mxu0
        %v748 = vadd.f32 %v423, %v747
        %v749 = vpop.f32.mrb[0].mxu0
        %v750 = vadd.f32 %v427, %v749
        %751 = vdwg.mxu0
        %752 = vmatprep.subr.bf16.mxu0 0
        %753 = vmatpush1.bf16.msra.mxu0 %v517
        %754 = vmatprep.subr.bf16.mxu0 0
        %755 = vmatpush1.bf16.msra.mxu0 %v520
        %756 = vmatprep.subr.bf16.mxu0 0
        %757 = vmatpush1.bf16.msra.mxu0 %v523
        %758 = vmatprep.subr.bf16.mxu0 0
        %759 = vmatpush1.bf16.msra.mxu0 %v526
        %760 = vmatprep.subr.bf16.mxu0 0
        %761 = vmatpush1.bf16.msra.mxu0 %v529
        %762 = vmatprep.subr.bf16.mxu0 0
        %763 = vmatpush1.bf16.msra.mxu0 %v532
        %764 = vmatprep.subr.bf16.mxu0 0
        %765 = vmatpush1.bf16.msra.mxu0 %v535
        %766 = vmatprep.subr.bf16.mxu0 0
        %767 = vmatpush1.bf16.msra.mxu0 %v538
        %768 = vmatprep.subr.bf16.mxu0 0
        %769 = vmatpush1.bf16.msra.mxu0 0
        %770 = vmatprep.subr.bf16.mxu0 0
        %771 = vmatpush1.bf16.msra.mxu0 0
        %772 = vmatprep.subr.bf16.mxu0 0
        %773 = vmatpush1.bf16.msra.mxu0 0
        %774 = vmatprep.subr.bf16.mxu0 0
        %775 = vmatpush1.bf16.msra.mxu0 0
        %776 = vmatprep.subr.bf16.mxu0 0
        %777 = vmatpush1.bf16.msra.mxu0 0
        %778 = vmatprep.subr.bf16.mxu0 0
        %779 = vmatpush1.bf16.msra.mxu0 0
        %780 = vmatprep.subr.bf16.mxu0 0
        %781 = vmatpush1.bf16.msra.mxu0 0
        %782 = vmatprep.subr.bf16.mxu0 0
        %783 = vmatpush1.bf16.msra.mxu0 0
        %784 = vmatprep.mubr.bf16.mxu0 0
        %785 = vmatmul.mubr.bf16.gmra.mrb[0].mxu0 %v708
        %v786 = vpop.f32.mrb[0].mxu0
        %v787 = vadd.f32 %v431, %v786
        %v788 = vpop.f32.mrb[0].mxu0
        %v789 = vpop.f32.mrb[0].mxu0
        %v790 = vadd.f32 %v431, %v789
        %v791 = vpop.f32.mrb[0].mxu0
        %792 = vdwg.mxu0
        %v793 = vadd.f32 %v700, %v744
        %v794 = vadd.f32 %v703, %v748
        %v795 = vxor.u32 %v793, 2147483648
        %v796 = vxor.u32 %v794, 2147483648
        %v797 = vmul.f32 %v795, 1.442695
        %v798 = vpow.pop %v797
        %v799 = vmul.f32 %v796, 1.442695
        %v800 = vpow.pop %v799
        %v801 = vadd.f32 %v798, 1.0
        %v802 = vadd.f32 %v800, 1.0
        %v803 = vrcp.pop %v801
        %v804 = vmul.f32 1.0, %v803
        %v805 = vrcp.pop %v802
        %v806 = vmul.f32 1.0, %v805
        %v807 = vadd.f32 %v701, %v746
        %v808 = vadd.f32 %v704, %v750
        %v809 = vxor.u32 %v807, 2147483648
        %v810 = vxor.u32 %v808, 2147483648
        %v811 = vmul.f32 %v809, 1.442695
        %v812 = vpow.pop %v811
        %v813 = vmul.f32 %v810, 1.442695
        %v814 = vpow.pop %v813
        %v815 = vadd.f32 %v812, 1.0
        %v816 = vadd.f32 %v814, 1.0
        %v817 = vrcp.pop %v815
        %v818 = vmul.f32 1.0, %v817
        %v819 = vrcp.pop %v816
        %v820 = vmul.f32 1.0, %v819
        %v821 = vmul.f32 %v804, %v787
        %v822 = vmul.f32 %v806, %v790
        %v823 = vadd.f32 %v702, %v821
        %v824 = vadd.f32 %v705, %v822
        %v825 = vtanh.pop %v823
        %v826 = vtanh.pop %v824
        %v827 = vsub.f32 1.0, %v818
        %v828 = vsub.f32 1.0, %v820
        %v829 = vmul.f32 %v827, %v825
        %v830 = vmul.f32 %v828, %v826
        %v831 = vmul.f32 %v818, %v706
        %v832 = vmul.f32 %v820, %v707
        %v833 = vadd.f32 %v829, %v831
        %v834 = vadd.f32 %v830, %v832
        %835 = vst [vmem:[#allocation2] sm:$0xff] %v833
        %836 = vst [vmem:[#allocation2 + $0x8] sm:$0xff] %v834
        %s837 = smul.u32 %s696, 16
        %s838 = scalar_lea.vmem %s345, %s837 [#allocation4]
        %839 = vst [vmem:[%s838] sm:$0xff] %v833
        %840 = vst [vmem:[%s838 + $0x8] sm:$0xff] %v834
        %s841 = smul.u32 %s18, 3
        %s842 = sadd.s32 %s841, 2
        %s843 = smul.u32 %s842, 6
        %s844 = smul.addr %s843, 8
        %s845 = scalar_lea.vmem %s317, %s844 [#allocation3]
        %v846 = vld [vmem:[%s845] sm:$0xff]
        %v847 = vld [vmem:[%s845 + $0x8] sm:$0xff]
        %v848 = vld [vmem:[%s845 + $0x10] sm:$0xff]
        %v849 = vld [vmem:[%s845 + $0x18] sm:$0xff]
        %v850 = vld [vmem:[%s845 + $0x20] sm:$0xff]
        %v851 = vld [vmem:[%s845 + $0x28] sm:$0xff]
        %v852 = vld [vmem:[#allocation2] sm:$0xff]
        %v853 = vld [vmem:[#allocation2 + $0x8] sm:$0xff]
        %v854 = vpack.c.bf16 %v853, %v852
        %855 = vmatprep.subr.bf16.mxu0 %v516
        %856 = vmatpush1.bf16.msra.mxu0 %v515
        %857 = vmatprep.subr.bf16.mxu0 %v519
        %858 = vmatpush1.bf16.msra.mxu0 %v518
        %859 = vmatprep.subr.bf16.mxu0 %v522
        %860 = vmatpush1.bf16.msra.mxu0 %v521
        %861 = vmatprep.subr.bf16.mxu0 %v525
        %862 = vmatpush1.bf16.msra.mxu0 %v524
        %863 = vmatprep.subr.bf16.mxu0 %v528
        %864 = vmatpush1.bf16.msra.mxu0 %v527
        %865 = vmatprep.subr.bf16.mxu0 %v531
        %866 = vmatpush1.bf16.msra.mxu0 %v530
        %867 = vmatprep.subr.bf16.mxu0 %v534
        %868 = vmatpush1.bf16.msra.mxu0 %v533
        %869 = vmatprep.subr.bf16.mxu0 %v537
        %870 = vmatpush1.bf16.msra.mxu0 %v536
        %871 = vmatprep.subr.bf16.mxu0 0
        %872 = vmatpush1.bf16.msra.mxu0 0
        %873 = vmatprep.subr.bf16.mxu0 0
        %874 = vmatpush1.bf16.msra.mxu0 0
        %875 = vmatprep.subr.bf16.mxu0 0
        %876 = vmatpush1.bf16.msra.mxu0 0
        %877 = vmatprep.subr.bf16.mxu0 0
        %878 = vmatpush1.bf16.msra.mxu0 0
        %879 = vmatprep.subr.bf16.mxu0 0
        %880 = vmatpush1.bf16.msra.mxu0 0
        %881 = vmatprep.subr.bf16.mxu0 0
        %882 = vmatpush1.bf16.msra.mxu0 0
        %883 = vmatprep.subr.bf16.mxu0 0
        %884 = vmatpush1.bf16.msra.mxu0 0
        %885 = vmatprep.subr.bf16.mxu0 0
        %886 = vmatpush1.bf16.msra.mxu0 0
        %887 = vmatprep.mubr.bf16.mxu0 0
        %888 = vmatmul.mubr.bf16.gmra.mrb[0].mxu0 %v854
        %v889 = vpop.f32.mrb[0].mxu0
        %v890 = vadd.f32 %v423, %v889
        %v891 = vpop.f32.mrb[0].mxu0
        %v892 = vadd.f32 %v427, %v891
        %v893 = vpop.f32.mrb[0].mxu0
        %v894 = vadd.f32 %v423, %v893
        %v895 = vpop.f32.mrb[0].mxu0
        %v896 = vadd.f32 %v427, %v895
        %897 = vdwg.mxu0
        %898 = vmatprep.subr.bf16.mxu0 0
        %899 = vmatpush1.bf16.msra.mxu0 %v517
        %900 = vmatprep.subr.bf16.mxu0 0
        %901 = vmatpush1.bf16.msra.mxu0 %v520
        %902 = vmatprep.subr.bf16.mxu0 0
        %903 = vmatpush1.bf16.msra.mxu0 %v523
        %904 = vmatprep.subr.bf16.mxu0 0
        %905 = vmatpush1.bf16.msra.mxu0 %v526
        %906 = vmatprep.subr.bf16.mxu0 0
        %907 = vmatpush1.bf16.msra.mxu0 %v529
        %908 = vmatprep.subr.bf16.mxu0 0
        %909 = vmatpush1.bf16.msra.mxu0 %v532
        %910 = vmatprep.subr.bf16.mxu0 0
        %911 = vmatpush1.bf16.msra.mxu0 %v535
        %912 = vmatprep.subr.bf16.mxu0 0
        %913 = vmatpush1.bf16.msra.mxu0 %v538
        %914 = vmatprep.subr.bf16.mxu0 0
        %915 = vmatpush1.bf16.msra.mxu0 0
        %916 = vmatprep.subr.bf16.mxu0 0
        %917 = vmatpush1.bf16.msra.mxu0 0
        %918 = vmatprep.subr.bf16.mxu0 0
        %919 = vmatpush1.bf16.msra.mxu0 0
        %920 = vmatprep.subr.bf16.mxu0 0
        %921 = vmatpush1.bf16.msra.mxu0 0
        %922 = vmatprep.subr.bf16.mxu0 0
        %923 = vmatpush1.bf16.msra.mxu0 0
        %924 = vmatprep.subr.bf16.mxu0 0
        %925 = vmatpush1.bf16.msra.mxu0 0
        %926 = vmatprep.subr.bf16.mxu0 0
        %927 = vmatpush1.bf16.msra.mxu0 0
        %928 = vmatprep.subr.bf16.mxu0 0
        %929 = vmatpush1.bf16.msra.mxu0 0
        %930 = vmatprep.mubr.bf16.mxu0 0
        %931 = vmatmul.mubr.bf16.gmra.mrb[0].mxu0 %v854
        %v932 = vpop.f32.mrb[0].mxu0
        %v933 = vadd.f32 %v431, %v932
        %v934 = vpop.f32.mrb[0].mxu0
        %v935 = vpop.f32.mrb[0].mxu0
        %v936 = vadd.f32 %v431, %v935
        %v937 = vpop.f32.mrb[0].mxu0
        %938 = vdwg.mxu0
        %v939 = vadd.f32 %v846, %v890
        %v940 = vadd.f32 %v849, %v894
        %v941 = vxor.u32 %v939, 2147483648
        %v942 = vxor.u32 %v940, 2147483648
        %v943 = vmul.f32 %v941, 1.442695
        %v944 = vpow.pop %v943
        %v945 = vmul.f32 %v942, 1.442695
        %v946 = vpow.pop %v945
        %v947 = vadd.f32 %v944, 1.0
        %v948 = vadd.f32 %v946, 1.0
        %v949 = vrcp.pop %v947
        %v950 = vmul.f32 1.0, %v949
        %v951 = vrcp.pop %v948
        %v952 = vmul.f32 1.0, %v951
        %v953 = vadd.f32 %v847, %v892
        %v954 = vadd.f32 %v850, %v896
        %v955 = vxor.u32 %v953, 2147483648
        %v956 = vxor.u32 %v954, 2147483648
        %v957 = vmul.f32 %v955, 1.442695
        %v958 = vpow.pop %v957
        %v959 = vmul.f32 %v956, 1.442695
        %v960 = vpow.pop %v959
        %v961 = vadd.f32 %v958, 1.0
        %v962 = vadd.f32 %v960, 1.0
        %v963 = vrcp.pop %v961
        %v964 = vmul.f32 1.0, %v963
        %v965 = vrcp.pop %v962
        %v966 = vmul.f32 1.0, %v965
        %v967 = vmul.f32 %v950, %v933
        %v968 = vmul.f32 %v952, %v936
        %v969 = vadd.f32 %v848, %v967
        %v970 = vadd.f32 %v851, %v968
        %v971 = vtanh.pop %v969
        %v972 = vtanh.pop %v970
        %v973 = vsub.f32 1.0, %v964
        %v974 = vsub.f32 1.0, %v966
        %v975 = vmul.f32 %v973, %v971
        %v976 = vmul.f32 %v974, %v972
        %v977 = vmul.f32 %v964, %v852
        %v978 = vmul.f32 %v966, %v853
        %v979 = vadd.f32 %v975, %v977
        %v980 = vadd.f32 %v976, %v978
        %981 = vst [vmem:[#allocation2] sm:$0xff] %v979
        %982 = vst [vmem:[#allocation2 + $0x8] sm:$0xff] %v980
        %s983 = smul.u32 %s842, 16
        %s984 = scalar_lea.vmem %s345, %s983 [#allocation4]
        %985 = vst [vmem:[%s984] sm:$0xff] %v979
        %986 = vst [vmem:[%s984 + $0x8] sm:$0xff] %v980
        %s987 = sadd.s32 %s18, 3
        %s988 = smul.u32 %s987, 6
        %s989 = smul.addr %s988, 8
        %s990 = scalar_lea.vmem %s317, %s989 [#allocation3]
        %v991 = vld [vmem:[%s990] sm:$0xff]
        %v992 = vld [vmem:[%s990 + $0x8] sm:$0xff]
        %v993 = vld [vmem:[%s990 + $0x10] sm:$0xff]
        %v994 = vld [vmem:[%s990 + $0x18] sm:$0xff]
        %v995 = vld [vmem:[%s990 + $0x20] sm:$0xff]
        %v996 = vld [vmem:[%s990 + $0x28] sm:$0xff]
        %v997 = vld [vmem:[#allocation2] sm:$0xff]
        %v998 = vld [vmem:[#allocation2 + $0x8] sm:$0xff]
        %v999 = vpack.c.bf16 %v998, %v997
        %1000 = vmatprep.subr.bf16.mxu0 %v516
        %1001 = vmatpush1.bf16.msra.mxu0 %v515
        %1002 = vmatprep.subr.bf16.mxu0 %v519
        %1003 = vmatpush1.bf16.msra.mxu0 %v518
        %1004 = vmatprep.subr.bf16.mxu0 %v522
        %1005 = vmatpush1.bf16.msra.mxu0 %v521
        %1006 = vmatprep.subr.bf16.mxu0 %v525
        %1007 = vmatpush1.bf16.msra.mxu0 %v524
        %1008 = vmatprep.subr.bf16.mxu0 %v528
        %1009 = vmatpush1.bf16.msra.mxu0 %v527
        %1010 = vmatprep.subr.bf16.mxu0 %v531
        %1011 = vmatpush1.bf16.msra.mxu0 %v530
        %1012 = vmatprep.subr.bf16.mxu0 %v534
        %1013 = vmatpush1.bf16.msra.mxu0 %v533
        %1014 = vmatprep.subr.bf16.mxu0 %v537
        %1015 = vmatpush1.bf16.msra.mxu0 %v536
        %1016 = vmatprep.subr.bf16.mxu0 0
        %1017 = vmatpush1.bf16.msra.mxu0 0
        %1018 = vmatprep.subr.bf16.mxu0 0
        %1019 = vmatpush1.bf16.msra.mxu0 0
        %1020 = vmatprep.subr.bf16.mxu0 0
        %1021 = vmatpush1.bf16.msra.mxu0 0
        %1022 = vmatprep.subr.bf16.mxu0 0
        %1023 = vmatpush1.bf16.msra.mxu0 0
        %1024 = vmatprep.subr.bf16.mxu0 0
        %1025 = vmatpush1.bf16.msra.mxu0 0
        %1026 = vmatprep.subr.bf16.mxu0 0
        %1027 = vmatpush1.bf16.msra.mxu0 0
        %1028 = vmatprep.subr.bf16.mxu0 0
        %1029 = vmatpush1.bf16.msra.mxu0 0
        %1030 = vmatprep.subr.bf16.mxu0 0
        %1031 = vmatpush1.bf16.msra.mxu0 0
        %1032 = vmatprep.mubr.bf16.mxu0 0
        %1033 = vmatmul.mubr.bf16.gmra.mrb[0].mxu0 %v999
        %v1034 = vpop.f32.mrb[0].mxu0
        %v1035 = vadd.f32 %v423, %v1034
        %v1036 = vpop.f32.mrb[0].mxu0
        %v1037 = vadd.f32 %v427, %v1036
        %v1038 = vpop.f32.mrb[0].mxu0
        %v1039 = vadd.f32 %v423, %v1038
        %v1040 = vpop.f32.mrb[0].mxu0
        %v1041 = vadd.f32 %v427, %v1040
        %1042 = vdwg.mxu0
        %1043 = vmatprep.subr.bf16.mxu0 0
        %1044 = vmatpush1.bf16.msra.mxu0 %v517
        %1045 = vmatprep.subr.bf16.mxu0 0
        %1046 = vmatpush1.bf16.msra.mxu0 %v520
        %1047 = vmatprep.subr.bf16.mxu0 0
        %1048 = vmatpush1.bf16.msra.mxu0 %v523
        %1049 = vmatprep.subr.bf16.mxu0 0
        %1050 = vmatpush1.bf16.msra.mxu0 %v526
        %1051 = vmatprep.subr.bf16.mxu0 0
        %1052 = vmatpush1.bf16.msra.mxu0 %v529
        %1053 = vmatprep.subr.bf16.mxu0 0
        %1054 = vmatpush1.bf16.msra.mxu0 %v532
        %1055 = vmatprep.subr.bf16.mxu0 0
        %1056 = vmatpush1.bf16.msra.mxu0 %v535
        %1057 = vmatprep.subr.bf16.mxu0 0
        %1058 = vmatpush1.bf16.msra.mxu0 %v538
        %1059 = vmatprep.subr.bf16.mxu0 0
        %1060 = vmatpush1.bf16.msra.mxu0 0
        %1061 = vmatprep.subr.bf16.mxu0 0
        %1062 = vmatpush1.bf16.msra.mxu0 0
        %1063 = vmatprep.subr.bf16.mxu0 0
        %1064 = vmatpush1.bf16.msra.mxu0 0
        %1065 = vmatprep.subr.bf16.mxu0 0
        %1066 = vmatpush1.bf16.msra.mxu0 0
        %1067 = vmatprep.subr.bf16.mxu0 0
        %1068 = vmatpush1.bf16.msra.mxu0 0
        %1069 = vmatprep.subr.bf16.mxu0 0
        %1070 = vmatpush1.bf16.msra.mxu0 0
        %1071 = vmatprep.subr.bf16.mxu0 0
        %1072 = vmatpush1.bf16.msra.mxu0 0
        %1073 = vmatprep.subr.bf16.mxu0 0
        %1074 = vmatpush1.bf16.msra.mxu0 0
        %1075 = vmatprep.mubr.bf16.mxu0 0
        %1076 = vmatmul.mubr.bf16.gmra.mrb[0].mxu0 %v999
        %v1077 = vpop.f32.mrb[0].mxu0
        %v1078 = vadd.f32 %v431, %v1077
        %v1079 = vpop.f32.mrb[0].mxu0
        %v1080 = vpop.f32.mrb[0].mxu0
        %v1081 = vadd.f32 %v431, %v1080
        %v1082 = vpop.f32.mrb[0].mxu0
        %1083 = vdwg.mxu0
        %v1084 = vadd.f32 %v991, %v1035
        %v1085 = vadd.f32 %v994, %v1039
        %v1086 = vxor.u32 %v1084, 2147483648
        %v1087 = vxor.u32 %v1085, 2147483648
        %v1088 = vmul.f32 %v1086, 1.442695
        %v1089 = vpow.pop %v1088
        %v1090 = vmul.f32 %v1087, 1.442695
        %v1091 = vpow.pop %v1090
        %v1092 = vadd.f32 %v1089, 1.0
        %v1093 = vadd.f32 %v1091, 1.0
        %v1094 = vrcp.pop %v1092
        %v1095 = vmul.f32 1.0, %v1094
        %v1096 = vrcp.pop %v1093
        %v1097 = vmul.f32 1.0, %v1096
        %v1098 = vadd.f32 %v992, %v1037
        %v1099 = vadd.f32 %v995, %v1041
        %v1100 = vxor.u32 %v1098, 2147483648
        %v1101 = vxor.u32 %v1099, 2147483648
        %v1102 = vmul.f32 %v1100, 1.442695
        %v1103 = vpow.pop %v1102
        %v1104 = vmul.f32 %v1101, 1.442695
        %v1105 = vpow.pop %v1104
        %v1106 = vadd.f32 %v1103, 1.0
        %v1107 = vadd.f32 %v1105, 1.0
        %v1108 = vrcp.pop %v1106
        %v1109 = vmul.f32 1.0, %v1108
        %v1110 = vrcp.pop %v1107
        %v1111 = vmul.f32 1.0, %v1110
        %v1112 = vmul.f32 %v1095, %v1078
        %v1113 = vmul.f32 %v1097, %v1081
        %v1114 = vadd.f32 %v993, %v1112
        %v1115 = vadd.f32 %v996, %v1113
        %v1116 = vtanh.pop %v1114
        %v1117 = vtanh.pop %v1115
        %v1118 = vsub.f32 1.0, %v1109
        %v1119 = vsub.f32 1.0, %v1111
        %v1120 = vmul.f32 %v1118, %v1116
        %v1121 = vmul.f32 %v1119, %v1117
        %v1122 = vmul.f32 %v1109, %v997
        %v1123 = vmul.f32 %v1111, %v998
        %v1124 = vadd.f32 %v1120, %v1122
        %v1125 = vadd.f32 %v1121, %v1123
        %1126 = vst [vmem:[#allocation2] sm:$0xff] %v1124
        %1127 = vst [vmem:[#allocation2 + $0x8] sm:$0xff] %v1125
        %s1128 = smul.u32 %s987, 16
        %s1129 = scalar_lea.vmem %s345, %s1128 [#allocation4]
        %1130 = vst [vmem:[%s1129] sm:$0xff] %v1124
        %1131 = vst [vmem:[%s1129 + $0x8] sm:$0xff] %v1125
        %s1132 = ssub.s32 4, %s18
        %s1133 = smul.u32 %s1132, 6
        %s1134 = smul.addr %s1133, 8
        %s1135 = scalar_lea.vmem %s317, %s1134 [#allocation3]
        %v1136 = vld [vmem:[%s1135] sm:$0xff]
        %v1137 = vld [vmem:[%s1135 + $0x8] sm:$0xff]
        %v1138 = vld [vmem:[%s1135 + $0x10] sm:$0xff]
        %v1139 = vld [vmem:[%s1135 + $0x18] sm:$0xff]
        %v1140 = vld [vmem:[%s1135 + $0x20] sm:$0xff]
        %v1141 = vld [vmem:[%s1135 + $0x28] sm:$0xff]
        %v1142 = vld [vmem:[#allocation2] sm:$0xff]
        %v1143 = vld [vmem:[#allocation2 + $0x8] sm:$0xff]
        %v1144 = vpack.c.bf16 %v1143, %v1142
        %1145 = vmatprep.subr.bf16.mxu0 %v516
        %1146 = vmatpush1.bf16.msra.mxu0 %v515
        %1147 = vmatprep.subr.bf16.mxu0 %v519
        %1148 = vmatpush1.bf16.msra.mxu0 %v518
        %1149 = vmatprep.subr.bf16.mxu0 %v522
        %1150 = vmatpush1.bf16.msra.mxu0 %v521
        %1151 = vmatprep.subr.bf16.mxu0 %v525
        %1152 = vmatpush1.bf16.msra.mxu0 %v524
        %1153 = vmatprep.subr.bf16.mxu0 %v528
        %1154 = vmatpush1.bf16.msra.mxu0 %v527
        %1155 = vmatprep.subr.bf16.mxu0 %v531
        %1156 = vmatpush1.bf16.msra.mxu0 %v530
        %1157 = vmatprep.subr.bf16.mxu0 %v534
        %1158 = vmatpush1.bf16.msra.mxu0 %v533
        %1159 = vmatprep.subr.bf16.mxu0 %v537
        %1160 = vmatpush1.bf16.msra.mxu0 %v536
        %1161 = vmatprep.subr.bf16.mxu0 0
        %1162 = vmatpush1.bf16.msra.mxu0 0
        %1163 = vmatprep.subr.bf16.mxu0 0
        %1164 = vmatpush1.bf16.msra.mxu0 0
        %1165 = vmatprep.subr.bf16.mxu0 0
        %1166 = vmatpush1.bf16.msra.mxu0 0
        %1167 = vmatprep.subr.bf16.mxu0 0
        %1168 = vmatpush1.bf16.msra.mxu0 0
        %1169 = vmatprep.subr.bf16.mxu0 0
        %1170 = vmatpush1.bf16.msra.mxu0 0
        %1171 = vmatprep.subr.bf16.mxu0 0
        %1172 = vmatpush1.bf16.msra.mxu0 0
        %1173 = vmatprep.subr.bf16.mxu0 0
        %1174 = vmatpush1.bf16.msra.mxu0 0
        %1175 = vmatprep.subr.bf16.mxu0 0
        %1176 = vmatpush1.bf16.msra.mxu0 0
        %1177 = vmatprep.mubr.bf16.mxu0 0
        %1178 = vmatmul.mubr.bf16.gmra.mrb[0].mxu0 %v1144
        %v1179 = vpop.f32.mrb[0].mxu0
        %v1180 = vadd.f32 %v423, %v1179
        %v1181 = vpop.f32.mrb[0].mxu0
        %v1182 = vadd.f32 %v427, %v1181
        %v1183 = vpop.f32.mrb[0].mxu0
        %v1184 = vadd.f32 %v423, %v1183
        %v1185 = vpop.f32.mrb[0].mxu0
        %v1186 = vadd.f32 %v427, %v1185
        %1187 = vdwg.mxu0
        %1188 = vmatprep.subr.bf16.mxu0 0
        %1189 = vmatpush1.bf16.msra.mxu0 %v517
        %1190 = vmatprep.subr.bf16.mxu0 0
        %1191 = vmatpush1.bf16.msra.mxu0 %v520
        %1192 = vmatprep.subr.bf16.mxu0 0
        %1193 = vmatpush1.bf16.msra.mxu0 %v523
        %1194 = vmatprep.subr.bf16.mxu0 0
        %1195 = vmatpush1.bf16.msra.mxu0 %v526
        %1196 = vmatprep.subr.bf16.mxu0 0
        %1197 = vmatpush1.bf16.msra.mxu0 %v529
        %1198 = vmatprep.subr.bf16.mxu0 0
        %1199 = vmatpush1.bf16.msra.mxu0 %v532
        %1200 = vmatprep.subr.bf16.mxu0 0
        %1201 = vmatpush1.bf16.msra.mxu0 %v535
        %1202 = vmatprep.subr.bf16.mxu0 0
        %1203 = vmatpush1.bf16.msra.mxu0 %v538
        %1204 = vmatprep.subr.bf16.mxu0 0
        %1205 = vmatpush1.bf16.msra.mxu0 0
        %1206 = vmatprep.subr.bf16.mxu0 0
        %1207 = vmatpush1.bf16.msra.mxu0 0
        %1208 = vmatprep.subr.bf16.mxu0 0
        %1209 = vmatpush1.bf16.msra.mxu0 0
        %1210 = vmatprep.subr.bf16.mxu0 0
        %1211 = vmatpush1.bf16.msra.mxu0 0
        %1212 = vmatprep.subr.bf16.mxu0 0
        %1213 = vmatpush1.bf16.msra.mxu0 0
        %1214 = vmatprep.subr.bf16.mxu0 0
        %1215 = vmatpush1.bf16.msra.mxu0 0
        %1216 = vmatprep.subr.bf16.mxu0 0
        %1217 = vmatpush1.bf16.msra.mxu0 0
        %1218 = vmatprep.subr.bf16.mxu0 0
        %1219 = vmatpush1.bf16.msra.mxu0 0
        %1220 = vmatprep.mubr.bf16.mxu0 0
        %1221 = vmatmul.mubr.bf16.gmra.mrb[0].mxu0 %v1144
        %v1222 = vpop.f32.mrb[0].mxu0
        %v1223 = vadd.f32 %v431, %v1222
        %v1224 = vpop.f32.mrb[0].mxu0
        %v1225 = vpop.f32.mrb[0].mxu0
        %v1226 = vadd.f32 %v431, %v1225
        %v1227 = vpop.f32.mrb[0].mxu0
        %1228 = vdwg.mxu0
        %v1229 = vadd.f32 %v1136, %v1180
        %v1230 = vadd.f32 %v1139, %v1184
        %v1231 = vxor.u32 %v1229, 2147483648
        %v1232 = vxor.u32 %v1230, 2147483648
        %v1233 = vmul.f32 %v1231, 1.442695
        %v1234 = vpow.pop %v1233
        %v1235 = vmul.f32 %v1232, 1.442695
        %v1236 = vpow.pop %v1235
        %v1237 = vadd.f32 %v1234, 1.0
        %v1238 = vadd.f32 %v1236, 1.0
        %v1239 = vrcp.pop %v1237
        %v1240 = vmul.f32 1.0, %v1239
        %v1241 = vrcp.pop %v1238
        %v1242 = vmul.f32 1.0, %v1241
        %v1243 = vadd.f32 %v1137, %v1182
        %v1244 = vadd.f32 %v1140, %v1186
        %v1245 = vxor.u32 %v1243, 2147483648
        %v1246 = vxor.u32 %v1244, 2147483648
        %v1247 = vmul.f32 %v1245, 1.442695
        %v1248 = vpow.pop %v1247
        %v1249 = vmul.f32 %v1246, 1.442695
        %v1250 = vpow.pop %v1249
        %v1251 = vadd.f32 %v1248, 1.0
        %v1252 = vadd.f32 %v1250, 1.0
        %v1253 = vrcp.pop %v1251
        %v1254 = vmul.f32 1.0, %v1253
        %v1255 = vrcp.pop %v1252
        %v1256 = vmul.f32 1.0, %v1255
        %v1257 = vmul.f32 %v1240, %v1223
        %v1258 = vmul.f32 %v1242, %v1226
        %v1259 = vadd.f32 %v1138, %v1257
        %v1260 = vadd.f32 %v1141, %v1258
        %v1261 = vtanh.pop %v1259
        %v1262 = vtanh.pop %v1260
        %v1263 = vsub.f32 1.0, %v1254
        %v1264 = vsub.f32 1.0, %v1256
        %v1265 = vmul.f32 %v1263, %v1261
        %v1266 = vmul.f32 %v1264, %v1262
        %v1267 = vmul.f32 %v1254, %v1142
        %v1268 = vmul.f32 %v1256, %v1143
        %v1269 = vadd.f32 %v1265, %v1267
        %v1270 = vadd.f32 %v1266, %v1268
        %1271 = vst [vmem:[#allocation2] sm:$0xff] %v1269
        %1272 = vst [vmem:[#allocation2 + $0x8] sm:$0xff] %v1270
        %s1273 = smul.u32 %s1132, 16
        %s1274 = scalar_lea.vmem %s345, %s1273 [#allocation4]
        %1275 = vst [vmem:[%s1274] sm:$0xff] %v1269
        %1276 = vst [vmem:[%s1274 + $0x8] sm:$0xff] %v1270
        %s1277 = smul.u32 %s18, 4294967293
        %s1278 = sadd.s32 %s1277, 5
        %s1279 = smul.u32 %s1278, 6
        %s1280 = smul.addr %s1279, 8
        %s1281 = scalar_lea.vmem %s317, %s1280 [#allocation3]
        %v1282 = vld [vmem:[%s1281] sm:$0xff]
        %v1283 = vld [vmem:[%s1281 + $0x8] sm:$0xff]
        %v1284 = vld [vmem:[%s1281 + $0x10] sm:$0xff]
        %v1285 = vld [vmem:[%s1281 + $0x18] sm:$0xff]
        %v1286 = vld [vmem:[%s1281 + $0x20] sm:$0xff]
        %v1287 = vld [vmem:[%s1281 + $0x28] sm:$0xff]
        %v1288 = vld [vmem:[#allocation2] sm:$0xff]
        %v1289 = vld [vmem:[#allocation2 + $0x8] sm:$0xff]
        %v1290 = vpack.c.bf16 %v1289, %v1288
        %1291 = vmatprep.subr.bf16.mxu0 %v516
        %1292 = vmatpush1.bf16.msra.mxu0 %v515
        %1293 = vmatprep.subr.bf16.mxu0 %v519
        %1294 = vmatpush1.bf16.msra.mxu0 %v518
        %1295 = vmatprep.subr.bf16.mxu0 %v522
        %1296 = vmatpush1.bf16.msra.mxu0 %v521
        %1297 = vmatprep.subr.bf16.mxu0 %v525
        %1298 = vmatpush1.bf16.msra.mxu0 %v524
        %1299 = vmatprep.subr.bf16.mxu0 %v528
        %1300 = vmatpush1.bf16.msra.mxu0 %v527
        %1301 = vmatprep.subr.bf16.mxu0 %v531
        %1302 = vmatpush1.bf16.msra.mxu0 %v530
        %1303 = vmatprep.subr.bf16.mxu0 %v534
        %1304 = vmatpush1.bf16.msra.mxu0 %v533
        %1305 = vmatprep.subr.bf16.mxu0 %v537
        %1306 = vmatpush1.bf16.msra.mxu0 %v536
        %1307 = vmatprep.subr.bf16.mxu0 0
        %1308 = vmatpush1.bf16.msra.mxu0 0
        %1309 = vmatprep.subr.bf16.mxu0 0
        %1310 = vmatpush1.bf16.msra.mxu0 0
        %1311 = vmatprep.subr.bf16.mxu0 0
        %1312 = vmatpush1.bf16.msra.mxu0 0
        %1313 = vmatprep.subr.bf16.mxu0 0
        %1314 = vmatpush1.bf16.msra.mxu0 0
        %1315 = vmatprep.subr.bf16.mxu0 0
        %1316 = vmatpush1.bf16.msra.mxu0 0
        %1317 = vmatprep.subr.bf16.mxu0 0
        %1318 = vmatpush1.bf16.msra.mxu0 0
        %1319 = vmatprep.subr.bf16.mxu0 0
        %1320 = vmatpush1.bf16.msra.mxu0 0
        %1321 = vmatprep.subr.bf16.mxu0 0
        %1322 = vmatpush1.bf16.msra.mxu0 0
        %1323 = vmatprep.mubr.bf16.mxu0 0
        %1324 = vmatmul.mubr.bf16.gmra.mrb[0].mxu0 %v1290
        %v1325 = vpop.f32.mrb[0].mxu0
        %v1326 = vadd.f32 %v423, %v1325
        %v1327 = vpop.f32.mrb[0].mxu0
        %v1328 = vadd.f32 %v427, %v1327
        %v1329 = vpop.f32.mrb[0].mxu0
        %v1330 = vadd.f32 %v423, %v1329
        %v1331 = vpop.f32.mrb[0].mxu0
        %v1332 = vadd.f32 %v427, %v1331
        %1333 = vdwg.mxu0
        %1334 = vmatprep.subr.bf16.mxu0 0
        %1335 = vmatpush1.bf16.msra.mxu0 %v517
        %1336 = vmatprep.subr.bf16.mxu0 0
        %1337 = vmatpush1.bf16.msra.mxu0 %v520
        %1338 = vmatprep.subr.bf16.mxu0 0
        %1339 = vmatpush1.bf16.msra.mxu0 %v523
        %1340 = vmatprep.subr.bf16.mxu0 0
        %1341 = vmatpush1.bf16.msra.mxu0 %v526
        %1342 = vmatprep.subr.bf16.mxu0 0
        %1343 = vmatpush1.bf16.msra.mxu0 %v529
        %1344 = vmatprep.subr.bf16.mxu0 0
        %1345 = vmatpush1.bf16.msra.mxu0 %v532
        %1346 = vmatprep.subr.bf16.mxu0 0
        %1347 = vmatpush1.bf16.msra.mxu0 %v535
        %1348 = vmatprep.subr.bf16.mxu0 0
        %1349 = vmatpush1.bf16.msra.mxu0 %v538
        %1350 = vmatprep.subr.bf16.mxu0 0
        %1351 = vmatpush1.bf16.msra.mxu0 0
        %1352 = vmatprep.subr.bf16.mxu0 0
        %1353 = vmatpush1.bf16.msra.mxu0 0
        %1354 = vmatprep.subr.bf16.mxu0 0
        %1355 = vmatpush1.bf16.msra.mxu0 0
        %1356 = vmatprep.subr.bf16.mxu0 0
        %1357 = vmatpush1.bf16.msra.mxu0 0
        %1358 = vmatprep.subr.bf16.mxu0 0
        %1359 = vmatpush1.bf16.msra.mxu0 0
        %1360 = vmatprep.subr.bf16.mxu0 0
        %1361 = vmatpush1.bf16.msra.mxu0 0
        %1362 = vmatprep.subr.bf16.mxu0 0
        %1363 = vmatpush1.bf16.msra.mxu0 0
        %1364 = vmatprep.subr.bf16.mxu0 0
        %1365 = vmatpush1.bf16.msra.mxu0 0
        %1366 = vmatprep.mubr.bf16.mxu0 0
        %1367 = vmatmul.mubr.bf16.gmra.mrb[0].mxu0 %v1290
        %v1368 = vpop.f32.mrb[0].mxu0
        %v1369 = vadd.f32 %v431, %v1368
        %v1370 = vpop.f32.mrb[0].mxu0
        %v1371 = vpop.f32.mrb[0].mxu0
        %v1372 = vadd.f32 %v431, %v1371
        %v1373 = vpop.f32.mrb[0].mxu0
        %1374 = vdwg.mxu0
        %v1375 = vadd.f32 %v1282, %v1326
        %v1376 = vadd.f32 %v1285, %v1330
        %v1377 = vxor.u32 %v1375, 2147483648
        %v1378 = vxor.u32 %v1376, 2147483648
        %v1379 = vmul.f32 %v1377, 1.442695
        %v1380 = vpow.pop %v1379
        %v1381 = vmul.f32 %v1378, 1.442695
        %v1382 = vpow.pop %v1381
        %v1383 = vadd.f32 %v1380, 1.0
        %v1384 = vadd.f32 %v1382, 1.0
        %v1385 = vrcp.pop %v1383
        %v1386 = vmul.f32 1.0, %v1385
        %v1387 = vrcp.pop %v1384
        %v1388 = vmul.f32 1.0, %v1387
        %v1389 = vadd.f32 %v1283, %v1328
        %v1390 = vadd.f32 %v1286, %v1332
        %v1391 = vxor.u32 %v1389, 2147483648
        %v1392 = vxor.u32 %v1390, 2147483648
        %v1393 = vmul.f32 %v1391, 1.442695
        %v1394 = vpow.pop %v1393
        %v1395 = vmul.f32 %v1392, 1.442695
        %v1396 = vpow.pop %v1395
        %v1397 = vadd.f32 %v1394, 1.0
        %v1398 = vadd.f32 %v1396, 1.0
        %v1399 = vrcp.pop %v1397
        %v1400 = vmul.f32 1.0, %v1399
        %v1401 = vrcp.pop %v1398
        %v1402 = vmul.f32 1.0, %v1401
        %v1403 = vmul.f32 %v1386, %v1369
        %v1404 = vmul.f32 %v1388, %v1372
        %v1405 = vadd.f32 %v1284, %v1403
        %v1406 = vadd.f32 %v1287, %v1404
        %v1407 = vtanh.pop %v1405
        %v1408 = vtanh.pop %v1406
        %v1409 = vsub.f32 1.0, %v1400
        %v1410 = vsub.f32 1.0, %v1402
        %v1411 = vmul.f32 %v1409, %v1407
        %v1412 = vmul.f32 %v1410, %v1408
        %v1413 = vmul.f32 %v1400, %v1288
        %v1414 = vmul.f32 %v1402, %v1289
        %v1415 = vadd.f32 %v1411, %v1413
        %v1416 = vadd.f32 %v1412, %v1414
        %1417 = vst [vmem:[#allocation2] sm:$0xff] %v1415
        %1418 = vst [vmem:[#allocation2 + $0x8] sm:$0xff] %v1416
        %s1419 = smul.u32 %s1278, 16
        %s1420 = scalar_lea.vmem %s345, %s1419 [#allocation4]
        %1421 = vst [vmem:[%s1420] sm:$0xff] %v1415
        %1422 = vst [vmem:[%s1420 + $0x8] sm:$0xff] %v1416
        %s1423 = smul.u32 %s18, 4294967291
        %s1424 = sadd.s32 %s1423, 6
        %s1425 = smul.u32 %s1424, 6
        %s1426 = smul.addr %s1425, 8
        %s1427 = scalar_lea.vmem %s317, %s1426 [#allocation3]
        %v1428 = vld [vmem:[%s1427] sm:$0xff]
        %v1429 = vld [vmem:[%s1427 + $0x8] sm:$0xff]
        %v1430 = vld [vmem:[%s1427 + $0x10] sm:$0xff]
        %v1431 = vld [vmem:[%s1427 + $0x18] sm:$0xff]
        %v1432 = vld [vmem:[%s1427 + $0x20] sm:$0xff]
        %v1433 = vld [vmem:[%s1427 + $0x28] sm:$0xff]
        %v1434 = vld [vmem:[#allocation2] sm:$0xff]
        %v1435 = vld [vmem:[#allocation2 + $0x8] sm:$0xff]
        %v1436 = vpack.c.bf16 %v1435, %v1434
        %1437 = vmatprep.subr.bf16.mxu0 %v516
        %1438 = vmatpush1.bf16.msra.mxu0 %v515
        %1439 = vmatprep.subr.bf16.mxu0 %v519
        %1440 = vmatpush1.bf16.msra.mxu0 %v518
        %1441 = vmatprep.subr.bf16.mxu0 %v522
        %1442 = vmatpush1.bf16.msra.mxu0 %v521
        %1443 = vmatprep.subr.bf16.mxu0 %v525
        %1444 = vmatpush1.bf16.msra.mxu0 %v524
        %1445 = vmatprep.subr.bf16.mxu0 %v528
        %1446 = vmatpush1.bf16.msra.mxu0 %v527
        %1447 = vmatprep.subr.bf16.mxu0 %v531
        %1448 = vmatpush1.bf16.msra.mxu0 %v530
        %1449 = vmatprep.subr.bf16.mxu0 %v534
        %1450 = vmatpush1.bf16.msra.mxu0 %v533
        %1451 = vmatprep.subr.bf16.mxu0 %v537
        %1452 = vmatpush1.bf16.msra.mxu0 %v536
        %1453 = vmatprep.subr.bf16.mxu0 0
        %1454 = vmatpush1.bf16.msra.mxu0 0
        %1455 = vmatprep.subr.bf16.mxu0 0
        %1456 = vmatpush1.bf16.msra.mxu0 0
        %1457 = vmatprep.subr.bf16.mxu0 0
        %1458 = vmatpush1.bf16.msra.mxu0 0
        %1459 = vmatprep.subr.bf16.mxu0 0
        %1460 = vmatpush1.bf16.msra.mxu0 0
        %1461 = vmatprep.subr.bf16.mxu0 0
        %1462 = vmatpush1.bf16.msra.mxu0 0
        %1463 = vmatprep.subr.bf16.mxu0 0
        %1464 = vmatpush1.bf16.msra.mxu0 0
        %1465 = vmatprep.subr.bf16.mxu0 0
        %1466 = vmatpush1.bf16.msra.mxu0 0
        %1467 = vmatprep.subr.bf16.mxu0 0
        %1468 = vmatpush1.bf16.msra.mxu0 0
        %1469 = vmatprep.mubr.bf16.mxu0 0
        %1470 = vmatmul.mubr.bf16.gmra.mrb[0].mxu0 %v1436
        %v1471 = vpop.f32.mrb[0].mxu0
        %v1472 = vadd.f32 %v423, %v1471
        %v1473 = vpop.f32.mrb[0].mxu0
        %v1474 = vadd.f32 %v427, %v1473
        %v1475 = vpop.f32.mrb[0].mxu0
        %v1476 = vadd.f32 %v423, %v1475
        %v1477 = vpop.f32.mrb[0].mxu0
        %v1478 = vadd.f32 %v427, %v1477
        %1479 = vdwg.mxu0
        %1480 = vmatprep.subr.bf16.mxu0 0
        %1481 = vmatpush1.bf16.msra.mxu0 %v517
        %1482 = vmatprep.subr.bf16.mxu0 0
        %1483 = vmatpush1.bf16.msra.mxu0 %v520
        %1484 = vmatprep.subr.bf16.mxu0 0
        %1485 = vmatpush1.bf16.msra.mxu0 %v523
        %1486 = vmatprep.subr.bf16.mxu0 0
        %1487 = vmatpush1.bf16.msra.mxu0 %v526
        %1488 = vmatprep.subr.bf16.mxu0 0
        %1489 = vmatpush1.bf16.msra.mxu0 %v529
        %1490 = vmatprep.subr.bf16.mxu0 0
        %1491 = vmatpush1.bf16.msra.mxu0 %v532
        %1492 = vmatprep.subr.bf16.mxu0 0
        %1493 = vmatpush1.bf16.msra.mxu0 %v535
        %1494 = vmatprep.subr.bf16.mxu0 0
        %1495 = vmatpush1.bf16.msra.mxu0 %v538
        %1496 = vmatprep.subr.bf16.mxu0 0
        %1497 = vmatpush1.bf16.msra.mxu0 0
        %1498 = vmatprep.subr.bf16.mxu0 0
        %1499 = vmatpush1.bf16.msra.mxu0 0
        %1500 = vmatprep.subr.bf16.mxu0 0
        %1501 = vmatpush1.bf16.msra.mxu0 0
        %1502 = vmatprep.subr.bf16.mxu0 0
        %1503 = vmatpush1.bf16.msra.mxu0 0
        %1504 = vmatprep.subr.bf16.mxu0 0
        %1505 = vmatpush1.bf16.msra.mxu0 0
        %1506 = vmatprep.subr.bf16.mxu0 0
        %1507 = vmatpush1.bf16.msra.mxu0 0
        %1508 = vmatprep.subr.bf16.mxu0 0
        %1509 = vmatpush1.bf16.msra.mxu0 0
        %1510 = vmatprep.subr.bf16.mxu0 0
        %1511 = vmatpush1.bf16.msra.mxu0 0
        %1512 = vmatprep.mubr.bf16.mxu0 0
        %1513 = vmatmul.mubr.bf16.gmra.mrb[0].mxu0 %v1436
        %v1514 = vpop.f32.mrb[0].mxu0
        %v1515 = vadd.f32 %v431, %v1514
        %v1516 = vpop.f32.mrb[0].mxu0
        %v1517 = vpop.f32.mrb[0].mxu0
        %v1518 = vadd.f32 %v431, %v1517
        %v1519 = vpop.f32.mrb[0].mxu0
        %1520 = vdwg.mxu0
        %v1521 = vadd.f32 %v1428, %v1472
        %v1522 = vadd.f32 %v1431, %v1476
        %v1523 = vxor.u32 %v1521, 2147483648
        %v1524 = vxor.u32 %v1522, 2147483648
        %v1525 = vmul.f32 %v1523, 1.442695
        %v1526 = vpow.pop %v1525
        %v1527 = vmul.f32 %v1524, 1.442695
        %v1528 = vpow.pop %v1527
        %v1529 = vadd.f32 %v1526, 1.0
        %v1530 = vadd.f32 %v1528, 1.0
        %v1531 = vrcp.pop %v1529
        %v1532 = vmul.f32 1.0, %v1531
        %v1533 = vrcp.pop %v1530
        %v1534 = vmul.f32 1.0, %v1533
        %v1535 = vadd.f32 %v1429, %v1474
        %v1536 = vadd.f32 %v1432, %v1478
        %v1537 = vxor.u32 %v1535, 2147483648
        %v1538 = vxor.u32 %v1536, 2147483648
        %v1539 = vmul.f32 %v1537, 1.442695
        %v1540 = vpow.pop %v1539
        %v1541 = vmul.f32 %v1538, 1.442695
        %v1542 = vpow.pop %v1541
        %v1543 = vadd.f32 %v1540, 1.0
        %v1544 = vadd.f32 %v1542, 1.0
        %v1545 = vrcp.pop %v1543
        %v1546 = vmul.f32 1.0, %v1545
        %v1547 = vrcp.pop %v1544
        %v1548 = vmul.f32 1.0, %v1547
        %v1549 = vmul.f32 %v1532, %v1515
        %v1550 = vmul.f32 %v1534, %v1518
        %v1551 = vadd.f32 %v1430, %v1549
        %v1552 = vadd.f32 %v1433, %v1550
        %v1553 = vtanh.pop %v1551
        %v1554 = vtanh.pop %v1552
        %v1555 = vsub.f32 1.0, %v1546
        %v1556 = vsub.f32 1.0, %v1548
        %v1557 = vmul.f32 %v1555, %v1553
        %v1558 = vmul.f32 %v1556, %v1554
        %v1559 = vmul.f32 %v1546, %v1434
        %v1560 = vmul.f32 %v1548, %v1435
        %v1561 = vadd.f32 %v1557, %v1559
        %v1562 = vadd.f32 %v1558, %v1560
        %1563 = vst [vmem:[#allocation2] sm:$0xff] %v1561
        %1564 = vst [vmem:[#allocation2 + $0x8] sm:$0xff] %v1562
        %s1565 = smul.u32 %s1424, 16
        %s1566 = scalar_lea.vmem %s345, %s1565 [#allocation4]
        %1567 = vst [vmem:[%s1566] sm:$0xff] %v1561
        %1568 = vst [vmem:[%s1566 + $0x8] sm:$0xff] %v1562
        %s1569 = smul.u32 %s18, 4294967289
        %s1570 = sadd.s32 %s1569, 7
        %s1571 = smul.u32 %s1570, 6
        %s1572 = smul.addr %s1571, 8
        %s1573 = scalar_lea.vmem %s317, %s1572 [#allocation3]
        %v1574 = vld [vmem:[%s1573] sm:$0xff]
        %v1575 = vld [vmem:[%s1573 + $0x8] sm:$0xff]
        %v1576 = vld [vmem:[%s1573 + $0x10] sm:$0xff]
        %v1577 = vld [vmem:[%s1573 + $0x18] sm:$0xff]
        %v1578 = vld [vmem:[%s1573 + $0x20] sm:$0xff]
        %v1579 = vld [vmem:[%s1573 + $0x28] sm:$0xff]
        %v1580 = vld [vmem:[#allocation2] sm:$0xff]
        %v1581 = vld [vmem:[#allocation2 + $0x8] sm:$0xff]
        %v1582 = vpack.c.bf16 %v1581, %v1580
        %1583 = vmatprep.subr.bf16.mxu0 %v516
        %1584 = vmatpush1.bf16.msra.mxu0 %v515
        %1585 = vmatprep.subr.bf16.mxu0 %v519
        %1586 = vmatpush1.bf16.msra.mxu0 %v518
        %1587 = vmatprep.subr.bf16.mxu0 %v522
        %1588 = vmatpush1.bf16.msra.mxu0 %v521
        %1589 = vmatprep.subr.bf16.mxu0 %v525
        %1590 = vmatpush1.bf16.msra.mxu0 %v524
        %1591 = vmatprep.subr.bf16.mxu0 %v528
        %1592 = vmatpush1.bf16.msra.mxu0 %v527
        %1593 = vmatprep.subr.bf16.mxu0 %v531
        %1594 = vmatpush1.bf16.msra.mxu0 %v530
        %1595 = vmatprep.subr.bf16.mxu0 %v534
        %1596 = vmatpush1.bf16.msra.mxu0 %v533
        %1597 = vmatprep.subr.bf16.mxu0 %v537
        %1598 = vmatpush1.bf16.msra.mxu0 %v536
        %1599 = vmatprep.subr.bf16.mxu0 0
        %1600 = vmatpush1.bf16.msra.mxu0 0
        %1601 = vmatprep.subr.bf16.mxu0 0
        %1602 = vmatpush1.bf16.msra.mxu0 0
        %1603 = vmatprep.subr.bf16.mxu0 0
        %1604 = vmatpush1.bf16.msra.mxu0 0
        %1605 = vmatprep.subr.bf16.mxu0 0
        %1606 = vmatpush1.bf16.msra.mxu0 0
        %1607 = vmatprep.subr.bf16.mxu0 0
        %1608 = vmatpush1.bf16.msra.mxu0 0
        %1609 = vmatprep.subr.bf16.mxu0 0
        %1610 = vmatpush1.bf16.msra.mxu0 0
        %1611 = vmatprep.subr.bf16.mxu0 0
        %1612 = vmatpush1.bf16.msra.mxu0 0
        %1613 = vmatprep.subr.bf16.mxu0 0
        %1614 = vmatpush1.bf16.msra.mxu0 0
        %1615 = vmatprep.mubr.bf16.mxu0 0
        %1616 = vmatmul.mubr.bf16.gmra.mrb[0].mxu0 %v1582
        %v1617 = vpop.f32.mrb[0].mxu0
        %v1618 = vadd.f32 %v423, %v1617
        %v1619 = vpop.f32.mrb[0].mxu0
        %v1620 = vadd.f32 %v427, %v1619
        %v1621 = vpop.f32.mrb[0].mxu0
        %v1622 = vadd.f32 %v423, %v1621
        %v1623 = vpop.f32.mrb[0].mxu0
        %v1624 = vadd.f32 %v427, %v1623
        %1625 = vdwg.mxu0
        %1626 = vmatprep.subr.bf16.mxu0 0
        %1627 = vmatpush1.bf16.msra.mxu0 %v517
        %1628 = vmatprep.subr.bf16.mxu0 0
        %1629 = vmatpush1.bf16.msra.mxu0 %v520
        %1630 = vmatprep.subr.bf16.mxu0 0
        %1631 = vmatpush1.bf16.msra.mxu0 %v523
        %1632 = vmatprep.subr.bf16.mxu0 0
        %1633 = vmatpush1.bf16.msra.mxu0 %v526
        %1634 = vmatprep.subr.bf16.mxu0 0
        %1635 = vmatpush1.bf16.msra.mxu0 %v529
        %1636 = vmatprep.subr.bf16.mxu0 0
        %1637 = vmatpush1.bf16.msra.mxu0 %v532
        %1638 = vmatprep.subr.bf16.mxu0 0
        %1639 = vmatpush1.bf16.msra.mxu0 %v535
        %1640 = vmatprep.subr.bf16.mxu0 0
        %1641 = vmatpush1.bf16.msra.mxu0 %v538
        %1642 = vmatprep.subr.bf16.mxu0 0
        %1643 = vmatpush1.bf16.msra.mxu0 0
        %1644 = vmatprep.subr.bf16.mxu0 0
        %1645 = vmatpush1.bf16.msra.mxu0 0
        %1646 = vmatprep.subr.bf16.mxu0 0
        %1647 = vmatpush1.bf16.msra.mxu0 0
        %1648 = vmatprep.subr.bf16.mxu0 0
        %1649 = vmatpush1.bf16.msra.mxu0 0
        %1650 = vmatprep.subr.bf16.mxu0 0
        %1651 = vmatpush1.bf16.msra.mxu0 0
        %1652 = vmatprep.subr.bf16.mxu0 0
        %1653 = vmatpush1.bf16.msra.mxu0 0
        %1654 = vmatprep.subr.bf16.mxu0 0
        %1655 = vmatpush1.bf16.msra.mxu0 0
        %1656 = vmatprep.subr.bf16.mxu0 0
        %1657 = vmatpush1.bf16.msra.mxu0 0
        %1658 = vmatprep.mubr.bf16.mxu0 0
        %1659 = vmatmul.mubr.bf16.gmra.mrb[0].mxu0 %v1582
        %v1660 = vpop.f32.mrb[0].mxu0
        %v1661 = vadd.f32 %v431, %v1660
        %v1662 = vpop.f32.mrb[0].mxu0
        %v1663 = vpop.f32.mrb[0].mxu0
        %v1664 = vadd.f32 %v431, %v1663
        %v1665 = vpop.f32.mrb[0].mxu0
        %1666 = vdwg.mxu0
        %v1667 = vadd.f32 %v1574, %v1618
        %v1668 = vadd.f32 %v1577, %v1622
        %v1669 = vxor.u32 %v1667, 2147483648
        %v1670 = vxor.u32 %v1668, 2147483648
        %v1671 = vmul.f32 %v1669, 1.442695
        %v1672 = vpow.pop %v1671
        %v1673 = vmul.f32 %v1670, 1.442695
        %v1674 = vpow.pop %v1673
        %v1675 = vadd.f32 %v1672, 1.0
        %v1676 = vadd.f32 %v1674, 1.0
        %v1677 = vrcp.pop %v1675
        %v1678 = vmul.f32 1.0, %v1677
        %v1679 = vrcp.pop %v1676
        %v1680 = vmul.f32 1.0, %v1679
        %v1681 = vadd.f32 %v1575, %v1620
        %v1682 = vadd.f32 %v1578, %v1624
        %v1683 = vxor.u32 %v1681, 2147483648
        %v1684 = vxor.u32 %v1682, 2147483648
        %v1685 = vmul.f32 %v1683, 1.442695
        %v1686 = vpow.pop %v1685
        %v1687 = vmul.f32 %v1684, 1.442695
        %v1688 = vpow.pop %v1687
        %v1689 = vadd.f32 %v1686, 1.0
        %v1690 = vadd.f32 %v1688, 1.0
        %v1691 = vrcp.pop %v1689
        %v1692 = vmul.f32 1.0, %v1691
        %v1693 = vrcp.pop %v1690
        %v1694 = vmul.f32 1.0, %v1693
        %v1695 = vmul.f32 %v1678, %v1661
        %v1696 = vmul.f32 %v1680, %v1664
        %v1697 = vadd.f32 %v1576, %v1695
        %v1698 = vadd.f32 %v1579, %v1696
        %v1699 = vtanh.pop %v1697
        %v1700 = vtanh.pop %v1698
        %v1701 = vsub.f32 1.0, %v1692
        %v1702 = vsub.f32 1.0, %v1694
        %v1703 = vmul.f32 %v1701, %v1699
        %v1704 = vmul.f32 %v1702, %v1700
        %v1705 = vmul.f32 %v1692, %v1580
        %v1706 = vmul.f32 %v1694, %v1581
        %v1707 = vadd.f32 %v1703, %v1705
        %v1708 = vadd.f32 %v1704, %v1706
        %1709 = vst [vmem:[#allocation2] sm:$0xff] %v1707
        %1710 = vst [vmem:[#allocation2 + $0x8] sm:$0xff] %v1708
        %s1711 = smul.u32 %s1570, 16
        %s1712 = scalar_lea.vmem %s345, %s1711 [#allocation4]
        %1713 = vst [vmem:[%s1712] sm:$0xff] %v1707
        %1714 = vst [vmem:[%s1712 + $0x8] sm:$0xff] %v1708
        %s1715 = sand.u32 %s132, 1
        %s1716 = sand.u32 %s132, 1
        %s1717 = smul.addr %s1716, 128
        %s1718 = scalar_lea.vmem [#allocation4], %s1717
        // Predicated region
        $region60: #{forward.13} parent=50 // pred_check
          %p1719 = pneg %p142
        $region61: #{forward.13} parent=50 // pred_check_branch
          %1721 = sbr.rel (%p1719) target = $region63
        $region62: #{forward.13} parent=50 // pred_region
          %s1722 = smul.u32 %s19, 2
          %s1723 = ssub.s32 0, %s1722
          %s1724 = smul.u32 %s18, %s1723
          %s1725 = sadd.s32 %s19, %s1724
          %s1726 = smul.u32 8, %s1725
          %s1727 = smul.addr %s1726, 4
          %s1728 = sadd.s32 %s18, %s1727
          %s1729 = smul.addr %s1728, 8
          %s1730 = scalar_lea.vmem %s3, %s1729
          // Predicated region
          $region64: #{forward.13} parent=62 // pred_check
            _
          $region65: #{forward.13} parent=62 // pred_check_branch
            %1732 = sbr.rel (0) target = $region67
          $region66: #{forward.13} parent=62 // pred_region
            // Predicated region
            $region68: #{forward.13} parent=66 // pred_check
              _
            $region69: #{forward.13} parent=66 // pred_check_branch
              %1734 = sbr.rel (0) target = $region71
            $region70: #{forward.13} parent=66 // pred_region
              // Predicated region
              $region83: #{forward.13} parent=70 // pred_check
                _
              $region84: #{forward.13} parent=70 // pred_check_branch
                %1779 = sbr.rel (0) target = $region86
              $region85: #{forward.13} parent=70 // pred_region
                loop: start=0, step=1, limit=1
                $region87: #{forward.13} parent=85 // loop_pre_header
                  _
                $region88: #{forward.13} parent=85 // loop_header
                  %s1781 = sphi 0, %s1785
                  %p1782 = scmp.ge.s32.totalorder %s1781, 1
                  %s1786 = sphi %s1718, %s1718
                  %s1787 = sphi %s1730, %s1730
                $region89: #{forward.13} parent=85 // loop_header_branch
                  %1784 = sbr.rel (%p1782) target = $region93
                $region90: #{forward.13} parent=85 // loop_body
                  %v1788 = vld [vmem:[%s1786] sm:$0xff]
                  %1789 = vst [vmem:[%s1787] sm:$0xff] %v1788
                  %v1790 = vld [vmem:[%s1786 + $0x8] sm:$0xff]
                  %1791 = vst [vmem:[%s1787 + $0x10] sm:$0xff] %v1790
                  %v1792 = vld [vmem:[%s1786 + $0x10] sm:$0xff]
                  %1793 = vst [vmem:[%s1787 + $0x20] sm:$0xff] %v1792
                  %v1794 = vld [vmem:[%s1786 + $0x18] sm:$0xff]
                  %1795 = vst [vmem:[%s1787 + $0x30] sm:$0xff] %v1794
                  %v1796 = vld [vmem:[%s1786 + $0x20] sm:$0xff]
                  %1797 = vst [vmem:[%s1787 + $0x40] sm:$0xff] %v1796
                  %v1798 = vld [vmem:[%s1786 + $0x28] sm:$0xff]
                  %1799 = vst [vmem:[%s1787 + $0x50] sm:$0xff] %v1798
                  %v1800 = vld [vmem:[%s1786 + $0x30] sm:$0xff]
                  %1801 = vst [vmem:[%s1787 + $0x60] sm:$0xff] %v1800
                  %v1802 = vld [vmem:[%s1786 + $0x38] sm:$0xff]
                  %1803 = vst [vmem:[%s1787 + $0x70] sm:$0xff] %v1802
                  %v1804 = vld [vmem:[%s1786 + $0x40] sm:$0xff]
                  %1805 = vst [vmem:[%s1787 + $0x80] sm:$0xff] %v1804
                  %v1806 = vld [vmem:[%s1786 + $0x48] sm:$0xff]
                  %1807 = vst [vmem:[%s1787 + $0x90] sm:$0xff] %v1806
                  %v1808 = vld [vmem:[%s1786 + $0x50] sm:$0xff]
                  %1809 = vst [vmem:[%s1787 + $0xa0] sm:$0xff] %v1808
                  %v1810 = vld [vmem:[%s1786 + $0x58] sm:$0xff]
                  %1811 = vst [vmem:[%s1787 + $0xb0] sm:$0xff] %v1810
                  %v1812 = vld [vmem:[%s1786 + $0x60] sm:$0xff]
                  %1813 = vst [vmem:[%s1787 + $0xc0] sm:$0xff] %v1812
                  %v1814 = vld [vmem:[%s1786 + $0x68] sm:$0xff]
                  %1815 = vst [vmem:[%s1787 + $0xd0] sm:$0xff] %v1814
                  %v1816 = vld [vmem:[%s1786 + $0x70] sm:$0xff]
                  %1817 = vst [vmem:[%s1787 + $0xe0] sm:$0xff] %v1816
                  %v1818 = vld [vmem:[%s1786 + $0x78] sm:$0xff]
                  %1819 = vst [vmem:[%s1787 + $0xf0] sm:$0xff] %v1818
                $region91: #{forward.13} parent=85 // loop_footer
                  %s1785 = sadd.s32 1, %s1781
                $region92: #{forward.13} parent=85 // loop_footer_branch
                  %1780 = sbr.rel target = $region88
                $region93: #{forward.13} parent=85 // loop_exit
                  _
              $region86: #{forward.13} parent=70 // pred_fallthru
                _
              // Predicated region
              $region94: #{forward.13} parent=70 // pred_check
                _
              $region95: #{forward.13} parent=70 // pred_check_branch
                %1821 = sbr.rel target = $region97
              $region96: #{forward.13} parent=70 // pred_region
                _
              $region97: #{forward.13} parent=70 // pred_fallthru
                _
            $region71: #{forward.13} parent=66 // pred_fallthru
              _
            // Predicated region
            $region72: #{forward.13} parent=66 // pred_check
              _
            $region73: #{forward.13} parent=66 // pred_check_branch
              %1736 = sbr.rel target = $region75
            $region74: #{forward.13} parent=66 // pred_region
              loop: start=0, step=1, limit=1
              $region76: #{forward.13} parent=74 // loop_pre_header
                _
              $region77: #{forward.13} parent=74 // loop_header
                %s1739 = sphi 0, %s1743
                %p1740 = scmp.ge.s32.totalorder %s1739, 1
                %s1744 = sphi %s1718, %s1718
                %s1745 = sphi %s1730, %s1730
              $region78: #{forward.13} parent=74 // loop_header_branch
                %1742 = sbr.rel (%p1740) target = $region82
              $region79: #{forward.13} parent=74 // loop_body
                %v1746 = vld [vmem:[%s1744] sm:$0xff]
                %1747 = vst [vmem:[%s1745] sm:$0xff] %v1746
                %v1748 = vld [vmem:[%s1744 + $0x8] sm:$0xff]
                %1749 = vst [vmem:[%s1745 + $0x10] sm:$0xff] %v1748
                %v1750 = vld [vmem:[%s1744 + $0x10] sm:$0xff]
                %1751 = vst [vmem:[%s1745 + $0x20] sm:$0xff] %v1750
                %v1752 = vld [vmem:[%s1744 + $0x18] sm:$0xff]
                %1753 = vst [vmem:[%s1745 + $0x30] sm:$0xff] %v1752
                %v1754 = vld [vmem:[%s1744 + $0x20] sm:$0xff]
                %1755 = vst [vmem:[%s1745 + $0x40] sm:$0xff] %v1754
                %v1756 = vld [vmem:[%s1744 + $0x28] sm:$0xff]
                %1757 = vst [vmem:[%s1745 + $0x50] sm:$0xff] %v1756
                %v1758 = vld [vmem:[%s1744 + $0x30] sm:$0xff]
                %1759 = vst [vmem:[%s1745 + $0x60] sm:$0xff] %v1758
                %v1760 = vld [vmem:[%s1744 + $0x38] sm:$0xff]
                %1761 = vst [vmem:[%s1745 + $0x70] sm:$0xff] %v1760
                %v1762 = vld [vmem:[%s1744 + $0x40] sm:$0xff]
                %1763 = vst [vmem:[%s1745 + $0x80] sm:$0xff] %v1762
                %v1764 = vld [vmem:[%s1744 + $0x48] sm:$0xff]
                %1765 = vst [vmem:[%s1745 + $0x90] sm:$0xff] %v1764
                %v1766 = vld [vmem:[%s1744 + $0x50] sm:$0xff]
                %1767 = vst [vmem:[%s1745 + $0xa0] sm:$0xff] %v1766
                %v1768 = vld [vmem:[%s1744 + $0x58] sm:$0xff]
                %1769 = vst [vmem:[%s1745 + $0xb0] sm:$0xff] %v1768
                %v1770 = vld [vmem:[%s1744 + $0x60] sm:$0xff]
                %1771 = vst [vmem:[%s1745 + $0xc0] sm:$0xff] %v1770
                %v1772 = vld [vmem:[%s1744 + $0x68] sm:$0xff]
                %1773 = vst [vmem:[%s1745 + $0xd0] sm:$0xff] %v1772
                %v1774 = vld [vmem:[%s1744 + $0x70] sm:$0xff]
                %1775 = vst [vmem:[%s1745 + $0xe0] sm:$0xff] %v1774
                %v1776 = vld [vmem:[%s1744 + $0x78] sm:$0xff]
                %1777 = vst [vmem:[%s1745 + $0xf0] sm:$0xff] %v1776
              $region80: #{forward.13} parent=74 // loop_footer
                %s1743 = sadd.s32 1, %s1739
              $region81: #{forward.13} parent=74 // loop_footer_branch
                %1738 = sbr.rel target = $region77
              $region82: #{forward.13} parent=74 // loop_exit
                _
            $region75: #{forward.13} parent=66 // pred_fallthru
              _
          $region67: #{forward.13} parent=62 // pred_fallthru
            _
          %1822 = vnop
        $region63: #{forward.13} parent=50 // pred_fallthru
          _
      $region51: #{forward.13} parent=5 // pred_fallthru
        _
      %p1823 = scmp.le.s32.totalorder 2, %s9
      // Predicated region
      $region98: #{forward.13} parent=5 // pred_check
        %p1824 = pneg %p1823
      $region99: #{forward.13} parent=5 // pred_check_branch
        %1826 = sbr.rel (%p1824) target = $region101
      $region100: #{forward.13} parent=5 // pred_region
        %s1827 = ssub.s32 %s9, 2
        // Predicated region
        $region102: #{forward.13} parent=100 // pred_check
          %p1828 = pneg %p148
        $region103: #{forward.13} parent=100 // pred_check_branch
          %1830 = sbr.rel (%p1828) target = $region105
        $region104: #{forward.13} parent=100 // pred_region
          %s1831 = sand.u32 %s133, 1
          %s1832 = sand.u32 %s133, 1
          %s1833 = smul.addr %s1832, 128
          %s1834 = scalar_lea.vmem [#allocation4], %s1833
        $region105: #{forward.13} parent=100 // pred_fallthru
          _
      $region101: #{forward.13} parent=5 // pred_fallthru
        _
    $region6: #{forward.13} parent=1 // loop_footer
      %s13 = sadd.s32 1, %s9
    $region7: #{forward.13} parent=1 // loop_footer_branch
      %8 = sbr.rel target = $region3
    $region8: #{forward.13} parent=1 // loop_exit
      _

</llo_original>
